<compile_context>
chip_gen: v7x
topology: tpu7x:2x2x1
jax: 0.10.0
libtpu: 0.0.40
codegen_flags: <defaults>
</compile_context>

<pallas_src>
import functools

import jax
import jax.numpy as jnp
from jax.experimental import pallas as pl
from jax.experimental.pallas import tpu as pltpu


# ----------------------------- fused Pallas kernel -----------------------------

def mf_subnet2_kernel(s2_ref, s3_ref,
                      w_s3_ref, slab_ref,
                      a1_w1_ref, a1_w2_ref, ksp1_ref,
                      up_ref,
                      a2_w1_ref, a2_w2_ref, ksp2_ref,
                      cent_ref, wc_ref,
                      o_ref, *, B, S2, S3):
    f32 = jnp.float32
    K = cent_ref.shape[0]

    # packed per-channel vectors (one (8,128) slab -> one DMA)
    b_s3 = slab_ref[0:1, :]          # (1, 128) conv1x1_s3 bias
    bn_scale = slab_ref[1:2, :]      # (1, 128) folded BN scale
    bn_shift = slab_ref[2:3, :]      # (1, 128) folded BN shift
    vlad_bc = slab_ref[3:4, 0:K]     # (1, K)   NetVLAD conv bias

    def bn_relu(x):
        return jnp.maximum(x * bn_scale + bn_shift, 0.0)

    def cbam(x_flat, S, w1, w2, ksp):
        """Canonical CBAM on B samples stored as (B*S, C) channels-last rows."""
        xs = [x_flat[b * S:(b + 1) * S, :] for b in range(B)]
        # channel attention: shared MLP applied once to the stacked [avg; max] pools of all samples
        pooled_c = jnp.concatenate(
            [jnp.mean(xb, axis=0, keepdims=True) for xb in xs]
            + [jnp.max(xb, axis=0, keepdims=True) for xb in xs], axis=0)            # (2B, C)
        h = jnp.maximum(jnp.dot(pooled_c, w1, preferred_element_type=f32), 0.0)
        mm = jnp.dot(h, w2, preferred_element_type=f32)                             # (2B, C)
        ca = jax.nn.sigmoid(mm[:B, :] + mm[B:, :])                                  # (B, C)
        xcs = [xs[b] * ca[b:b + 1, :] for b in range(B)]                            # (S, C) each
        # spatial attention: 7x7 conv folded into ONE (S, 2S) @ (2S, B) matmul for all B samples
        pm_t = jnp.concatenate([jnp.mean(xc, axis=1, keepdims=True) for xc in xcs], axis=1)  # (S,B)
        px_t = jnp.concatenate([jnp.max(xc, axis=1, keepdims=True) for xc in xcs], axis=1)   # (S,B)
        pooled_t = jnp.concatenate([pm_t, px_t], axis=0)                            # (2S, B)
        gate_t = jax.nn.sigmoid(jnp.dot(ksp, pooled_t, preferred_element_type=f32))  # (S, B)
        return jnp.concatenate([xcs[b] * gate_t[:, b:b + 1] for b in range(B)], axis=0)

    # --- s2 branch: BN + ReLU ---
    s2p = bn_relu(s2_ref[...])                                                      # (B*S2, 128)

    # --- s3 branch: 1x1 conv (bf16 MXU operands, f32 accum) + BN + ReLU + CBAM(128) ---
    y3 = jnp.dot(s3_ref[...], w_s3_ref[...], preferred_element_type=f32) + b_s3     # (B*S3, 128)
    s3p = cbam(bn_relu(y3), S3, a1_w1_ref[...], a1_w2_ref[...], ksp1_ref[...])

    # --- nearest-2x upsample (precomputed 0/1 matmul, per sample) + BN + ReLU ---
    # TODO(synk): at production feature-map sizes replace the dense up_mat/ksp2 matrices (O(S^2)
    # VMEM) with a sublane-repeat upsample and a roll-based 7x7 stencil.
    up = up_ref[...]
    s3u = jnp.concatenate(
        [jnp.dot(up, s3p[b * S3:(b + 1) * S3, :], preferred_element_type=f32)
         for b in range(B)], axis=0)                                                # (B*S2, 128)
    s3u = bn_relu(s3u)

    # --- channel concat + CBAM(256) ---
    fused = jnp.concatenate([s2p, s3u], axis=1)                                     # (B*S2, 256)
    fused = cbam(fused, S2, a2_w1_ref[...], a2_w2_ref[...], ksp2_ref[...])
    C = fused.shape[1]

    # --- NetVLAD ---
    # descriptor-wise L2 norm over channels (F.normalize, eps=1e-12 -> eps^2 on sum of squares)
    ssq = jnp.sum(fused * fused, axis=1, keepdims=True)
    xn = fused * jax.lax.rsqrt(jnp.maximum(ssq, 1e-24))                             # (B*S2, C)
    # soft assignment (1x1 conv) + softmax over clusters (f32: alpha=100 logits)
    logits = jnp.dot(xn, wc_ref[...], preferred_element_type=f32) + vlad_bc         # (B*S2, K)
    logits = logits - jnp.max(logits, axis=1, keepdims=True)
    e = jnp.exp(logits)
    a = e * pl.reciprocal(jnp.sum(e, axis=1, keepdims=True), approx=True)           # (B*S2, K)

    # asum[k] = sum_s a[s,k]: sublane reduction per sample, one tiny transpose for all samples
    asum_t = jnp.transpose(jnp.concatenate(
        [jnp.sum(a[b * S2:(b + 1) * S2, :], axis=0, keepdims=True)
         for b in range(B)], axis=0))                                               # (K, B)
    cent = cent_ref[...]
    dn = (((0,), (0,)), ((), ()))
    for b in range(B):
        acc = jax.lax.dot_general(a[b * S2:(b + 1) * S2, :],
                                  xn[b * S2:(b + 1) * S2, :],
                                  dn, preferred_element_type=f32)                   # (K, C)
        v = acc - cent * asum_t[:, b:b + 1]
        # intra-normalization over C, then global L2 normalization over (K*C)
        v = v * jax.lax.rsqrt(jnp.maximum(jnp.sum(v * v, axis=1, keepdims=True), 1e-24))
        v = v * jax.lax.rsqrt(jnp.maximum(jnp.sum(v * v, keepdims=True), 1e-24))
        o_ref[b] = v


# ----------------------------- wrapper -----------------------------

def _full_spec(arr):
    return pl.BlockSpec(arr.shape, lambda n, _nd=arr.ndim: (0,) * _nd)


def nchw_to_nsc(x):
    N, Cc, H, W = x.shape
    return jnp.transpose(x, (0, 2, 3, 1)).reshape(N, H * W, Cc)


def mf_subnet2_forward(s2_nchw, s3_nchw, p, batch_block=4):
    N, C2, H2, W2 = s2_nchw.shape
    _, C3, H3, W3 = s3_nchw.shape
    S2, S3 = H2 * W2, H3 * W3
    K, C = p['vlad_centroids'].shape
    B = batch_block
    assert N % B == 0, "batch must be divisible by batch_block"

    # channels-last, spatial flattened onto the sublane axis; batch block folded into the rows.
    s2 = nchw_to_nsc(s2_nchw).reshape(N * S2, C2)                          # f32
    s3 = nchw_to_nsc(s3_nchw).reshape(N * S3, C3).astype(jnp.bfloat16)     # bf16 activations

    weights = [p['w_s3'], p['bias_slab'],
               p['a1_w1'], p['a1_w2'], p['ksp1'],
               p['up_mat'],
               p['a2_w1'], p['a2_w2'], p['ksp2'],
               p['vlad_centroids'], p['vlad_wc']]

    kernel = functools.partial(mf_subnet2_kernel, B=B, S2=S2, S3=S3)
    vlad = pl.pallas_call(
        kernel,
        out_shape=jax.ShapeDtypeStruct((N, K, C), jnp.float32),
        grid=(N // B,),
        in_specs=[pl.BlockSpec((B * S2, C2), lambda n: (n, 0)),
                  pl.BlockSpec((B * S3, C3), lambda n: (n, 0))]
                 + [_full_spec(w) for w in weights],
        out_specs=pl.BlockSpec((B, K, C), lambda n: (n, 0, 0)),
        compiler_params=pltpu.CompilerParams(dimension_semantics=("parallel",)),
    )(s2, s3, *weights)
    return vlad.reshape(N, K * C)


# ----------------------------- glue / parameter prep -----------------------------

def build_spatial_matrix(wsp, H, W):
    """Fold the CBAM 7x7 (2->1 ch, pad 3, no bias) conv into a dense (S, 2S) matrix so that
    gate = ksp @ [mean_maps; max_maps] inside the kernel."""
    S = H * W
    yy, xx = jnp.meshgrid(jnp.arange(H), jnp.arange(W), indexing='ij')
    y = yy.reshape(S)
    x = xx.reshape(S)
    dy = y[None, :] - y[:, None] + 3          # [s_out, s_in]
    dx = x[None, :] - x[:, None] + 3
    valid = (dy >= 0) & (dy <= 6) & (dx >= 0) & (dx <= 6)
    dyc = jnp.clip(dy, 0, 6)
    dxc = jnp.clip(dx, 0, 6)
    w = wsp[..., 0]                           # (7, 7, 2)
    m0 = jnp.where(valid, w[dyc, dxc, 0], 0.0)   # mean-channel taps
    m1 = jnp.where(valid, w[dyc, dxc, 1], 0.0)   # max-channel taps
    return jnp.concatenate([m0, m1], axis=1).astype(jnp.float32)          # (S, 2S)


def build_upsample_matrix(H3, W3):
    """0/1 matrix U (S2, S3) with U @ x == nearest-neighbor 2x upsample of the flattened map."""
    H2, W2 = 2 * H3, 2 * W3
    Yo, Xo = jnp.meshgrid(jnp.arange(H2), jnp.arange(W2), indexing='ij')
    src = ((Yo // 2) * W3 + (Xo // 2)).reshape(H2 * W2)
    return (src[:, None] == jnp.arange(H3 * W3)[None, :]).astype(jnp.float32)


def init_params(keys, H2, W2, H3, W3):
    f32 = jnp.float32
    p = {}
    # conv1x1_s3: 512 -> 128 (stored (Cin, Cout), bf16 for the MXU / halved HBM bytes)
    p['w_s3'] = (0.02 * jax.random.normal(keys[0], (512, 128), f32)).astype(jnp.bfloat16)
    b_s3 = 0.02 * jax.random.normal(keys[1], (128,), f32)
    # shared BatchNorm2d(128), inference mode (folded scale/shift)
    gamma = 1.0 + 0.1 * jax.random.normal(keys[2], (128,), f32)
    beta = 0.1 * jax.random.normal(keys[3], (128,), f32)
    mean = 0.1 * jax.random.normal(keys[4], (128,), f32)
    var = 0.5 + jax.random.uniform(keys[5], (128,), dtype=f32)
    scale = gamma / jnp.sqrt(var + 1e-5)
    shift = beta - mean * scale
    # CBAM(128), reduction 16
    p['a1_w1'] = 0.1 * jax.random.normal(keys[6], (128, 8), f32)
    p['a1_w2'] = 0.1 * jax.random.normal(keys[7], (8, 128), f32)
    a1_wsp = 0.1 * jax.random.normal(keys[8], (7, 7, 2, 1), f32)
    p['ksp1'] = build_spatial_matrix(a1_wsp, H3, W3)                      # (S3, 2*S3)
    # CBAM(256), reduction 16
    p['a2_w1'] = 0.1 * jax.random.normal(keys[9], (256, 16), f32)
    p['a2_w2'] = 0.1 * jax.random.normal(keys[10], (16, 256), f32)
    a2_wsp = 0.1 * jax.random.normal(keys[11], (7, 7, 2, 1), f32)
    p['ksp2'] = build_spatial_matrix(a2_wsp, H2, W2)                      # (S2, 2*S2)
    # nearest-2x upsample matrix
    p['up_mat'] = build_upsample_matrix(H3, W3)                           # (S2, S3)
    # NetVLAD(dim=256, num_clusters=64, alpha=100) -- init exactly as in the module
    alpha = 100.0
    cent = jax.random.uniform(keys[12], (64, 256), dtype=f32)             # torch.rand
    p['vlad_centroids'] = cent
    p['vlad_wc'] = (2.0 * alpha * cent).T                                 # (256, 64)
    vlad_bc = -alpha * jnp.sqrt(jnp.sum(cent * cent, axis=1))             # (64,)
    # pack the tiny per-channel vectors into one (8,128) slab (one DMA instead of four)
    slab = jnp.zeros((8, 128), f32)
    slab = slab.at[0, :].set(b_s3)
    slab = slab.at[1, :].set(scale)
    slab = slab.at[2, :].set(shift)
    slab = slab.at[3, :64].set(vlad_bc)
    p['bias_slab'] = slab
    return p


if __name__ == "__main__":
    N = 16                            # processed 4 per grid step -> grid of 4 (>=2 steps/TC on v7x)
    C2, H2, W2 = 128, 8, 8            # s2 must have 128 channels (BatchNorm2d(128))
    C3, H3, W3 = 512, 4, 4            # s3: channel_sizes[2]=512, half the spatial size of s2

    key = jax.random.PRNGKey(0)
    ks = jax.random.split(key, 20)
    s2 = jax.random.normal(ks[0], (N, C2, H2, W2), jnp.float32)
    s3 = jax.random.normal(ks[1], (N, C3, H3, W3), jnp.float32)
    params = init_params(ks[2:], H2, W2, H3, W3)

    out = mf_subnet2_forward(s2, s3, params, batch_block=4)
    out = jax.block_until_ready(out)
    assert out.shape == (N, 64 * 256), out.shape
    assert bool(jnp.all(jnp.isfinite(out)))
    print("KERNEL_OK")
</pallas_src>

<mosaic_0001>
module attributes {stable_mosaic.version = 11 : i64} {
  func.func @mf_subnet2_kernel(%arg0: i32, %arg1: memref<256x128xf32, #tpu.memory_space<vmem>>, %arg2: memref<64x512xbf16, #tpu.memory_space<vmem>>, %arg3: memref<512x128xbf16, #tpu.memory_space<vmem>>, %arg4: memref<8x128xf32, #tpu.memory_space<vmem>>, %arg5: memref<128x8xf32, #tpu.memory_space<vmem>>, %arg6: memref<8x128xf32, #tpu.memory_space<vmem>>, %arg7: memref<16x32xf32, #tpu.memory_space<vmem>>, %arg8: memref<64x16xf32, #tpu.memory_space<vmem>>, %arg9: memref<256x16xf32, #tpu.memory_space<vmem>>, %arg10: memref<16x256xf32, #tpu.memory_space<vmem>>, %arg11: memref<64x128xf32, #tpu.memory_space<vmem>>, %arg12: memref<64x256xf32, #tpu.memory_space<vmem>>, %arg13: memref<256x64xf32, #tpu.memory_space<vmem>>, %arg14: memref<4x64x256xf32, #tpu.memory_space<vmem>>) attributes {dimension_semantics = [#tpu.dimension_semantics<parallel>], iteration_bounds = array<i64: 4>, scalar_prefetch = 0 : i64, scratch_operands = 0 : i64, tpu.core_type = #tpu.core_type<tc>, window_params = [{transform_indices = @transform_0, window_bounds = array<i64: 256, 128>}, {transform_indices = @transform_1, window_bounds = array<i64: 64, 512>}, {pipeline_mode = #tpu.pipeline_mode<synchronous>, transform_indices = @transform_2, window_bounds = array<i64: 512, 128>}, {pipeline_mode = #tpu.pipeline_mode<synchronous>, transform_indices = @transform_3, window_bounds = array<i64: 8, 128>}, {pipeline_mode = #tpu.pipeline_mode<synchronous>, transform_indices = @transform_4, window_bounds = array<i64: 128, 8>}, {pipeline_mode = #tpu.pipeline_mode<synchronous>, transform_indices = @transform_5, window_bounds = array<i64: 8, 128>}, {pipeline_mode = #tpu.pipeline_mode<synchronous>, transform_indices = @transform_6, window_bounds = array<i64: 16, 32>}, {pipeline_mode = #tpu.pipeline_mode<synchronous>, transform_indices = @transform_7, window_bounds = array<i64: 64, 16>}, {pipeline_mode = #tpu.pipeline_mode<synchronous>, transform_indices = @transform_8, window_bounds = array<i64: 256, 16>}, {pipeline_mode = #tpu.pipeline_mode<synchronous>, transform_indices = @transform_9, window_bounds = array<i64: 16, 256>}, {pipeline_mode = #tpu.pipeline_mode<synchronous>, transform_indices = @transform_10, window_bounds = array<i64: 64, 128>}, {pipeline_mode = #tpu.pipeline_mode<synchronous>, transform_indices = @transform_11, window_bounds = array<i64: 64, 256>}, {pipeline_mode = #tpu.pipeline_mode<synchronous>, transform_indices = @transform_12, window_bounds = array<i64: 256, 64>}, {transform_indices = @transform_13, window_bounds = array<i64: 4, 64, 256>}]} {
    %c0 = arith.constant 0 : index
    %c0_0 = arith.constant 0 : index
    %0 = vector.load %arg4[%c0, %c0_0] : memref<8x128xf32, #tpu.memory_space<vmem>>, vector<1x128xf32>
    %c1 = arith.constant 1 : index
    %c0_1 = arith.constant 0 : index
    %1 = vector.load %arg4[%c1, %c0_1] : memref<8x128xf32, #tpu.memory_space<vmem>>, vector<1x128xf32>
    %c2 = arith.constant 2 : index
    %c0_2 = arith.constant 0 : index
    %2 = vector.load %arg4[%c2, %c0_2] : memref<8x128xf32, #tpu.memory_space<vmem>>, vector<1x128xf32>
    %c3 = arith.constant 3 : index
    %c0_3 = arith.constant 0 : index
    %3 = vector.load %arg4[%c3, %c0_3] : memref<8x128xf32, #tpu.memory_space<vmem>>, vector<1x64xf32>
    %c0_4 = arith.constant 0 : index
    %c0_5 = arith.constant 0 : index
    %4 = vector.load %arg1[%c0_4, %c0_5] : memref<256x128xf32, #tpu.memory_space<vmem>>, vector<256x128xf32>
    %5 = vector.broadcast %1 : vector<1x128xf32> to vector<256x128xf32>
    %6 = arith.mulf %4, %5 : vector<256x128xf32>
    %7 = vector.broadcast %2 : vector<1x128xf32> to vector<256x128xf32>
    %8 = arith.addf %6, %7 : vector<256x128xf32>
    %cst = arith.constant 0.000000e+00 : f32
    %9 = vector.broadcast %cst : f32 to vector<256x128xf32>
    %10 = arith.maximumf %8, %9 : vector<256x128xf32>
    %c0_6 = arith.constant 0 : index
    %c0_7 = arith.constant 0 : index
    %11 = vector.load %arg2[%c0_6, %c0_7] : memref<64x512xbf16, #tpu.memory_space<vmem>>, vector<64x512xbf16>
    %c0_8 = arith.constant 0 : index
    %c0_9 = arith.constant 0 : index
    %12 = vector.load %arg3[%c0_8, %c0_9] : memref<512x128xbf16, #tpu.memory_space<vmem>>, vector<512x128xbf16>
    %cst_10 = arith.constant dense<0.000000e+00> : vector<64x128xf32>
    %13 = tpu.matmul %11, %12, %cst_10 {dimension_numbers = #tpu.dot_dimension_numbers<[1], [0], [0], [1], [0, 0, 1, 1], [], []>} : vector<64x512xbf16>, vector<512x128xbf16>, vector<64x128xf32> -> vector<64x128xf32>
    %14 = vector.broadcast %0 : vector<1x128xf32> to vector<64x128xf32>
    %15 = arith.addf %13, %14 : vector<64x128xf32>
    %16 = vector.broadcast %1 : vector<1x128xf32> to vector<64x128xf32>
    %17 = arith.mulf %15, %16 : vector<64x128xf32>
    %18 = vector.broadcast %2 : vector<1x128xf32> to vector<64x128xf32>
    %19 = arith.addf %17, %18 : vector<64x128xf32>
    %cst_11 = arith.constant 0.000000e+00 : f32
    %20 = vector.broadcast %cst_11 : f32 to vector<64x128xf32>
    %21 = arith.maximumf %19, %20 : vector<64x128xf32>
    %c0_12 = arith.constant 0 : index
    %c0_13 = arith.constant 0 : index
    %22 = vector.load %arg5[%c0_12, %c0_13] : memref<128x8xf32, #tpu.memory_space<vmem>>, vector<128x8xf32>
    %c0_14 = arith.constant 0 : index
    %c0_15 = arith.constant 0 : index
    %23 = vector.load %arg6[%c0_14, %c0_15] : memref<8x128xf32, #tpu.memory_space<vmem>>, vector<8x128xf32>
    %c0_16 = arith.constant 0 : index
    %c0_17 = arith.constant 0 : index
    %24 = vector.load %arg7[%c0_16, %c0_17] : memref<16x32xf32, #tpu.memory_space<vmem>>, vector<16x32xf32>
    %25 = vector.extract_strided_slice %21 {offsets = [0, 0], sizes = [16, 128], strides = [1, 1]} : vector<64x128xf32> to vector<16x128xf32>
    %26 = vector.extract_strided_slice %21 {offsets = [16, 0], sizes = [16, 128], strides = [1, 1]} : vector<64x128xf32> to vector<16x128xf32>
    %27 = vector.extract_strided_slice %21 {offsets = [32, 0], sizes = [16, 128], strides = [1, 1]} : vector<64x128xf32> to vector<16x128xf32>
    %28 = vector.extract_strided_slice %21 {offsets = [48, 0], sizes = [16, 128], strides = [1, 1]} : vector<64x128xf32> to vector<16x128xf32>
    %cst_18 = arith.constant dense<0.000000e+00> : vector<128xf32>
    %29 = vector.multi_reduction <add>, %25, %cst_18 [0] : vector<16x128xf32> to vector<128xf32>
    %30 = vector.shape_cast %29 : vector<128xf32> to vector<1x128xf32>
    %cst_19 = arith.constant 1.600000e+01 : f32
    %31 = vector.broadcast %cst_19 : f32 to vector<1x128xf32>
    %32 = arith.divf %30, %31 : vector<1x128xf32>
    %cst_20 = arith.constant dense<0.000000e+00> : vector<128xf32>
    %33 = vector.multi_reduction <add>, %26, %cst_20 [0] : vector<16x128xf32> to vector<128xf32>
    %34 = vector.shape_cast %33 : vector<128xf32> to vector<1x128xf32>
    %cst_21 = arith.constant 1.600000e+01 : f32
    %35 = vector.broadcast %cst_21 : f32 to vector<1x128xf32>
    %36 = arith.divf %34, %35 : vector<1x128xf32>
    %cst_22 = arith.constant dense<0.000000e+00> : vector<128xf32>
    %37 = vector.multi_reduction <add>, %27, %cst_22 [0] : vector<16x128xf32> to vector<128xf32>
    %38 = vector.shape_cast %37 : vector<128xf32> to vector<1x128xf32>
    %cst_23 = arith.constant 1.600000e+01 : f32
    %39 = vector.broadcast %cst_23 : f32 to vector<1x128xf32>
    %40 = arith.divf %38, %39 : vector<1x128xf32>
    %cst_24 = arith.constant dense<0.000000e+00> : vector<128xf32>
    %41 = vector.multi_reduction <add>, %28, %cst_24 [0] : vector<16x128xf32> to vector<128xf32>
    %42 = vector.shape_cast %41 : vector<128xf32> to vector<1x128xf32>
    %cst_25 = arith.constant 1.600000e+01 : f32
    %43 = vector.broadcast %cst_25 : f32 to vector<1x128xf32>
    %44 = arith.divf %42, %43 : vector<1x128xf32>
    %cst_26 = arith.constant dense<0xFF800000> : vector<128xf32>
    %45 = vector.multi_reduction <maximumf>, %25, %cst_26 [0] : vector<16x128xf32> to vector<128xf32>
    %46 = vector.shape_cast %45 : vector<128xf32> to vector<1x128xf32>
    %cst_27 = arith.constant dense<0xFF800000> : vector<128xf32>
    %47 = vector.multi_reduction <maximumf>, %26, %cst_27 [0] : vector<16x128xf32> to vector<128xf32>
    %48 = vector.shape_cast %47 : vector<128xf32> to vector<1x128xf32>
    %cst_28 = arith.constant dense<0xFF800000> : vector<128xf32>
    %49 = vector.multi_reduction <maximumf>, %27, %cst_28 [0] : vector<16x128xf32> to vector<128xf32>
    %50 = vector.shape_cast %49 : vector<128xf32> to vector<1x128xf32>
    %cst_29 = arith.constant dense<0xFF800000> : vector<128xf32>
    %51 = vector.multi_reduction <maximumf>, %28, %cst_29 [0] : vector<16x128xf32> to vector<128xf32>
    %52 = vector.shape_cast %51 : vector<128xf32> to vector<1x128xf32>
    %53 = tpu.concatenate %32, %36, %40, %44, %46, %48, %50, %52 in 0 : vector<1x128xf32>, vector<1x128xf32>, vector<1x128xf32>, vector<1x128xf32>, vector<1x128xf32>, vector<1x128xf32>, vector<1x128xf32>, vector<1x128xf32> -> vector<8x128xf32>
    %cst_30 = arith.constant dense<0.000000e+00> : vector<8x8xf32>
    %54 = tpu.matmul %53, %22, %cst_30 {dimension_numbers = #tpu.dot_dimension_numbers<[1], [0], [0], [1], [0, 0, 1, 1], [], []>} : vector<8x128xf32>, vector<128x8xf32>, vector<8x8xf32> -> vector<8x8xf32>
    %cst_31 = arith.constant 0.000000e+00 : f32
    %55 = vector.broadcast %cst_31 : f32 to vector<8x8xf32>
    %56 = arith.maximumf %54, %55 : vector<8x8xf32>
    %cst_32 = arith.constant dense<0.000000e+00> : vector<8x128xf32>
    %57 = tpu.matmul %56, %23, %cst_32 {dimension_numbers = #tpu.dot_dimension_numbers<[1], [0], [0], [1], [0, 0, 1, 1], [], []>} : vector<8x8xf32>, vector<8x128xf32>, vector<8x128xf32> -> vector<8x128xf32>
    %58 = vector.extract_strided_slice %57 {offsets = [0, 0], sizes = [4, 128], strides = [1, 1]} : vector<8x128xf32> to vector<4x128xf32>
    %59 = vector.extract_strided_slice %57 {offsets = [4, 0], sizes = [4, 128], strides = [1, 1]} : vector<8x128xf32> to vector<4x128xf32>
    %60 = arith.addf %58, %59 : vector<4x128xf32>
    %61 = arith.negf %60 : vector<4x128xf32>
    %62 = math.exp %61 : vector<4x128xf32>
    %cst_33 = arith.constant 1.000000e+00 : f32
    %63 = vector.broadcast %cst_33 : f32 to vector<4x128xf32>
    %64 = arith.addf %63, %62 : vector<4x128xf32>
    %65 = arith.divf %63, %64 : vector<4x128xf32>
    %66 = vector.extract_strided_slice %65 {offsets = [0, 0], sizes = [1, 128], strides = [1, 1]} : vector<4x128xf32> to vector<1x128xf32>
    %67 = vector.broadcast %66 : vector<1x128xf32> to vector<16x128xf32>
    %68 = arith.mulf %25, %67 : vector<16x128xf32>
    %69 = vector.extract_strided_slice %65 {offsets = [1, 0], sizes = [1, 128], strides = [1, 1]} : vector<4x128xf32> to vector<1x128xf32>
    %70 = vector.broadcast %69 : vector<1x128xf32> to vector<16x128xf32>
    %71 = arith.mulf %26, %70 : vector<16x128xf32>
    %72 = vector.extract_strided_slice %65 {offsets = [2, 0], sizes = [1, 128], strides = [1, 1]} : vector<4x128xf32> to vector<1x128xf32>
    %73 = vector.broadcast %72 : vector<1x128xf32> to vector<16x128xf32>
    %74 = arith.mulf %27, %73 : vector<16x128xf32>
    %75 = vector.extract_strided_slice %65 {offsets = [3, 0], sizes = [1, 128], strides = [1, 1]} : vector<4x128xf32> to vector<1x128xf32>
    %76 = vector.broadcast %75 : vector<1x128xf32> to vector<16x128xf32>
    %77 = arith.mulf %28, %76 : vector<16x128xf32>
    %cst_34 = arith.constant dense<0.000000e+00> : vector<16xf32>
    %78 = vector.multi_reduction <add>, %68, %cst_34 [1] : vector<16x128xf32> to vector<16xf32>
    %79 = vector.shape_cast %78 : vector<16xf32> to vector<16x1xf32>
    %cst_35 = arith.constant 1.280000e+02 : f32
    %80 = vector.broadcast %cst_35 : f32 to vector<16x1xf32>
    %81 = arith.divf %79, %80 : vector<16x1xf32>
    %cst_36 = arith.constant dense<0.000000e+00> : vector<16xf32>
    %82 = vector.multi_reduction <add>, %71, %cst_36 [1] : vector<16x128xf32> to vector<16xf32>
    %83 = vector.shape_cast %82 : vector<16xf32> to vector<16x1xf32>
    %cst_37 = arith.constant 1.280000e+02 : f32
    %84 = vector.broadcast %cst_37 : f32 to vector<16x1xf32>
    %85 = arith.divf %83, %84 : vector<16x1xf32>
    %cst_38 = arith.constant dense<0.000000e+00> : vector<16xf32>
    %86 = vector.multi_reduction <add>, %74, %cst_38 [1] : vector<16x128xf32> to vector<16xf32>
    %87 = vector.shape_cast %86 : vector<16xf32> to vector<16x1xf32>
    %cst_39 = arith.constant 1.280000e+02 : f32
    %88 = vector.broadcast %cst_39 : f32 to vector<16x1xf32>
    %89 = arith.divf %87, %88 : vector<16x1xf32>
    %cst_40 = arith.constant dense<0.000000e+00> : vector<16xf32>
    %90 = vector.multi_reduction <add>, %77, %cst_40 [1] : vector<16x128xf32> to vector<16xf32>
    %91 = vector.shape_cast %90 : vector<16xf32> to vector<16x1xf32>
    %cst_41 = arith.constant 1.280000e+02 : f32
    %92 = vector.broadcast %cst_41 : f32 to vector<16x1xf32>
    %93 = arith.divf %91, %92 : vector<16x1xf32>
    %94 = tpu.concatenate %81, %85, %89, %93 in 1 : vector<16x1xf32>, vector<16x1xf32>, vector<16x1xf32>, vector<16x1xf32> -> vector<16x4xf32>
    %cst_42 = arith.constant dense<0xFF800000> : vector<16xf32>
    %95 = vector.multi_reduction <maximumf>, %68, %cst_42 [1] : vector<16x128xf32> to vector<16xf32>
    %96 = vector.shape_cast %95 : vector<16xf32> to vector<16x1xf32>
    %cst_43 = arith.constant dense<0xFF800000> : vector<16xf32>
    %97 = vector.multi_reduction <maximumf>, %71, %cst_43 [1] : vector<16x128xf32> to vector<16xf32>
    %98 = vector.shape_cast %97 : vector<16xf32> to vector<16x1xf32>
    %cst_44 = arith.constant dense<0xFF800000> : vector<16xf32>
    %99 = vector.multi_reduction <maximumf>, %74, %cst_44 [1] : vector<16x128xf32> to vector<16xf32>
    %100 = vector.shape_cast %99 : vector<16xf32> to vector<16x1xf32>
    %cst_45 = arith.constant dense<0xFF800000> : vector<16xf32>
    %101 = vector.multi_reduction <maximumf>, %77, %cst_45 [1] : vector<16x128xf32> to vector<16xf32>
    %102 = vector.shape_cast %101 : vector<16xf32> to vector<16x1xf32>
    %103 = tpu.concatenate %96, %98, %100, %102 in 1 : vector<16x1xf32>, vector<16x1xf32>, vector<16x1xf32>, vector<16x1xf32> -> vector<16x4xf32>
    %104 = tpu.concatenate %94, %103 in 0 : vector<16x4xf32>, vector<16x4xf32> -> vector<32x4xf32>
    %cst_46 = arith.constant dense<0.000000e+00> : vector<16x4xf32>
    %105 = tpu.matmul %24, %104, %cst_46 {dimension_numbers = #tpu.dot_dimension_numbers<[1], [0], [0], [1], [0, 0, 1, 1], [], []>} : vector<16x32xf32>, vector<32x4xf32>, vector<16x4xf32> -> vector<16x4xf32>
    %106 = arith.negf %105 : vector<16x4xf32>
    %107 = math.exp %106 : vector<16x4xf32>
    %cst_47 = arith.constant 1.000000e+00 : f32
    %108 = vector.broadcast %cst_47 : f32 to vector<16x4xf32>
    %109 = arith.addf %108, %107 : vector<16x4xf32>
    %110 = arith.divf %108, %109 : vector<16x4xf32>
    %111 = vector.extract_strided_slice %110 {offsets = [0, 0], sizes = [16, 1], strides = [1, 1]} : vector<16x4xf32> to vector<16x1xf32>
    %112 = vector.broadcast %111 : vector<16x1xf32> to vector<16x128xf32>
    %113 = arith.mulf %68, %112 : vector<16x128xf32>
    %114 = vector.extract_strided_slice %110 {offsets = [0, 1], sizes = [16, 1], strides = [1, 1]} : vector<16x4xf32> to vector<16x1xf32>
    %115 = vector.broadcast %114 : vector<16x1xf32> to vector<16x128xf32>
    %116 = arith.mulf %71, %115 : vector<16x128xf32>
    %117 = vector.extract_strided_slice %110 {offsets = [0, 2], sizes = [16, 1], strides = [1, 1]} : vector<16x4xf32> to vector<16x1xf32>
    %118 = vector.broadcast %117 : vector<16x1xf32> to vector<16x128xf32>
    %119 = arith.mulf %74, %118 : vector<16x128xf32>
    %120 = vector.extract_strided_slice %110 {offsets = [0, 3], sizes = [16, 1], strides = [1, 1]} : vector<16x4xf32> to vector<16x1xf32>
    %121 = vector.broadcast %120 : vector<16x1xf32> to vector<16x128xf32>
    %122 = arith.mulf %77, %121 : vector<16x128xf32>
    %123 = tpu.concatenate %113, %116, %119, %122 in 0 : vector<16x128xf32>, vector<16x128xf32>, vector<16x128xf32>, vector<16x128xf32> -> vector<64x128xf32>
    %c0_48 = arith.constant 0 : index
    %c0_49 = arith.constant 0 : index
    %124 = vector.load %arg8[%c0_48, %c0_49] : memref<64x16xf32, #tpu.memory_space<vmem>>, vector<64x16xf32>
    %125 = vector.extract_strided_slice %123 {offsets = [0, 0], sizes = [16, 128], strides = [1, 1]} : vector<64x128xf32> to vector<16x128xf32>
    %cst_50 = arith.constant dense<0.000000e+00> : vector<64x128xf32>
    %126 = tpu.matmul %124, %125, %cst_50 {dimension_numbers = #tpu.dot_dimension_numbers<[1], [0], [0], [1], [0, 0, 1, 1], [], []>} : vector<64x16xf32>, vector<16x128xf32>, vector<64x128xf32> -> vector<64x128xf32>
    %127 = vector.extract_strided_slice %123 {offsets = [16, 0], sizes = [16, 128], strides = [1, 1]} : vector<64x128xf32> to vector<16x128xf32>
    %cst_51 = arith.constant dense<0.000000e+00> : vector<64x128xf32>
    %128 = tpu.matmul %124, %127, %cst_51 {dimension_numbers = #tpu.dot_dimension_numbers<[1], [0], [0], [1], [0, 0, 1, 1], [], []>} : vector<64x16xf32>, vector<16x128xf32>, vector<64x128xf32> -> vector<64x128xf32>
    %129 = vector.extract_strided_slice %123 {offsets = [32, 0], sizes = [16, 128], strides = [1, 1]} : vector<64x128xf32> to vector<16x128xf32>
    %cst_52 = arith.constant dense<0.000000e+00> : vector<64x128xf32>
    %130 = tpu.matmul %124, %129, %cst_52 {dimension_numbers = #tpu.dot_dimension_numbers<[1], [0], [0], [1], [0, 0, 1, 1], [], []>} : vector<64x16xf32>, vector<16x128xf32>, vector<64x128xf32> -> vector<64x128xf32>
    %131 = vector.extract_strided_slice %123 {offsets = [48, 0], sizes = [16, 128], strides = [1, 1]} : vector<64x128xf32> to vector<16x128xf32>
    %cst_53 = arith.constant dense<0.000000e+00> : vector<64x128xf32>
    %132 = tpu.matmul %124, %131, %cst_53 {dimension_numbers = #tpu.dot_dimension_numbers<[1], [0], [0], [1], [0, 0, 1, 1], [], []>} : vector<64x16xf32>, vector<16x128xf32>, vector<64x128xf32> -> vector<64x128xf32>
    %133 = tpu.concatenate %126, %128, %130, %132 in 0 : vector<64x128xf32>, vector<64x128xf32>, vector<64x128xf32>, vector<64x128xf32> -> vector<256x128xf32>
    %134 = vector.broadcast %1 : vector<1x128xf32> to vector<256x128xf32>
    %135 = arith.mulf %133, %134 : vector<256x128xf32>
    %136 = vector.broadcast %2 : vector<1x128xf32> to vector<256x128xf32>
    %137 = arith.addf %135, %136 : vector<256x128xf32>
    %cst_54 = arith.constant 0.000000e+00 : f32
    %138 = vector.broadcast %cst_54 : f32 to vector<256x128xf32>
    %139 = arith.maximumf %137, %138 : vector<256x128xf32>
    %140 = tpu.concatenate %10, %139 in 1 : vector<256x128xf32>, vector<256x128xf32> -> vector<256x256xf32>
    %c0_55 = arith.constant 0 : index
    %c0_56 = arith.constant 0 : index
    %141 = vector.load %arg9[%c0_55, %c0_56] : memref<256x16xf32, #tpu.memory_space<vmem>>, vector<256x16xf32>
    %c0_57 = arith.constant 0 : index
    %c0_58 = arith.constant 0 : index
    %142 = vector.load %arg10[%c0_57, %c0_58] : memref<16x256xf32, #tpu.memory_space<vmem>>, vector<16x256xf32>
    %c0_59 = arith.constant 0 : index
    %c0_60 = arith.constant 0 : index
    %143 = vector.load %arg11[%c0_59, %c0_60] : memref<64x128xf32, #tpu.memory_space<vmem>>, vector<64x128xf32>
    %144 = vector.extract_strided_slice %140 {offsets = [0, 0], sizes = [64, 256], strides = [1, 1]} : vector<256x256xf32> to vector<64x256xf32>
    %145 = vector.extract_strided_slice %140 {offsets = [64, 0], sizes = [64, 256], strides = [1, 1]} : vector<256x256xf32> to vector<64x256xf32>
    %146 = vector.extract_strided_slice %140 {offsets = [128, 0], sizes = [64, 256], strides = [1, 1]} : vector<256x256xf32> to vector<64x256xf32>
    %147 = vector.extract_strided_slice %140 {offsets = [192, 0], sizes = [64, 256], strides = [1, 1]} : vector<256x256xf32> to vector<64x256xf32>
    %cst_61 = arith.constant dense<0.000000e+00> : vector<256xf32>
    %148 = vector.multi_reduction <add>, %144, %cst_61 [0] : vector<64x256xf32> to vector<256xf32>
    %149 = vector.shape_cast %148 : vector<256xf32> to vector<1x256xf32>
    %cst_62 = arith.constant 6.400000e+01 : f32
    %150 = vector.broadcast %cst_62 : f32 to vector<1x256xf32>
    %151 = arith.divf %149, %150 : vector<1x256xf32>
    %cst_63 = arith.constant dense<0.000000e+00> : vector<256xf32>
    %152 = vector.multi_reduction <add>, %145, %cst_63 [0] : vector<64x256xf32> to vector<256xf32>
    %153 = vector.shape_cast %152 : vector<256xf32> to vector<1x256xf32>
    %cst_64 = arith.constant 6.400000e+01 : f32
    %154 = vector.broadcast %cst_64 : f32 to vector<1x256xf32>
    %155 = arith.divf %153, %154 : vector<1x256xf32>
    %cst_65 = arith.constant dense<0.000000e+00> : vector<256xf32>
    %156 = vector.multi_reduction <add>, %146, %cst_65 [0] : vector<64x256xf32> to vector<256xf32>
    %157 = vector.shape_cast %156 : vector<256xf32> to vector<1x256xf32>
    %cst_66 = arith.constant 6.400000e+01 : f32
    %158 = vector.broadcast %cst_66 : f32 to vector<1x256xf32>
    %159 = arith.divf %157, %158 : vector<1x256xf32>
    %cst_67 = arith.constant dense<0.000000e+00> : vector<256xf32>
    %160 = vector.multi_reduction <add>, %147, %cst_67 [0] : vector<64x256xf32> to vector<256xf32>
    %161 = vector.shape_cast %160 : vector<256xf32> to vector<1x256xf32>
    %cst_68 = arith.constant 6.400000e+01 : f32
    %162 = vector.broadcast %cst_68 : f32 to vector<1x256xf32>
    %163 = arith.divf %161, %162 : vector<1x256xf32>
    %cst_69 = arith.constant dense<0xFF800000> : vector<256xf32>
    %164 = vector.multi_reduction <maximumf>, %144, %cst_69 [0] : vector<64x256xf32> to vector<256xf32>
    %165 = vector.shape_cast %164 : vector<256xf32> to vector<1x256xf32>
    %cst_70 = arith.constant dense<0xFF800000> : vector<256xf32>
    %166 = vector.multi_reduction <maximumf>, %145, %cst_70 [0] : vector<64x256xf32> to vector<256xf32>
    %167 = vector.shape_cast %166 : vector<256xf32> to vector<1x256xf32>
    %cst_71 = arith.constant dense<0xFF800000> : vector<256xf32>
    %168 = vector.multi_reduction <maximumf>, %146, %cst_71 [0] : vector<64x256xf32> to vector<256xf32>
    %169 = vector.shape_cast %168 : vector<256xf32> to vector<1x256xf32>
    %cst_72 = arith.constant dense<0xFF800000> : vector<256xf32>
    %170 = vector.multi_reduction <maximumf>, %147, %cst_72 [0] : vector<64x256xf32> to vector<256xf32>
    %171 = vector.shape_cast %170 : vector<256xf32> to vector<1x256xf32>
    %172 = tpu.concatenate %151, %155, %159, %163, %165, %167, %169, %171 in 0 : vector<1x256xf32>, vector<1x256xf32>, vector<1x256xf32>, vector<1x256xf32>, vector<1x256xf32>, vector<1x256xf32>, vector<1x256xf32>, vector<1x256xf32> -> vector<8x256xf32>
    %cst_73 = arith.constant dense<0.000000e+00> : vector<8x16xf32>
    %173 = tpu.matmul %172, %141, %cst_73 {dimension_numbers = #tpu.dot_dimension_numbers<[1], [0], [0], [1], [0, 0, 1, 1], [], []>} : vector<8x256xf32>, vector<256x16xf32>, vector<8x16xf32> -> vector<8x16xf32>
    %cst_74 = arith.constant 0.000000e+00 : f32
    %174 = vector.broadcast %cst_74 : f32 to vector<8x16xf32>
    %175 = arith.maximumf %173, %174 : vector<8x16xf32>
    %cst_75 = arith.constant dense<0.000000e+00> : vector<8x256xf32>
    %176 = tpu.matmul %175, %142, %cst_75 {dimension_numbers = #tpu.dot_dimension_numbers<[1], [0], [0], [1], [0, 0, 1, 1], [], []>} : vector<8x16xf32>, vector<16x256xf32>, vector<8x256xf32> -> vector<8x256xf32>
    %177 = vector.extract_strided_slice %176 {offsets = [0, 0], sizes = [4, 256], strides = [1, 1]} : vector<8x256xf32> to vector<4x256xf32>
    %178 = vector.extract_strided_slice %176 {offsets = [4, 0], sizes = [4, 256], strides = [1, 1]} : vector<8x256xf32> to vector<4x256xf32>
    %179 = arith.addf %177, %178 : vector<4x256xf32>
    %180 = arith.negf %179 : vector<4x256xf32>
    %181 = math.exp %180 : vector<4x256xf32>
    %cst_76 = arith.constant 1.000000e+00 : f32
    %182 = vector.broadcast %cst_76 : f32 to vector<4x256xf32>
    %183 = arith.addf %182, %181 : vector<4x256xf32>
    %184 = arith.divf %182, %183 : vector<4x256xf32>
    %185 = vector.extract_strided_slice %184 {offsets = [0, 0], sizes = [1, 256], strides = [1, 1]} : vector<4x256xf32> to vector<1x256xf32>
    %186 = vector.broadcast %185 : vector<1x256xf32> to vector<64x256xf32>
    %187 = arith.mulf %144, %186 : vector<64x256xf32>
    %188 = vector.extract_strided_slice %184 {offsets = [1, 0], sizes = [1, 256], strides = [1, 1]} : vector<4x256xf32> to vector<1x256xf32>
    %189 = vector.broadcast %188 : vector<1x256xf32> to vector<64x256xf32>
    %190 = arith.mulf %145, %189 : vector<64x256xf32>
    %191 = vector.extract_strided_slice %184 {offsets = [2, 0], sizes = [1, 256], strides = [1, 1]} : vector<4x256xf32> to vector<1x256xf32>
    %192 = vector.broadcast %191 : vector<1x256xf32> to vector<64x256xf32>
    %193 = arith.mulf %146, %192 : vector<64x256xf32>
    %194 = vector.extract_strided_slice %184 {offsets = [3, 0], sizes = [1, 256], strides = [1, 1]} : vector<4x256xf32> to vector<1x256xf32>
    %195 = vector.broadcast %194 : vector<1x256xf32> to vector<64x256xf32>
    %196 = arith.mulf %147, %195 : vector<64x256xf32>
    %cst_77 = arith.constant dense<0.000000e+00> : vector<64xf32>
    %197 = vector.multi_reduction <add>, %187, %cst_77 [1] : vector<64x256xf32> to vector<64xf32>
    %198 = vector.shape_cast %197 : vector<64xf32> to vector<64x1xf32>
    %cst_78 = arith.constant 2.560000e+02 : f32
    %199 = vector.broadcast %cst_78 : f32 to vector<64x1xf32>
    %200 = arith.divf %198, %199 : vector<64x1xf32>
    %cst_79 = arith.constant dense<0.000000e+00> : vector<64xf32>
    %201 = vector.multi_reduction <add>, %190, %cst_79 [1] : vector<64x256xf32> to vector<64xf32>
    %202 = vector.shape_cast %201 : vector<64xf32> to vector<64x1xf32>
    %cst_80 = arith.constant 2.560000e+02 : f32
    %203 = vector.broadcast %cst_80 : f32 to vector<64x1xf32>
    %204 = arith.divf %202, %203 : vector<64x1xf32>
    %cst_81 = arith.constant dense<0.000000e+00> : vector<64xf32>
    %205 = vector.multi_reduction <add>, %193, %cst_81 [1] : vector<64x256xf32> to vector<64xf32>
    %206 = vector.shape_cast %205 : vector<64xf32> to vector<64x1xf32>
    %cst_82 = arith.constant 2.560000e+02 : f32
    %207 = vector.broadcast %cst_82 : f32 to vector<64x1xf32>
    %208 = arith.divf %206, %207 : vector<64x1xf32>
    %cst_83 = arith.constant dense<0.000000e+00> : vector<64xf32>
    %209 = vector.multi_reduction <add>, %196, %cst_83 [1] : vector<64x256xf32> to vector<64xf32>
    %210 = vector.shape_cast %209 : vector<64xf32> to vector<64x1xf32>
    %cst_84 = arith.constant 2.560000e+02 : f32
    %211 = vector.broadcast %cst_84 : f32 to vector<64x1xf32>
    %212 = arith.divf %210, %211 : vector<64x1xf32>
    %213 = tpu.concatenate %200, %204, %208, %212 in 1 : vector<64x1xf32>, vector<64x1xf32>, vector<64x1xf32>, vector<64x1xf32> -> vector<64x4xf32>
    %cst_85 = arith.constant dense<0xFF800000> : vector<64xf32>
    %214 = vector.multi_reduction <maximumf>, %187, %cst_85 [1] : vector<64x256xf32> to vector<64xf32>
    %215 = vector.shape_cast %214 : vector<64xf32> to vector<64x1xf32>
    %cst_86 = arith.constant dense<0xFF800000> : vector<64xf32>
    %216 = vector.multi_reduction <maximumf>, %190, %cst_86 [1] : vector<64x256xf32> to vector<64xf32>
    %217 = vector.shape_cast %216 : vector<64xf32> to vector<64x1xf32>
    %cst_87 = arith.constant dense<0xFF800000> : vector<64xf32>
    %218 = vector.multi_reduction <maximumf>, %193, %cst_87 [1] : vector<64x256xf32> to vector<64xf32>
    %219 = vector.shape_cast %218 : vector<64xf32> to vector<64x1xf32>
    %cst_88 = arith.constant dense<0xFF800000> : vector<64xf32>
    %220 = vector.multi_reduction <maximumf>, %196, %cst_88 [1] : vector<64x256xf32> to vector<64xf32>
    %221 = vector.shape_cast %220 : vector<64xf32> to vector<64x1xf32>
    %222 = tpu.concatenate %215, %217, %219, %221 in 1 : vector<64x1xf32>, vector<64x1xf32>, vector<64x1xf32>, vector<64x1xf32> -> vector<64x4xf32>
    %223 = tpu.concatenate %213, %222 in 0 : vector<64x4xf32>, vector<64x4xf32> -> vector<128x4xf32>
    %cst_89 = arith.constant dense<0.000000e+00> : vector<64x4xf32>
    %224 = tpu.matmul %143, %223, %cst_89 {dimension_numbers = #tpu.dot_dimension_numbers<[1], [0], [0], [1], [0, 0, 1, 1], [], []>} : vector<64x128xf32>, vector<128x4xf32>, vector<64x4xf32> -> vector<64x4xf32>
    %225 = arith.negf %224 : vector<64x4xf32>
    %226 = math.exp %225 : vector<64x4xf32>
    %cst_90 = arith.constant 1.000000e+00 : f32
    %227 = vector.broadcast %cst_90 : f32 to vector<64x4xf32>
    %228 = arith.addf %227, %226 : vector<64x4xf32>
    %229 = arith.divf %227, %228 : vector<64x4xf32>
    %230 = vector.extract_strided_slice %229 {offsets = [0, 0], sizes = [64, 1], strides = [1, 1]} : vector<64x4xf32> to vector<64x1xf32>
    %231 = vector.broadcast %230 : vector<64x1xf32> to vector<64x256xf32>
    %232 = arith.mulf %187, %231 : vector<64x256xf32>
    %233 = vector.extract_strided_slice %229 {offsets = [0, 1], sizes = [64, 1], strides = [1, 1]} : vector<64x4xf32> to vector<64x1xf32>
    %234 = vector.broadcast %233 : vector<64x1xf32> to vector<64x256xf32>
    %235 = arith.mulf %190, %234 : vector<64x256xf32>
    %236 = vector.extract_strided_slice %229 {offsets = [0, 2], sizes = [64, 1], strides = [1, 1]} : vector<64x4xf32> to vector<64x1xf32>
    %237 = vector.broadcast %236 : vector<64x1xf32> to vector<64x256xf32>
    %238 = arith.mulf %193, %237 : vector<64x256xf32>
    %239 = vector.extract_strided_slice %229 {offsets = [0, 3], sizes = [64, 1], strides = [1, 1]} : vector<64x4xf32> to vector<64x1xf32>
    %240 = vector.broadcast %239 : vector<64x1xf32> to vector<64x256xf32>
    %241 = arith.mulf %196, %240 : vector<64x256xf32>
    %242 = tpu.concatenate %232, %235, %238, %241 in 0 : vector<64x256xf32>, vector<64x256xf32>, vector<64x256xf32>, vector<64x256xf32> -> vector<256x256xf32>
    %243 = arith.mulf %242, %242 : vector<256x256xf32>
    %cst_91 = arith.constant dense<0.000000e+00> : vector<256xf32>
    %244 = vector.multi_reduction <add>, %243, %cst_91 [1] : vector<256x256xf32> to vector<256xf32>
    %245 = vector.shape_cast %244 : vector<256xf32> to vector<256x1xf32>
    %cst_92 = arith.constant 1.000000e-24 : f32
    %246 = vector.broadcast %cst_92 : f32 to vector<256x1xf32>
    %247 = arith.maximumf %245, %246 : vector<256x1xf32>
    %248 = math.rsqrt %247 : vector<256x1xf32>
    %249 = vector.broadcast %248 : vector<256x1xf32> to vector<256x256xf32>
    %250 = arith.mulf %242, %249 : vector<256x256xf32>
    %c0_93 = arith.constant 0 : index
    %c0_94 = arith.constant 0 : index
    %251 = vector.load %arg13[%c0_93, %c0_94] : memref<256x64xf32, #tpu.memory_space<vmem>>, vector<256x64xf32>
    %cst_95 = arith.constant dense<0.000000e+00> : vector<256x64xf32>
    %252 = tpu.matmul %250, %251, %cst_95 {dimension_numbers = #tpu.dot_dimension_numbers<[1], [0], [0], [1], [0, 0, 1, 1], [], []>} : vector<256x256xf32>, vector<256x64xf32>, vector<256x64xf32> -> vector<256x64xf32>
    %253 = vector.broadcast %3 : vector<1x64xf32> to vector<256x64xf32>
    %254 = arith.addf %252, %253 : vector<256x64xf32>
    %cst_96 = arith.constant dense<0xFF800000> : vector<256xf32>
    %255 = vector.multi_reduction <maximumf>, %254, %cst_96 [1] : vector<256x64xf32> to vector<256xf32>
    %256 = vector.shape_cast %255 : vector<256xf32> to vector<256x1xf32>
    %257 = vector.broadcast %256 : vector<256x1xf32> to vector<256x64xf32>
    %258 = arith.subf %254, %257 : vector<256x64xf32>
    %259 = math.exp %258 : vector<256x64xf32>
    %cst_97 = arith.constant dense<0.000000e+00> : vector<256xf32>
    %260 = vector.multi_reduction <add>, %259, %cst_97 [1] : vector<256x64xf32> to vector<256xf32>
    %261 = vector.shape_cast %260 : vector<256xf32> to vector<256x1xf32>
    %262 = tpu.reciprocal %261 {approx = true} : vector<256x1xf32> -> vector<256x1xf32>
    %263 = vector.broadcast %262 : vector<256x1xf32> to vector<256x64xf32>
    %264 = arith.mulf %259, %263 : vector<256x64xf32>
    %265 = vector.extract_strided_slice %264 {offsets = [0, 0], sizes = [64, 64], strides = [1, 1]} : vector<256x64xf32> to vector<64x64xf32>
    %cst_98 = arith.constant dense<0.000000e+00> : vector<64xf32>
    %266 = vector.multi_reduction <add>, %265, %cst_98 [0] : vector<64x64xf32> to vector<64xf32>
    %267 = vector.shape_cast %266 : vector<64xf32> to vector<1x64xf32>
    %268 = vector.extract_strided_slice %264 {offsets = [64, 0], sizes = [64, 64], strides = [1, 1]} : vector<256x64xf32> to vector<64x64xf32>
    %cst_99 = arith.constant dense<0.000000e+00> : vector<64xf32>
    %269 = vector.multi_reduction <add>, %268, %cst_99 [0] : vector<64x64xf32> to vector<64xf32>
    %270 = vector.shape_cast %269 : vector<64xf32> to vector<1x64xf32>
    %271 = vector.extract_strided_slice %264 {offsets = [128, 0], sizes = [64, 64], strides = [1, 1]} : vector<256x64xf32> to vector<64x64xf32>
    %cst_100 = arith.constant dense<0.000000e+00> : vector<64xf32>
    %272 = vector.multi_reduction <add>, %271, %cst_100 [0] : vector<64x64xf32> to vector<64xf32>
    %273 = vector.shape_cast %272 : vector<64xf32> to vector<1x64xf32>
    %274 = vector.extract_strided_slice %264 {offsets = [192, 0], sizes = [64, 64], strides = [1, 1]} : vector<256x64xf32> to vector<64x64xf32>
    %cst_101 = arith.constant dense<0.000000e+00> : vector<64xf32>
    %275 = vector.multi_reduction <add>, %274, %cst_101 [0] : vector<64x64xf32> to vector<64xf32>
    %276 = vector.shape_cast %275 : vector<64xf32> to vector<1x64xf32>
    %277 = tpu.concatenate %267, %270, %273, %276 in 0 : vector<1x64xf32>, vector<1x64xf32>, vector<1x64xf32>, vector<1x64xf32> -> vector<4x64xf32>
    %278 = tpu.transpose %277, [1, 0] : vector<4x64xf32> -> vector<64x4xf32>
    %c0_102 = arith.constant 0 : index
    %c0_103 = arith.constant 0 : index
    %279 = vector.load %arg12[%c0_102, %c0_103] : memref<64x256xf32, #tpu.memory_space<vmem>>, vector<64x256xf32>
    %280 = vector.extract_strided_slice %264 {offsets = [0, 0], sizes = [64, 64], strides = [1, 1]} : vector<256x64xf32> to vector<64x64xf32>
    %281 = vector.extract_strided_slice %250 {offsets = [0, 0], sizes = [64, 256], strides = [1, 1]} : vector<256x256xf32> to vector<64x256xf32>
    %cst_104 = arith.constant dense<0.000000e+00> : vector<64x256xf32>
    %282 = tpu.matmul %280, %281, %cst_104 {dimension_numbers = #tpu.dot_dimension_numbers<[0], [0], [1], [1], [0, 1, 1, 1], [], []>} : vector<64x64xf32>, vector<64x256xf32>, vector<64x256xf32> -> vector<64x256xf32>
    %283 = vector.extract_strided_slice %278 {offsets = [0, 0], sizes = [64, 1], strides = [1, 1]} : vector<64x4xf32> to vector<64x1xf32>
    %284 = vector.broadcast %283 : vector<64x1xf32> to vector<64x256xf32>
    %285 = arith.mulf %279, %284 : vector<64x256xf32>
    %286 = arith.subf %282, %285 : vector<64x256xf32>
    %287 = arith.mulf %286, %286 : vector<64x256xf32>
    %cst_105 = arith.constant dense<0.000000e+00> : vector<64xf32>
    %288 = vector.multi_reduction <add>, %287, %cst_105 [1] : vector<64x256xf32> to vector<64xf32>
    %289 = vector.shape_cast %288 : vector<64xf32> to vector<64x1xf32>
    %cst_106 = arith.constant 1.000000e-24 : f32
    %290 = vector.broadcast %cst_106 : f32 to vector<64x1xf32>
    %291 = arith.maximumf %289, %290 : vector<64x1xf32>
    %292 = math.rsqrt %291 : vector<64x1xf32>
    %293 = vector.broadcast %292 : vector<64x1xf32> to vector<64x256xf32>
    %294 = arith.mulf %286, %293 : vector<64x256xf32>
    %295 = arith.mulf %294, %294 : vector<64x256xf32>
    %296 = vector.shape_cast %295 : vector<64x256xf32> to vector<1x64x256xf32>
    %cst_107 = arith.constant dense<0.000000e+00> : vector<1xf32>
    %297 = vector.multi_reduction <add>, %296, %cst_107 [1, 2] : vector<1x64x256xf32> to vector<1xf32>
    %298 = vector.shape_cast %297 : vector<1xf32> to vector<1x1x1xf32>
    %299 = vector.extract %298[0, 0, 0] : f32 from vector<1x1x1xf32>
    %300 = vector.broadcast %299 : f32 to vector<1x1xf32>
    %cst_108 = arith.constant 1.000000e-24 : f32
    %301 = vector.broadcast %cst_108 : f32 to vector<1x1xf32>
    %302 = arith.maximumf %300, %301 : vector<1x1xf32>
    %303 = math.rsqrt %302 : vector<1x1xf32>
    %304 = vector.broadcast %303 : vector<1x1xf32> to vector<64x256xf32>
    %305 = arith.mulf %294, %304 : vector<64x256xf32>
    %c0_109 = arith.constant 0 : index
    %c0_110 = arith.constant 0 : index
    %c0_111 = arith.constant 0 : index
    %306 = vector.load %arg14[%c0_109, %c0_110, %c0_111] : memref<4x64x256xf32, #tpu.memory_space<vmem>>, vector<1x64x256xf32>
    %307 = vector.shape_cast %306 : vector<1x64x256xf32> to vector<64x256xf32>
    %308 = vector.shape_cast %305 : vector<64x256xf32> to vector<1x64x256xf32>
    tpu.vector_store %arg14[%c0_109, %c0_110, %c0_111], %308 {strides = array<i32>} : memref<4x64x256xf32, #tpu.memory_space<vmem>>, vector<1x64x256xf32>,
    %309 = vector.extract_strided_slice %264 {offsets = [64, 0], sizes = [64, 64], strides = [1, 1]} : vector<256x64xf32> to vector<64x64xf32>
    %310 = vector.extract_strided_slice %250 {offsets = [64, 0], sizes = [64, 256], strides = [1, 1]} : vector<256x256xf32> to vector<64x256xf32>
    %cst_112 = arith.constant dense<0.000000e+00> : vector<64x256xf32>
    %311 = tpu.matmul %309, %310, %cst_112 {dimension_numbers = #tpu.dot_dimension_numbers<[0], [0], [1], [1], [0, 1, 1, 1], [], []>} : vector<64x64xf32>, vector<64x256xf32>, vector<64x256xf32> -> vector<64x256xf32>
    %312 = vector.extract_strided_slice %278 {offsets = [0, 1], sizes = [64, 1], strides = [1, 1]} : vector<64x4xf32> to vector<64x1xf32>
    %313 = vector.broadcast %312 : vector<64x1xf32> to vector<64x256xf32>
    %314 = arith.mulf %279, %313 : vector<64x256xf32>
    %315 = arith.subf %311, %314 : vector<64x256xf32>
    %316 = arith.mulf %315, %315 : vector<64x256xf32>
    %cst_113 = arith.constant dense<0.000000e+00> : vector<64xf32>
    %317 = vector.multi_reduction <add>, %316, %cst_113 [1] : vector<64x256xf32> to vector<64xf32>
    %318 = vector.shape_cast %317 : vector<64xf32> to vector<64x1xf32>
    %cst_114 = arith.constant 1.000000e-24 : f32
    %319 = vector.broadcast %cst_114 : f32 to vector<64x1xf32>
    %320 = arith.maximumf %318, %319 : vector<64x1xf32>
    %321 = math.rsqrt %320 : vector<64x1xf32>
    %322 = vector.broadcast %321 : vector<64x1xf32> to vector<64x256xf32>
    %323 = arith.mulf %315, %322 : vector<64x256xf32>
    %324 = arith.mulf %323, %323 : vector<64x256xf32>
    %325 = vector.shape_cast %324 : vector<64x256xf32> to vector<1x64x256xf32>
    %cst_115 = arith.constant dense<0.000000e+00> : vector<1xf32>
    %326 = vector.multi_reduction <add>, %325, %cst_115 [1, 2] : vector<1x64x256xf32> to vector<1xf32>
    %327 = vector.shape_cast %326 : vector<1xf32> to vector<1x1x1xf32>
    %328 = vector.extract %327[0, 0, 0] : f32 from vector<1x1x1xf32>
    %329 = vector.broadcast %328 : f32 to vector<1x1xf32>
    %cst_116 = arith.constant 1.000000e-24 : f32
    %330 = vector.broadcast %cst_116 : f32 to vector<1x1xf32>
    %331 = arith.maximumf %329, %330 : vector<1x1xf32>
    %332 = math.rsqrt %331 : vector<1x1xf32>
    %333 = vector.broadcast %332 : vector<1x1xf32> to vector<64x256xf32>
    %334 = arith.mulf %323, %333 : vector<64x256xf32>
    %c1_117 = arith.constant 1 : index
    %c0_118 = arith.constant 0 : index
    %c0_119 = arith.constant 0 : index
    %335 = vector.load %arg14[%c1_117, %c0_118, %c0_119] : memref<4x64x256xf32, #tpu.memory_space<vmem>>, vector<1x64x256xf32>
    %336 = vector.shape_cast %335 : vector<1x64x256xf32> to vector<64x256xf32>
    %337 = vector.shape_cast %334 : vector<64x256xf32> to vector<1x64x256xf32>
    tpu.vector_store %arg14[%c1_117, %c0_118, %c0_119], %337 {strides = array<i32>} : memref<4x64x256xf32, #tpu.memory_space<vmem>>, vector<1x64x256xf32>,
    %338 = vector.extract_strided_slice %264 {offsets = [128, 0], sizes = [64, 64], strides = [1, 1]} : vector<256x64xf32> to vector<64x64xf32>
    %339 = vector.extract_strided_slice %250 {offsets = [128, 0], sizes = [64, 256], strides = [1, 1]} : vector<256x256xf32> to vector<64x256xf32>
    %cst_120 = arith.constant dense<0.000000e+00> : vector<64x256xf32>
    %340 = tpu.matmul %338, %339, %cst_120 {dimension_numbers = #tpu.dot_dimension_numbers<[0], [0], [1], [1], [0, 1, 1, 1], [], []>} : vector<64x64xf32>, vector<64x256xf32>, vector<64x256xf32> -> vector<64x256xf32>
    %341 = vector.extract_strided_slice %278 {offsets = [0, 2], sizes = [64, 1], strides = [1, 1]} : vector<64x4xf32> to vector<64x1xf32>
    %342 = vector.broadcast %341 : vector<64x1xf32> to vector<64x256xf32>
    %343 = arith.mulf %279, %342 : vector<64x256xf32>
    %344 = arith.subf %340, %343 : vector<64x256xf32>
    %345 = arith.mulf %344, %344 : vector<64x256xf32>
    %cst_121 = arith.constant dense<0.000000e+00> : vector<64xf32>
    %346 = vector.multi_reduction <add>, %345, %cst_121 [1] : vector<64x256xf32> to vector<64xf32>
    %347 = vector.shape_cast %346 : vector<64xf32> to vector<64x1xf32>
    %cst_122 = arith.constant 1.000000e-24 : f32
    %348 = vector.broadcast %cst_122 : f32 to vector<64x1xf32>
    %349 = arith.maximumf %347, %348 : vector<64x1xf32>
    %350 = math.rsqrt %349 : vector<64x1xf32>
    %351 = vector.broadcast %350 : vector<64x1xf32> to vector<64x256xf32>
    %352 = arith.mulf %344, %351 : vector<64x256xf32>
    %353 = arith.mulf %352, %352 : vector<64x256xf32>
    %354 = vector.shape_cast %353 : vector<64x256xf32> to vector<1x64x256xf32>
    %cst_123 = arith.constant dense<0.000000e+00> : vector<1xf32>
    %355 = vector.multi_reduction <add>, %354, %cst_123 [1, 2] : vector<1x64x256xf32> to vector<1xf32>
    %356 = vector.shape_cast %355 : vector<1xf32> to vector<1x1x1xf32>
    %357 = vector.extract %356[0, 0, 0] : f32 from vector<1x1x1xf32>
    %358 = vector.broadcast %357 : f32 to vector<1x1xf32>
    %cst_124 = arith.constant 1.000000e-24 : f32
    %359 = vector.broadcast %cst_124 : f32 to vector<1x1xf32>
    %360 = arith.maximumf %358, %359 : vector<1x1xf32>
    %361 = math.rsqrt %360 : vector<1x1xf32>
    %362 = vector.broadcast %361 : vector<1x1xf32> to vector<64x256xf32>
    %363 = arith.mulf %352, %362 : vector<64x256xf32>
    %c2_125 = arith.constant 2 : index
    %c0_126 = arith.constant 0 : index
    %c0_127 = arith.constant 0 : index
    %364 = vector.load %arg14[%c2_125, %c0_126, %c0_127] : memref<4x64x256xf32, #tpu.memory_space<vmem>>, vector<1x64x256xf32>
    %365 = vector.shape_cast %364 : vector<1x64x256xf32> to vector<64x256xf32>
    %366 = vector.shape_cast %363 : vector<64x256xf32> to vector<1x64x256xf32>
    tpu.vector_store %arg14[%c2_125, %c0_126, %c0_127], %366 {strides = array<i32>} : memref<4x64x256xf32, #tpu.memory_space<vmem>>, vector<1x64x256xf32>,
    %367 = vector.extract_strided_slice %264 {offsets = [192, 0], sizes = [64, 64], strides = [1, 1]} : vector<256x64xf32> to vector<64x64xf32>
    %368 = vector.extract_strided_slice %250 {offsets = [192, 0], sizes = [64, 256], strides = [1, 1]} : vector<256x256xf32> to vector<64x256xf32>
    %cst_128 = arith.constant dense<0.000000e+00> : vector<64x256xf32>
    %369 = tpu.matmul %367, %368, %cst_128 {dimension_numbers = #tpu.dot_dimension_numbers<[0], [0], [1], [1], [0, 1, 1, 1], [], []>} : vector<64x64xf32>, vector<64x256xf32>, vector<64x256xf32> -> vector<64x256xf32>
    %370 = vector.extract_strided_slice %278 {offsets = [0, 3], sizes = [64, 1], strides = [1, 1]} : vector<64x4xf32> to vector<64x1xf32>
    %371 = vector.broadcast %370 : vector<64x1xf32> to vector<64x256xf32>
    %372 = arith.mulf %279, %371 : vector<64x256xf32>
    %373 = arith.subf %369, %372 : vector<64x256xf32>
    %374 = arith.mulf %373, %373 : vector<64x256xf32>
    %cst_129 = arith.constant dense<0.000000e+00> : vector<64xf32>
    %375 = vector.multi_reduction <add>, %374, %cst_129 [1] : vector<64x256xf32> to vector<64xf32>
    %376 = vector.shape_cast %375 : vector<64xf32> to vector<64x1xf32>
    %cst_130 = arith.constant 1.000000e-24 : f32
    %377 = vector.broadcast %cst_130 : f32 to vector<64x1xf32>
    %378 = arith.maximumf %376, %377 : vector<64x1xf32>
    %379 = math.rsqrt %378 : vector<64x1xf32>
    %380 = vector.broadcast %379 : vector<64x1xf32> to vector<64x256xf32>
    %381 = arith.mulf %373, %380 : vector<64x256xf32>
    %382 = arith.mulf %381, %381 : vector<64x256xf32>
    %383 = vector.shape_cast %382 : vector<64x256xf32> to vector<1x64x256xf32>
    %cst_131 = arith.constant dense<0.000000e+00> : vector<1xf32>
    %384 = vector.multi_reduction <add>, %383, %cst_131 [1, 2] : vector<1x64x256xf32> to vector<1xf32>
    %385 = vector.shape_cast %384 : vector<1xf32> to vector<1x1x1xf32>
    %386 = vector.extract %385[0, 0, 0] : f32 from vector<1x1x1xf32>
    %387 = vector.broadcast %386 : f32 to vector<1x1xf32>
    %cst_132 = arith.constant 1.000000e-24 : f32
    %388 = vector.broadcast %cst_132 : f32 to vector<1x1xf32>
    %389 = arith.maximumf %387, %388 : vector<1x1xf32>
    %390 = math.rsqrt %389 : vector<1x1xf32>
    %391 = vector.broadcast %390 : vector<1x1xf32> to vector<64x256xf32>
    %392 = arith.mulf %381, %391 : vector<64x256xf32>
    %c3_133 = arith.constant 3 : index
    %c0_134 = arith.constant 0 : index
    %c0_135 = arith.constant 0 : index
    %393 = vector.load %arg14[%c3_133, %c0_134, %c0_135] : memref<4x64x256xf32, #tpu.memory_space<vmem>>, vector<1x64x256xf32>
    %394 = vector.shape_cast %393 : vector<1x64x256xf32> to vector<64x256xf32>
    %395 = vector.shape_cast %392 : vector<64x256xf32> to vector<1x64x256xf32>
    tpu.vector_store %arg14[%c3_133, %c0_134, %c0_135], %395 {strides = array<i32>} : memref<4x64x256xf32, #tpu.memory_space<vmem>>, vector<1x64x256xf32>,
    return
  }
  func.func @transform_0(%arg0: i32) -> (i32, i32) {
    %c0_i32 = arith.constant 0 : i32
    %c0_i32_0 = arith.constant 0 : i32
    return %arg0, %c0_i32 : i32, i32
  }
  func.func @transform_1(%arg0: i32) -> (i32, i32) {
    %c0_i32 = arith.constant 0 : i32
    %c0_i32_0 = arith.constant 0 : i32
    return %arg0, %c0_i32 : i32, i32
  }
  func.func @transform_2(%arg0: i32) -> (i32, i32) {
    %c0_i32 = arith.constant 0 : i32
    %c0_i32_0 = arith.constant 0 : i32
    %c0_i32_1 = arith.constant 0 : i32
    return %c0_i32, %c0_i32_0 : i32, i32
  }
  func.func @transform_3(%arg0: i32) -> (i32, i32) {
    %c0_i32 = arith.constant 0 : i32
    %c0_i32_0 = arith.constant 0 : i32
    %c0_i32_1 = arith.constant 0 : i32
    return %c0_i32, %c0_i32_0 : i32, i32
  }
  func.func @transform_4(%arg0: i32) -> (i32, i32) {
    %c0_i32 = arith.constant 0 : i32
    %c0_i32_0 = arith.constant 0 : i32
    %c0_i32_1 = arith.constant 0 : i32
    return %c0_i32, %c0_i32_0 : i32, i32
  }
  func.func @transform_5(%arg0: i32) -> (i32, i32) {
    %c0_i32 = arith.constant 0 : i32
    %c0_i32_0 = arith.constant 0 : i32
    %c0_i32_1 = arith.constant 0 : i32
    return %c0_i32, %c0_i32_0 : i32, i32
  }
  func.func @transform_6(%arg0: i32) -> (i32, i32) {
    %c0_i32 = arith.constant 0 : i32
    %c0_i32_0 = arith.constant 0 : i32
    %c0_i32_1 = arith.constant 0 : i32
    return %c0_i32, %c0_i32_0 : i32, i32
  }
  func.func @transform_7(%arg0: i32) -> (i32, i32) {
    %c0_i32 = arith.constant 0 : i32
    %c0_i32_0 = arith.constant 0 : i32
    %c0_i32_1 = arith.constant 0 : i32
    return %c0_i32, %c0_i32_0 : i32, i32
  }
  func.func @transform_8(%arg0: i32) -> (i32, i32) {
    %c0_i32 = arith.constant 0 : i32
    %c0_i32_0 = arith.constant 0 : i32
    %c0_i32_1 = arith.constant 0 : i32
    return %c0_i32, %c0_i32_0 : i32, i32
  }
  func.func @transform_9(%arg0: i32) -> (i32, i32) {
    %c0_i32 = arith.constant 0 : i32
    %c0_i32_0 = arith.constant 0 : i32
    %c0_i32_1 = arith.constant 0 : i32
    return %c0_i32, %c0_i32_0 : i32, i32
  }
  func.func @transform_10(%arg0: i32) -> (i32, i32) {
    %c0_i32 = arith.constant 0 : i32
    %c0_i32_0 = arith.constant 0 : i32
    %c0_i32_1 = arith.constant 0 : i32
    return %c0_i32, %c0_i32_0 : i32, i32
  }
  func.func @transform_11(%arg0: i32) -> (i32, i32) {
    %c0_i32 = arith.constant 0 : i32
    %c0_i32_0 = arith.constant 0 : i32
    %c0_i32_1 = arith.constant 0 : i32
    return %c0_i32, %c0_i32_0 : i32, i32
  }
  func.func @transform_12(%arg0: i32) -> (i32, i32) {
    %c0_i32 = arith.constant 0 : i32
    %c0_i32_0 = arith.constant 0 : i32
    %c0_i32_1 = arith.constant 0 : i32
    return %c0_i32, %c0_i32_0 : i32, i32
  }
  func.func @transform_13(%arg0: i32) -> (i32, i32, i32) {
    %c0_i32 = arith.constant 0 : i32
    %c0_i32_0 = arith.constant 0 : i32
    %c0_i32_1 = arith.constant 0 : i32
    return %arg0, %c0_i32, %c0_i32_0 : i32, i32, i32
  }
}

</mosaic_0001>

<llo_original>
// kernel: tpu_custom_call.1
$region0: #{tpu_custom_call.1}
  #allocation0 [shape = 'u32[]', space=smem, size = 0x4, offset = 0x4, fixed_abs, tag = 'smem constant byte address 0x4 - core index']
  #allocation1 [shape = 'u32[144,128]{1,0:T(1,128)}', space=vmem, size = 0x12000, scoped, tag = 'internal scratch']
  %s0 = inlined_call_operand.hbm [shape: f32[1024,128], index: 0, kind: input, shape index: {}]
  %s1 = inlined_call_operand.vmem [shape: bf16[256,512], index: 1, kind: input, shape index: {}]
  %s2 = inlined_call_operand.vmem [shape: bf16[512,128], index: 2, kind: input, shape index: {}]
  %s3 = inlined_call_operand.hbm [shape: f32[8,128], index: 3, kind: input, shape index: {}]
  %s4 = inlined_call_operand.vmem [shape: f32[128,8], index: 4, kind: input, shape index: {}]
  %s5 = inlined_call_operand.hbm [shape: f32[8,128], index: 5, kind: input, shape index: {}]
  %s6 = inlined_call_operand.hbm [shape: f32[16,32], index: 6, kind: input, shape index: {}]
  %s7 = inlined_call_operand.vmem [shape: f32[64,16], index: 7, kind: input, shape index: {}]
  %s8 = inlined_call_operand.vmem [shape: f32[256,16], index: 8, kind: input, shape index: {}]
  %s9 = inlined_call_operand.hbm [shape: f32[16,256], index: 9, kind: input, shape index: {}]
  %s10 = inlined_call_operand.hbm [shape: f32[64,128], index: 10, kind: input, shape index: {}]
  %s11 = inlined_call_operand.hbm [shape: f32[64,256], index: 11, kind: input, shape index: {}]
  %s12 = inlined_call_operand.vmem [shape: f32[256,64], index: 12, kind: input, shape index: {}]
  %s13 = inlined_call_operand.hbm [shape: f32[16,64,256], index: 13, kind: output, shape index: {}]
  %s14 = sld [smem:[#allocation0]]
  $region113: #{tpu_custom_call.1} parent=0
    _
  %s16 = ssub.s32 1, %s14
  %s17 = scalar_select 0, %s16, %s14
  $region1: #{tpu_custom_call.1} parent=0
    #allocation2 [shape = 'u8[262144]{0}', space=vmem, size = 0x40000, scoped, tag = 'input window, operand 0']
    #allocation3 [shape = 's32[2]{0}', space=sflag, size = 0x8, scoped, tag = 'scoped memory for tpu_custom_call.1']
    #allocation4 [shape = 's32[2]{0}', space=sflag, size = 0x8, scoped, tag = 'scoped memory for tpu_custom_call.1']
    #allocation5 [shape = 'u8[4096]{0}', space=vmem, size = 0x1000, scoped, tag = 'input window, operand 3, single buffered']
    #allocation6 [shape = 's32[1]{0}', space=sflag, size = 0x4, scoped, tag = 'scoped memory for tpu_custom_call.1']
    #allocation7 [shape = 'u8[4096]{0}', space=vmem, size = 0x1000, scoped, tag = 'input window, operand 5, single buffered']
    #allocation8 [shape = 'u8[8192]{0}', space=vmem, size = 0x2000, scoped, tag = 'input window, operand 6, single buffered']
    #allocation9 [shape = 's32[1]{0}', space=sflag, size = 0x4, scoped, tag = 'scoped memory for tpu_custom_call.1']
    #allocation10 [shape = 'u8[16384]{0}', space=vmem, size = 0x4000, scoped, tag = 'input window, operand 9, single buffered']
    #allocation11 [shape = 'u8[32768]{0}', space=vmem, size = 0x8000, scoped, tag = 'input window, operand 10, single buffered']
    #allocation12 [shape = 's32[1]{0}', space=sflag, size = 0x4, scoped, tag = 'scoped memory for tpu_custom_call.1']
    #allocation13 [shape = 'u8[65536]{0}', space=vmem, size = 0x10000, scoped, tag = 'input window, operand 11, single buffered']
    #allocation14 [shape = 'u8[524288]{0}', space=vmem, size = 0x80000, scoped, tag = 'output window, operand 0']
    %18 = vsyncpa [#allocation3], 0
    %s19 = scalar_lea.sflag [#allocation3], 1
    %20 = vsyncpa %s19, 0
    %21 = vsyncpa [#allocation6], 0
    %22 = vsyncpa [#allocation9], 0
    %23 = vsyncpa [#allocation12], 0
    %24 = vsyncpa [#allocation4], 0
    %s25 = scalar_lea.sflag [#allocation4], 1
    %26 = vsyncpa %s25, 0
    loop: start=0, step=1, limit=6
    $region2: #{tpu_custom_call.1} parent=1 // loop_pre_header
      _
    $region3: #{tpu_custom_call.1} parent=1 // loop_header
      %s28 = sphi 0, %s32
      %p29 = scmp.ge.s32.totalorder %s28, 6
      %s38 = sphi 0, %s40
      %s41 = sphi 0, %s38
      %s42 = sphi 0, %s41
      %s58 = sphi 0, %s42
      %s64 = sphi 0, %s66
      %s67 = sphi 0, %s64
      %s68 = sphi 0, %s67
      %s84 = sphi 0, %s68
      %s88 = sphi 0, %s88
      %s90 = sphi 0, %s88
      %s91 = sphi 0, %s90
      %s105 = sphi 0, %s91
      %s109 = sphi 0, %s109
      %s111 = sphi 0, %s109
      %s112 = sphi 0, %s111
      %s126 = sphi 0, %s112
      %s130 = sphi 0, %s130
      %s132 = sphi 0, %s130
      %s133 = sphi 0, %s132
      %s147 = sphi 0, %s133
      %s151 = sphi 0, %s151
      %s153 = sphi 0, %s151
      %s154 = sphi 0, %s153
      %s168 = sphi 0, %s154
      %s172 = sphi 0, %s172
      %s174 = sphi 0, %s172
      %s175 = sphi 0, %s174
      %s189 = sphi 0, %s175
      %s193 = sphi 0, %s193
      %s195 = sphi 0, %s193
      %s196 = sphi 0, %s195
      %s210 = sphi 0, %s196
      %s214 = sphi 0, %s214
      %s216 = sphi 0, %s214
      %s217 = sphi 0, %s216
      %s231 = sphi 0, %s217
      %s235 = sphi 0, %s235
      %s237 = sphi 0, %s235
      %s238 = sphi 0, %s237
      %s252 = sphi 0, %s238
      %s256 = sphi 0, %s256
      %s258 = sphi 0, %s256
      %s259 = sphi 0, %s258
      %s273 = sphi 0, %s259
      %s277 = sphi 0, %s277
      %s279 = sphi 0, %s277
      %s280 = sphi 0, %s279
      %s294 = sphi 0, %s280
      %s298 = sphi 0, %s298
      %s300 = sphi 0, %s298
      %s301 = sphi 0, %s300
      %s315 = sphi 0, %s301
      %s321 = sphi 0, %s323
      %s324 = sphi 0, %s321
      %s325 = sphi 0, %s324
      %s341 = sphi 0, %s325
    $region4: #{tpu_custom_call.1} parent=1 // loop_header_branch
      %31 = sbr.rel (%p29) target = $region8
    $region5: #{tpu_custom_call.1} parent=1 // loop_body
      %s33 = ssub.s32 %s28, 1
      %s34 = ssub.s32 %s28, 2
      %s35 = sadd.s32 %s28, 1
      %s36 = ssub.s32 %s28, %s35
      %p37 = scmp.eq.s32.totalorder %s36, 0
      %s39 = sadd.s32 %s38, 1
      %s40 = scalar_select %p37, %s38, %s39
      %p43 = pneg %p37
      %p44 = scmp.eq.s32.totalorder %s28, 3
      %p45 = por %p43, %p44
      %p46 = scmp.ne.s32.totalorder %s38, %s41
      %p47 = scmp.eq.s32.totalorder %s28, 0
      %p48 = por %p46, %p47
      %p49 = scmp.ne.s32.totalorder %s38, %s41
      %p50 = scmp.eq.s32.totalorder %s33, 3
      %p51 = por %p49, %p50
      %p52 = scmp.ne.s32.totalorder %s41, %s42
      %p53 = scmp.eq.s32.totalorder %s33, 0
      %p54 = por %p52, %p53
      %p55 = scmp.ne.s32.totalorder %s41, %s42
      %p56 = scmp.eq.s32.totalorder %s34, 3
      %p57 = por %p55, %p56
      %p59 = scmp.ne.s32.totalorder %s42, %s58
      %p60 = scmp.eq.s32.totalorder %s34, 0
      %p61 = por %p59, %p60
      %s62 = ssub.s32 %s28, %s35
      %p63 = scmp.eq.s32.totalorder %s62, 0
      %s65 = sadd.s32 %s64, 1
      %s66 = scalar_select %p63, %s64, %s65
      %p69 = pneg %p63
      %p70 = scmp.eq.s32.totalorder %s28, 3
      %p71 = por %p69, %p70
      %p72 = scmp.ne.s32.totalorder %s64, %s67
      %p73 = scmp.eq.s32.totalorder %s28, 0
      %p74 = por %p72, %p73
      %p75 = scmp.ne.s32.totalorder %s64, %s67
      %p76 = scmp.eq.s32.totalorder %s33, 3
      %p77 = por %p75, %p76
      %p78 = scmp.ne.s32.totalorder %s67, %s68
      %p79 = scmp.eq.s32.totalorder %s33, 0
      %p80 = por %p78, %p79
      %p81 = scmp.ne.s32.totalorder %s67, %s68
      %p82 = scmp.eq.s32.totalorder %s34, 3
      %p83 = por %p81, %p82
      %p85 = scmp.ne.s32.totalorder %s68, %s84
      %p86 = scmp.eq.s32.totalorder %s34, 0
      %p87 = por %p85, %p86
      %s89 = sadd.s32 %s88, 1
      %p92 = scmp.eq.s32.totalorder %s28, 3
      %p93 = scmp.ne.s32.totalorder %s88, %s90
      %p94 = scmp.eq.s32.totalorder %s28, 0
      %p95 = por %p93, %p94
      %p96 = scmp.ne.s32.totalorder %s88, %s90
      %p97 = scmp.eq.s32.totalorder %s33, 3
      %p98 = por %p96, %p97
      %p99 = scmp.ne.s32.totalorder %s90, %s91
      %p100 = scmp.eq.s32.totalorder %s33, 0
      %p101 = por %p99, %p100
      %p102 = scmp.ne.s32.totalorder %s90, %s91
      %p103 = scmp.eq.s32.totalorder %s34, 3
      %p104 = por %p102, %p103
      %p106 = scmp.ne.s32.totalorder %s91, %s105
      %p107 = scmp.eq.s32.totalorder %s34, 0
      %p108 = por %p106, %p107
      %s110 = sadd.s32 %s109, 1
      %p113 = scmp.eq.s32.totalorder %s28, 3
      %p114 = scmp.ne.s32.totalorder %s109, %s111
      %p115 = scmp.eq.s32.totalorder %s28, 0
      %p116 = por %p114, %p115
      %p117 = scmp.ne.s32.totalorder %s109, %s111
      %p118 = scmp.eq.s32.totalorder %s33, 3
      %p119 = por %p117, %p118
      %p120 = scmp.ne.s32.totalorder %s111, %s112
      %p121 = scmp.eq.s32.totalorder %s33, 0
      %p122 = por %p120, %p121
      %p123 = scmp.ne.s32.totalorder %s111, %s112
      %p124 = scmp.eq.s32.totalorder %s34, 3
      %p125 = por %p123, %p124
      %p127 = scmp.ne.s32.totalorder %s112, %s126
      %p128 = scmp.eq.s32.totalorder %s34, 0
      %p129 = por %p127, %p128
      %s131 = sadd.s32 %s130, 1
      %p134 = scmp.eq.s32.totalorder %s28, 3
      %p135 = scmp.ne.s32.totalorder %s130, %s132
      %p136 = scmp.eq.s32.totalorder %s28, 0
      %p137 = por %p135, %p136
      %p138 = scmp.ne.s32.totalorder %s130, %s132
      %p139 = scmp.eq.s32.totalorder %s33, 3
      %p140 = por %p138, %p139
      %p141 = scmp.ne.s32.totalorder %s132, %s133
      %p142 = scmp.eq.s32.totalorder %s33, 0
      %p143 = por %p141, %p142
      %p144 = scmp.ne.s32.totalorder %s132, %s133
      %p145 = scmp.eq.s32.totalorder %s34, 3
      %p146 = por %p144, %p145
      %p148 = scmp.ne.s32.totalorder %s133, %s147
      %p149 = scmp.eq.s32.totalorder %s34, 0
      %p150 = por %p148, %p149
      %s152 = sadd.s32 %s151, 1
      %p155 = scmp.eq.s32.totalorder %s28, 3
      %p156 = scmp.ne.s32.totalorder %s151, %s153
      %p157 = scmp.eq.s32.totalorder %s28, 0
      %p158 = por %p156, %p157
      %p159 = scmp.ne.s32.totalorder %s151, %s153
      %p160 = scmp.eq.s32.totalorder %s33, 3
      %p161 = por %p159, %p160
      %p162 = scmp.ne.s32.totalorder %s153, %s154
      %p163 = scmp.eq.s32.totalorder %s33, 0
      %p164 = por %p162, %p163
      %p165 = scmp.ne.s32.totalorder %s153, %s154
      %p166 = scmp.eq.s32.totalorder %s34, 3
      %p167 = por %p165, %p166
      %p169 = scmp.ne.s32.totalorder %s154, %s168
      %p170 = scmp.eq.s32.totalorder %s34, 0
      %p171 = por %p169, %p170
      %s173 = sadd.s32 %s172, 1
      %p176 = scmp.eq.s32.totalorder %s28, 3
      %p177 = scmp.ne.s32.totalorder %s172, %s174
      %p178 = scmp.eq.s32.totalorder %s28, 0
      %p179 = por %p177, %p178
      %p180 = scmp.ne.s32.totalorder %s172, %s174
      %p181 = scmp.eq.s32.totalorder %s33, 3
      %p182 = por %p180, %p181
      %p183 = scmp.ne.s32.totalorder %s174, %s175
      %p184 = scmp.eq.s32.totalorder %s33, 0
      %p185 = por %p183, %p184
      %p186 = scmp.ne.s32.totalorder %s174, %s175
      %p187 = scmp.eq.s32.totalorder %s34, 3
      %p188 = por %p186, %p187
      %p190 = scmp.ne.s32.totalorder %s175, %s189
      %p191 = scmp.eq.s32.totalorder %s34, 0
      %p192 = por %p190, %p191
      %s194 = sadd.s32 %s193, 1
      %p197 = scmp.eq.s32.totalorder %s28, 3
      %p198 = scmp.ne.s32.totalorder %s193, %s195
      %p199 = scmp.eq.s32.totalorder %s28, 0
      %p200 = por %p198, %p199
      %p201 = scmp.ne.s32.totalorder %s193, %s195
      %p202 = scmp.eq.s32.totalorder %s33, 3
      %p203 = por %p201, %p202
      %p204 = scmp.ne.s32.totalorder %s195, %s196
      %p205 = scmp.eq.s32.totalorder %s33, 0
      %p206 = por %p204, %p205
      %p207 = scmp.ne.s32.totalorder %s195, %s196
      %p208 = scmp.eq.s32.totalorder %s34, 3
      %p209 = por %p207, %p208
      %p211 = scmp.ne.s32.totalorder %s196, %s210
      %p212 = scmp.eq.s32.totalorder %s34, 0
      %p213 = por %p211, %p212
      %s215 = sadd.s32 %s214, 1
      %p218 = scmp.eq.s32.totalorder %s28, 3
      %p219 = scmp.ne.s32.totalorder %s214, %s216
      %p220 = scmp.eq.s32.totalorder %s28, 0
      %p221 = por %p219, %p220
      %p222 = scmp.ne.s32.totalorder %s214, %s216
      %p223 = scmp.eq.s32.totalorder %s33, 3
      %p224 = por %p222, %p223
      %p225 = scmp.ne.s32.totalorder %s216, %s217
      %p226 = scmp.eq.s32.totalorder %s33, 0
      %p227 = por %p225, %p226
      %p228 = scmp.ne.s32.totalorder %s216, %s217
      %p229 = scmp.eq.s32.totalorder %s34, 3
      %p230 = por %p228, %p229
      %p232 = scmp.ne.s32.totalorder %s217, %s231
      %p233 = scmp.eq.s32.totalorder %s34, 0
      %p234 = por %p232, %p233
      %s236 = sadd.s32 %s235, 1
      %p239 = scmp.eq.s32.totalorder %s28, 3
      %p240 = scmp.ne.s32.totalorder %s235, %s237
      %p241 = scmp.eq.s32.totalorder %s28, 0
      %p242 = por %p240, %p241
      %p243 = scmp.ne.s32.totalorder %s235, %s237
      %p244 = scmp.eq.s32.totalorder %s33, 3
      %p245 = por %p243, %p244
      %p246 = scmp.ne.s32.totalorder %s237, %s238
      %p247 = scmp.eq.s32.totalorder %s33, 0
      %p248 = por %p246, %p247
      %p249 = scmp.ne.s32.totalorder %s237, %s238
      %p250 = scmp.eq.s32.totalorder %s34, 3
      %p251 = por %p249, %p250
      %p253 = scmp.ne.s32.totalorder %s238, %s252
      %p254 = scmp.eq.s32.totalorder %s34, 0
      %p255 = por %p253, %p254
      %s257 = sadd.s32 %s256, 1
      %p260 = scmp.eq.s32.totalorder %s28, 3
      %p261 = scmp.ne.s32.totalorder %s256, %s258
      %p262 = scmp.eq.s32.totalorder %s28, 0
      %p263 = por %p261, %p262
      %p264 = scmp.ne.s32.totalorder %s256, %s258
      %p265 = scmp.eq.s32.totalorder %s33, 3
      %p266 = por %p264, %p265
      %p267 = scmp.ne.s32.totalorder %s258, %s259
      %p268 = scmp.eq.s32.totalorder %s33, 0
      %p269 = por %p267, %p268
      %p270 = scmp.ne.s32.totalorder %s258, %s259
      %p271 = scmp.eq.s32.totalorder %s34, 3
      %p272 = por %p270, %p271
      %p274 = scmp.ne.s32.totalorder %s259, %s273
      %p275 = scmp.eq.s32.totalorder %s34, 0
      %p276 = por %p274, %p275
      %s278 = sadd.s32 %s277, 1
      %p281 = scmp.eq.s32.totalorder %s28, 3
      %p282 = scmp.ne.s32.totalorder %s277, %s279
      %p283 = scmp.eq.s32.totalorder %s28, 0
      %p284 = por %p282, %p283
      %p285 = scmp.ne.s32.totalorder %s277, %s279
      %p286 = scmp.eq.s32.totalorder %s33, 3
      %p287 = por %p285, %p286
      %p288 = scmp.ne.s32.totalorder %s279, %s280
      %p289 = scmp.eq.s32.totalorder %s33, 0
      %p290 = por %p288, %p289
      %p291 = scmp.ne.s32.totalorder %s279, %s280
      %p292 = scmp.eq.s32.totalorder %s34, 3
      %p293 = por %p291, %p292
      %p295 = scmp.ne.s32.totalorder %s280, %s294
      %p296 = scmp.eq.s32.totalorder %s34, 0
      %p297 = por %p295, %p296
      %s299 = sadd.s32 %s298, 1
      %p302 = scmp.eq.s32.totalorder %s28, 3
      %p303 = scmp.ne.s32.totalorder %s298, %s300
      %p304 = scmp.eq.s32.totalorder %s28, 0
      %p305 = por %p303, %p304
      %p306 = scmp.ne.s32.totalorder %s298, %s300
      %p307 = scmp.eq.s32.totalorder %s33, 3
      %p308 = por %p306, %p307
      %p309 = scmp.ne.s32.totalorder %s300, %s301
      %p310 = scmp.eq.s32.totalorder %s33, 0
      %p311 = por %p309, %p310
      %p312 = scmp.ne.s32.totalorder %s300, %s301
      %p313 = scmp.eq.s32.totalorder %s34, 3
      %p314 = por %p312, %p313
      %p316 = scmp.ne.s32.totalorder %s301, %s315
      %p317 = scmp.eq.s32.totalorder %s34, 0
      %p318 = por %p316, %p317
      %s319 = ssub.s32 %s28, %s35
      %p320 = scmp.eq.s32.totalorder %s319, 0
      %s322 = sadd.s32 %s321, 1
      %s323 = scalar_select %p320, %s321, %s322
      %p326 = pneg %p320
      %p327 = scmp.eq.s32.totalorder %s28, 3
      %p328 = por %p326, %p327
      %p329 = scmp.ne.s32.totalorder %s321, %s324
      %p330 = scmp.eq.s32.totalorder %s28, 0
      %p331 = por %p329, %p330
      %p332 = scmp.ne.s32.totalorder %s321, %s324
      %p333 = scmp.eq.s32.totalorder %s33, 3
      %p334 = por %p332, %p333
      %p335 = scmp.ne.s32.totalorder %s324, %s325
      %p336 = scmp.eq.s32.totalorder %s33, 0
      %p337 = por %p335, %p336
      %p338 = scmp.ne.s32.totalorder %s324, %s325
      %p339 = scmp.eq.s32.totalorder %s34, 3
      %p340 = por %p338, %p339
      %p342 = scmp.ne.s32.totalorder %s325, %s341
      %p343 = scmp.eq.s32.totalorder %s34, 0
      %p344 = por %p342, %p343
      %p345 = scmp.le.s32.totalorder 1, %s28
      %p346 = scmp.lt.s32.totalorder %s28, 5
      %p347 = pnand %p345, %p346
      %p348 = pneg %p347
      // Predicated region
      $region9: #{tpu_custom_call.1} parent=5 // pred_check
        _
      $region10: #{tpu_custom_call.1} parent=5 // pred_check_branch
        %350 = sbr.rel (%p347) target = $region12
      $region11: #{tpu_custom_call.1} parent=5 // pred_region
        %s351 = ssub.s32 %s28, 1
        // Predicated region
        $region13: #{tpu_custom_call.1} parent=11 // pred_check
          %p352 = pneg %p101
        $region14: #{tpu_custom_call.1} parent=11 // pred_check_branch
          %354 = sbr.rel (%p352) target = $region16
        $region15: #{tpu_custom_call.1} parent=11 // pred_region
          _
        $region16: #{tpu_custom_call.1} parent=11 // pred_fallthru
          _
        // Predicated region
        $region17: #{tpu_custom_call.1} parent=11 // pred_check
          %p355 = pneg %p122
        $region18: #{tpu_custom_call.1} parent=11 // pred_check_branch
          %357 = sbr.rel (%p355) target = $region20
        $region19: #{tpu_custom_call.1} parent=11 // pred_region
          %s359 = ssub.s32 128, 128
          %360 = vsyncadd [#allocation6], %s359
          %s362 = sshll.u32 [#allocation5], 4
          %s363 = int_to_ptr.vmem [resolvable:$true] %s362
          %365 = dma.hbm_to_vmem [thread:$0]  %s3, 128, %s363, [#allocation6]
        $region20: #{tpu_custom_call.1} parent=11 // pred_fallthru
          _
        // Predicated region
        $region21: #{tpu_custom_call.1} parent=11 // pred_check
          %p366 = pneg %p143
        $region22: #{tpu_custom_call.1} parent=11 // pred_check_branch
          %368 = sbr.rel (%p366) target = $region24
        $region23: #{tpu_custom_call.1} parent=11 // pred_region
          _
        $region24: #{tpu_custom_call.1} parent=11 // pred_fallthru
          _
        // Predicated region
        $region25: #{tpu_custom_call.1} parent=11 // pred_check
          %p369 = pneg %p164
        $region26: #{tpu_custom_call.1} parent=11 // pred_check_branch
          %371 = sbr.rel (%p369) target = $region28
        $region27: #{tpu_custom_call.1} parent=11 // pred_region
          %s373 = ssub.s32 128, 128
          %374 = vsyncadd [#allocation6], %s373
          %s376 = sshll.u32 [#allocation7], 4
          %s377 = int_to_ptr.vmem [resolvable:$true] %s376
          %379 = dma.hbm_to_vmem [thread:$0]  %s5, 128, %s377, [#allocation6]
        $region28: #{tpu_custom_call.1} parent=11 // pred_fallthru
          _
        // Predicated region
        $region29: #{tpu_custom_call.1} parent=11 // pred_check
          %p380 = pneg %p185
        $region30: #{tpu_custom_call.1} parent=11 // pred_check_branch
          %382 = sbr.rel (%p380) target = $region32
        $region31: #{tpu_custom_call.1} parent=11 // pred_region
          %s384 = ssub.s32 256, 256
          %385 = vsyncadd [#allocation9], %s384
          %s386 = sshll.u32 [#allocation8], 4
          %s387 = int_to_ptr.vmem [resolvable:$true] %s386
          %392 = dma.hbm_to_vmem [thread:$0]  %s6, 256, %s387, [#allocation9], 128, 128, 8
        $region32: #{tpu_custom_call.1} parent=11 // pred_fallthru
          _
        // Predicated region
        $region33: #{tpu_custom_call.1} parent=11 // pred_check
          %p393 = pneg %p206
        $region34: #{tpu_custom_call.1} parent=11 // pred_check_branch
          %395 = sbr.rel (%p393) target = $region36
        $region35: #{tpu_custom_call.1} parent=11 // pred_region
          _
        $region36: #{tpu_custom_call.1} parent=11 // pred_fallthru
          _
        // Predicated region
        $region37: #{tpu_custom_call.1} parent=11 // pred_check
          %p396 = pneg %p227
        $region38: #{tpu_custom_call.1} parent=11 // pred_check_branch
          %398 = sbr.rel (%p396) target = $region40
        $region39: #{tpu_custom_call.1} parent=11 // pred_region
          _
        $region40: #{tpu_custom_call.1} parent=11 // pred_fallthru
          _
        // Predicated region
        $region41: #{tpu_custom_call.1} parent=11 // pred_check
          %p399 = pneg %p248
        $region42: #{tpu_custom_call.1} parent=11 // pred_check_branch
          %401 = sbr.rel (%p399) target = $region44
        $region43: #{tpu_custom_call.1} parent=11 // pred_region
          %s403 = ssub.s32 512, 512
          %404 = vsyncadd [#allocation9], %s403
          %s405 = sshll.u32 [#allocation10], 4
          %s406 = int_to_ptr.vmem [resolvable:$true] %s405
          %411 = dma.hbm_to_vmem [thread:$0]  %s9, 512, %s406, [#allocation9], 256, 256, 16
        $region44: #{tpu_custom_call.1} parent=11 // pred_fallthru
          _
        // Predicated region
        $region45: #{tpu_custom_call.1} parent=11 // pred_check
          %p412 = pneg %p269
        $region46: #{tpu_custom_call.1} parent=11 // pred_check_branch
          %414 = sbr.rel (%p412) target = $region48
        $region47: #{tpu_custom_call.1} parent=11 // pred_region
          %s416 = ssub.s32 1024, 1024
          %417 = vsyncadd [#allocation12], %s416
          %s418 = sshll.u32 [#allocation11], 4
          %s419 = int_to_ptr.vmem [resolvable:$true] %s418
          %424 = dma.hbm_to_vmem [thread:$0]  %s10, 1024, %s419, [#allocation12], 128, 128, 8
        $region48: #{tpu_custom_call.1} parent=11 // pred_fallthru
          _
        // Predicated region
        $region49: #{tpu_custom_call.1} parent=11 // pred_check
          %p425 = pneg %p290
        $region50: #{tpu_custom_call.1} parent=11 // pred_check_branch
          %427 = sbr.rel (%p425) target = $region52
        $region51: #{tpu_custom_call.1} parent=11 // pred_region
          %s429 = ssub.s32 2048, 2048
          %430 = vsyncadd [#allocation12], %s429
          %s431 = sshll.u32 [#allocation13], 4
          %s432 = int_to_ptr.vmem [resolvable:$true] %s431
          %437 = dma.hbm_to_vmem [thread:$0]  %s11, 2048, %s432, [#allocation12], 256, 256, 16
        $region52: #{tpu_custom_call.1} parent=11 // pred_fallthru
          _
        // Predicated region
        $region53: #{tpu_custom_call.1} parent=11 // pred_check
          %p438 = pneg %p311
        $region54: #{tpu_custom_call.1} parent=11 // pred_check_branch
          %440 = sbr.rel (%p438) target = $region56
        $region55: #{tpu_custom_call.1} parent=11 // pred_region
          _
        $region56: #{tpu_custom_call.1} parent=11 // pred_fallthru
          _
      $region12: #{tpu_custom_call.1} parent=5 // pred_fallthru
        _
      %p441 = scmp.lt.s32.totalorder %s28, 4
      // Predicated region
      $region57: #{tpu_custom_call.1} parent=5 // pred_check
        %p442 = pneg %p441
      $region58: #{tpu_custom_call.1} parent=5 // pred_check_branch
        %444 = sbr.rel (%p442) target = $region60
      $region59: #{tpu_custom_call.1} parent=5 // pred_region
        // Predicated region
        $region61: #{tpu_custom_call.1} parent=59 // pred_check
          %p445 = pneg %p48
        $region62: #{tpu_custom_call.1} parent=59 // pred_check_branch
          %447 = sbr.rel (%p445) target = $region64
        $region63: #{tpu_custom_call.1} parent=59 // pred_region
          %s448 = sand.u32 %s38, 1
          %s449 = scalar_lea.sflag [#allocation3], %s448
          %s450 = sand.u32 %s38, 1
          %s451 = smul.addr %s450, 256
          %s452 = scalar_lea.vmem [#allocation2], %s451
          %s453 = smul.u32 32, %s28
          %s455 = ssub.s32 4096, 4096
          %456 = vsyncadd %s449, %s455
          %s457 = smul.addr %s453, 128
          %s458 = scalar_lea.hbm %s0, %s457
          %s459 = sshll.u32 %s452, 4
          %s460 = int_to_ptr.vmem [resolvable:$true] %s459
          %465 = dma.hbm_to_vmem [thread:$0]  %s458, 4096, %s460, %s449, 128, 128, 8
        $region64: #{tpu_custom_call.1} parent=59 // pred_fallthru
          _
        // Predicated region
        $region65: #{tpu_custom_call.1} parent=59 // pred_check
          %p466 = pneg %p74
        $region66: #{tpu_custom_call.1} parent=59 // pred_check_branch
          %468 = sbr.rel (%p466) target = $region68
        $region67: #{tpu_custom_call.1} parent=59 // pred_region
          %s469 = smul.u32 8, %s28
          %p470 = scmp.lt.s32.totalorder %s469, 31
          %s471 = scalar_select %p470, %s469, 31
          %s472 = smul.addr %s471, 4
          %s473 = smul.addr %s472, 4
          %s474 = scalar_lea.vmem %s1, %s473
          %s475 = smul.u32 8, %s28
        $region68: #{tpu_custom_call.1} parent=59 // pred_fallthru
          _
      $region60: #{tpu_custom_call.1} parent=5 // pred_fallthru
        _
      %p476 = scmp.le.s32.totalorder 1, %s28
      %p477 = scmp.lt.s32.totalorder %s28, 5
      %p478 = pnand %p476, %p477
      %p479 = pneg %p478
      // Predicated region
      $region69: #{tpu_custom_call.1} parent=5 // pred_check
        _
      $region70: #{tpu_custom_call.1} parent=5 // pred_check_branch
        %481 = sbr.rel (%p478) target = $region72
      $region71: #{tpu_custom_call.1} parent=5 // pred_region
        %s482 = ssub.s32 %s28, 1
        %s483 = sand.u32 %s41, 1
        %s484 = scalar_lea.sflag [#allocation3], %s483
        %s485 = sand.u32 %s41, 1
        %s486 = smul.addr %s485, 256
        %s487 = scalar_lea.vmem [#allocation2], %s486
        // Predicated region
        $region73: #{tpu_custom_call.1} parent=71 // pred_check
          %p488 = pneg %p54
        $region74: #{tpu_custom_call.1} parent=71 // pred_check_branch
          %490 = sbr.rel (%p488) target = $region76
        $region75: #{tpu_custom_call.1} parent=71 // pred_region
          %491 = dma.done %s484, 4096
        $region76: #{tpu_custom_call.1} parent=71 // pred_fallthru
          _
        // Predicated region
        $region77: #{tpu_custom_call.1} parent=71 // pred_check
          %p492 = pneg %p122
        $region78: #{tpu_custom_call.1} parent=71 // pred_check_branch
          %494 = sbr.rel (%p492) target = $region80
        $region79: #{tpu_custom_call.1} parent=71 // pred_region
          %495 = dma.done [#allocation6], 128
        $region80: #{tpu_custom_call.1} parent=71 // pred_fallthru
          _
        // Predicated region
        $region81: #{tpu_custom_call.1} parent=71 // pred_check
          %p496 = pneg %p164
        $region82: #{tpu_custom_call.1} parent=71 // pred_check_branch
          %498 = sbr.rel (%p496) target = $region84
        $region83: #{tpu_custom_call.1} parent=71 // pred_region
          %499 = dma.done [#allocation6], 128
        $region84: #{tpu_custom_call.1} parent=71 // pred_fallthru
          _
        // Predicated region
        $region85: #{tpu_custom_call.1} parent=71 // pred_check
          %p500 = pneg %p185
        $region86: #{tpu_custom_call.1} parent=71 // pred_check_branch
          %502 = sbr.rel (%p500) target = $region88
        $region87: #{tpu_custom_call.1} parent=71 // pred_region
          %503 = dma.done [#allocation9], 256
        $region88: #{tpu_custom_call.1} parent=71 // pred_fallthru
          _
        // Predicated region
        $region89: #{tpu_custom_call.1} parent=71 // pred_check
          %p504 = pneg %p248
        $region90: #{tpu_custom_call.1} parent=71 // pred_check_branch
          %506 = sbr.rel (%p504) target = $region92
        $region91: #{tpu_custom_call.1} parent=71 // pred_region
          %507 = dma.done [#allocation9], 512
        $region92: #{tpu_custom_call.1} parent=71 // pred_fallthru
          _
        // Predicated region
        $region93: #{tpu_custom_call.1} parent=71 // pred_check
          %p508 = pneg %p269
        $region94: #{tpu_custom_call.1} parent=71 // pred_check_branch
          %510 = sbr.rel (%p508) target = $region96
        $region95: #{tpu_custom_call.1} parent=71 // pred_region
          %511 = dma.done [#allocation12], 1024
        $region96: #{tpu_custom_call.1} parent=71 // pred_fallthru
          _
        // Predicated region
        $region97: #{tpu_custom_call.1} parent=71 // pred_check
          %p512 = pneg %p290
        $region98: #{tpu_custom_call.1} parent=71 // pred_check_branch
          %514 = sbr.rel (%p512) target = $region100
        $region99: #{tpu_custom_call.1} parent=71 // pred_region
          %515 = dma.done [#allocation12], 2048
        $region100: #{tpu_custom_call.1} parent=71 // pred_fallthru
          _
        %s516 = sand.u32 %s41, 1
        %s517 = scalar_lea.sflag [#allocation3], %s516
        %s518 = sand.u32 %s41, 1
        %s519 = smul.addr %s518, 256
        %s520 = scalar_lea.vmem [#allocation2], %s519
        %p521 = pneg %p54
        %p522 = pneg %p51
        %s523 = smul.u32 8, %s33
        %p524 = scmp.lt.s32.totalorder %s523, 31
        %s525 = scalar_select %p524, %s523, 31
        %s526 = smul.addr %s525, 4
        %s527 = smul.addr %s526, 4
        %s528 = scalar_lea.vmem %s1, %s527
        %p529 = pneg %p80
        %p530 = pneg %p77
        %p531 = pneg %p101
        %p532 = pneg %p98
        %p533 = pneg %p122
        %p534 = pneg %p119
        %p535 = pneg %p143
        %p536 = pneg %p140
        %p537 = pneg %p164
        %p538 = pneg %p161
        %p539 = pneg %p185
        %p540 = pneg %p182
        %p541 = pneg %p206
        %p542 = pneg %p203
        %p543 = pneg %p227
        %p544 = pneg %p224
        %p545 = pneg %p248
        %p546 = pneg %p245
        %p547 = pneg %p269
        %p548 = pneg %p266
        %p549 = pneg %p290
        %p550 = pneg %p287
        %p551 = pneg %p311
        %p552 = pneg %p308
        %p553 = pneg %p337
        %p554 = pneg %p334
        %s555 = sand.u32 %s324, 1
        %s556 = scalar_lea.sflag [#allocation4], %s555
        %s557 = sand.u32 %s324, 1
        %s558 = smul.addr %s557, 512
        %s559 = scalar_lea.vmem [#allocation14], %s558
        %s560 = smul.u32 32, %s33
        %s561 = smul.u32 8, %s33
        %p562 = scmp.lt.s32.totalorder %s561, 31
        %s563 = scalar_select %p562, %s561, 31
        %s564 = smul.addr %s563, 4
        %s565 = smul.addr %s564, 4
        %s566 = scalar_lea.vmem %s1, %s565
        %s567 = smul.u32 8, %s33
        %s568 = smul.u32 4, %s33
        %v570 = vld [vmem:[#allocation5] sm:$0x1]
        %v571 = vld [vmem:[#allocation5 + $0x1] sm:$0x1]
        %v572 = vld [vmem:[#allocation5 + $0x2] sm:$0x1]
        %v573 = vld [vmem:[#allocation5 + $0x3] sm:$0x1]
        %v574 = vld [vmem:[%s487] sm:$0xff]
        %v575 = vld [vmem:[%s487 + $0x8] sm:$0xff]
        %v576 = vld [vmem:[%s487 + $0x10] sm:$0xff]
        %v577 = vld [vmem:[%s487 + $0x18] sm:$0xff]
        %v578 = vld [vmem:[%s487 + $0x20] sm:$0xff]
        %v579 = vld [vmem:[%s487 + $0x28] sm:$0xff]
        %v580 = vld [vmem:[%s487 + $0x30] sm:$0xff]
        %v581 = vld [vmem:[%s487 + $0x38] sm:$0xff]
        %v582 = vld [vmem:[%s487 + $0x40] sm:$0xff]
        %v583 = vld [vmem:[%s487 + $0x48] sm:$0xff]
        %v584 = vld [vmem:[%s487 + $0x50] sm:$0xff]
        %v585 = vld [vmem:[%s487 + $0x58] sm:$0xff]
        %v586 = vld [vmem:[%s487 + $0x60] sm:$0xff]
        %v587 = vld [vmem:[%s487 + $0x68] sm:$0xff]
        %v588 = vld [vmem:[%s487 + $0x70] sm:$0xff]
        %v589 = vld [vmem:[%s487 + $0x78] sm:$0xff]
        %v590 = vld [vmem:[%s487 + $0x80] sm:$0xff]
        %v591 = vld [vmem:[%s487 + $0x88] sm:$0xff]
        %v592 = vld [vmem:[%s487 + $0x90] sm:$0xff]
        %v593 = vld [vmem:[%s487 + $0x98] sm:$0xff]
        %v594 = vld [vmem:[%s487 + $0xa0] sm:$0xff]
        %v595 = vld [vmem:[%s487 + $0xa8] sm:$0xff]
        %v596 = vld [vmem:[%s487 + $0xb0] sm:$0xff]
        %v597 = vld [vmem:[%s487 + $0xb8] sm:$0xff]
        %v598 = vld [vmem:[%s487 + $0xc0] sm:$0xff]
        %v599 = vld [vmem:[%s487 + $0xc8] sm:$0xff]
        %v600 = vld [vmem:[%s487 + $0xd0] sm:$0xff]
        %v601 = vld [vmem:[%s487 + $0xd8] sm:$0xff]
        %v602 = vld [vmem:[%s487 + $0xe0] sm:$0xff]
        %v603 = vld [vmem:[%s487 + $0xe8] sm:$0xff]
        %v604 = vld [vmem:[%s487 + $0xf0] sm:$0xff]
        %v605 = vld [vmem:[%s487 + $0xf8] sm:$0xff]
        %v606 = vlaneseq
        %v607 = vshrl.u32 %v606, 7
        %v608 = vsub.s32 0, %v607
        %v609 = vrot.slane %v571, %v608
        %v610 = vmul.f32 %v574, %v609
        %v611 = vmul.f32 %v575, %v609
        %v612 = vmul.f32 %v576, %v609
        %v613 = vmul.f32 %v577, %v609
        %v614 = vmul.f32 %v578, %v609
        %v615 = vmul.f32 %v579, %v609
        %v616 = vmul.f32 %v580, %v609
        %v617 = vmul.f32 %v581, %v609
        %v618 = vmul.f32 %v582, %v609
        %v619 = vmul.f32 %v583, %v609
        %v620 = vmul.f32 %v584, %v609
        %v621 = vmul.f32 %v585, %v609
        %v622 = vmul.f32 %v586, %v609
        %v623 = vmul.f32 %v587, %v609
        %v624 = vmul.f32 %v588, %v609
        %v625 = vmul.f32 %v589, %v609
        %v626 = vmul.f32 %v590, %v609
        %v627 = vmul.f32 %v591, %v609
        %v628 = vmul.f32 %v592, %v609
        %v629 = vmul.f32 %v593, %v609
        %v630 = vmul.f32 %v594, %v609
        %v631 = vmul.f32 %v595, %v609
        %v632 = vmul.f32 %v596, %v609
        %v633 = vmul.f32 %v597, %v609
        %v634 = vmul.f32 %v598, %v609
        %v635 = vmul.f32 %v599, %v609
        %v636 = vmul.f32 %v600, %v609
        %v637 = vmul.f32 %v601, %v609
        %v638 = vmul.f32 %v602, %v609
        %v639 = vmul.f32 %v603, %v609
        %v640 = vmul.f32 %v604, %v609
        %v641 = vmul.f32 %v605, %v609
        %v642 = vlaneseq
        %v643 = vshrl.u32 %v642, 7
        %v644 = vsub.s32 0, %v643
        %v645 = vrot.slane %v572, %v644
        %v646 = vadd.f32 %v610, %v645
        %v647 = vadd.f32 %v611, %v645
        %v648 = vadd.f32 %v612, %v645
        %v649 = vadd.f32 %v613, %v645
        %v650 = vadd.f32 %v614, %v645
        %v651 = vadd.f32 %v615, %v645
        %v652 = vadd.f32 %v616, %v645
        %v653 = vadd.f32 %v617, %v645
        %v654 = vadd.f32 %v618, %v645
        %v655 = vadd.f32 %v619, %v645
        %v656 = vadd.f32 %v620, %v645
        %v657 = vadd.f32 %v621, %v645
        %v658 = vadd.f32 %v622, %v645
        %v659 = vadd.f32 %v623, %v645
        %v660 = vadd.f32 %v624, %v645
        %v661 = vadd.f32 %v625, %v645
        %v662 = vadd.f32 %v626, %v645
        %v663 = vadd.f32 %v627, %v645
        %v664 = vadd.f32 %v628, %v645
        %v665 = vadd.f32 %v629, %v645
        %v666 = vadd.f32 %v630, %v645
        %v667 = vadd.f32 %v631, %v645
        %v668 = vadd.f32 %v632, %v645
        %v669 = vadd.f32 %v633, %v645
        %v670 = vadd.f32 %v634, %v645
        %v671 = vadd.f32 %v635, %v645
        %v672 = vadd.f32 %v636, %v645
        %v673 = vadd.f32 %v637, %v645
        %v674 = vadd.f32 %v638, %v645
        %v675 = vadd.f32 %v639, %v645
        %v676 = vadd.f32 %v640, %v645
        %v677 = vadd.f32 %v641, %v645
        %v678 = vmax.f32 %v646, 0.0
        %v679 = vmax.f32 %v647, 0.0
        %v680 = vmax.f32 %v648, 0.0
        %v681 = vmax.f32 %v649, 0.0
        %v682 = vmax.f32 %v650, 0.0
        %v683 = vmax.f32 %v651, 0.0
        %v684 = vmax.f32 %v652, 0.0
        %v685 = vmax.f32 %v653, 0.0
        %v686 = vmax.f32 %v654, 0.0
        %v687 = vmax.f32 %v655, 0.0
        %v688 = vmax.f32 %v656, 0.0
        %v689 = vmax.f32 %v657, 0.0
        %v690 = vmax.f32 %v658, 0.0
        %v691 = vmax.f32 %v659, 0.0
        %v692 = vmax.f32 %v660, 0.0
        %v693 = vmax.f32 %v661, 0.0
        %v694 = vmax.f32 %v662, 0.0
        %v695 = vmax.f32 %v663, 0.0
        %v696 = vmax.f32 %v664, 0.0
        %v697 = vmax.f32 %v665, 0.0
        %v698 = vmax.f32 %v666, 0.0
        %v699 = vmax.f32 %v667, 0.0
        %v700 = vmax.f32 %v668, 0.0
        %v701 = vmax.f32 %v669, 0.0
        %v702 = vmax.f32 %v670, 0.0
        %v703 = vmax.f32 %v671, 0.0
        %v704 = vmax.f32 %v672, 0.0
        %v705 = vmax.f32 %v673, 0.0
        %v706 = vmax.f32 %v674, 0.0
        %v707 = vmax.f32 %v675, 0.0
        %v708 = vmax.f32 %v676, 0.0
        %v709 = vmax.f32 %v677, 0.0
        %v710 = vld [vmem:[%s566] sm:$0xff]
        %v711 = vld [vmem:[%s566 + $0x8] sm:$0xff]
        %v712 = vld [vmem:[%s566 + $0x10] sm:$0xff]
        %v713 = vld [vmem:[%s566 + $0x18] sm:$0xff]
        %v714 = vld [vmem:[%s566 + $0x20] sm:$0xff]
        %v715 = vld [vmem:[%s566 + $0x28] sm:$0xff]
        %v716 = vld [vmem:[%s566 + $0x30] sm:$0xff]
        %v717 = vld [vmem:[%s566 + $0x38] sm:$0xff]
        %v718 = vld [vmem:[%s566 + $0x40] sm:$0xff]
        %v719 = vld [vmem:[%s566 + $0x48] sm:$0xff]
        %v720 = vld [vmem:[%s566 + $0x50] sm:$0xff]
        %v721 = vld [vmem:[%s566 + $0x58] sm:$0xff]
        %v722 = vld [vmem:[%s566 + $0x60] sm:$0xff]
        %v723 = vld [vmem:[%s566 + $0x68] sm:$0xff]
        %v724 = vld [vmem:[%s566 + $0x70] sm:$0xff]
        %v725 = vld [vmem:[%s566 + $0x78] sm:$0xff]
        %v726 = vld [vmem:[%s2] sm:$0xf]
        %v727 = vld [vmem:[%s2 + $0x4] sm:$0xf]
        %v728 = vld [vmem:[%s2 + $0x8] sm:$0xf]
        %v729 = vld [vmem:[%s2 + $0xc] sm:$0xf]
        %v730 = vld [vmem:[%s2 + $0x10] sm:$0xf]
        %v731 = vld [vmem:[%s2 + $0x14] sm:$0xf]
        %v732 = vld [vmem:[%s2 + $0x18] sm:$0xf]
        %v733 = vld [vmem:[%s2 + $0x1c] sm:$0xf]
        %v734 = vld [vmem:[%s2 + $0x20] sm:$0xf]
        %v735 = vld [vmem:[%s2 + $0x24] sm:$0xf]
        %v736 = vld [vmem:[%s2 + $0x28] sm:$0xf]
        %v737 = vld [vmem:[%s2 + $0x2c] sm:$0xf]
        %v738 = vld [vmem:[%s2 + $0x30] sm:$0xf]
        %v739 = vld [vmem:[%s2 + $0x34] sm:$0xf]
        %v740 = vld [vmem:[%s2 + $0x38] sm:$0xf]
        %v741 = vld [vmem:[%s2 + $0x3c] sm:$0xf]
        %v742 = vld [vmem:[%s2 + $0x40] sm:$0xf]
        %v743 = vld [vmem:[%s2 + $0x44] sm:$0xf]
        %v744 = vld [vmem:[%s2 + $0x48] sm:$0xf]
        %v745 = vld [vmem:[%s2 + $0x4c] sm:$0xf]
        %v746 = vld [vmem:[%s2 + $0x50] sm:$0xf]
        %v747 = vld [vmem:[%s2 + $0x54] sm:$0xf]
        %v748 = vld [vmem:[%s2 + $0x58] sm:$0xf]
        %v749 = vld [vmem:[%s2 + $0x5c] sm:$0xf]
        %v750 = vld [vmem:[%s2 + $0x60] sm:$0xf]
        %v751 = vld [vmem:[%s2 + $0x64] sm:$0xf]
        %v752 = vld [vmem:[%s2 + $0x68] sm:$0xf]
        %v753 = vld [vmem:[%s2 + $0x6c] sm:$0xf]
        %v754 = vld [vmem:[%s2 + $0x70] sm:$0xf]
        %v755 = vld [vmem:[%s2 + $0x74] sm:$0xf]
        %v756 = vld [vmem:[%s2 + $0x78] sm:$0xf]
        %v757 = vld [vmem:[%s2 + $0x7c] sm:$0xf]
        %v758 = vld [vmem:[%s2 + $0x80] sm:$0xf]
        %v759 = vld [vmem:[%s2 + $0x84] sm:$0xf]
        %v760 = vld [vmem:[%s2 + $0x88] sm:$0xf]
        %v761 = vld [vmem:[%s2 + $0x8c] sm:$0xf]
        %v762 = vld [vmem:[%s2 + $0x90] sm:$0xf]
        %v763 = vld [vmem:[%s2 + $0x94] sm:$0xf]
        %v764 = vld [vmem:[%s2 + $0x98] sm:$0xf]
        %v765 = vld [vmem:[%s2 + $0x9c] sm:$0xf]
        %v766 = vld [vmem:[%s2 + $0xa0] sm:$0xf]
        %v767 = vld [vmem:[%s2 + $0xa4] sm:$0xf]
        %v768 = vld [vmem:[%s2 + $0xa8] sm:$0xf]
        %v769 = vld [vmem:[%s2 + $0xac] sm:$0xf]
        %v770 = vld [vmem:[%s2 + $0xb0] sm:$0xf]
        %v771 = vld [vmem:[%s2 + $0xb4] sm:$0xf]
        %v772 = vld [vmem:[%s2 + $0xb8] sm:$0xf]
        %v773 = vld [vmem:[%s2 + $0xbc] sm:$0xf]
        %v774 = vld [vmem:[%s2 + $0xc0] sm:$0xf]
        %v775 = vld [vmem:[%s2 + $0xc4] sm:$0xf]
        %v776 = vld [vmem:[%s2 + $0xc8] sm:$0xf]
        %v777 = vld [vmem:[%s2 + $0xcc] sm:$0xf]
        %v778 = vld [vmem:[%s2 + $0xd0] sm:$0xf]
        %v779 = vld [vmem:[%s2 + $0xd4] sm:$0xf]
        %v780 = vld [vmem:[%s2 + $0xd8] sm:$0xf]
        %v781 = vld [vmem:[%s2 + $0xdc] sm:$0xf]
        %v782 = vld [vmem:[%s2 + $0xe0] sm:$0xf]
        %v783 = vld [vmem:[%s2 + $0xe4] sm:$0xf]
        %v784 = vld [vmem:[%s2 + $0xe8] sm:$0xf]
        %v785 = vld [vmem:[%s2 + $0xec] sm:$0xf]
        %v786 = vld [vmem:[%s2 + $0xf0] sm:$0xf]
        %v787 = vld [vmem:[%s2 + $0xf4] sm:$0xf]
        %v788 = vld [vmem:[%s2 + $0xf8] sm:$0xf]
        %v789 = vld [vmem:[%s2 + $0xfc] sm:$0xf]
        %v790 = vlaneseq
        %v791 = vshrl.u32 %v790, 7
        %v792 = vsub.s32 0, %v791
        %v793 = vrot.slane %v570, %v792
        %v810 = vunpack.c.l.b16 %v710
        %v811 = vunpack.c.h.b16 %v710
        %v812 = vunpack.c.l.b16 %v711
        %v813 = vunpack.c.h.b16 %v711
        %v814 = vunpack.c.l.b16 %v712
        %v815 = vunpack.c.h.b16 %v712
        %v816 = vunpack.c.l.b16 %v713
        %v817 = vunpack.c.h.b16 %v713
        %v818 = vunpack.c.l.b16 %v714
        %v819 = vunpack.c.h.b16 %v714
        %v820 = vunpack.c.l.b16 %v715
        %v821 = vunpack.c.h.b16 %v715
        %v822 = vunpack.c.l.b16 %v716
        %v823 = vunpack.c.h.b16 %v716
        %v824 = vunpack.c.l.b16 %v717
        %v825 = vunpack.c.h.b16 %v717
        %v826 = vunpack.c.l.b16 %v718
        %v827 = vunpack.c.h.b16 %v718
        %v828 = vunpack.c.l.b16 %v719
        %v829 = vunpack.c.h.b16 %v719
        %v830 = vunpack.c.l.b16 %v720
        %v831 = vunpack.c.h.b16 %v720
        %v832 = vunpack.c.l.b16 %v721
        %v833 = vunpack.c.h.b16 %v721
        %v834 = vunpack.c.l.b16 %v722
        %v835 = vunpack.c.h.b16 %v722
        %v836 = vunpack.c.l.b16 %v723
        %v837 = vunpack.c.h.b16 %v723
        %v838 = vunpack.c.l.b16 %v724
        %v839 = vunpack.c.h.b16 %v724
        %v840 = vunpack.c.l.b16 %v725
        %v841 = vunpack.c.h.b16 %v725
        %v842 = vpack.c.b16 %v814, %v810
        %v843 = vpack.c.b16 %v815, %v811
        %v844 = vpack.c.b16 %v816, %v812
        %v845 = vpack.c.b16 %v817, %v813
        %v846 = vpack.c.b16 %v822, %v818
        %v847 = vpack.c.b16 %v823, %v819
        %v848 = vpack.c.b16 %v824, %v820
        %v849 = vpack.c.b16 %v825, %v821
        %v850 = vpack.c.b16 %v830, %v826
        %v851 = vpack.c.b16 %v831, %v827
        %v852 = vpack.c.b16 %v832, %v828
        %v853 = vpack.c.b16 %v833, %v829
        %v854 = vpack.c.b16 %v838, %v834
        %v855 = vpack.c.b16 %v839, %v835
        %v856 = vpack.c.b16 %v840, %v836
        %v857 = vpack.c.b16 %v841, %v837
        %v938 = vunpack.c.l.b16 %v726
        %v939 = vunpack.c.l.b16 %v727
        %v940 = vunpack.c.l.b16 %v728
        %v941 = vunpack.c.l.b16 %v729
        %v942 = vunpack.c.l.b16 %v730
        %v943 = vunpack.c.l.b16 %v731
        %v944 = vunpack.c.l.b16 %v732
        %v945 = vunpack.c.l.b16 %v733
        %v946 = vunpack.c.l.b16 %v734
        %v947 = vunpack.c.l.b16 %v735
        %v948 = vunpack.c.l.b16 %v736
        %v949 = vunpack.c.l.b16 %v737
        %v950 = vunpack.c.l.b16 %v738
        %v951 = vunpack.c.l.b16 %v739
        %v952 = vunpack.c.l.b16 %v740
        %v953 = vunpack.c.l.b16 %v741
        %v954 = vunpack.c.l.b16 %v742
        %v955 = vunpack.c.l.b16 %v743
        %v956 = vunpack.c.l.b16 %v744
        %v957 = vunpack.c.l.b16 %v745
        %v958 = vunpack.c.l.b16 %v746
        %v959 = vunpack.c.l.b16 %v747
        %v960 = vunpack.c.l.b16 %v748
        %v961 = vunpack.c.l.b16 %v749
        %v962 = vunpack.c.l.b16 %v750
        %v963 = vunpack.c.l.b16 %v751
        %v964 = vunpack.c.l.b16 %v752
        %v965 = vunpack.c.l.b16 %v753
        %v966 = vunpack.c.l.b16 %v754
        %v967 = vunpack.c.l.b16 %v755
        %v968 = vunpack.c.l.b16 %v756
        %v969 = vunpack.c.l.b16 %v757
        %v970 = vunpack.c.l.b16 %v758
        %v971 = vunpack.c.l.b16 %v759
        %v972 = vunpack.c.l.b16 %v760
        %v973 = vunpack.c.l.b16 %v761
        %v974 = vunpack.c.l.b16 %v762
        %v975 = vunpack.c.l.b16 %v763
        %v976 = vunpack.c.l.b16 %v764
        %v977 = vunpack.c.l.b16 %v765
        %v978 = vunpack.c.l.b16 %v766
        %v979 = vunpack.c.l.b16 %v767
        %v980 = vunpack.c.l.b16 %v768
        %v981 = vunpack.c.l.b16 %v769
        %v982 = vunpack.c.l.b16 %v770
        %v983 = vunpack.c.l.b16 %v771
        %v984 = vunpack.c.l.b16 %v772
        %v985 = vunpack.c.l.b16 %v773
        %v986 = vunpack.c.l.b16 %v774
        %v987 = vunpack.c.l.b16 %v775
        %v988 = vunpack.c.l.b16 %v776
        %v989 = vunpack.c.l.b16 %v777
        %v990 = vunpack.c.l.b16 %v778
        %v991 = vunpack.c.l.b16 %v779
        %v992 = vunpack.c.l.b16 %v780
        %v993 = vunpack.c.l.b16 %v781
        %v994 = vunpack.c.l.b16 %v782
        %v995 = vunpack.c.l.b16 %v783
        %v996 = vunpack.c.l.b16 %v784
        %v997 = vunpack.c.l.b16 %v785
        %v998 = vunpack.c.l.b16 %v786
        %v999 = vunpack.c.l.b16 %v787
        %v1000 = vunpack.c.l.b16 %v788
        %v1001 = vunpack.c.l.b16 %v789
        %v1002 = vpack.c.b16 %v939, %v938
        %v1003 = vpack.c.b16 %v941, %v940
        %v1004 = vpack.c.b16 %v943, %v942
        %v1005 = vpack.c.b16 %v945, %v944
        %v1006 = vpack.c.b16 %v947, %v946
        %v1007 = vpack.c.b16 %v949, %v948
        %v1008 = vpack.c.b16 %v951, %v950
        %v1009 = vpack.c.b16 %v953, %v952
        %v1010 = vpack.c.b16 %v955, %v954
        %v1011 = vpack.c.b16 %v957, %v956
        %v1012 = vpack.c.b16 %v959, %v958
        %v1013 = vpack.c.b16 %v961, %v960
        %v1014 = vpack.c.b16 %v963, %v962
        %v1015 = vpack.c.b16 %v965, %v964
        %v1016 = vpack.c.b16 %v967, %v966
        %v1017 = vpack.c.b16 %v969, %v968
        %v1018 = vpack.c.b16 %v971, %v970
        %v1019 = vpack.c.b16 %v973, %v972
        %v1020 = vpack.c.b16 %v975, %v974
        %v1021 = vpack.c.b16 %v977, %v976
        %v1022 = vpack.c.b16 %v979, %v978
        %v1023 = vpack.c.b16 %v981, %v980
        %v1024 = vpack.c.b16 %v983, %v982
        %v1025 = vpack.c.b16 %v985, %v984
        %v1026 = vpack.c.b16 %v987, %v986
        %v1027 = vpack.c.b16 %v989, %v988
        %v1028 = vpack.c.b16 %v991, %v990
        %v1029 = vpack.c.b16 %v993, %v992
        %v1030 = vpack.c.b16 %v995, %v994
        %v1031 = vpack.c.b16 %v997, %v996
        %v1032 = vpack.c.b16 %v999, %v998
        %v1033 = vpack.c.b16 %v1001, %v1000
        %1066 = vmatprep.subr.bf16.mxu0 0
        %1067 = vmatpush1.bf16.msra.mxu0 %v1002
        %1068 = vmatprep.subr.bf16.mxu0 0
        %1069 = vmatpush1.bf16.msra.mxu0 %v1003
        %1070 = vmatprep.subr.bf16.mxu0 0
        %1071 = vmatpush1.bf16.msra.mxu0 %v1004
        %1072 = vmatprep.subr.bf16.mxu0 0
        %1073 = vmatpush1.bf16.msra.mxu0 %v1005
        %1074 = vmatprep.subr.bf16.mxu0 0
        %1075 = vmatpush1.bf16.msra.mxu0 %v1006
        %1076 = vmatprep.subr.bf16.mxu0 0
        %1077 = vmatpush1.bf16.msra.mxu0 %v1007
        %1078 = vmatprep.subr.bf16.mxu0 0
        %1079 = vmatpush1.bf16.msra.mxu0 %v1008
        %1080 = vmatprep.subr.bf16.mxu0 0
        %1081 = vmatpush1.bf16.msra.mxu0 %v1009
        %1082 = vmatprep.subr.bf16.mxu0 0
        %1083 = vmatpush1.bf16.msra.mxu0 %v1010
        %1084 = vmatprep.subr.bf16.mxu0 0
        %1085 = vmatpush1.bf16.msra.mxu0 %v1011
        %1086 = vmatprep.subr.bf16.mxu0 0
        %1087 = vmatpush1.bf16.msra.mxu0 %v1012
        %1088 = vmatprep.subr.bf16.mxu0 0
        %1089 = vmatpush1.bf16.msra.mxu0 %v1013
        %1090 = vmatprep.subr.bf16.mxu0 0
        %1091 = vmatpush1.bf16.msra.mxu0 %v1014
        %1092 = vmatprep.subr.bf16.mxu0 0
        %1093 = vmatpush1.bf16.msra.mxu0 %v1015
        %1094 = vmatprep.subr.bf16.mxu0 0
        %1095 = vmatpush1.bf16.msra.mxu0 %v1016
        %1096 = vmatprep.subr.bf16.mxu0 0
        %1097 = vmatpush1.bf16.msra.mxu0 %v1017
        %1098 = vmatprep.mubr.bf16.mxu0 %v843
        %1099 = vmatmul.mubr.bf16.gmra.mrb[0].mxu0 %v842
        %v1100 = vpop.f32.mrb[0].mxu0
        %v1101 = vadd.f32 %v793, %v1100
        %v1102 = vpop.f32.mrb[0].mxu0
        %v1103 = vpop.f32.mrb[0].mxu0
        %v1104 = vadd.f32 %v793, %v1103
        %v1105 = vpop.f32.mrb[0].mxu0
        %1106 = vmatprep.mubr.bf16.mxu0 %v847
        %1107 = vmatmul.mubr.bf16.gmra.mrb[0].mxu0 %v846
        %v1108 = vpop.f32.mrb[0].mxu0
        %v1109 = vadd.f32 %v793, %v1108
        %v1110 = vpop.f32.mrb[0].mxu0
        %v1111 = vpop.f32.mrb[0].mxu0
        %v1112 = vadd.f32 %v793, %v1111
        %v1113 = vpop.f32.mrb[0].mxu0
        %1114 = vmatprep.mubr.bf16.mxu0 %v851
        %1115 = vmatmul.mubr.bf16.gmra.mrb[0].mxu0 %v850
        %v1116 = vpop.f32.mrb[0].mxu0
        %v1117 = vadd.f32 %v793, %v1116
        %v1118 = vpop.f32.mrb[0].mxu0
        %v1119 = vpop.f32.mrb[0].mxu0
        %v1120 = vadd.f32 %v793, %v1119
        %v1121 = vpop.f32.mrb[0].mxu0
        %1122 = vmatprep.mubr.bf16.mxu0 %v855
        %1123 = vmatmul.mubr.bf16.gmra.mrb[0].mxu0 %v854
        %v1124 = vpop.f32.mrb[0].mxu0
        %v1125 = vadd.f32 %v793, %v1124
        %v1126 = vpop.f32.mrb[0].mxu0
        %v1127 = vpop.f32.mrb[0].mxu0
        %v1128 = vadd.f32 %v793, %v1127
        %v1129 = vpop.f32.mrb[0].mxu0
        %1130 = vdwg.mxu0
        %1131 = vmatprep.subr.bf16.mxu0 0
        %1132 = vmatpush1.bf16.msra.mxu0 %v1018
        %1133 = vmatprep.subr.bf16.mxu0 0
        %1134 = vmatpush1.bf16.msra.mxu0 %v1019
        %1135 = vmatprep.subr.bf16.mxu0 0
        %1136 = vmatpush1.bf16.msra.mxu0 %v1020
        %1137 = vmatprep.subr.bf16.mxu0 0
        %1138 = vmatpush1.bf16.msra.mxu0 %v1021
        %1139 = vmatprep.subr.bf16.mxu0 0
        %1140 = vmatpush1.bf16.msra.mxu0 %v1022
        %1141 = vmatprep.subr.bf16.mxu0 0
        %1142 = vmatpush1.bf16.msra.mxu0 %v1023
        %1143 = vmatprep.subr.bf16.mxu0 0
        %1144 = vmatpush1.bf16.msra.mxu0 %v1024
        %1145 = vmatprep.subr.bf16.mxu0 0
        %1146 = vmatpush1.bf16.msra.mxu0 %v1025
        %1147 = vmatprep.subr.bf16.mxu0 0
        %1148 = vmatpush1.bf16.msra.mxu0 %v1026
        %1149 = vmatprep.subr.bf16.mxu0 0
        %1150 = vmatpush1.bf16.msra.mxu0 %v1027
        %1151 = vmatprep.subr.bf16.mxu0 0
        %1152 = vmatpush1.bf16.msra.mxu0 %v1028
        %1153 = vmatprep.subr.bf16.mxu0 0
        %1154 = vmatpush1.bf16.msra.mxu0 %v1029
        %1155 = vmatprep.subr.bf16.mxu0 0
        %1156 = vmatpush1.bf16.msra.mxu0 %v1030
        %1157 = vmatprep.subr.bf16.mxu0 0
        %1158 = vmatpush1.bf16.msra.mxu0 %v1031
        %1159 = vmatprep.subr.bf16.mxu0 0
        %1160 = vmatpush1.bf16.msra.mxu0 %v1032
        %1161 = vmatprep.subr.bf16.mxu0 0
        %1162 = vmatpush1.bf16.msra.mxu0 %v1033
        %1163 = vmatprep.mubr.bf16.mxu0 %v845
        %1164 = vmatmul.mubr.bf16.gmra.mrb[0].mxu0 %v844
        %v1165 = vpop.f32.mrb[0].mxu0
        %v1166 = vadd.f32 %v1101, %v1165
        %v1167 = vpop.f32.mrb[0].mxu0
        %v1168 = vpop.f32.mrb[0].mxu0
        %v1169 = vadd.f32 %v1104, %v1168
        %v1170 = vpop.f32.mrb[0].mxu0
        %1171 = vmatprep.mubr.bf16.mxu0 %v849
        %1172 = vmatmul.mubr.bf16.gmra.mrb[0].mxu0 %v848
        %v1173 = vpop.f32.mrb[0].mxu0
        %v1174 = vadd.f32 %v1109, %v1173
        %v1175 = vpop.f32.mrb[0].mxu0
        %v1176 = vpop.f32.mrb[0].mxu0
        %v1177 = vadd.f32 %v1112, %v1176
        %v1178 = vpop.f32.mrb[0].mxu0
        %1179 = vmatprep.mubr.bf16.mxu0 %v853
        %1180 = vmatmul.mubr.bf16.gmra.mrb[0].mxu0 %v852
        %v1181 = vpop.f32.mrb[0].mxu0
        %v1182 = vadd.f32 %v1117, %v1181
        %v1183 = vpop.f32.mrb[0].mxu0
        %v1184 = vpop.f32.mrb[0].mxu0
        %v1185 = vadd.f32 %v1120, %v1184
        %v1186 = vpop.f32.mrb[0].mxu0
        %1187 = vmatprep.mubr.bf16.mxu0 %v857
        %1188 = vmatmul.mubr.bf16.gmra.mrb[0].mxu0 %v856
        %v1189 = vpop.f32.mrb[0].mxu0
        %v1190 = vadd.f32 %v1125, %v1189
        %v1191 = vpop.f32.mrb[0].mxu0
        %v1192 = vpop.f32.mrb[0].mxu0
        %v1193 = vadd.f32 %v1128, %v1192
        %v1194 = vpop.f32.mrb[0].mxu0
        %1195 = vdwg.mxu0
        %v1196 = vmul.f32 %v1166, %v609
        %v1197 = vmul.f32 %v1169, %v609
        %v1198 = vmul.f32 %v1174, %v609
        %v1199 = vmul.f32 %v1177, %v609
        %v1200 = vmul.f32 %v1182, %v609
        %v1201 = vmul.f32 %v1185, %v609
        %v1202 = vmul.f32 %v1190, %v609
        %v1203 = vmul.f32 %v1193, %v609
        %v1204 = vadd.f32 %v1196, %v645
        %v1205 = vadd.f32 %v1197, %v645
        %v1206 = vadd.f32 %v1198, %v645
        %v1207 = vadd.f32 %v1199, %v645
        %v1208 = vadd.f32 %v1200, %v645
        %v1209 = vadd.f32 %v1201, %v645
        %v1210 = vadd.f32 %v1202, %v645
        %v1211 = vadd.f32 %v1203, %v645
        %v1212 = vmax.f32 %v1204, 0.0
        %v1213 = vmax.f32 %v1205, 0.0
        %v1214 = vmax.f32 %v1206, 0.0
        %v1215 = vmax.f32 %v1207, 0.0
        %v1216 = vmax.f32 %v1208, 0.0
        %v1217 = vmax.f32 %v1209, 0.0
        %v1218 = vmax.f32 %v1210, 0.0
        %v1219 = vmax.f32 %v1211, 0.0
        %v1220 = vld [vmem:[%s4] sm:$0xff]
        %v1221 = vld [vmem:[%s4 + $0x8] sm:$0xff]
        %v1222 = vld [vmem:[%s4 + $0x10] sm:$0xff]
        %v1223 = vld [vmem:[%s4 + $0x18] sm:$0xff]
        %v1224 = vld [vmem:[%s4 + $0x20] sm:$0xff]
        %v1225 = vld [vmem:[%s4 + $0x28] sm:$0xff]
        %v1226 = vld [vmem:[%s4 + $0x30] sm:$0xff]
        %v1227 = vld [vmem:[%s4 + $0x38] sm:$0xff]
        %v1228 = vld [vmem:[%s4 + $0x40] sm:$0xff]
        %v1229 = vld [vmem:[%s4 + $0x48] sm:$0xff]
        %v1230 = vld [vmem:[%s4 + $0x50] sm:$0xff]
        %v1231 = vld [vmem:[%s4 + $0x58] sm:$0xff]
        %v1232 = vld [vmem:[%s4 + $0x60] sm:$0xff]
        %v1233 = vld [vmem:[%s4 + $0x68] sm:$0xff]
        %v1234 = vld [vmem:[%s4 + $0x70] sm:$0xff]
        %v1235 = vld [vmem:[%s4 + $0x78] sm:$0xff]
        %v1236 = vld [vmem:[#allocation7] sm:$0xff]
        %v1237 = vld [vmem:[#allocation8] sm:$0xff]
        %v1238 = vld [vmem:[#allocation8 + $0x8] sm:$0xff]
        %v1239 = vadd.f32 %v1212, %v1213
        %v1240 = vrot.slane %v1239, 4
        %v1241 = vadd.f32 %v1239, %v1240
        %v1242 = vrot.slane %v1241, 2
        %v1243 = vadd.f32 %v1241, %v1242
        %v1244 = vrot.slane %v1243, 1
        %v1245 = vadd.f32 %v1243, %v1244
        %v1246 = vrcp.pop 16.0
        %v1247 = vmul.f32 %v1245, %v1246
        %v1248 = vadd.f32 %v1214, %v1215
        %v1249 = vrot.slane %v1248, 4
        %v1250 = vadd.f32 %v1248, %v1249
        %v1251 = vrot.slane %v1250, 2
        %v1252 = vadd.f32 %v1250, %v1251
        %v1253 = vrot.slane %v1252, 1
        %v1254 = vadd.f32 %v1252, %v1253
        %v1255 = vmul.f32 %v1254, %v1246
        %v1256 = vadd.f32 %v1216, %v1217
        %v1257 = vrot.slane %v1256, 4
        %v1258 = vadd.f32 %v1256, %v1257
        %v1259 = vrot.slane %v1258, 2
        %v1260 = vadd.f32 %v1258, %v1259
        %v1261 = vrot.slane %v1260, 1
        %v1262 = vadd.f32 %v1260, %v1261
        %v1263 = vmul.f32 %v1262, %v1246
        %v1264 = vadd.f32 %v1218, %v1219
        %v1265 = vrot.slane %v1264, 4
        %v1266 = vadd.f32 %v1264, %v1265
        %v1267 = vrot.slane %v1266, 2
        %v1268 = vadd.f32 %v1266, %v1267
        %v1269 = vrot.slane %v1268, 1
        %v1270 = vadd.f32 %v1268, %v1269
        %v1271 = vmul.f32 %v1270, %v1246
        %v1272 = vmax.f32 %v1212, %v1213
        %v1273 = vrot.slane %v1272, 4
        %v1274 = vmax.f32 %v1272, %v1273
        %v1275 = vrot.slane %v1274, 2
        %v1276 = vmax.f32 %v1274, %v1275
        %v1277 = vrot.slane %v1276, 1
        %v1278 = vmax.f32 %v1276, %v1277
        %v1279 = vmax.f32 %v1214, %v1215
        %v1280 = vrot.slane %v1279, 4
        %v1281 = vmax.f32 %v1279, %v1280
        %v1282 = vrot.slane %v1281, 2
        %v1283 = vmax.f32 %v1281, %v1282
        %v1284 = vrot.slane %v1283, 1
        %v1285 = vmax.f32 %v1283, %v1284
        %v1286 = vmax.f32 %v1216, %v1217
        %v1287 = vrot.slane %v1286, 4
        %v1288 = vmax.f32 %v1286, %v1287
        %v1289 = vrot.slane %v1288, 2
        %v1290 = vmax.f32 %v1288, %v1289
        %v1291 = vrot.slane %v1290, 1
        %v1292 = vmax.f32 %v1290, %v1291
        %v1293 = vmax.f32 %v1218, %v1219
        %v1294 = vrot.slane %v1293, 4
        %v1295 = vmax.f32 %v1293, %v1294
        %v1296 = vrot.slane %v1295, 2
        %v1297 = vmax.f32 %v1295, %v1296
        %v1298 = vrot.slane %v1297, 1
        %v1299 = vmax.f32 %v1297, %v1298
        %vm1300 = vcmask 1040384
        %v1301 = vsel %vm1300, %v1247, %v1255
        %vm1302 = vcmask 1041408
        %v1303 = vsel %vm1302, %v1301, %v1263
        %vm1304 = vcmask 1042432
        %v1305 = vsel %vm1304, %v1303, %v1271
        %vm1306 = vcmask 1043456
        %v1307 = vsel %vm1306, %v1305, %v1278
        %vm1308 = vcmask 1044480
        %v1309 = vsel %vm1308, %v1307, %v1285
        %vm1310 = vcmask 1045504
        %v1311 = vsel %vm1310, %v1309, %v1292
        %vm1312 = vcmask 1046528
        %v1313 = vsel %vm1312, %v1311, %v1299
        %1314 = vmatprep.subr.mxu0 0.0
        %1315 = vmatpush1.msra.mxu0 %v1220
        %1316 = vmatprep.subr.mxu0 0.0
        %1317 = vmatpush1.msra.mxu0 %v1221
        %1318 = vmatprep.subr.mxu0 0.0
        %1319 = vmatpush1.msra.mxu0 %v1222
        %1320 = vmatprep.subr.mxu0 0.0
        %1321 = vmatpush1.msra.mxu0 %v1223
        %1322 = vmatprep.subr.mxu0 0.0
        %1323 = vmatpush1.msra.mxu0 %v1224
        %1324 = vmatprep.subr.mxu0 0.0
        %1325 = vmatpush1.msra.mxu0 %v1225
        %1326 = vmatprep.subr.mxu0 0.0
        %1327 = vmatpush1.msra.mxu0 %v1226
        %1328 = vmatprep.subr.mxu0 0.0
        %1329 = vmatpush1.msra.mxu0 %v1227
        %1330 = vmatprep.subr.mxu0 0.0
        %1331 = vmatpush1.msra.mxu0 %v1228
        %1332 = vmatprep.subr.mxu0 0.0
        %1333 = vmatpush1.msra.mxu0 %v1229
        %1334 = vmatprep.subr.mxu0 0.0
        %1335 = vmatpush1.msra.mxu0 %v1230
        %1336 = vmatprep.subr.mxu0 0.0
        %1337 = vmatpush1.msra.mxu0 %v1231
        %1338 = vmatprep.subr.mxu0 0.0
        %1339 = vmatpush1.msra.mxu0 %v1232
        %1340 = vmatprep.subr.mxu0 0.0
        %1341 = vmatpush1.msra.mxu0 %v1233
        %1342 = vmatprep.subr.mxu0 0.0
        %1343 = vmatpush1.msra.mxu0 %v1234
        %1344 = vmatprep.subr.mxu0 0.0
        %1345 = vmatpush1.msra.mxu0 %v1235
        %1346 = vmatprep.subr.mxu0 0.0
        %1347 = vmatpush1.msra.mxu0 0.0
        %1348 = vmatprep.subr.mxu0 0.0
        %1349 = vmatpush1.msra.mxu0 0.0
        %1350 = vmatprep.subr.mxu0 0.0
        %1351 = vmatpush1.msra.mxu0 0.0
        %1352 = vmatprep.subr.mxu0 0.0
        %1353 = vmatpush1.msra.mxu0 0.0
        %1354 = vmatprep.subr.mxu0 0.0
        %1355 = vmatpush1.msra.mxu0 0.0
        %1356 = vmatprep.subr.mxu0 0.0
        %1357 = vmatpush1.msra.mxu0 0.0
        %1358 = vmatprep.subr.mxu0 0.0
        %1359 = vmatpush1.msra.mxu0 0.0
        %1360 = vmatprep.subr.mxu0 0.0
        %1361 = vmatpush1.msra.mxu0 0.0
        %1362 = vmatprep.subr.mxu0 0.0
        %1363 = vmatpush1.msra.mxu0 0.0
        %1364 = vmatprep.subr.mxu0 0.0
        %1365 = vmatpush1.msra.mxu0 0.0
        %1366 = vmatprep.subr.mxu0 0.0
        %1367 = vmatpush1.msra.mxu0 0.0
        %1368 = vmatprep.subr.mxu0 0.0
        %1369 = vmatpush1.msra.mxu0 0.0
        %1370 = vmatprep.subr.mxu0 0.0
        %1371 = vmatpush1.msra.mxu0 0.0
        %1372 = vmatprep.subr.mxu0 0.0
        %1373 = vmatpush1.msra.mxu0 0.0
        %1374 = vmatprep.subr.mxu0 0.0
        %1375 = vmatpush1.msra.mxu0 0.0
        %1376 = vmatprep.subr.mxu0 0.0
        %1377 = vmatpush1.msra.mxu0 0.0
        %1378 = vmatprep.mubr.f32.mxu0 0.0
        %1379 = vmatmul.mubr.f32.gmra.mrb[0].mxu0 %v1313
        %v1380 = vpop.f32.mrb[0].mxu0
        %v1381 = vadd.f32 0.0, %v1380
        %v1382 = vpop.f32.mrb[0].mxu0
        %1383 = vdwg.mxu0
        %v1384 = vmax.f32 %v1381, 0.0
        %vm1385 = vcmask 64512
        %v1387 = vsel %vm1385, %v1384, 0
        %1389 = vmatprep.subr.mxu0 0.0
        %1390 = vmatpush1.msra.mxu0 %v1236
        %1391 = vmatprep.subr.mxu0 0.0
        %1392 = vmatpush1.msra.mxu0 0.0
        %1393 = vmatprep.subr.mxu0 0.0
        %1394 = vmatpush1.msra.mxu0 0.0
        %1395 = vmatprep.subr.mxu0 0.0
        %1396 = vmatpush1.msra.mxu0 0.0
        %1397 = vmatprep.subr.mxu0 0.0
        %1398 = vmatpush1.msra.mxu0 0.0
        %1399 = vmatprep.subr.mxu0 0.0
        %1400 = vmatpush1.msra.mxu0 0.0
        %1401 = vmatprep.subr.mxu0 0.0
        %1402 = vmatpush1.msra.mxu0 0.0
        %1403 = vmatprep.subr.mxu0 0.0
        %1404 = vmatpush1.msra.mxu0 0.0
        %1405 = vmatprep.subr.mxu0 0.0
        %1406 = vmatpush1.msra.mxu0 0.0
        %1407 = vmatprep.subr.mxu0 0.0
        %1408 = vmatpush1.msra.mxu0 0.0
        %1409 = vmatprep.subr.mxu0 0.0
        %1410 = vmatpush1.msra.mxu0 0.0
        %1411 = vmatprep.subr.mxu0 0.0
        %1412 = vmatpush1.msra.mxu0 0.0
        %1413 = vmatprep.subr.mxu0 0.0
        %1414 = vmatpush1.msra.mxu0 0.0
        %1415 = vmatprep.subr.mxu0 0.0
        %1416 = vmatpush1.msra.mxu0 0.0
        %1417 = vmatprep.subr.mxu0 0.0
        %1418 = vmatpush1.msra.mxu0 0.0
        %1419 = vmatprep.subr.mxu0 0.0
        %1420 = vmatpush1.msra.mxu0 0.0
        %1421 = vmatprep.subr.mxu0 0.0
        %1422 = vmatpush1.msra.mxu0 0.0
        %1423 = vmatprep.subr.mxu0 0.0
        %1424 = vmatpush1.msra.mxu0 0.0
        %1425 = vmatprep.subr.mxu0 0.0
        %1426 = vmatpush1.msra.mxu0 0.0
        %1427 = vmatprep.subr.mxu0 0.0
        %1428 = vmatpush1.msra.mxu0 0.0
        %1429 = vmatprep.subr.mxu0 0.0
        %1430 = vmatpush1.msra.mxu0 0.0
        %1431 = vmatprep.subr.mxu0 0.0
        %1432 = vmatpush1.msra.mxu0 0.0
        %1433 = vmatprep.subr.mxu0 0.0
        %1434 = vmatpush1.msra.mxu0 0.0
        %1435 = vmatprep.subr.mxu0 0.0
        %1436 = vmatpush1.msra.mxu0 0.0
        %1437 = vmatprep.subr.mxu0 0.0
        %1438 = vmatpush1.msra.mxu0 0.0
        %1439 = vmatprep.subr.mxu0 0.0
        %1440 = vmatpush1.msra.mxu0 0.0
        %1441 = vmatprep.subr.mxu0 0.0
        %1442 = vmatpush1.msra.mxu0 0.0
        %1443 = vmatprep.subr.mxu0 0.0
        %1444 = vmatpush1.msra.mxu0 0.0
        %1445 = vmatprep.subr.mxu0 0.0
        %1446 = vmatpush1.msra.mxu0 0.0
        %1447 = vmatprep.subr.mxu0 0.0
        %1448 = vmatpush1.msra.mxu0 0.0
        %1449 = vmatprep.subr.mxu0 0.0
        %1450 = vmatpush1.msra.mxu0 0.0
        %1451 = vmatprep.subr.mxu0 0.0
        %1452 = vmatpush1.msra.mxu0 0.0
        %1453 = vmatprep.mubr.f32.mxu0 0.0
        %1454 = vmatmul.mubr.f32.gmra.mrb[0].mxu0 %v1387
        %v1455 = vpop.f32.mrb[0].mxu0
        %v1456 = vadd.f32 0.0, %v1455
        %v1457 = vpop.f32.mrb[0].mxu0
        %1458 = vdwg.mxu0
        %v1460 = vrot.slane %v1456, 4
        %v1462 = vadd.f32 %v1456, %v1460
        %v1463 = vxor.u32 %v1462, 2147483648
        %v1464 = vmul.f32 %v1463, 1.442695
        %v1465 = vpow.pop %v1464
        %v1466 = vadd.f32 %v1465, 1.0
        %v1467 = vrcp.pop %v1466
        %v1468 = vmul.f32 1.0, %v1467
        %v1469 = vlaneseq
        %v1470 = vshrl.u32 %v1469, 7
        %v1471 = vsub.s32 0, %v1470
        %v1472 = vrot.slane %v1468, %v1471
        %v1473 = vmul.f32 %v1212, %v1472
        %v1474 = vmul.f32 %v1213, %v1472
        %v1475 = vlaneseq
        %v1476 = vshrl.u32 %v1475, 7
        %v1477 = vsub.s32 1, %v1476
        %v1478 = vrot.slane %v1468, %v1477
        %v1479 = vmul.f32 %v1214, %v1478
        %v1480 = vmul.f32 %v1215, %v1478
        %v1481 = vlaneseq
        %v1482 = vshrl.u32 %v1481, 7
        %v1483 = vsub.s32 2, %v1482
        %v1484 = vrot.slane %v1468, %v1483
        %v1485 = vmul.f32 %v1216, %v1484
        %v1486 = vmul.f32 %v1217, %v1484
        %v1487 = vlaneseq
        %v1488 = vshrl.u32 %v1487, 7
        %v1489 = vsub.s32 3, %v1488
        %v1490 = vrot.slane %v1468, %v1489
        %v1491 = vmul.f32 %v1218, %v1490
        %v1492 = vmul.f32 %v1219, %v1490
        %1493 = vadd.xlane.f32.xlu0 %v1473
        %v1494 = vpop.xlane.xlu0 %1493
        %1495 = vadd.xlane.f32.xlu0 %v1474
        %v1496 = vpop.xlane.xlu0 %1495
        %v1497 = vrcp.pop 128.0
        %v1498 = vmul.f32 %v1494, %v1497
        %v1499 = vmul.f32 %v1496, %v1497
        %1500 = vadd.xlane.f32.xlu0 %v1479
        %v1501 = vpop.xlane.xlu0 %1500
        %1502 = vadd.xlane.f32.xlu0 %v1480
        %v1503 = vpop.xlane.xlu0 %1502
        %v1504 = vmul.f32 %v1501, %v1497
        %v1505 = vmul.f32 %v1503, %v1497
        %1506 = vadd.xlane.f32.xlu0 %v1485
        %v1507 = vpop.xlane.xlu0 %1506
        %1508 = vadd.xlane.f32.xlu0 %v1486
        %v1509 = vpop.xlane.xlu0 %1508
        %v1510 = vmul.f32 %v1507, %v1497
        %v1511 = vmul.f32 %v1509, %v1497
        %1512 = vadd.xlane.f32.xlu0 %v1491
        %v1513 = vpop.xlane.xlu0 %1512
        %1514 = vadd.xlane.f32.xlu0 %v1492
        %v1515 = vpop.xlane.xlu0 %1514
        %v1516 = vmul.f32 %v1513, %v1497
        %v1517 = vmul.f32 %v1515, %v1497
        %vm1518 = vcmask 7168
        %v1519 = vsel %vm1518, %v1498, %v1504
        %v1520 = vsel %vm1518, %v1499, %v1505
        %vm1521 = vcmask 15360
        %v1522 = vsel %vm1521, %v1519, %v1510
        %v1523 = vsel %vm1521, %v1520, %v1511
        %vm1524 = vcmask 23552
        %v1525 = vsel %vm1524, %v1522, %v1516
        %v1526 = vsel %vm1524, %v1523, %v1517
        %1527 = vmax.xlane.f32.xlu0 %v1473
        %v1528 = vpop.xlane.xlu0 %1527
        %1529 = vmax.xlane.f32.xlu0 %v1474
        %v1530 = vpop.xlane.xlu0 %1529
        %1531 = vmax.xlane.f32.xlu0 %v1479
        %v1532 = vpop.xlane.xlu0 %1531
        %1533 = vmax.xlane.f32.xlu0 %v1480
        %v1534 = vpop.xlane.xlu0 %1533
        %1535 = vmax.xlane.f32.xlu0 %v1485
        %v1536 = vpop.xlane.xlu0 %1535
        %1537 = vmax.xlane.f32.xlu0 %v1486
        %v1538 = vpop.xlane.xlu0 %1537
        %1539 = vmax.xlane.f32.xlu0 %v1491
        %v1540 = vpop.xlane.xlu0 %1539
        %1541 = vmax.xlane.f32.xlu0 %v1492
        %v1542 = vpop.xlane.xlu0 %1541
        %v1543 = vsel %vm1518, %v1528, %v1532
        %v1544 = vsel %vm1518, %v1530, %v1534
        %v1545 = vsel %vm1521, %v1543, %v1536
        %v1546 = vsel %vm1521, %v1544, %v1538
        %v1547 = vsel %vm1524, %v1545, %v1540
        %v1548 = vsel %vm1524, %v1546, %v1542
        %vm1549 = vcmask 261120
        %v1551 = vsel %vm1549, %v1237, 0
        %v1554 = vsel %vm1549, %v1238, 0
        %1556 = vmatprep.subr.mxu0 0.0
        %1557 = vmatpush1.msra.mxu0 %v1525
        %1558 = vmatprep.subr.mxu0 0.0
        %1559 = vmatpush1.msra.mxu0 %v1526
        %1560 = vmatprep.subr.mxu0 0.0
        %1561 = vmatpush1.msra.mxu0 %v1547
        %1562 = vmatprep.subr.mxu0 0.0
        %1563 = vmatpush1.msra.mxu0 %v1548
        %1564 = vmatprep.subr.mxu0 0.0
        %1565 = vmatpush1.msra.mxu0 0.0
        %1566 = vmatprep.subr.mxu0 0.0
        %1567 = vmatpush1.msra.mxu0 0.0
        %1568 = vmatprep.subr.mxu0 0.0
        %1569 = vmatpush1.msra.mxu0 0.0
        %1570 = vmatprep.subr.mxu0 0.0
        %1571 = vmatpush1.msra.mxu0 0.0
        %1572 = vmatprep.subr.mxu0 0.0
        %1573 = vmatpush1.msra.mxu0 0.0
        %1574 = vmatprep.subr.mxu0 0.0
        %1575 = vmatpush1.msra.mxu0 0.0
        %1576 = vmatprep.subr.mxu0 0.0
        %1577 = vmatpush1.msra.mxu0 0.0
        %1578 = vmatprep.subr.mxu0 0.0
        %1579 = vmatpush1.msra.mxu0 0.0
        %1580 = vmatprep.subr.mxu0 0.0
        %1581 = vmatpush1.msra.mxu0 0.0
        %1582 = vmatprep.subr.mxu0 0.0
        %1583 = vmatpush1.msra.mxu0 0.0
        %1584 = vmatprep.subr.mxu0 0.0
        %1585 = vmatpush1.msra.mxu0 0.0
        %1586 = vmatprep.subr.mxu0 0.0
        %1587 = vmatpush1.msra.mxu0 0.0
        %1588 = vmatprep.subr.mxu0 0.0
        %1589 = vmatpush1.msra.mxu0 0.0
        %1590 = vmatprep.subr.mxu0 0.0
        %1591 = vmatpush1.msra.mxu0 0.0
        %1592 = vmatprep.subr.mxu0 0.0
        %1593 = vmatpush1.msra.mxu0 0.0
        %1594 = vmatprep.subr.mxu0 0.0
        %1595 = vmatpush1.msra.mxu0 0.0
        %1596 = vmatprep.subr.mxu0 0.0
        %1597 = vmatpush1.msra.mxu0 0.0
        %1598 = vmatprep.subr.mxu0 0.0
        %1599 = vmatpush1.msra.mxu0 0.0
        %1600 = vmatprep.subr.mxu0 0.0
        %1601 = vmatpush1.msra.mxu0 0.0
        %1602 = vmatprep.subr.mxu0 0.0
        %1603 = vmatpush1.msra.mxu0 0.0
        %1604 = vmatprep.subr.mxu0 0.0
        %1605 = vmatpush1.msra.mxu0 0.0
        %1606 = vmatprep.subr.mxu0 0.0
        %1607 = vmatpush1.msra.mxu0 0.0
        %1608 = vmatprep.subr.mxu0 0.0
        %1609 = vmatpush1.msra.mxu0 0.0
        %1610 = vmatprep.subr.mxu0 0.0
        %1611 = vmatpush1.msra.mxu0 0.0
        %1612 = vmatprep.subr.mxu0 0.0
        %1613 = vmatpush1.msra.mxu0 0.0
        %1614 = vmatprep.subr.mxu0 0.0
        %1615 = vmatpush1.msra.mxu0 0.0
        %1616 = vmatprep.subr.mxu0 0.0
        %1617 = vmatpush1.msra.mxu0 0.0
        %1618 = vmatprep.subr.mxu0 0.0
        %1619 = vmatpush1.msra.mxu0 0.0
        %1620 = vmatprep.mubr.f32.mxu0 0.0
        %1621 = vmatmul.mubr.f32.gmra.mrb[0].mxu0 %v1551
        %v1622 = vpop.f32.mrb[0].mxu0
        %v1623 = vadd.f32 0.0, %v1622
        %v1624 = vpop.f32.mrb[0].mxu0
        %1625 = vmatprep.mubr.f32.mxu0 0.0
        %1626 = vmatmul.mubr.f32.gmra.mrb[0].mxu0 %v1554
        %v1627 = vpop.f32.mrb[0].mxu0
        %v1628 = vadd.f32 0.0, %v1627
        %v1629 = vpop.f32.mrb[0].mxu0
        %1630 = vdwg.mxu0
        %v1631 = vxor.u32 %v1623, 2147483648
        %v1632 = vxor.u32 %v1628, 2147483648
        %v1633 = vmul.f32 %v1631, 1.442695
        %v1634 = vpow.pop %v1633
        %v1635 = vmul.f32 %v1632, 1.442695
        %v1636 = vpow.pop %v1635
        %v1637 = vadd.f32 %v1634, 1.0
        %v1638 = vadd.f32 %v1636, 1.0
        %v1639 = vrcp.pop %v1637
        %v1640 = vmul.f32 1.0, %v1639
        %v1641 = vrcp.pop %v1638
        %v1642 = vmul.f32 1.0, %v1641
        %1644 = vset.pattern.permute.xlu0 0
        %1645 = vperm.xlu0 %1644, %v1640
        %v1646 = vpop.permute.xlu0 %1645
        %1649 = vset.pattern.permute.xlu0 0
        %1650 = vperm.xlu0 %1649, %v1642
        %v1651 = vpop.permute.xlu0 %1650
        %v1653 = vmul.f32 %v1473, %v1646
        %v1654 = vmul.f32 %v1474, %v1651
        %1655 = vset.pattern.permute.xlu0 1
        %1656 = vperm.xlu0 %1655, %v1640
        %v1657 = vpop.permute.xlu0 %1656
        %1659 = vset.pattern.permute.xlu0 1
        %1660 = vperm.xlu0 %1659, %v1642
        %v1661 = vpop.permute.xlu0 %1660
        %v1663 = vmul.f32 %v1479, %v1657
        %v1664 = vmul.f32 %v1480, %v1661
        %1665 = vset.pattern.permute.xlu0 2
        %1666 = vperm.xlu0 %1665, %v1640
        %v1667 = vpop.permute.xlu0 %1666
        %1669 = vset.pattern.permute.xlu0 2
        %1670 = vperm.xlu0 %1669, %v1642
        %v1671 = vpop.permute.xlu0 %1670
        %v1673 = vmul.f32 %v1485, %v1667
        %v1674 = vmul.f32 %v1486, %v1671
        %1675 = vset.pattern.permute.xlu0 3
        %1676 = vperm.xlu0 %1675, %v1640
        %v1677 = vpop.permute.xlu0 %1676
        %1679 = vset.pattern.permute.xlu0 3
        %1680 = vperm.xlu0 %1679, %v1642
        %v1681 = vpop.permute.xlu0 %1680
        %v1683 = vmul.f32 %v1491, %v1677
        %v1684 = vmul.f32 %v1492, %v1681
        %v1685 = vld [vmem:[%s7] sm:$0xff]
        %v1686 = vld [vmem:[%s7 + $0x8] sm:$0xff]
        %v1687 = vld [vmem:[%s7 + $0x10] sm:$0xff]
        %v1688 = vld [vmem:[%s7 + $0x18] sm:$0xff]
        %v1689 = vld [vmem:[%s7 + $0x20] sm:$0xff]
        %v1690 = vld [vmem:[%s7 + $0x28] sm:$0xff]
        %v1691 = vld [vmem:[%s7 + $0x30] sm:$0xff]
        %v1692 = vld [vmem:[%s7 + $0x38] sm:$0xff]
        %vm1693 = vcmask 130048
        %v1695 = vsel %vm1693, %v1685, 0
        %v1698 = vsel %vm1693, %v1686, 0
        %v1701 = vsel %vm1693, %v1687, 0
        %v1704 = vsel %vm1693, %v1688, 0
        %v1707 = vsel %vm1693, %v1689, 0
        %v1710 = vsel %vm1693, %v1690, 0
        %v1713 = vsel %vm1693, %v1691, 0
        %v1716 = vsel %vm1693, %v1692, 0
        %1718 = vmatprep.subr.mxu0 0.0
        %1719 = vmatpush1.msra.mxu0 %v1653
        %1720 = vmatprep.subr.mxu0 0.0
        %1721 = vmatpush1.msra.mxu0 %v1654
        %1722 = vmatprep.subr.mxu0 0.0
        %1723 = vmatpush1.msra.mxu0 0.0
        %1724 = vmatprep.subr.mxu0 0.0
        %1725 = vmatpush1.msra.mxu0 0.0
        %1726 = vmatprep.subr.mxu0 0.0
        %1727 = vmatpush1.msra.mxu0 0.0
        %1728 = vmatprep.subr.mxu0 0.0
        %1729 = vmatpush1.msra.mxu0 0.0
        %1730 = vmatprep.subr.mxu0 0.0
        %1731 = vmatpush1.msra.mxu0 0.0
        %1732 = vmatprep.subr.mxu0 0.0
        %1733 = vmatpush1.msra.mxu0 0.0
        %1734 = vmatprep.subr.mxu0 0.0
        %1735 = vmatpush1.msra.mxu0 0.0
        %1736 = vmatprep.subr.mxu0 0.0
        %1737 = vmatpush1.msra.mxu0 0.0
        %1738 = vmatprep.subr.mxu0 0.0
        %1739 = vmatpush1.msra.mxu0 0.0
        %1740 = vmatprep.subr.mxu0 0.0
        %1741 = vmatpush1.msra.mxu0 0.0
        %1742 = vmatprep.subr.mxu0 0.0
        %1743 = vmatpush1.msra.mxu0 0.0
        %1744 = vmatprep.subr.mxu0 0.0
        %1745 = vmatpush1.msra.mxu0 0.0
        %1746 = vmatprep.subr.mxu0 0.0
        %1747 = vmatpush1.msra.mxu0 0.0
        %1748 = vmatprep.subr.mxu0 0.0
        %1749 = vmatpush1.msra.mxu0 0.0
        %1750 = vmatprep.subr.mxu0 0.0
        %1751 = vmatpush1.msra.mxu0 0.0
        %1752 = vmatprep.subr.mxu0 0.0
        %1753 = vmatpush1.msra.mxu0 0.0
        %1754 = vmatprep.subr.mxu0 0.0
        %1755 = vmatpush1.msra.mxu0 0.0
        %1756 = vmatprep.subr.mxu0 0.0
        %1757 = vmatpush1.msra.mxu0 0.0
        %1758 = vmatprep.subr.mxu0 0.0
        %1759 = vmatpush1.msra.mxu0 0.0
        %1760 = vmatprep.subr.mxu0 0.0
        %1761 = vmatpush1.msra.mxu0 0.0
        %1762 = vmatprep.subr.mxu0 0.0
        %1763 = vmatpush1.msra.mxu0 0.0
        %1764 = vmatprep.subr.mxu0 0.0
        %1765 = vmatpush1.msra.mxu0 0.0
        %1766 = vmatprep.subr.mxu0 0.0
        %1767 = vmatpush1.msra.mxu0 0.0
        %1768 = vmatprep.subr.mxu0 0.0
        %1769 = vmatpush1.msra.mxu0 0.0
        %1770 = vmatprep.subr.mxu0 0.0
        %1771 = vmatpush1.msra.mxu0 0.0
        %1772 = vmatprep.subr.mxu0 0.0
        %1773 = vmatpush1.msra.mxu0 0.0
        %1774 = vmatprep.subr.mxu0 0.0
        %1775 = vmatpush1.msra.mxu0 0.0
        %1776 = vmatprep.subr.mxu0 0.0
        %1777 = vmatpush1.msra.mxu0 0.0
        %1778 = vmatprep.subr.mxu0 0.0
        %1779 = vmatpush1.msra.mxu0 0.0
        %1780 = vmatprep.subr.mxu0 0.0
        %1781 = vmatpush1.msra.mxu0 0.0
        %1782 = vmatprep.mubr.f32.mxu0 0.0
        %1783 = vmatmul.mubr.f32.gmra.mrb[0].mxu0 %v1695
        %v1784 = vpop.f32.mrb[0].mxu0
        %v1785 = vadd.f32 0.0, %v1784
        %v1786 = vpop.f32.mrb[0].mxu0
        %1787 = vmatprep.mubr.f32.mxu0 0.0
        %1788 = vmatmul.mubr.f32.gmra.mrb[0].mxu0 %v1698
        %v1789 = vpop.f32.mrb[0].mxu0
        %v1790 = vadd.f32 0.0, %v1789
        %v1791 = vpop.f32.mrb[0].mxu0
        %1792 = vmatprep.mubr.f32.mxu0 0.0
        %1793 = vmatmul.mubr.f32.gmra.mrb[0].mxu0 %v1701
        %v1794 = vpop.f32.mrb[0].mxu0
        %v1795 = vadd.f32 0.0, %v1794
        %v1796 = vpop.f32.mrb[0].mxu0
        %1797 = vmatprep.mubr.f32.mxu0 0.0
        %1798 = vmatmul.mubr.f32.gmra.mrb[0].mxu0 %v1704
        %v1799 = vpop.f32.mrb[0].mxu0
        %v1800 = vadd.f32 0.0, %v1799
        %v1801 = vpop.f32.mrb[0].mxu0
        %1802 = vmatprep.mubr.f32.mxu0 0.0
        %1803 = vmatmul.mubr.f32.gmra.mrb[0].mxu0 %v1707
        %v1804 = vpop.f32.mrb[0].mxu0
        %v1805 = vadd.f32 0.0, %v1804
        %v1806 = vpop.f32.mrb[0].mxu0
        %1807 = vmatprep.mubr.f32.mxu0 0.0
        %1808 = vmatmul.mubr.f32.gmra.mrb[0].mxu0 %v1710
        %v1809 = vpop.f32.mrb[0].mxu0
        %v1810 = vadd.f32 0.0, %v1809
        %v1811 = vpop.f32.mrb[0].mxu0
        %1812 = vmatprep.mubr.f32.mxu0 0.0
        %1813 = vmatmul.mubr.f32.gmra.mrb[0].mxu0 %v1713
        %v1814 = vpop.f32.mrb[0].mxu0
        %v1815 = vadd.f32 0.0, %v1814
        %v1816 = vpop.f32.mrb[0].mxu0
        %1817 = vmatprep.mubr.f32.mxu0 0.0
        %1818 = vmatmul.mubr.f32.gmra.mrb[0].mxu0 %v1716
        %v1819 = vpop.f32.mrb[0].mxu0
        %v1820 = vadd.f32 0.0, %v1819
        %v1821 = vpop.f32.mrb[0].mxu0
        %1822 = vdwg.mxu0
        %1823 = vmatprep.subr.mxu0 0.0
        %1824 = vmatpush1.msra.mxu0 %v1663
        %1825 = vmatprep.subr.mxu0 0.0
        %1826 = vmatpush1.msra.mxu0 %v1664
        %1827 = vmatprep.subr.mxu0 0.0
        %1828 = vmatpush1.msra.mxu0 0.0
        %1829 = vmatprep.subr.mxu0 0.0
        %1830 = vmatpush1.msra.mxu0 0.0
        %1831 = vmatprep.subr.mxu0 0.0
        %1832 = vmatpush1.msra.mxu0 0.0
        %1833 = vmatprep.subr.mxu0 0.0
        %1834 = vmatpush1.msra.mxu0 0.0
        %1835 = vmatprep.subr.mxu0 0.0
        %1836 = vmatpush1.msra.mxu0 0.0
        %1837 = vmatprep.subr.mxu0 0.0
        %1838 = vmatpush1.msra.mxu0 0.0
        %1839 = vmatprep.subr.mxu0 0.0
        %1840 = vmatpush1.msra.mxu0 0.0
        %1841 = vmatprep.subr.mxu0 0.0
        %1842 = vmatpush1.msra.mxu0 0.0
        %1843 = vmatprep.subr.mxu0 0.0
        %1844 = vmatpush1.msra.mxu0 0.0
        %1845 = vmatprep.subr.mxu0 0.0
        %1846 = vmatpush1.msra.mxu0 0.0
        %1847 = vmatprep.subr.mxu0 0.0
        %1848 = vmatpush1.msra.mxu0 0.0
        %1849 = vmatprep.subr.mxu0 0.0
        %1850 = vmatpush1.msra.mxu0 0.0
        %1851 = vmatprep.subr.mxu0 0.0
        %1852 = vmatpush1.msra.mxu0 0.0
        %1853 = vmatprep.subr.mxu0 0.0
        %1854 = vmatpush1.msra.mxu0 0.0
        %1855 = vmatprep.subr.mxu0 0.0
        %1856 = vmatpush1.msra.mxu0 0.0
        %1857 = vmatprep.subr.mxu0 0.0
        %1858 = vmatpush1.msra.mxu0 0.0
        %1859 = vmatprep.subr.mxu0 0.0
        %1860 = vmatpush1.msra.mxu0 0.0
        %1861 = vmatprep.subr.mxu0 0.0
        %1862 = vmatpush1.msra.mxu0 0.0
        %1863 = vmatprep.subr.mxu0 0.0
        %1864 = vmatpush1.msra.mxu0 0.0
        %1865 = vmatprep.subr.mxu0 0.0
        %1866 = vmatpush1.msra.mxu0 0.0
        %1867 = vmatprep.subr.mxu0 0.0
        %1868 = vmatpush1.msra.mxu0 0.0
        %1869 = vmatprep.subr.mxu0 0.0
        %1870 = vmatpush1.msra.mxu0 0.0
        %1871 = vmatprep.subr.mxu0 0.0
        %1872 = vmatpush1.msra.mxu0 0.0
        %1873 = vmatprep.subr.mxu0 0.0
        %1874 = vmatpush1.msra.mxu0 0.0
        %1875 = vmatprep.subr.mxu0 0.0
        %1876 = vmatpush1.msra.mxu0 0.0
        %1877 = vmatprep.subr.mxu0 0.0
        %1878 = vmatpush1.msra.mxu0 0.0
        %1879 = vmatprep.subr.mxu0 0.0
        %1880 = vmatpush1.msra.mxu0 0.0
        %1881 = vmatprep.subr.mxu0 0.0
        %1882 = vmatpush1.msra.mxu0 0.0
        %1883 = vmatprep.subr.mxu0 0.0
        %1884 = vmatpush1.msra.mxu0 0.0
        %1885 = vmatprep.subr.mxu0 0.0
        %1886 = vmatpush1.msra.mxu0 0.0
        %1887 = vmatprep.mubr.f32.mxu0 0.0
        %1888 = vmatmul.mubr.f32.gmra.mrb[0].mxu0 %v1695
        %v1889 = vpop.f32.mrb[0].mxu0
        %v1890 = vadd.f32 0.0, %v1889
        %v1891 = vpop.f32.mrb[0].mxu0
        %1892 = vmatprep.mubr.f32.mxu0 0.0
        %1893 = vmatmul.mubr.f32.gmra.mrb[0].mxu0 %v1698
        %v1894 = vpop.f32.mrb[0].mxu0
        %v1895 = vadd.f32 0.0, %v1894
        %v1896 = vpop.f32.mrb[0].mxu0
        %1897 = vmatprep.mubr.f32.mxu0 0.0
        %1898 = vmatmul.mubr.f32.gmra.mrb[0].mxu0 %v1701
        %v1899 = vpop.f32.mrb[0].mxu0
        %v1900 = vadd.f32 0.0, %v1899
        %v1901 = vpop.f32.mrb[0].mxu0
        %1902 = vmatprep.mubr.f32.mxu0 0.0
        %1903 = vmatmul.mubr.f32.gmra.mrb[0].mxu0 %v1704
        %v1904 = vpop.f32.mrb[0].mxu0
        %v1905 = vadd.f32 0.0, %v1904
        %v1906 = vpop.f32.mrb[0].mxu0
        %1907 = vmatprep.mubr.f32.mxu0 0.0
        %1908 = vmatmul.mubr.f32.gmra.mrb[0].mxu0 %v1707
        %v1909 = vpop.f32.mrb[0].mxu0
        %v1910 = vadd.f32 0.0, %v1909
        %v1911 = vpop.f32.mrb[0].mxu0
        %1912 = vmatprep.mubr.f32.mxu0 0.0
        %1913 = vmatmul.mubr.f32.gmra.mrb[0].mxu0 %v1710
        %v1914 = vpop.f32.mrb[0].mxu0
        %v1915 = vadd.f32 0.0, %v1914
        %v1916 = vpop.f32.mrb[0].mxu0
        %1917 = vmatprep.mubr.f32.mxu0 0.0
        %1918 = vmatmul.mubr.f32.gmra.mrb[0].mxu0 %v1713
        %v1919 = vpop.f32.mrb[0].mxu0
        %v1920 = vadd.f32 0.0, %v1919
        %v1921 = vpop.f32.mrb[0].mxu0
        %1922 = vmatprep.mubr.f32.mxu0 0.0
        %1923 = vmatmul.mubr.f32.gmra.mrb[0].mxu0 %v1716
        %v1924 = vpop.f32.mrb[0].mxu0
        %v1925 = vadd.f32 0.0, %v1924
        %v1926 = vpop.f32.mrb[0].mxu0
        %1927 = vdwg.mxu0
        %1928 = vmatprep.subr.mxu0 0.0
        %1929 = vmatpush1.msra.mxu0 %v1673
        %1930 = vmatprep.subr.mxu0 0.0
        %1931 = vmatpush1.msra.mxu0 %v1674
        %1932 = vmatprep.subr.mxu0 0.0
        %1933 = vmatpush1.msra.mxu0 0.0
        %1934 = vmatprep.subr.mxu0 0.0
        %1935 = vmatpush1.msra.mxu0 0.0
        %1936 = vmatprep.subr.mxu0 0.0
        %1937 = vmatpush1.msra.mxu0 0.0
        %1938 = vmatprep.subr.mxu0 0.0
        %1939 = vmatpush1.msra.mxu0 0.0
        %1940 = vmatprep.subr.mxu0 0.0
        %1941 = vmatpush1.msra.mxu0 0.0
        %1942 = vmatprep.subr.mxu0 0.0
        %1943 = vmatpush1.msra.mxu0 0.0
        %1944 = vmatprep.subr.mxu0 0.0
        %1945 = vmatpush1.msra.mxu0 0.0
        %1946 = vmatprep.subr.mxu0 0.0
        %1947 = vmatpush1.msra.mxu0 0.0
        %1948 = vmatprep.subr.mxu0 0.0
        %1949 = vmatpush1.msra.mxu0 0.0
        %1950 = vmatprep.subr.mxu0 0.0
        %1951 = vmatpush1.msra.mxu0 0.0
        %1952 = vmatprep.subr.mxu0 0.0
        %1953 = vmatpush1.msra.mxu0 0.0
        %1954 = vmatprep.subr.mxu0 0.0
        %1955 = vmatpush1.msra.mxu0 0.0
        %1956 = vmatprep.subr.mxu0 0.0
        %1957 = vmatpush1.msra.mxu0 0.0
        %1958 = vmatprep.subr.mxu0 0.0
        %1959 = vmatpush1.msra.mxu0 0.0
        %1960 = vmatprep.subr.mxu0 0.0
        %1961 = vmatpush1.msra.mxu0 0.0
        %1962 = vmatprep.subr.mxu0 0.0
        %1963 = vmatpush1.msra.mxu0 0.0
        %1964 = vmatprep.subr.mxu0 0.0
        %1965 = vmatpush1.msra.mxu0 0.0
        %1966 = vmatprep.subr.mxu0 0.0
        %1967 = vmatpush1.msra.mxu0 0.0
        %1968 = vmatprep.subr.mxu0 0.0
        %1969 = vmatpush1.msra.mxu0 0.0
        %1970 = vmatprep.subr.mxu0 0.0
        %1971 = vmatpush1.msra.mxu0 0.0
        %1972 = vmatprep.subr.mxu0 0.0
        %1973 = vmatpush1.msra.mxu0 0.0
        %1974 = vmatprep.subr.mxu0 0.0
        %1975 = vmatpush1.msra.mxu0 0.0
        %1976 = vmatprep.subr.mxu0 0.0
        %1977 = vmatpush1.msra.mxu0 0.0
        %1978 = vmatprep.subr.mxu0 0.0
        %1979 = vmatpush1.msra.mxu0 0.0
        %1980 = vmatprep.subr.mxu0 0.0
        %1981 = vmatpush1.msra.mxu0 0.0
        %1982 = vmatprep.subr.mxu0 0.0
        %1983 = vmatpush1.msra.mxu0 0.0
        %1984 = vmatprep.subr.mxu0 0.0
        %1985 = vmatpush1.msra.mxu0 0.0
        %1986 = vmatprep.subr.mxu0 0.0
        %1987 = vmatpush1.msra.mxu0 0.0
        %1988 = vmatprep.subr.mxu0 0.0
        %1989 = vmatpush1.msra.mxu0 0.0
        %1990 = vmatprep.subr.mxu0 0.0
        %1991 = vmatpush1.msra.mxu0 0.0
        %1992 = vmatprep.mubr.f32.mxu0 0.0
        %1993 = vmatmul.mubr.f32.gmra.mrb[0].mxu0 %v1695
        %v1994 = vpop.f32.mrb[0].mxu0
        %v1995 = vadd.f32 0.0, %v1994
        %v1996 = vpop.f32.mrb[0].mxu0
        %1997 = vmatprep.mubr.f32.mxu0 0.0
        %1998 = vmatmul.mubr.f32.gmra.mrb[0].mxu0 %v1698
        %v1999 = vpop.f32.mrb[0].mxu0
        %v2000 = vadd.f32 0.0, %v1999
        %v2001 = vpop.f32.mrb[0].mxu0
        %2002 = vmatprep.mubr.f32.mxu0 0.0
        %2003 = vmatmul.mubr.f32.gmra.mrb[0].mxu0 %v1701
        %v2004 = vpop.f32.mrb[0].mxu0
        %v2005 = vadd.f32 0.0, %v2004
        %v2006 = vpop.f32.mrb[0].mxu0
        %2007 = vmatprep.mubr.f32.mxu0 0.0
        %2008 = vmatmul.mubr.f32.gmra.mrb[0].mxu0 %v1704
        %v2009 = vpop.f32.mrb[0].mxu0
        %v2010 = vadd.f32 0.0, %v2009
        %v2011 = vpop.f32.mrb[0].mxu0
        %2012 = vmatprep.mubr.f32.mxu0 0.0
        %2013 = vmatmul.mubr.f32.gmra.mrb[0].mxu0 %v1707
        %v2014 = vpop.f32.mrb[0].mxu0
        %v2015 = vadd.f32 0.0, %v2014
        %v2016 = vpop.f32.mrb[0].mxu0
        %2017 = vmatprep.mubr.f32.mxu0 0.0
        %2018 = vmatmul.mubr.f32.gmra.mrb[0].mxu0 %v1710
        %v2019 = vpop.f32.mrb[0].mxu0
        %v2020 = vadd.f32 0.0, %v2019
        %v2021 = vpop.f32.mrb[0].mxu0
        %2022 = vmatprep.mubr.f32.mxu0 0.0
        %2023 = vmatmul.mubr.f32.gmra.mrb[0].mxu0 %v1713
        %v2024 = vpop.f32.mrb[0].mxu0
        %v2025 = vadd.f32 0.0, %v2024
        %v2026 = vpop.f32.mrb[0].mxu0
        %2027 = vmatprep.mubr.f32.mxu0 0.0
        %2028 = vmatmul.mubr.f32.gmra.mrb[0].mxu0 %v1716
        %v2029 = vpop.f32.mrb[0].mxu0
        %v2030 = vadd.f32 0.0, %v2029
        %v2031 = vpop.f32.mrb[0].mxu0
        %2032 = vdwg.mxu0
        %2033 = vmatprep.subr.mxu0 0.0
        %2034 = vmatpush1.msra.mxu0 %v1683
        %2035 = vmatprep.subr.mxu0 0.0
        %2036 = vmatpush1.msra.mxu0 %v1684
        %2037 = vmatprep.subr.mxu0 0.0
        %2038 = vmatpush1.msra.mxu0 0.0
        %2039 = vmatprep.subr.mxu0 0.0
        %2040 = vmatpush1.msra.mxu0 0.0
        %2041 = vmatprep.subr.mxu0 0.0
        %2042 = vmatpush1.msra.mxu0 0.0
        %2043 = vmatprep.subr.mxu0 0.0
        %2044 = vmatpush1.msra.mxu0 0.0
        %2045 = vmatprep.subr.mxu0 0.0
        %2046 = vmatpush1.msra.mxu0 0.0
        %2047 = vmatprep.subr.mxu0 0.0
        %2048 = vmatpush1.msra.mxu0 0.0
        %2049 = vmatprep.subr.mxu0 0.0
        %2050 = vmatpush1.msra.mxu0 0.0
        %2051 = vmatprep.subr.mxu0 0.0
        %2052 = vmatpush1.msra.mxu0 0.0
        %2053 = vmatprep.subr.mxu0 0.0
        %2054 = vmatpush1.msra.mxu0 0.0
        %2055 = vmatprep.subr.mxu0 0.0
        %2056 = vmatpush1.msra.mxu0 0.0
        %2057 = vmatprep.subr.mxu0 0.0
        %2058 = vmatpush1.msra.mxu0 0.0
        %2059 = vmatprep.subr.mxu0 0.0
        %2060 = vmatpush1.msra.mxu0 0.0
        %2061 = vmatprep.subr.mxu0 0.0
        %2062 = vmatpush1.msra.mxu0 0.0
        %2063 = vmatprep.subr.mxu0 0.0
        %2064 = vmatpush1.msra.mxu0 0.0
        %2065 = vmatprep.subr.mxu0 0.0
        %2066 = vmatpush1.msra.mxu0 0.0
        %2067 = vmatprep.subr.mxu0 0.0
        %2068 = vmatpush1.msra.mxu0 0.0
        %2069 = vmatprep.subr.mxu0 0.0
        %2070 = vmatpush1.msra.mxu0 0.0
        %2071 = vmatprep.subr.mxu0 0.0
        %2072 = vmatpush1.msra.mxu0 0.0
        %2073 = vmatprep.subr.mxu0 0.0
        %2074 = vmatpush1.msra.mxu0 0.0
        %2075 = vmatprep.subr.mxu0 0.0
        %2076 = vmatpush1.msra.mxu0 0.0
        %2077 = vmatprep.subr.mxu0 0.0
        %2078 = vmatpush1.msra.mxu0 0.0
        %2079 = vmatprep.subr.mxu0 0.0
        %2080 = vmatpush1.msra.mxu0 0.0
        %2081 = vmatprep.subr.mxu0 0.0
        %2082 = vmatpush1.msra.mxu0 0.0
        %2083 = vmatprep.subr.mxu0 0.0
        %2084 = vmatpush1.msra.mxu0 0.0
        %2085 = vmatprep.subr.mxu0 0.0
        %2086 = vmatpush1.msra.mxu0 0.0
        %2087 = vmatprep.subr.mxu0 0.0
        %2088 = vmatpush1.msra.mxu0 0.0
        %2089 = vmatprep.subr.mxu0 0.0
        %2090 = vmatpush1.msra.mxu0 0.0
        %2091 = vmatprep.subr.mxu0 0.0
        %2092 = vmatpush1.msra.mxu0 0.0
        %2093 = vmatprep.subr.mxu0 0.0
        %2094 = vmatpush1.msra.mxu0 0.0
        %2095 = vmatprep.subr.mxu0 0.0
        %2096 = vmatpush1.msra.mxu0 0.0
        %2097 = vmatprep.mubr.f32.mxu0 0.0
        %2098 = vmatmul.mubr.f32.gmra.mrb[0].mxu0 %v1695
        %v2099 = vpop.f32.mrb[0].mxu0
        %v2100 = vadd.f32 0.0, %v2099
        %v2101 = vpop.f32.mrb[0].mxu0
        %2102 = vmatprep.mubr.f32.mxu0 0.0
        %2103 = vmatmul.mubr.f32.gmra.mrb[0].mxu0 %v1698
        %v2104 = vpop.f32.mrb[0].mxu0
        %v2105 = vadd.f32 0.0, %v2104
        %v2106 = vpop.f32.mrb[0].mxu0
        %2107 = vmatprep.mubr.f32.mxu0 0.0
        %2108 = vmatmul.mubr.f32.gmra.mrb[0].mxu0 %v1701
        %v2109 = vpop.f32.mrb[0].mxu0
        %v2110 = vadd.f32 0.0, %v2109
        %v2111 = vpop.f32.mrb[0].mxu0
        %2112 = vmatprep.mubr.f32.mxu0 0.0
        %2113 = vmatmul.mubr.f32.gmra.mrb[0].mxu0 %v1704
        %v2114 = vpop.f32.mrb[0].mxu0
        %v2115 = vadd.f32 0.0, %v2114
        %v2116 = vpop.f32.mrb[0].mxu0
        %2117 = vmatprep.mubr.f32.mxu0 0.0
        %2118 = vmatmul.mubr.f32.gmra.mrb[0].mxu0 %v1707
        %v2119 = vpop.f32.mrb[0].mxu0
        %v2120 = vadd.f32 0.0, %v2119
        %v2121 = vpop.f32.mrb[0].mxu0
        %2122 = vmatprep.mubr.f32.mxu0 0.0
        %2123 = vmatmul.mubr.f32.gmra.mrb[0].mxu0 %v1710
        %v2124 = vpop.f32.mrb[0].mxu0
        %v2125 = vadd.f32 0.0, %v2124
        %v2126 = vpop.f32.mrb[0].mxu0
        %2127 = vmatprep.mubr.f32.mxu0 0.0
        %2128 = vmatmul.mubr.f32.gmra.mrb[0].mxu0 %v1713
        %v2129 = vpop.f32.mrb[0].mxu0
        %v2130 = vadd.f32 0.0, %v2129
        %v2131 = vpop.f32.mrb[0].mxu0
        %2132 = vmatprep.mubr.f32.mxu0 0.0
        %2133 = vmatmul.mubr.f32.gmra.mrb[0].mxu0 %v1716
        %v2134 = vpop.f32.mrb[0].mxu0
        %v2135 = vadd.f32 0.0, %v2134
        %v2136 = vpop.f32.mrb[0].mxu0
        %2137 = vdwg.mxu0
        %v2138 = vmul.f32 %v1785, %v609
        %v2139 = vmul.f32 %v1790, %v609
        %v2140 = vmul.f32 %v1795, %v609
        %v2141 = vmul.f32 %v1800, %v609
        %v2142 = vmul.f32 %v1805, %v609
        %v2143 = vmul.f32 %v1810, %v609
        %v2144 = vmul.f32 %v1815, %v609
        %v2145 = vmul.f32 %v1820, %v609
        %v2146 = vmul.f32 %v1890, %v609
        %v2147 = vmul.f32 %v1895, %v609
        %v2148 = vmul.f32 %v1900, %v609
        %v2149 = vmul.f32 %v1905, %v609
        %v2150 = vmul.f32 %v1910, %v609
        %v2151 = vmul.f32 %v1915, %v609
        %v2152 = vmul.f32 %v1920, %v609
        %v2153 = vmul.f32 %v1925, %v609
        %v2154 = vmul.f32 %v1995, %v609
        %v2155 = vmul.f32 %v2000, %v609
        %v2156 = vmul.f32 %v2005, %v609
        %v2157 = vmul.f32 %v2010, %v609
        %v2158 = vmul.f32 %v2015, %v609
        %v2159 = vmul.f32 %v2020, %v609
        %v2160 = vmul.f32 %v2025, %v609
        %v2161 = vmul.f32 %v2030, %v609
        %v2162 = vmul.f32 %v2100, %v609
        %v2163 = vmul.f32 %v2105, %v609
        %v2164 = vmul.f32 %v2110, %v609
        %v2165 = vmul.f32 %v2115, %v609
        %v2166 = vmul.f32 %v2120, %v609
        %v2167 = vmul.f32 %v2125, %v609
        %v2168 = vmul.f32 %v2130, %v609
        %v2169 = vmul.f32 %v2135, %v609
        %v2170 = vadd.f32 %v2138, %v645
        %v2171 = vadd.f32 %v2139, %v645
        %v2172 = vadd.f32 %v2140, %v645
        %v2173 = vadd.f32 %v2141, %v645
        %v2174 = vadd.f32 %v2142, %v645
        %v2175 = vadd.f32 %v2143, %v645
        %v2176 = vadd.f32 %v2144, %v645
        %v2177 = vadd.f32 %v2145, %v645
        %v2178 = vadd.f32 %v2146, %v645
        %v2179 = vadd.f32 %v2147, %v645
        %v2180 = vadd.f32 %v2148, %v645
        %v2181 = vadd.f32 %v2149, %v645
        %v2182 = vadd.f32 %v2150, %v645
        %v2183 = vadd.f32 %v2151, %v645
        %v2184 = vadd.f32 %v2152, %v645
        %v2185 = vadd.f32 %v2153, %v645
        %v2186 = vadd.f32 %v2154, %v645
        %v2187 = vadd.f32 %v2155, %v645
        %v2188 = vadd.f32 %v2156, %v645
        %v2189 = vadd.f32 %v2157, %v645
        %v2190 = vadd.f32 %v2158, %v645
        %v2191 = vadd.f32 %v2159, %v645
        %v2192 = vadd.f32 %v2160, %v645
        %v2193 = vadd.f32 %v2161, %v645
        %v2194 = vadd.f32 %v2162, %v645
        %v2195 = vadd.f32 %v2163, %v645
        %v2196 = vadd.f32 %v2164, %v645
        %v2197 = vadd.f32 %v2165, %v645
        %v2198 = vadd.f32 %v2166, %v645
        %v2199 = vadd.f32 %v2167, %v645
        %v2200 = vadd.f32 %v2168, %v645
        %v2201 = vadd.f32 %v2169, %v645
        %v2202 = vmax.f32 %v2170, 0.0
        %v2203 = vmax.f32 %v2171, 0.0
        %v2204 = vmax.f32 %v2172, 0.0
        %v2205 = vmax.f32 %v2173, 0.0
        %v2206 = vmax.f32 %v2174, 0.0
        %v2207 = vmax.f32 %v2175, 0.0
        %v2208 = vmax.f32 %v2176, 0.0
        %v2209 = vmax.f32 %v2177, 0.0
        %v2210 = vmax.f32 %v2178, 0.0
        %v2211 = vmax.f32 %v2179, 0.0
        %v2212 = vmax.f32 %v2180, 0.0
        %v2213 = vmax.f32 %v2181, 0.0
        %v2214 = vmax.f32 %v2182, 0.0
        %v2215 = vmax.f32 %v2183, 0.0
        %v2216 = vmax.f32 %v2184, 0.0
        %v2217 = vmax.f32 %v2185, 0.0
        %v2218 = vmax.f32 %v2186, 0.0
        %v2219 = vmax.f32 %v2187, 0.0
        %v2220 = vmax.f32 %v2188, 0.0
        %v2221 = vmax.f32 %v2189, 0.0
        %v2222 = vmax.f32 %v2190, 0.0
        %v2223 = vmax.f32 %v2191, 0.0
        %v2224 = vmax.f32 %v2192, 0.0
        %v2225 = vmax.f32 %v2193, 0.0
        %v2226 = vmax.f32 %v2194, 0.0
        %v2227 = vmax.f32 %v2195, 0.0
        %v2228 = vmax.f32 %v2196, 0.0
        %v2229 = vmax.f32 %v2197, 0.0
        %v2230 = vmax.f32 %v2198, 0.0
        %v2231 = vmax.f32 %v2199, 0.0
        %v2232 = vmax.f32 %v2200, 0.0
        %v2233 = vmax.f32 %v2201, 0.0
        %v2234 = vld [vmem:[%s8] sm:$0xff]
        %v2235 = vld [vmem:[%s8 + $0x8] sm:$0xff]
        %v2236 = vld [vmem:[%s8 + $0x10] sm:$0xff]
        %v2237 = vld [vmem:[%s8 + $0x18] sm:$0xff]
        %v2238 = vld [vmem:[%s8 + $0x20] sm:$0xff]
        %v2239 = vld [vmem:[%s8 + $0x28] sm:$0xff]
        %v2240 = vld [vmem:[%s8 + $0x30] sm:$0xff]
        %v2241 = vld [vmem:[%s8 + $0x38] sm:$0xff]
        %v2242 = vld [vmem:[%s8 + $0x40] sm:$0xff]
        %v2243 = vld [vmem:[%s8 + $0x48] sm:$0xff]
        %v2244 = vld [vmem:[%s8 + $0x50] sm:$0xff]
        %v2245 = vld [vmem:[%s8 + $0x58] sm:$0xff]
        %v2246 = vld [vmem:[%s8 + $0x60] sm:$0xff]
        %v2247 = vld [vmem:[%s8 + $0x68] sm:$0xff]
        %v2248 = vld [vmem:[%s8 + $0x70] sm:$0xff]
        %v2249 = vld [vmem:[%s8 + $0x78] sm:$0xff]
        %v2250 = vld [vmem:[%s8 + $0x80] sm:$0xff]
        %v2251 = vld [vmem:[%s8 + $0x88] sm:$0xff]
        %v2252 = vld [vmem:[%s8 + $0x90] sm:$0xff]
        %v2253 = vld [vmem:[%s8 + $0x98] sm:$0xff]
        %v2254 = vld [vmem:[%s8 + $0xa0] sm:$0xff]
        %v2255 = vld [vmem:[%s8 + $0xa8] sm:$0xff]
        %v2256 = vld [vmem:[%s8 + $0xb0] sm:$0xff]
        %v2257 = vld [vmem:[%s8 + $0xb8] sm:$0xff]
        %v2258 = vld [vmem:[%s8 + $0xc0] sm:$0xff]
        %v2259 = vld [vmem:[%s8 + $0xc8] sm:$0xff]
        %v2260 = vld [vmem:[%s8 + $0xd0] sm:$0xff]
        %v2261 = vld [vmem:[%s8 + $0xd8] sm:$0xff]
        %v2262 = vld [vmem:[%s8 + $0xe0] sm:$0xff]
        %v2263 = vld [vmem:[%s8 + $0xe8] sm:$0xff]
        %v2264 = vld [vmem:[%s8 + $0xf0] sm:$0xff]
        %v2265 = vld [vmem:[%s8 + $0xf8] sm:$0xff]
        %v2266 = vld [vmem:[#allocation10] sm:$0xff]
        %v2267 = vld [vmem:[#allocation10 + $0x8] sm:$0xff]
        %v2268 = vld [vmem:[#allocation10 + $0x10] sm:$0xff]
        %v2269 = vld [vmem:[#allocation10 + $0x18] sm:$0xff]
        %v2270 = vld [vmem:[#allocation11] sm:$0xff]
        %v2271 = vld [vmem:[#allocation11 + $0x8] sm:$0xff]
        %v2272 = vld [vmem:[#allocation11 + $0x10] sm:$0xff]
        %v2273 = vld [vmem:[#allocation11 + $0x18] sm:$0xff]
        %v2274 = vld [vmem:[#allocation11 + $0x20] sm:$0xff]
        %v2275 = vld [vmem:[#allocation11 + $0x28] sm:$0xff]
        %v2276 = vld [vmem:[#allocation11 + $0x30] sm:$0xff]
        %v2277 = vld [vmem:[#allocation11 + $0x38] sm:$0xff]
        %v2278 = vadd.f32 %v678, %v679
        %v2279 = vadd.f32 %v2278, %v680
        %v2280 = vadd.f32 %v2279, %v681
        %v2281 = vadd.f32 %v2280, %v682
        %v2282 = vadd.f32 %v2281, %v683
        %v2283 = vadd.f32 %v2282, %v684
        %v2284 = vadd.f32 %v2283, %v685
        %v2285 = vrot.slane %v2284, 4
        %v2286 = vadd.f32 %v2284, %v2285
        %v2287 = vrot.slane %v2286, 2
        %v2288 = vadd.f32 %v2286, %v2287
        %v2289 = vrot.slane %v2288, 1
        %v2290 = vadd.f32 %v2288, %v2289
        %v2291 = vadd.f32 %v2202, %v2203
        %v2292 = vadd.f32 %v2291, %v2204
        %v2293 = vadd.f32 %v2292, %v2205
        %v2294 = vadd.f32 %v2293, %v2206
        %v2295 = vadd.f32 %v2294, %v2207
        %v2296 = vadd.f32 %v2295, %v2208
        %v2297 = vadd.f32 %v2296, %v2209
        %v2298 = vrot.slane %v2297, 4
        %v2299 = vadd.f32 %v2297, %v2298
        %v2300 = vrot.slane %v2299, 2
        %v2301 = vadd.f32 %v2299, %v2300
        %v2302 = vrot.slane %v2301, 1
        %v2303 = vadd.f32 %v2301, %v2302
        %v2304 = vrcp.pop 64.0
        %v2305 = vmul.f32 %v2290, %v2304
        %v2306 = vmul.f32 %v2303, %v2304
        %v2307 = vadd.f32 %v686, %v687
        %v2308 = vadd.f32 %v2307, %v688
        %v2309 = vadd.f32 %v2308, %v689
        %v2310 = vadd.f32 %v2309, %v690
        %v2311 = vadd.f32 %v2310, %v691
        %v2312 = vadd.f32 %v2311, %v692
        %v2313 = vadd.f32 %v2312, %v693
        %v2314 = vrot.slane %v2313, 4
        %v2315 = vadd.f32 %v2313, %v2314
        %v2316 = vrot.slane %v2315, 2
        %v2317 = vadd.f32 %v2315, %v2316
        %v2318 = vrot.slane %v2317, 1
        %v2319 = vadd.f32 %v2317, %v2318
        %v2320 = vadd.f32 %v2210, %v2211
        %v2321 = vadd.f32 %v2320, %v2212
        %v2322 = vadd.f32 %v2321, %v2213
        %v2323 = vadd.f32 %v2322, %v2214
        %v2324 = vadd.f32 %v2323, %v2215
        %v2325 = vadd.f32 %v2324, %v2216
        %v2326 = vadd.f32 %v2325, %v2217
        %v2327 = vrot.slane %v2326, 4
        %v2328 = vadd.f32 %v2326, %v2327
        %v2329 = vrot.slane %v2328, 2
        %v2330 = vadd.f32 %v2328, %v2329
        %v2331 = vrot.slane %v2330, 1
        %v2332 = vadd.f32 %v2330, %v2331
        %v2333 = vmul.f32 %v2319, %v2304
        %v2334 = vmul.f32 %v2332, %v2304
        %v2335 = vadd.f32 %v694, %v695
        %v2336 = vadd.f32 %v2335, %v696
        %v2337 = vadd.f32 %v2336, %v697
        %v2338 = vadd.f32 %v2337, %v698
        %v2339 = vadd.f32 %v2338, %v699
        %v2340 = vadd.f32 %v2339, %v700
        %v2341 = vadd.f32 %v2340, %v701
        %v2342 = vrot.slane %v2341, 4
        %v2343 = vadd.f32 %v2341, %v2342
        %v2344 = vrot.slane %v2343, 2
        %v2345 = vadd.f32 %v2343, %v2344
        %v2346 = vrot.slane %v2345, 1
        %v2347 = vadd.f32 %v2345, %v2346
        %v2348 = vadd.f32 %v2218, %v2219
        %v2349 = vadd.f32 %v2348, %v2220
        %v2350 = vadd.f32 %v2349, %v2221
        %v2351 = vadd.f32 %v2350, %v2222
        %v2352 = vadd.f32 %v2351, %v2223
        %v2353 = vadd.f32 %v2352, %v2224
        %v2354 = vadd.f32 %v2353, %v2225
        %v2355 = vrot.slane %v2354, 4
        %v2356 = vadd.f32 %v2354, %v2355
        %v2357 = vrot.slane %v2356, 2
        %v2358 = vadd.f32 %v2356, %v2357
        %v2359 = vrot.slane %v2358, 1
        %v2360 = vadd.f32 %v2358, %v2359
        %v2361 = vmul.f32 %v2347, %v2304
        %v2362 = vmul.f32 %v2360, %v2304
        %v2363 = vadd.f32 %v702, %v703
        %v2364 = vadd.f32 %v2363, %v704
        %v2365 = vadd.f32 %v2364, %v705
        %v2366 = vadd.f32 %v2365, %v706
        %v2367 = vadd.f32 %v2366, %v707
        %v2368 = vadd.f32 %v2367, %v708
        %v2369 = vadd.f32 %v2368, %v709
        %v2370 = vrot.slane %v2369, 4
        %v2371 = vadd.f32 %v2369, %v2370
        %v2372 = vrot.slane %v2371, 2
        %v2373 = vadd.f32 %v2371, %v2372
        %v2374 = vrot.slane %v2373, 1
        %v2375 = vadd.f32 %v2373, %v2374
        %v2376 = vadd.f32 %v2226, %v2227
        %v2377 = vadd.f32 %v2376, %v2228
        %v2378 = vadd.f32 %v2377, %v2229
        %v2379 = vadd.f32 %v2378, %v2230
        %v2380 = vadd.f32 %v2379, %v2231
        %v2381 = vadd.f32 %v2380, %v2232
        %v2382 = vadd.f32 %v2381, %v2233
        %v2383 = vrot.slane %v2382, 4
        %v2384 = vadd.f32 %v2382, %v2383
        %v2385 = vrot.slane %v2384, 2
        %v2386 = vadd.f32 %v2384, %v2385
        %v2387 = vrot.slane %v2386, 1
        %v2388 = vadd.f32 %v2386, %v2387
        %v2389 = vmul.f32 %v2375, %v2304
        %v2390 = vmul.f32 %v2388, %v2304
        %v2391 = vmax.f32 %v678, %v680
        %v2392 = vmax.f32 %v679, %v681
        %v2393 = vmax.f32 %v2391, %v682
        %v2394 = vmax.f32 %v2392, %v683
        %v2395 = vmax.f32 %v2393, %v684
        %v2396 = vmax.f32 %v2394, %v685
        %v2397 = vmax.f32 %v2395, %v2396
        %v2398 = vrot.slane %v2397, 4
        %v2399 = vmax.f32 %v2397, %v2398
        %v2400 = vrot.slane %v2399, 2
        %v2401 = vmax.f32 %v2399, %v2400
        %v2402 = vrot.slane %v2401, 1
        %v2403 = vmax.f32 %v2401, %v2402
        %v2404 = vmax.f32 %v2202, %v2204
        %v2405 = vmax.f32 %v2203, %v2205
        %v2406 = vmax.f32 %v2404, %v2206
        %v2407 = vmax.f32 %v2405, %v2207
        %v2408 = vmax.f32 %v2406, %v2208
        %v2409 = vmax.f32 %v2407, %v2209
        %v2410 = vmax.f32 %v2408, %v2409
        %v2411 = vrot.slane %v2410, 4
        %v2412 = vmax.f32 %v2410, %v2411
        %v2413 = vrot.slane %v2412, 2
        %v2414 = vmax.f32 %v2412, %v2413
        %v2415 = vrot.slane %v2414, 1
        %v2416 = vmax.f32 %v2414, %v2415
        %v2417 = vmax.f32 %v686, %v688
        %v2418 = vmax.f32 %v687, %v689
        %v2419 = vmax.f32 %v2417, %v690
        %v2420 = vmax.f32 %v2418, %v691
        %v2421 = vmax.f32 %v2419, %v692
        %v2422 = vmax.f32 %v2420, %v693
        %v2423 = vmax.f32 %v2421, %v2422
        %v2424 = vrot.slane %v2423, 4
        %v2425 = vmax.f32 %v2423, %v2424
        %v2426 = vrot.slane %v2425, 2
        %v2427 = vmax.f32 %v2425, %v2426
        %v2428 = vrot.slane %v2427, 1
        %v2429 = vmax.f32 %v2427, %v2428
        %v2430 = vmax.f32 %v2210, %v2212
        %v2431 = vmax.f32 %v2211, %v2213
        %v2432 = vmax.f32 %v2430, %v2214
        %v2433 = vmax.f32 %v2431, %v2215
        %v2434 = vmax.f32 %v2432, %v2216
        %v2435 = vmax.f32 %v2433, %v2217
        %v2436 = vmax.f32 %v2434, %v2435
        %v2437 = vrot.slane %v2436, 4
        %v2438 = vmax.f32 %v2436, %v2437
        %v2439 = vrot.slane %v2438, 2
        %v2440 = vmax.f32 %v2438, %v2439
        %v2441 = vrot.slane %v2440, 1
        %v2442 = vmax.f32 %v2440, %v2441
        %v2443 = vmax.f32 %v694, %v696
        %v2444 = vmax.f32 %v695, %v697
        %v2445 = vmax.f32 %v2443, %v698
        %v2446 = vmax.f32 %v2444, %v699
        %v2447 = vmax.f32 %v2445, %v700
        %v2448 = vmax.f32 %v2446, %v701
        %v2449 = vmax.f32 %v2447, %v2448
        %v2450 = vrot.slane %v2449, 4
        %v2451 = vmax.f32 %v2449, %v2450
        %v2452 = vrot.slane %v2451, 2
        %v2453 = vmax.f32 %v2451, %v2452
        %v2454 = vrot.slane %v2453, 1
        %v2455 = vmax.f32 %v2453, %v2454
        %v2456 = vmax.f32 %v2218, %v2220
        %v2457 = vmax.f32 %v2219, %v2221
        %v2458 = vmax.f32 %v2456, %v2222
        %v2459 = vmax.f32 %v2457, %v2223
        %v2460 = vmax.f32 %v2458, %v2224
        %v2461 = vmax.f32 %v2459, %v2225
        %v2462 = vmax.f32 %v2460, %v2461
        %v2463 = vrot.slane %v2462, 4
        %v2464 = vmax.f32 %v2462, %v2463
        %v2465 = vrot.slane %v2464, 2
        %v2466 = vmax.f32 %v2464, %v2465
        %v2467 = vrot.slane %v2466, 1
        %v2468 = vmax.f32 %v2466, %v2467
        %v2469 = vmax.f32 %v702, %v704
        %v2470 = vmax.f32 %v703, %v705
        %v2471 = vmax.f32 %v2469, %v706
        %v2472 = vmax.f32 %v2470, %v707
        %v2473 = vmax.f32 %v2471, %v708
        %v2474 = vmax.f32 %v2472, %v709
        %v2475 = vmax.f32 %v2473, %v2474
        %v2476 = vrot.slane %v2475, 4
        %v2477 = vmax.f32 %v2475, %v2476
        %v2478 = vrot.slane %v2477, 2
        %v2479 = vmax.f32 %v2477, %v2478
        %v2480 = vrot.slane %v2479, 1
        %v2481 = vmax.f32 %v2479, %v2480
        %v2482 = vmax.f32 %v2226, %v2228
        %v2483 = vmax.f32 %v2227, %v2229
        %v2484 = vmax.f32 %v2482, %v2230
        %v2485 = vmax.f32 %v2483, %v2231
        %v2486 = vmax.f32 %v2484, %v2232
        %v2487 = vmax.f32 %v2485, %v2233
        %v2488 = vmax.f32 %v2486, %v2487
        %v2489 = vrot.slane %v2488, 4
        %v2490 = vmax.f32 %v2488, %v2489
        %v2491 = vrot.slane %v2490, 2
        %v2492 = vmax.f32 %v2490, %v2491
        %v2493 = vrot.slane %v2492, 1
        %v2494 = vmax.f32 %v2492, %v2493
        %v2495 = vsel %vm1300, %v2305, %v2333
        %v2496 = vsel %vm1300, %v2306, %v2334
        %v2497 = vsel %vm1302, %v2495, %v2361
        %v2498 = vsel %vm1302, %v2496, %v2362
        %v2499 = vsel %vm1304, %v2497, %v2389
        %v2500 = vsel %vm1304, %v2498, %v2390
        %v2501 = vsel %vm1306, %v2499, %v2403
        %v2502 = vsel %vm1306, %v2500, %v2416
        %v2503 = vsel %vm1308, %v2501, %v2429
        %v2504 = vsel %vm1308, %v2502, %v2442
        %v2505 = vsel %vm1310, %v2503, %v2455
        %v2506 = vsel %vm1310, %v2504, %v2468
        %v2507 = vsel %vm1312, %v2505, %v2481
        %v2508 = vsel %vm1312, %v2506, %v2494
        %2509 = vmatprep.subr.mxu0 0.0
        %2510 = vmatpush1.msra.mxu0 %v2234
        %2511 = vmatprep.subr.mxu0 0.0
        %2512 = vmatpush1.msra.mxu0 %v2235
        %2513 = vmatprep.subr.mxu0 0.0
        %2514 = vmatpush1.msra.mxu0 %v2236
        %2515 = vmatprep.subr.mxu0 0.0
        %2516 = vmatpush1.msra.mxu0 %v2237
        %2517 = vmatprep.subr.mxu0 0.0
        %2518 = vmatpush1.msra.mxu0 %v2238
        %2519 = vmatprep.subr.mxu0 0.0
        %2520 = vmatpush1.msra.mxu0 %v2239
        %2521 = vmatprep.subr.mxu0 0.0
        %2522 = vmatpush1.msra.mxu0 %v2240
        %2523 = vmatprep.subr.mxu0 0.0
        %2524 = vmatpush1.msra.mxu0 %v2241
        %2525 = vmatprep.subr.mxu0 0.0
        %2526 = vmatpush1.msra.mxu0 %v2242
        %2527 = vmatprep.subr.mxu0 0.0
        %2528 = vmatpush1.msra.mxu0 %v2243
        %2529 = vmatprep.subr.mxu0 0.0
        %2530 = vmatpush1.msra.mxu0 %v2244
        %2531 = vmatprep.subr.mxu0 0.0
        %2532 = vmatpush1.msra.mxu0 %v2245
        %2533 = vmatprep.subr.mxu0 0.0
        %2534 = vmatpush1.msra.mxu0 %v2246
        %2535 = vmatprep.subr.mxu0 0.0
        %2536 = vmatpush1.msra.mxu0 %v2247
        %2537 = vmatprep.subr.mxu0 0.0
        %2538 = vmatpush1.msra.mxu0 %v2248
        %2539 = vmatprep.subr.mxu0 0.0
        %2540 = vmatpush1.msra.mxu0 %v2249
        %2541 = vmatprep.subr.mxu0 0.0
        %2542 = vmatpush1.msra.mxu0 %v2250
        %2543 = vmatprep.subr.mxu0 0.0
        %2544 = vmatpush1.msra.mxu0 %v2251
        %2545 = vmatprep.subr.mxu0 0.0
        %2546 = vmatpush1.msra.mxu0 %v2252
        %2547 = vmatprep.subr.mxu0 0.0
        %2548 = vmatpush1.msra.mxu0 %v2253
        %2549 = vmatprep.subr.mxu0 0.0
        %2550 = vmatpush1.msra.mxu0 %v2254
        %2551 = vmatprep.subr.mxu0 0.0
        %2552 = vmatpush1.msra.mxu0 %v2255
        %2553 = vmatprep.subr.mxu0 0.0
        %2554 = vmatpush1.msra.mxu0 %v2256
        %2555 = vmatprep.subr.mxu0 0.0
        %2556 = vmatpush1.msra.mxu0 %v2257
        %2557 = vmatprep.subr.mxu0 0.0
        %2558 = vmatpush1.msra.mxu0 %v2258
        %2559 = vmatprep.subr.mxu0 0.0
        %2560 = vmatpush1.msra.mxu0 %v2259
        %2561 = vmatprep.subr.mxu0 0.0
        %2562 = vmatpush1.msra.mxu0 %v2260
        %2563 = vmatprep.subr.mxu0 0.0
        %2564 = vmatpush1.msra.mxu0 %v2261
        %2565 = vmatprep.subr.mxu0 0.0
        %2566 = vmatpush1.msra.mxu0 %v2262
        %2567 = vmatprep.subr.mxu0 0.0
        %2568 = vmatpush1.msra.mxu0 %v2263
        %2569 = vmatprep.subr.mxu0 0.0
        %2570 = vmatpush1.msra.mxu0 %v2264
        %2571 = vmatprep.subr.mxu0 0.0
        %2572 = vmatpush1.msra.mxu0 %v2265
        %2573 = vmatprep.mubr.f32.mxu0 %v2508
        %2574 = vmatmul.mubr.f32.gmra.mrb[0].mxu0 %v2507
        %v2575 = vpop.f32.mrb[0].mxu0
        %v2576 = vadd.f32 0.0, %v2575
        %v2577 = vpop.f32.mrb[0].mxu0
        %2578 = vdwg.mxu0
        %v2579 = vmax.f32 %v2576, 0.0
        %v2581 = vsel %vm1693, %v2579, 0
        %2583 = vmatprep.subr.mxu0 %v2267
        %2584 = vmatpush1.msra.mxu0 %v2266
        %2585 = vmatprep.subr.mxu0 %v2269
        %2586 = vmatpush1.msra.mxu0 %v2268
        %2587 = vmatprep.subr.mxu0 0.0
        %2588 = vmatpush1.msra.mxu0 0.0
        %2589 = vmatprep.subr.mxu0 0.0
        %2590 = vmatpush1.msra.mxu0 0.0
        %2591 = vmatprep.subr.mxu0 0.0
        %2592 = vmatpush1.msra.mxu0 0.0
        %2593 = vmatprep.subr.mxu0 0.0
        %2594 = vmatpush1.msra.mxu0 0.0
        %2595 = vmatprep.subr.mxu0 0.0
        %2596 = vmatpush1.msra.mxu0 0.0
        %2597 = vmatprep.subr.mxu0 0.0
        %2598 = vmatpush1.msra.mxu0 0.0
        %2599 = vmatprep.subr.mxu0 0.0
        %2600 = vmatpush1.msra.mxu0 0.0
        %2601 = vmatprep.subr.mxu0 0.0
        %2602 = vmatpush1.msra.mxu0 0.0
        %2603 = vmatprep.subr.mxu0 0.0
        %2604 = vmatpush1.msra.mxu0 0.0
        %2605 = vmatprep.subr.mxu0 0.0
        %2606 = vmatpush1.msra.mxu0 0.0
        %2607 = vmatprep.subr.mxu0 0.0
        %2608 = vmatpush1.msra.mxu0 0.0
        %2609 = vmatprep.subr.mxu0 0.0
        %2610 = vmatpush1.msra.mxu0 0.0
        %2611 = vmatprep.subr.mxu0 0.0
        %2612 = vmatpush1.msra.mxu0 0.0
        %2613 = vmatprep.subr.mxu0 0.0
        %2614 = vmatpush1.msra.mxu0 0.0
        %2615 = vmatprep.subr.mxu0 0.0
        %2616 = vmatpush1.msra.mxu0 0.0
        %2617 = vmatprep.subr.mxu0 0.0
        %2618 = vmatpush1.msra.mxu0 0.0
        %2619 = vmatprep.subr.mxu0 0.0
        %2620 = vmatpush1.msra.mxu0 0.0
        %2621 = vmatprep.subr.mxu0 0.0
        %2622 = vmatpush1.msra.mxu0 0.0
        %2623 = vmatprep.subr.mxu0 0.0
        %2624 = vmatpush1.msra.mxu0 0.0
        %2625 = vmatprep.subr.mxu0 0.0
        %2626 = vmatpush1.msra.mxu0 0.0
        %2627 = vmatprep.subr.mxu0 0.0
        %2628 = vmatpush1.msra.mxu0 0.0
        %2629 = vmatprep.subr.mxu0 0.0
        %2630 = vmatpush1.msra.mxu0 0.0
        %2631 = vmatprep.subr.mxu0 0.0
        %2632 = vmatpush1.msra.mxu0 0.0
        %2633 = vmatprep.subr.mxu0 0.0
        %2634 = vmatpush1.msra.mxu0 0.0
        %2635 = vmatprep.subr.mxu0 0.0
        %2636 = vmatpush1.msra.mxu0 0.0
        %2637 = vmatprep.subr.mxu0 0.0
        %2638 = vmatpush1.msra.mxu0 0.0
        %2639 = vmatprep.subr.mxu0 0.0
        %2640 = vmatpush1.msra.mxu0 0.0
        %2641 = vmatprep.subr.mxu0 0.0
        %2642 = vmatpush1.msra.mxu0 0.0
        %2643 = vmatprep.subr.mxu0 0.0
        %2644 = vmatpush1.msra.mxu0 0.0
        %2645 = vmatprep.subr.mxu0 0.0
        %2646 = vmatpush1.msra.mxu0 0.0
        %2647 = vmatprep.mubr.f32.mxu0 0.0
        %2648 = vmatmul.mubr.f32.gmra.mrb[0].mxu0 %v2581
        %v2649 = vpop.f32.mrb[0].mxu0
        %v2650 = vadd.f32 0.0, %v2649
        %v2651 = vpop.f32.mrb[0].mxu0
        %v2652 = vadd.f32 0.0, %v2651
        %2653 = vdwg.mxu0
        %v2656 = vrot.slane %v2650, 4
        %v2657 = vrot.slane %v2652, 4
        %v2660 = vadd.f32 %v2650, %v2656
        %v2661 = vadd.f32 %v2652, %v2657
        %v2662 = vxor.u32 %v2660, 2147483648
        %v2663 = vxor.u32 %v2661, 2147483648
        %v2664 = vmul.f32 %v2662, 1.442695
        %v2665 = vpow.pop %v2664
        %v2666 = vmul.f32 %v2663, 1.442695
        %v2667 = vpow.pop %v2666
        %v2668 = vadd.f32 %v2665, 1.0
        %v2669 = vadd.f32 %v2667, 1.0
        %v2670 = vrcp.pop %v2668
        %v2671 = vmul.f32 1.0, %v2670
        %v2672 = vrcp.pop %v2669
        %v2673 = vmul.f32 1.0, %v2672
        %v2674 = vlaneseq
        %v2675 = vshrl.u32 %v2674, 7
        %v2676 = vsub.s32 0, %v2675
        %v2677 = vrot.slane %v2671, %v2676
        %v2678 = vlaneseq
        %v2679 = vshrl.u32 %v2678, 7
        %v2680 = vsub.s32 0, %v2679
        %v2681 = vrot.slane %v2673, %v2680
        %v2682 = vmul.f32 %v678, %v2677
        %v2683 = vmul.f32 %v2202, %v2681
        %v2684 = vmul.f32 %v679, %v2677
        %v2685 = vmul.f32 %v2203, %v2681
        %v2686 = vmul.f32 %v680, %v2677
        %v2687 = vmul.f32 %v2204, %v2681
        %v2688 = vmul.f32 %v681, %v2677
        %v2689 = vmul.f32 %v2205, %v2681
        %v2690 = vmul.f32 %v682, %v2677
        %v2691 = vmul.f32 %v2206, %v2681
        %v2692 = vmul.f32 %v683, %v2677
        %v2693 = vmul.f32 %v2207, %v2681
        %v2694 = vmul.f32 %v684, %v2677
        %v2695 = vmul.f32 %v2208, %v2681
        %v2696 = vmul.f32 %v685, %v2677
        %v2697 = vmul.f32 %v2209, %v2681
        %v2698 = vlaneseq
        %v2699 = vshrl.u32 %v2698, 7
        %v2700 = vsub.s32 1, %v2699
        %v2701 = vrot.slane %v2671, %v2700
        %v2702 = vlaneseq
        %v2703 = vshrl.u32 %v2702, 7
        %v2704 = vsub.s32 1, %v2703
        %v2705 = vrot.slane %v2673, %v2704
        %v2706 = vmul.f32 %v686, %v2701
        %v2707 = vmul.f32 %v2210, %v2705
        %v2708 = vmul.f32 %v687, %v2701
        %v2709 = vmul.f32 %v2211, %v2705
        %v2710 = vmul.f32 %v688, %v2701
        %v2711 = vmul.f32 %v2212, %v2705
        %v2712 = vmul.f32 %v689, %v2701
        %v2713 = vmul.f32 %v2213, %v2705
        %v2714 = vmul.f32 %v690, %v2701
        %v2715 = vmul.f32 %v2214, %v2705
        %v2716 = vmul.f32 %v691, %v2701
        %v2717 = vmul.f32 %v2215, %v2705
        %v2718 = vmul.f32 %v692, %v2701
        %v2719 = vmul.f32 %v2216, %v2705
        %v2720 = vmul.f32 %v693, %v2701
        %v2721 = vmul.f32 %v2217, %v2705
        %v2722 = vlaneseq
        %v2723 = vshrl.u32 %v2722, 7
        %v2724 = vsub.s32 2, %v2723
        %v2725 = vrot.slane %v2671, %v2724
        %v2726 = vlaneseq
        %v2727 = vshrl.u32 %v2726, 7
        %v2728 = vsub.s32 2, %v2727
        %v2729 = vrot.slane %v2673, %v2728
        %v2730 = vmul.f32 %v694, %v2725
        %v2731 = vmul.f32 %v2218, %v2729
        %v2732 = vmul.f32 %v695, %v2725
        %v2733 = vmul.f32 %v2219, %v2729
        %v2734 = vmul.f32 %v696, %v2725
        %v2735 = vmul.f32 %v2220, %v2729
        %v2736 = vmul.f32 %v697, %v2725
        %v2737 = vmul.f32 %v2221, %v2729
        %v2738 = vmul.f32 %v698, %v2725
        %v2739 = vmul.f32 %v2222, %v2729
        %v2740 = vmul.f32 %v699, %v2725
        %v2741 = vmul.f32 %v2223, %v2729
        %v2742 = vmul.f32 %v700, %v2725
        %v2743 = vmul.f32 %v2224, %v2729
        %v2744 = vmul.f32 %v701, %v2725
        %v2745 = vmul.f32 %v2225, %v2729
        %v2746 = vlaneseq
        %v2747 = vshrl.u32 %v2746, 7
        %v2748 = vsub.s32 3, %v2747
        %v2749 = vrot.slane %v2671, %v2748
        %v2750 = vlaneseq
        %v2751 = vshrl.u32 %v2750, 7
        %v2752 = vsub.s32 3, %v2751
        %v2753 = vrot.slane %v2673, %v2752
        %v2754 = vmul.f32 %v702, %v2749
        %v2755 = vmul.f32 %v2226, %v2753
        %v2756 = vmul.f32 %v703, %v2749
        %v2757 = vmul.f32 %v2227, %v2753
        %v2758 = vmul.f32 %v704, %v2749
        %v2759 = vmul.f32 %v2228, %v2753
        %v2760 = vmul.f32 %v705, %v2749
        %v2761 = vmul.f32 %v2229, %v2753
        %v2762 = vmul.f32 %v706, %v2749
        %v2763 = vmul.f32 %v2230, %v2753
        %v2764 = vmul.f32 %v707, %v2749
        %v2765 = vmul.f32 %v2231, %v2753
        %v2766 = vmul.f32 %v708, %v2749
        %v2767 = vmul.f32 %v2232, %v2753
        %v2768 = vmul.f32 %v709, %v2749
        %v2769 = vmul.f32 %v2233, %v2753
        %v2770 = vadd.f32 %v2682, %v2683
        %2771 = vadd.xlane.f32.xlu0 %v2770
        %v2772 = vpop.xlane.xlu0 %2771
        %v2773 = vadd.f32 %v2684, %v2685
        %2774 = vadd.xlane.f32.xlu0 %v2773
        %v2775 = vpop.xlane.xlu0 %2774
        %v2776 = vadd.f32 %v2686, %v2687
        %2777 = vadd.xlane.f32.xlu0 %v2776
        %v2778 = vpop.xlane.xlu0 %2777
        %v2779 = vadd.f32 %v2688, %v2689
        %2780 = vadd.xlane.f32.xlu0 %v2779
        %v2781 = vpop.xlane.xlu0 %2780
        %v2782 = vadd.f32 %v2690, %v2691
        %2783 = vadd.xlane.f32.xlu0 %v2782
        %v2784 = vpop.xlane.xlu0 %2783
        %v2785 = vadd.f32 %v2692, %v2693
        %2786 = vadd.xlane.f32.xlu0 %v2785
        %v2787 = vpop.xlane.xlu0 %2786
        %v2788 = vadd.f32 %v2694, %v2695
        %2789 = vadd.xlane.f32.xlu0 %v2788
        %v2790 = vpop.xlane.xlu0 %2789
        %v2791 = vadd.f32 %v2696, %v2697
        %2792 = vadd.xlane.f32.xlu0 %v2791
        %v2793 = vpop.xlane.xlu0 %2792
        %v2794 = vrcp.pop 256.0
        %v2795 = vmul.f32 %v2772, %v2794
        %v2796 = vmul.f32 %v2775, %v2794
        %v2797 = vmul.f32 %v2778, %v2794
        %v2798 = vmul.f32 %v2781, %v2794
        %v2799 = vmul.f32 %v2784, %v2794
        %v2800 = vmul.f32 %v2787, %v2794
        %v2801 = vmul.f32 %v2790, %v2794
        %v2802 = vmul.f32 %v2793, %v2794
        %v2803 = vadd.f32 %v2706, %v2707
        %2804 = vadd.xlane.f32.xlu0 %v2803
        %v2805 = vpop.xlane.xlu0 %2804
        %v2806 = vadd.f32 %v2708, %v2709
        %2807 = vadd.xlane.f32.xlu0 %v2806
        %v2808 = vpop.xlane.xlu0 %2807
        %v2809 = vadd.f32 %v2710, %v2711
        %2810 = vadd.xlane.f32.xlu0 %v2809
        %v2811 = vpop.xlane.xlu0 %2810
        %v2812 = vadd.f32 %v2712, %v2713
        %2813 = vadd.xlane.f32.xlu0 %v2812
        %v2814 = vpop.xlane.xlu0 %2813
        %v2815 = vadd.f32 %v2714, %v2715
        %2816 = vadd.xlane.f32.xlu0 %v2815
        %v2817 = vpop.xlane.xlu0 %2816
        %v2818 = vadd.f32 %v2716, %v2717
        %2819 = vadd.xlane.f32.xlu0 %v2818
        %v2820 = vpop.xlane.xlu0 %2819
        %v2821 = vadd.f32 %v2718, %v2719
        %2822 = vadd.xlane.f32.xlu0 %v2821
        %v2823 = vpop.xlane.xlu0 %2822
        %v2824 = vadd.f32 %v2720, %v2721
        %2825 = vadd.xlane.f32.xlu0 %v2824
        %v2826 = vpop.xlane.xlu0 %2825
        %v2827 = vmul.f32 %v2805, %v2794
        %v2828 = vmul.f32 %v2808, %v2794
        %v2829 = vmul.f32 %v2811, %v2794
        %v2830 = vmul.f32 %v2814, %v2794
        %v2831 = vmul.f32 %v2817, %v2794
        %v2832 = vmul.f32 %v2820, %v2794
        %v2833 = vmul.f32 %v2823, %v2794
        %v2834 = vmul.f32 %v2826, %v2794
        %v2835 = vadd.f32 %v2730, %v2731
        %2836 = vadd.xlane.f32.xlu0 %v2835
        %v2837 = vpop.xlane.xlu0 %2836
        %v2838 = vadd.f32 %v2732, %v2733
        %2839 = vadd.xlane.f32.xlu0 %v2838
        %v2840 = vpop.xlane.xlu0 %2839
        %v2841 = vadd.f32 %v2734, %v2735
        %2842 = vadd.xlane.f32.xlu0 %v2841
        %v2843 = vpop.xlane.xlu0 %2842
        %v2844 = vadd.f32 %v2736, %v2737
        %2845 = vadd.xlane.f32.xlu0 %v2844
        %v2846 = vpop.xlane.xlu0 %2845
        %v2847 = vadd.f32 %v2738, %v2739
        %2848 = vadd.xlane.f32.xlu0 %v2847
        %v2849 = vpop.xlane.xlu0 %2848
        %v2850 = vadd.f32 %v2740, %v2741
        %2851 = vadd.xlane.f32.xlu0 %v2850
        %v2852 = vpop.xlane.xlu0 %2851
        %v2853 = vadd.f32 %v2742, %v2743
        %2854 = vadd.xlane.f32.xlu0 %v2853
        %v2855 = vpop.xlane.xlu0 %2854
        %v2856 = vadd.f32 %v2744, %v2745
        %2857 = vadd.xlane.f32.xlu0 %v2856
        %v2858 = vpop.xlane.xlu0 %2857
        %v2859 = vmul.f32 %v2837, %v2794
        %v2860 = vmul.f32 %v2840, %v2794
        %v2861 = vmul.f32 %v2843, %v2794
        %v2862 = vmul.f32 %v2846, %v2794
        %v2863 = vmul.f32 %v2849, %v2794
        %v2864 = vmul.f32 %v2852, %v2794
        %v2865 = vmul.f32 %v2855, %v2794
        %v2866 = vmul.f32 %v2858, %v2794
        %v2867 = vadd.f32 %v2754, %v2755
        %2868 = vadd.xlane.f32.xlu0 %v2867
        %v2869 = vpop.xlane.xlu0 %2868
        %v2870 = vadd.f32 %v2756, %v2757
        %2871 = vadd.xlane.f32.xlu0 %v2870
        %v2872 = vpop.xlane.xlu0 %2871
        %v2873 = vadd.f32 %v2758, %v2759
        %2874 = vadd.xlane.f32.xlu0 %v2873
        %v2875 = vpop.xlane.xlu0 %2874
        %v2876 = vadd.f32 %v2760, %v2761
        %2877 = vadd.xlane.f32.xlu0 %v2876
        %v2878 = vpop.xlane.xlu0 %2877
        %v2879 = vadd.f32 %v2762, %v2763
        %2880 = vadd.xlane.f32.xlu0 %v2879
        %v2881 = vpop.xlane.xlu0 %2880
        %v2882 = vadd.f32 %v2764, %v2765
        %2883 = vadd.xlane.f32.xlu0 %v2882
        %v2884 = vpop.xlane.xlu0 %2883
        %v2885 = vadd.f32 %v2766, %v2767
        %2886 = vadd.xlane.f32.xlu0 %v2885
        %v2887 = vpop.xlane.xlu0 %2886
        %v2888 = vadd.f32 %v2768, %v2769
        %2889 = vadd.xlane.f32.xlu0 %v2888
        %v2890 = vpop.xlane.xlu0 %2889
        %v2891 = vmul.f32 %v2869, %v2794
        %v2892 = vmul.f32 %v2872, %v2794
        %v2893 = vmul.f32 %v2875, %v2794
        %v2894 = vmul.f32 %v2878, %v2794
        %v2895 = vmul.f32 %v2881, %v2794
        %v2896 = vmul.f32 %v2884, %v2794
        %v2897 = vmul.f32 %v2887, %v2794
        %v2898 = vmul.f32 %v2890, %v2794
        %v2899 = vsel %vm1518, %v2795, %v2827
        %v2900 = vsel %vm1518, %v2796, %v2828
        %v2901 = vsel %vm1518, %v2797, %v2829
        %v2902 = vsel %vm1518, %v2798, %v2830
        %v2903 = vsel %vm1518, %v2799, %v2831
        %v2904 = vsel %vm1518, %v2800, %v2832
        %v2905 = vsel %vm1518, %v2801, %v2833
        %v2906 = vsel %vm1518, %v2802, %v2834
        %v2907 = vsel %vm1521, %v2899, %v2859
        %v2908 = vsel %vm1521, %v2900, %v2860
        %v2909 = vsel %vm1521, %v2901, %v2861
        %v2910 = vsel %vm1521, %v2902, %v2862
        %v2911 = vsel %vm1521, %v2903, %v2863
        %v2912 = vsel %vm1521, %v2904, %v2864
        %v2913 = vsel %vm1521, %v2905, %v2865
        %v2914 = vsel %vm1521, %v2906, %v2866
        %v2915 = vsel %vm1524, %v2907, %v2891
        %v2916 = vsel %vm1524, %v2908, %v2892
        %v2917 = vsel %vm1524, %v2909, %v2893
        %v2918 = vsel %vm1524, %v2910, %v2894
        %v2919 = vsel %vm1524, %v2911, %v2895
        %v2920 = vsel %vm1524, %v2912, %v2896
        %v2921 = vsel %vm1524, %v2913, %v2897
        %v2922 = vsel %vm1524, %v2914, %v2898
        %v2923 = vmax.f32 %v2682, %v2683
        %2924 = vmax.xlane.f32.xlu0 %v2923
        %v2925 = vpop.xlane.xlu0 %2924
        %v2926 = vmax.f32 %v2684, %v2685
        %2927 = vmax.xlane.f32.xlu0 %v2926
        %v2928 = vpop.xlane.xlu0 %2927
        %v2929 = vmax.f32 %v2686, %v2687
        %2930 = vmax.xlane.f32.xlu0 %v2929
        %v2931 = vpop.xlane.xlu0 %2930
        %v2932 = vmax.f32 %v2688, %v2689
        %2933 = vmax.xlane.f32.xlu0 %v2932
        %v2934 = vpop.xlane.xlu0 %2933
        %v2935 = vmax.f32 %v2690, %v2691
        %2936 = vmax.xlane.f32.xlu0 %v2935
        %v2937 = vpop.xlane.xlu0 %2936
        %v2938 = vmax.f32 %v2692, %v2693
        %2939 = vmax.xlane.f32.xlu0 %v2938
        %v2940 = vpop.xlane.xlu0 %2939
        %v2941 = vmax.f32 %v2694, %v2695
        %2942 = vmax.xlane.f32.xlu0 %v2941
        %v2943 = vpop.xlane.xlu0 %2942
        %v2944 = vmax.f32 %v2696, %v2697
        %2945 = vmax.xlane.f32.xlu0 %v2944
        %v2946 = vpop.xlane.xlu0 %2945
        %v2947 = vmax.f32 %v2706, %v2707
        %2948 = vmax.xlane.f32.xlu0 %v2947
        %v2949 = vpop.xlane.xlu0 %2948
        %v2950 = vmax.f32 %v2708, %v2709
        %2951 = vmax.xlane.f32.xlu0 %v2950
        %v2952 = vpop.xlane.xlu0 %2951
        %v2953 = vmax.f32 %v2710, %v2711
        %2954 = vmax.xlane.f32.xlu0 %v2953
        %v2955 = vpop.xlane.xlu0 %2954
        %v2956 = vmax.f32 %v2712, %v2713
        %2957 = vmax.xlane.f32.xlu0 %v2956
        %v2958 = vpop.xlane.xlu0 %2957
        %v2959 = vmax.f32 %v2714, %v2715
        %2960 = vmax.xlane.f32.xlu0 %v2959
        %v2961 = vpop.xlane.xlu0 %2960
        %v2962 = vmax.f32 %v2716, %v2717
        %2963 = vmax.xlane.f32.xlu0 %v2962
        %v2964 = vpop.xlane.xlu0 %2963
        %v2965 = vmax.f32 %v2718, %v2719
        %2966 = vmax.xlane.f32.xlu0 %v2965
        %v2967 = vpop.xlane.xlu0 %2966
        %v2968 = vmax.f32 %v2720, %v2721
        %2969 = vmax.xlane.f32.xlu0 %v2968
        %v2970 = vpop.xlane.xlu0 %2969
        %v2971 = vmax.f32 %v2730, %v2731
        %2972 = vmax.xlane.f32.xlu0 %v2971
        %v2973 = vpop.xlane.xlu0 %2972
        %v2974 = vmax.f32 %v2732, %v2733
        %2975 = vmax.xlane.f32.xlu0 %v2974
        %v2976 = vpop.xlane.xlu0 %2975
        %v2977 = vmax.f32 %v2734, %v2735
        %2978 = vmax.xlane.f32.xlu0 %v2977
        %v2979 = vpop.xlane.xlu0 %2978
        %v2980 = vmax.f32 %v2736, %v2737
        %2981 = vmax.xlane.f32.xlu0 %v2980
        %v2982 = vpop.xlane.xlu0 %2981
        %v2983 = vmax.f32 %v2738, %v2739
        %2984 = vmax.xlane.f32.xlu0 %v2983
        %v2985 = vpop.xlane.xlu0 %2984
        %v2986 = vmax.f32 %v2740, %v2741
        %2987 = vmax.xlane.f32.xlu0 %v2986
        %v2988 = vpop.xlane.xlu0 %2987
        %v2989 = vmax.f32 %v2742, %v2743
        %2990 = vmax.xlane.f32.xlu0 %v2989
        %v2991 = vpop.xlane.xlu0 %2990
        %v2992 = vmax.f32 %v2744, %v2745
        %2993 = vmax.xlane.f32.xlu0 %v2992
        %v2994 = vpop.xlane.xlu0 %2993
        %v2995 = vmax.f32 %v2754, %v2755
        %2996 = vmax.xlane.f32.xlu0 %v2995
        %v2997 = vpop.xlane.xlu0 %2996
        %v2998 = vmax.f32 %v2756, %v2757
        %2999 = vmax.xlane.f32.xlu0 %v2998
        %v3000 = vpop.xlane.xlu0 %2999
        %v3001 = vmax.f32 %v2758, %v2759
        %3002 = vmax.xlane.f32.xlu0 %v3001
        %v3003 = vpop.xlane.xlu0 %3002
        %v3004 = vmax.f32 %v2760, %v2761
        %3005 = vmax.xlane.f32.xlu0 %v3004
        %v3006 = vpop.xlane.xlu0 %3005
        %v3007 = vmax.f32 %v2762, %v2763
        %3008 = vmax.xlane.f32.xlu0 %v3007
        %v3009 = vpop.xlane.xlu0 %3008
        %v3010 = vmax.f32 %v2764, %v2765
        %3011 = vmax.xlane.f32.xlu0 %v3010
        %v3012 = vpop.xlane.xlu0 %3011
        %v3013 = vmax.f32 %v2766, %v2767
        %3014 = vmax.xlane.f32.xlu0 %v3013
        %v3015 = vpop.xlane.xlu0 %3014
        %v3016 = vmax.f32 %v2768, %v2769
        %3017 = vmax.xlane.f32.xlu0 %v3016
        %v3018 = vpop.xlane.xlu0 %3017
        %v3019 = vsel %vm1518, %v2925, %v2949
        %v3020 = vsel %vm1518, %v2928, %v2952
        %v3021 = vsel %vm1518, %v2931, %v2955
        %v3022 = vsel %vm1518, %v2934, %v2958
        %v3023 = vsel %vm1518, %v2937, %v2961
        %v3024 = vsel %vm1518, %v2940, %v2964
        %v3025 = vsel %vm1518, %v2943, %v2967
        %v3026 = vsel %vm1518, %v2946, %v2970
        %v3027 = vsel %vm1521, %v3019, %v2973
        %v3028 = vsel %vm1521, %v3020, %v2976
        %v3029 = vsel %vm1521, %v3021, %v2979
        %v3030 = vsel %vm1521, %v3022, %v2982
        %v3031 = vsel %vm1521, %v3023, %v2985
        %v3032 = vsel %vm1521, %v3024, %v2988
        %v3033 = vsel %vm1521, %v3025, %v2991
        %v3034 = vsel %vm1521, %v3026, %v2994
        %v3035 = vsel %vm1524, %v3027, %v2997
        %v3036 = vsel %vm1524, %v3028, %v3000
        %v3037 = vsel %vm1524, %v3029, %v3003
        %v3038 = vsel %vm1524, %v3030, %v3006
        %v3039 = vsel %vm1524, %v3031, %v3009
        %v3040 = vsel %vm1524, %v3032, %v3012
        %v3041 = vsel %vm1524, %v3033, %v3015
        %v3042 = vsel %vm1524, %v3034, %v3018
        %3043 = vmatprep.subr.mxu0 0.0
        %3044 = vmatpush1.msra.mxu0 %v2915
        %3045 = vmatprep.subr.mxu0 0.0
        %3046 = vmatpush1.msra.mxu0 %v2916
        %3047 = vmatprep.subr.mxu0 0.0
        %3048 = vmatpush1.msra.mxu0 %v2917
        %3049 = vmatprep.subr.mxu0 0.0
        %3050 = vmatpush1.msra.mxu0 %v2918
        %3051 = vmatprep.subr.mxu0 0.0
        %3052 = vmatpush1.msra.mxu0 %v2919
        %3053 = vmatprep.subr.mxu0 0.0
        %3054 = vmatpush1.msra.mxu0 %v2920
        %3055 = vmatprep.subr.mxu0 0.0
        %3056 = vmatpush1.msra.mxu0 %v2921
        %3057 = vmatprep.subr.mxu0 0.0
        %3058 = vmatpush1.msra.mxu0 %v2922
        %3059 = vmatprep.subr.mxu0 0.0
        %3060 = vmatpush1.msra.mxu0 %v3035
        %3061 = vmatprep.subr.mxu0 0.0
        %3062 = vmatpush1.msra.mxu0 %v3036
        %3063 = vmatprep.subr.mxu0 0.0
        %3064 = vmatpush1.msra.mxu0 %v3037
        %3065 = vmatprep.subr.mxu0 0.0
        %3066 = vmatpush1.msra.mxu0 %v3038
        %3067 = vmatprep.subr.mxu0 0.0
        %3068 = vmatpush1.msra.mxu0 %v3039
        %3069 = vmatprep.subr.mxu0 0.0
        %3070 = vmatpush1.msra.mxu0 %v3040
        %3071 = vmatprep.subr.mxu0 0.0
        %3072 = vmatpush1.msra.mxu0 %v3041
        %3073 = vmatprep.subr.mxu0 0.0
        %3074 = vmatpush1.msra.mxu0 %v3042
        %3075 = vmatprep.subr.mxu0 0.0
        %3076 = vmatpush1.msra.mxu0 0.0
        %3077 = vmatprep.subr.mxu0 0.0
        %3078 = vmatpush1.msra.mxu0 0.0
        %3079 = vmatprep.subr.mxu0 0.0
        %3080 = vmatpush1.msra.mxu0 0.0
        %3081 = vmatprep.subr.mxu0 0.0
        %3082 = vmatpush1.msra.mxu0 0.0
        %3083 = vmatprep.subr.mxu0 0.0
        %3084 = vmatpush1.msra.mxu0 0.0
        %3085 = vmatprep.subr.mxu0 0.0
        %3086 = vmatpush1.msra.mxu0 0.0
        %3087 = vmatprep.subr.mxu0 0.0
        %3088 = vmatpush1.msra.mxu0 0.0
        %3089 = vmatprep.subr.mxu0 0.0
        %3090 = vmatpush1.msra.mxu0 0.0
        %3091 = vmatprep.subr.mxu0 0.0
        %3092 = vmatpush1.msra.mxu0 0.0
        %3093 = vmatprep.subr.mxu0 0.0
        %3094 = vmatpush1.msra.mxu0 0.0
        %3095 = vmatprep.subr.mxu0 0.0
        %3096 = vmatpush1.msra.mxu0 0.0
        %3097 = vmatprep.subr.mxu0 0.0
        %3098 = vmatpush1.msra.mxu0 0.0
        %3099 = vmatprep.subr.mxu0 0.0
        %3100 = vmatpush1.msra.mxu0 0.0
        %3101 = vmatprep.subr.mxu0 0.0
        %3102 = vmatpush1.msra.mxu0 0.0
        %3103 = vmatprep.subr.mxu0 0.0
        %3104 = vmatpush1.msra.mxu0 0.0
        %3105 = vmatprep.subr.mxu0 0.0
        %3106 = vmatpush1.msra.mxu0 0.0
        %3107 = vmatprep.mubr.f32.mxu0 0.0
        %3108 = vmatmul.mubr.f32.gmra.mrb[0].mxu0 %v2270
        %v3109 = vpop.f32.mrb[0].mxu0
        %v3110 = vadd.f32 0.0, %v3109
        %v3111 = vpop.f32.mrb[0].mxu0
        %3112 = vmatprep.mubr.f32.mxu0 0.0
        %3113 = vmatmul.mubr.f32.gmra.mrb[0].mxu0 %v2271
        %v3114 = vpop.f32.mrb[0].mxu0
        %v3115 = vadd.f32 0.0, %v3114
        %v3116 = vpop.f32.mrb[0].mxu0
        %3117 = vmatprep.mubr.f32.mxu0 0.0
        %3118 = vmatmul.mubr.f32.gmra.mrb[0].mxu0 %v2272
        %v3119 = vpop.f32.mrb[0].mxu0
        %v3120 = vadd.f32 0.0, %v3119
        %v3121 = vpop.f32.mrb[0].mxu0
        %3122 = vmatprep.mubr.f32.mxu0 0.0
        %3123 = vmatmul.mubr.f32.gmra.mrb[0].mxu0 %v2273
        %v3124 = vpop.f32.mrb[0].mxu0
        %v3125 = vadd.f32 0.0, %v3124
        %v3126 = vpop.f32.mrb[0].mxu0
        %3127 = vmatprep.mubr.f32.mxu0 0.0
        %3128 = vmatmul.mubr.f32.gmra.mrb[0].mxu0 %v2274
        %v3129 = vpop.f32.mrb[0].mxu0
        %v3130 = vadd.f32 0.0, %v3129
        %v3131 = vpop.f32.mrb[0].mxu0
        %3132 = vmatprep.mubr.f32.mxu0 0.0
        %3133 = vmatmul.mubr.f32.gmra.mrb[0].mxu0 %v2275
        %v3134 = vpop.f32.mrb[0].mxu0
        %v3135 = vadd.f32 0.0, %v3134
        %v3136 = vpop.f32.mrb[0].mxu0
        %3137 = vmatprep.mubr.f32.mxu0 0.0
        %3138 = vmatmul.mubr.f32.gmra.mrb[0].mxu0 %v2276
        %v3139 = vpop.f32.mrb[0].mxu0
        %v3140 = vadd.f32 0.0, %v3139
        %v3141 = vpop.f32.mrb[0].mxu0
        %3142 = vmatprep.mubr.f32.mxu0 0.0
        %3143 = vmatmul.mubr.f32.gmra.mrb[0].mxu0 %v2277
        %v3144 = vpop.f32.mrb[0].mxu0
        %v3145 = vadd.f32 0.0, %v3144
        %v3146 = vpop.f32.mrb[0].mxu0
        %3147 = vdwg.mxu0
        %v3148 = vxor.u32 %v3110, 2147483648
        %v3149 = vxor.u32 %v3115, 2147483648
        %v3150 = vxor.u32 %v3120, 2147483648
        %v3151 = vxor.u32 %v3125, 2147483648
        %v3152 = vxor.u32 %v3130, 2147483648
        %v3153 = vxor.u32 %v3135, 2147483648
        %v3154 = vxor.u32 %v3140, 2147483648
        %v3155 = vxor.u32 %v3145, 2147483648
        %v3156 = vmul.f32 %v3148, 1.442695
        %v3157 = vpow.pop %v3156
        %v3158 = vmul.f32 %v3149, 1.442695
        %v3159 = vpow.pop %v3158
        %v3160 = vmul.f32 %v3150, 1.442695
        %v3161 = vpow.pop %v3160
        %v3162 = vmul.f32 %v3151, 1.442695
        %v3163 = vpow.pop %v3162
        %v3164 = vmul.f32 %v3152, 1.442695
        %v3165 = vpow.pop %v3164
        %v3166 = vmul.f32 %v3153, 1.442695
        %v3167 = vpow.pop %v3166
        %v3168 = vmul.f32 %v3154, 1.442695
        %v3169 = vpow.pop %v3168
        %v3170 = vmul.f32 %v3155, 1.442695
        %v3171 = vpow.pop %v3170
        %v3172 = vadd.f32 %v3157, 1.0
        %v3173 = vadd.f32 %v3159, 1.0
        %v3174 = vadd.f32 %v3161, 1.0
        %v3175 = vadd.f32 %v3163, 1.0
        %v3176 = vadd.f32 %v3165, 1.0
        %v3177 = vadd.f32 %v3167, 1.0
        %v3178 = vadd.f32 %v3169, 1.0
        %v3179 = vadd.f32 %v3171, 1.0
        %v3180 = vrcp.pop %v3172
        %v3181 = vmul.f32 1.0, %v3180
        %v3182 = vrcp.pop %v3173
        %v3183 = vmul.f32 1.0, %v3182
        %v3184 = vrcp.pop %v3174
        %v3185 = vmul.f32 1.0, %v3184
        %v3186 = vrcp.pop %v3175
        %v3187 = vmul.f32 1.0, %v3186
        %v3188 = vrcp.pop %v3176
        %v3189 = vmul.f32 1.0, %v3188
        %v3190 = vrcp.pop %v3177
        %v3191 = vmul.f32 1.0, %v3190
        %v3192 = vrcp.pop %v3178
        %v3193 = vmul.f32 1.0, %v3192
        %v3194 = vrcp.pop %v3179
        %v3195 = vmul.f32 1.0, %v3194
        %3197 = vset.pattern.permute.xlu0 0
        %3198 = vperm.xlu0 %3197, %v3181
        %v3199 = vpop.permute.xlu0 %3198
        %3202 = vset.pattern.permute.xlu0 0
        %3203 = vperm.xlu0 %3202, %v3183
        %v3204 = vpop.permute.xlu0 %3203
        %3207 = vset.pattern.permute.xlu0 0
        %3208 = vperm.xlu0 %3207, %v3185
        %v3209 = vpop.permute.xlu0 %3208
        %3212 = vset.pattern.permute.xlu0 0
        %3213 = vperm.xlu0 %3212, %v3187
        %v3214 = vpop.permute.xlu0 %3213
        %3217 = vset.pattern.permute.xlu0 0
        %3218 = vperm.xlu0 %3217, %v3189
        %v3219 = vpop.permute.xlu0 %3218
        %3222 = vset.pattern.permute.xlu0 0
        %3223 = vperm.xlu0 %3222, %v3191
        %v3224 = vpop.permute.xlu0 %3223
        %3227 = vset.pattern.permute.xlu0 0
        %3228 = vperm.xlu0 %3227, %v3193
        %v3229 = vpop.permute.xlu0 %3228
        %3232 = vset.pattern.permute.xlu0 0
        %3233 = vperm.xlu0 %3232, %v3195
        %v3234 = vpop.permute.xlu0 %3233
        %v3236 = vmul.f32 %v2682, %v3199
        %v3237 = vmul.f32 %v2683, %v3199
        %v3238 = vmul.f32 %v2684, %v3204
        %v3239 = vmul.f32 %v2685, %v3204
        %v3240 = vmul.f32 %v2686, %v3209
        %v3241 = vmul.f32 %v2687, %v3209
        %v3242 = vmul.f32 %v2688, %v3214
        %v3243 = vmul.f32 %v2689, %v3214
        %v3244 = vmul.f32 %v2690, %v3219
        %v3245 = vmul.f32 %v2691, %v3219
        %v3246 = vmul.f32 %v2692, %v3224
        %v3247 = vmul.f32 %v2693, %v3224
        %v3248 = vmul.f32 %v2694, %v3229
        %v3249 = vmul.f32 %v2695, %v3229
        %v3250 = vmul.f32 %v2696, %v3234
        %v3251 = vmul.f32 %v2697, %v3234
        %3252 = vset.pattern.permute.xlu0 1
        %3253 = vperm.xlu0 %3252, %v3181
        %v3254 = vpop.permute.xlu0 %3253
        %3256 = vset.pattern.permute.xlu0 1
        %3257 = vperm.xlu0 %3256, %v3183
        %v3258 = vpop.permute.xlu0 %3257
        %3260 = vset.pattern.permute.xlu0 1
        %3261 = vperm.xlu0 %3260, %v3185
        %v3262 = vpop.permute.xlu0 %3261
        %3264 = vset.pattern.permute.xlu0 1
        %3265 = vperm.xlu0 %3264, %v3187
        %v3266 = vpop.permute.xlu0 %3265
        %3268 = vset.pattern.permute.xlu0 1
        %3269 = vperm.xlu0 %3268, %v3189
        %v3270 = vpop.permute.xlu0 %3269
        %3272 = vset.pattern.permute.xlu0 1
        %3273 = vperm.xlu0 %3272, %v3191
        %v3274 = vpop.permute.xlu0 %3273
        %3276 = vset.pattern.permute.xlu0 1
        %3277 = vperm.xlu0 %3276, %v3193
        %v3278 = vpop.permute.xlu0 %3277
        %3280 = vset.pattern.permute.xlu0 1
        %3281 = vperm.xlu0 %3280, %v3195
        %v3282 = vpop.permute.xlu0 %3281
        %v3284 = vmul.f32 %v2706, %v3254
        %v3285 = vmul.f32 %v2707, %v3254
        %v3286 = vmul.f32 %v2708, %v3258
        %v3287 = vmul.f32 %v2709, %v3258
        %v3288 = vmul.f32 %v2710, %v3262
        %v3289 = vmul.f32 %v2711, %v3262
        %v3290 = vmul.f32 %v2712, %v3266
        %v3291 = vmul.f32 %v2713, %v3266
        %v3292 = vmul.f32 %v2714, %v3270
        %v3293 = vmul.f32 %v2715, %v3270
        %v3294 = vmul.f32 %v2716, %v3274
        %v3295 = vmul.f32 %v2717, %v3274
        %v3296 = vmul.f32 %v2718, %v3278
        %v3297 = vmul.f32 %v2719, %v3278
        %v3298 = vmul.f32 %v2720, %v3282
        %v3299 = vmul.f32 %v2721, %v3282
        %3300 = vset.pattern.permute.xlu0 2
        %3301 = vperm.xlu0 %3300, %v3181
        %v3302 = vpop.permute.xlu0 %3301
        %3304 = vset.pattern.permute.xlu0 2
        %3305 = vperm.xlu0 %3304, %v3183
        %v3306 = vpop.permute.xlu0 %3305
        %3308 = vset.pattern.permute.xlu0 2
        %3309 = vperm.xlu0 %3308, %v3185
        %v3310 = vpop.permute.xlu0 %3309
        %3312 = vset.pattern.permute.xlu0 2
        %3313 = vperm.xlu0 %3312, %v3187
        %v3314 = vpop.permute.xlu0 %3313
        %3316 = vset.pattern.permute.xlu0 2
        %3317 = vperm.xlu0 %3316, %v3189
        %v3318 = vpop.permute.xlu0 %3317
        %3320 = vset.pattern.permute.xlu0 2
        %3321 = vperm.xlu0 %3320, %v3191
        %v3322 = vpop.permute.xlu0 %3321
        %3324 = vset.pattern.permute.xlu0 2
        %3325 = vperm.xlu0 %3324, %v3193
        %v3326 = vpop.permute.xlu0 %3325
        %3328 = vset.pattern.permute.xlu0 2
        %3329 = vperm.xlu0 %3328, %v3195
        %v3330 = vpop.permute.xlu0 %3329
        %v3332 = vmul.f32 %v2730, %v3302
        %v3333 = vmul.f32 %v2731, %v3302
        %v3334 = vmul.f32 %v2732, %v3306
        %v3335 = vmul.f32 %v2733, %v3306
        %v3336 = vmul.f32 %v2734, %v3310
        %v3337 = vmul.f32 %v2735, %v3310
        %v3338 = vmul.f32 %v2736, %v3314
        %v3339 = vmul.f32 %v2737, %v3314
        %v3340 = vmul.f32 %v2738, %v3318
        %v3341 = vmul.f32 %v2739, %v3318
        %v3342 = vmul.f32 %v2740, %v3322
        %v3343 = vmul.f32 %v2741, %v3322
        %v3344 = vmul.f32 %v2742, %v3326
        %v3345 = vmul.f32 %v2743, %v3326
        %v3346 = vmul.f32 %v2744, %v3330
        %v3347 = vmul.f32 %v2745, %v3330
        %3348 = vset.pattern.permute.xlu0 3
        %3349 = vperm.xlu0 %3348, %v3181
        %v3350 = vpop.permute.xlu0 %3349
        %3352 = vset.pattern.permute.xlu0 3
        %3353 = vperm.xlu0 %3352, %v3183
        %v3354 = vpop.permute.xlu0 %3353
        %3356 = vset.pattern.permute.xlu0 3
        %3357 = vperm.xlu0 %3356, %v3185
        %v3358 = vpop.permute.xlu0 %3357
        %3360 = vset.pattern.permute.xlu0 3
        %3361 = vperm.xlu0 %3360, %v3187
        %v3362 = vpop.permute.xlu0 %3361
        %3364 = vset.pattern.permute.xlu0 3
        %3365 = vperm.xlu0 %3364, %v3189
        %v3366 = vpop.permute.xlu0 %3365
        %3368 = vset.pattern.permute.xlu0 3
        %3369 = vperm.xlu0 %3368, %v3191
        %v3370 = vpop.permute.xlu0 %3369
        %3372 = vset.pattern.permute.xlu0 3
        %3373 = vperm.xlu0 %3372, %v3193
        %v3374 = vpop.permute.xlu0 %3373
        %3376 = vset.pattern.permute.xlu0 3
        %3377 = vperm.xlu0 %3376, %v3195
        %v3378 = vpop.permute.xlu0 %3377
        %v3380 = vmul.f32 %v2754, %v3350
        %v3381 = vmul.f32 %v2755, %v3350
        %v3382 = vmul.f32 %v2756, %v3354
        %v3383 = vmul.f32 %v2757, %v3354
        %v3384 = vmul.f32 %v2758, %v3358
        %v3385 = vmul.f32 %v2759, %v3358
        %v3386 = vmul.f32 %v2760, %v3362
        %v3387 = vmul.f32 %v2761, %v3362
        %v3388 = vmul.f32 %v2762, %v3366
        %v3389 = vmul.f32 %v2763, %v3366
        %v3390 = vmul.f32 %v2764, %v3370
        %v3391 = vmul.f32 %v2765, %v3370
        %v3392 = vmul.f32 %v2766, %v3374
        %v3393 = vmul.f32 %v2767, %v3374
        %v3394 = vmul.f32 %v2768, %v3378
        %v3395 = vmul.f32 %v2769, %v3378
        %v3396 = vmul.f32 %v3236, %v3236
        %v3397 = vmul.f32 %v3237, %v3237
        %v3398 = vmul.f32 %v3238, %v3238
        %v3399 = vmul.f32 %v3239, %v3239
        %v3400 = vmul.f32 %v3240, %v3240
        %v3401 = vmul.f32 %v3241, %v3241
        %v3402 = vmul.f32 %v3242, %v3242
        %v3403 = vmul.f32 %v3243, %v3243
        %v3404 = vmul.f32 %v3244, %v3244
        %v3405 = vmul.f32 %v3245, %v3245
        %v3406 = vmul.f32 %v3246, %v3246
        %v3407 = vmul.f32 %v3247, %v3247
        %v3408 = vmul.f32 %v3248, %v3248
        %v3409 = vmul.f32 %v3249, %v3249
        %v3410 = vmul.f32 %v3250, %v3250
        %v3411 = vmul.f32 %v3251, %v3251
        %v3412 = vmul.f32 %v3284, %v3284
        %v3413 = vmul.f32 %v3285, %v3285
        %v3414 = vmul.f32 %v3286, %v3286
        %v3415 = vmul.f32 %v3287, %v3287
        %v3416 = vmul.f32 %v3288, %v3288
        %v3417 = vmul.f32 %v3289, %v3289
        %v3418 = vmul.f32 %v3290, %v3290
        %v3419 = vmul.f32 %v3291, %v3291
        %v3420 = vmul.f32 %v3292, %v3292
        %v3421 = vmul.f32 %v3293, %v3293
        %v3422 = vmul.f32 %v3294, %v3294
        %v3423 = vmul.f32 %v3295, %v3295
        %v3424 = vmul.f32 %v3296, %v3296
        %v3425 = vmul.f32 %v3297, %v3297
        %v3426 = vmul.f32 %v3298, %v3298
        %v3427 = vmul.f32 %v3299, %v3299
        %v3428 = vmul.f32 %v3332, %v3332
        %v3429 = vmul.f32 %v3333, %v3333
        %v3430 = vmul.f32 %v3334, %v3334
        %v3431 = vmul.f32 %v3335, %v3335
        %v3432 = vmul.f32 %v3336, %v3336
        %v3433 = vmul.f32 %v3337, %v3337
        %v3434 = vmul.f32 %v3338, %v3338
        %v3435 = vmul.f32 %v3339, %v3339
        %v3436 = vmul.f32 %v3340, %v3340
        %v3437 = vmul.f32 %v3341, %v3341
        %v3438 = vmul.f32 %v3342, %v3342
        %v3439 = vmul.f32 %v3343, %v3343
        %v3440 = vmul.f32 %v3344, %v3344
        %v3441 = vmul.f32 %v3345, %v3345
        %v3442 = vmul.f32 %v3346, %v3346
        %v3443 = vmul.f32 %v3347, %v3347
        %v3444 = vmul.f32 %v3380, %v3380
        %v3445 = vmul.f32 %v3381, %v3381
        %v3446 = vmul.f32 %v3382, %v3382
        %v3447 = vmul.f32 %v3383, %v3383
        %v3448 = vmul.f32 %v3384, %v3384
        %v3449 = vmul.f32 %v3385, %v3385
        %v3450 = vmul.f32 %v3386, %v3386
        %v3451 = vmul.f32 %v3387, %v3387
        %v3452 = vmul.f32 %v3388, %v3388
        %v3453 = vmul.f32 %v3389, %v3389
        %v3454 = vmul.f32 %v3390, %v3390
        %v3455 = vmul.f32 %v3391, %v3391
        %v3456 = vmul.f32 %v3392, %v3392
        %v3457 = vmul.f32 %v3393, %v3393
        %v3458 = vmul.f32 %v3394, %v3394
        %v3459 = vmul.f32 %v3395, %v3395
        %v3460 = vadd.f32 %v3396, %v3397
        %3461 = vadd.xlane.f32.xlu0 %v3460
        %v3462 = vpop.xlane.xlu0 %3461
        %v3463 = vadd.f32 %v3398, %v3399
        %3464 = vadd.xlane.f32.xlu0 %v3463
        %v3465 = vpop.xlane.xlu0 %3464
        %v3466 = vadd.f32 %v3400, %v3401
        %3467 = vadd.xlane.f32.xlu0 %v3466
        %v3468 = vpop.xlane.xlu0 %3467
        %v3469 = vadd.f32 %v3402, %v3403
        %3470 = vadd.xlane.f32.xlu0 %v3469
        %v3471 = vpop.xlane.xlu0 %3470
        %v3472 = vadd.f32 %v3404, %v3405
        %3473 = vadd.xlane.f32.xlu0 %v3472
        %v3474 = vpop.xlane.xlu0 %3473
        %v3475 = vadd.f32 %v3406, %v3407
        %3476 = vadd.xlane.f32.xlu0 %v3475
        %v3477 = vpop.xlane.xlu0 %3476
        %v3478 = vadd.f32 %v3408, %v3409
        %3479 = vadd.xlane.f32.xlu0 %v3478
        %v3480 = vpop.xlane.xlu0 %3479
        %v3481 = vadd.f32 %v3410, %v3411
        %3482 = vadd.xlane.f32.xlu0 %v3481
        %v3483 = vpop.xlane.xlu0 %3482
        %v3484 = vadd.f32 %v3412, %v3413
        %3485 = vadd.xlane.f32.xlu0 %v3484
        %v3486 = vpop.xlane.xlu0 %3485
        %v3487 = vadd.f32 %v3414, %v3415
        %3488 = vadd.xlane.f32.xlu0 %v3487
        %v3489 = vpop.xlane.xlu0 %3488
        %v3490 = vadd.f32 %v3416, %v3417
        %3491 = vadd.xlane.f32.xlu0 %v3490
        %v3492 = vpop.xlane.xlu0 %3491
        %v3493 = vadd.f32 %v3418, %v3419
        %3494 = vadd.xlane.f32.xlu0 %v3493
        %v3495 = vpop.xlane.xlu0 %3494
        %v3496 = vadd.f32 %v3420, %v3421
        %3497 = vadd.xlane.f32.xlu0 %v3496
        %v3498 = vpop.xlane.xlu0 %3497
        %v3499 = vadd.f32 %v3422, %v3423
        %3500 = vadd.xlane.f32.xlu0 %v3499
        %v3501 = vpop.xlane.xlu0 %3500
        %v3502 = vadd.f32 %v3424, %v3425
        %3503 = vadd.xlane.f32.xlu0 %v3502
        %v3504 = vpop.xlane.xlu0 %3503
        %v3505 = vadd.f32 %v3426, %v3427
        %3506 = vadd.xlane.f32.xlu0 %v3505
        %v3507 = vpop.xlane.xlu0 %3506
        %v3508 = vadd.f32 %v3428, %v3429
        %3509 = vadd.xlane.f32.xlu0 %v3508
        %v3510 = vpop.xlane.xlu0 %3509
        %v3511 = vadd.f32 %v3430, %v3431
        %3512 = vadd.xlane.f32.xlu0 %v3511
        %v3513 = vpop.xlane.xlu0 %3512
        %v3514 = vadd.f32 %v3432, %v3433
        %3515 = vadd.xlane.f32.xlu0 %v3514
        %v3516 = vpop.xlane.xlu0 %3515
        %v3517 = vadd.f32 %v3434, %v3435
        %3518 = vadd.xlane.f32.xlu0 %v3517
        %v3519 = vpop.xlane.xlu0 %3518
        %v3520 = vadd.f32 %v3436, %v3437
        %3521 = vadd.xlane.f32.xlu0 %v3520
        %v3522 = vpop.xlane.xlu0 %3521
        %v3523 = vadd.f32 %v3438, %v3439
        %3524 = vadd.xlane.f32.xlu0 %v3523
        %v3525 = vpop.xlane.xlu0 %3524
        %v3526 = vadd.f32 %v3440, %v3441
        %3527 = vadd.xlane.f32.xlu0 %v3526
        %v3528 = vpop.xlane.xlu0 %3527
        %v3529 = vadd.f32 %v3442, %v3443
        %3530 = vadd.xlane.f32.xlu0 %v3529
        %v3531 = vpop.xlane.xlu0 %3530
        %v3532 = vadd.f32 %v3444, %v3445
        %3533 = vadd.xlane.f32.xlu0 %v3532
        %v3534 = vpop.xlane.xlu0 %3533
        %v3535 = vadd.f32 %v3446, %v3447
        %3536 = vadd.xlane.f32.xlu0 %v3535
        %v3537 = vpop.xlane.xlu0 %3536
        %v3538 = vadd.f32 %v3448, %v3449
        %3539 = vadd.xlane.f32.xlu0 %v3538
        %v3540 = vpop.xlane.xlu0 %3539
        %v3541 = vadd.f32 %v3450, %v3451
        %3542 = vadd.xlane.f32.xlu0 %v3541
        %v3543 = vpop.xlane.xlu0 %3542
        %v3544 = vadd.f32 %v3452, %v3453
        %3545 = vadd.xlane.f32.xlu0 %v3544
        %v3546 = vpop.xlane.xlu0 %3545
        %v3547 = vadd.f32 %v3454, %v3455
        %3548 = vadd.xlane.f32.xlu0 %v3547
        %v3549 = vpop.xlane.xlu0 %3548
        %v3550 = vadd.f32 %v3456, %v3457
        %3551 = vadd.xlane.f32.xlu0 %v3550
        %v3552 = vpop.xlane.xlu0 %3551
        %v3553 = vadd.f32 %v3458, %v3459
        %3554 = vadd.xlane.f32.xlu0 %v3553
        %v3555 = vpop.xlane.xlu0 %3554
        %v3556 = vmax.f32 %v3462, 1e-24
        %v3557 = vmax.f32 %v3465, 1e-24
        %v3558 = vmax.f32 %v3468, 1e-24
        %v3559 = vmax.f32 %v3471, 1e-24
        %v3560 = vmax.f32 %v3474, 1e-24
        %v3561 = vmax.f32 %v3477, 1e-24
        %v3562 = vmax.f32 %v3480, 1e-24
        %v3563 = vmax.f32 %v3483, 1e-24
        %v3564 = vmax.f32 %v3486, 1e-24
        %v3565 = vmax.f32 %v3489, 1e-24
        %v3566 = vmax.f32 %v3492, 1e-24
        %v3567 = vmax.f32 %v3495, 1e-24
        %v3568 = vmax.f32 %v3498, 1e-24
        %v3569 = vmax.f32 %v3501, 1e-24
        %v3570 = vmax.f32 %v3504, 1e-24
        %v3571 = vmax.f32 %v3507, 1e-24
        %v3572 = vmax.f32 %v3510, 1e-24
        %v3573 = vmax.f32 %v3513, 1e-24
        %v3574 = vmax.f32 %v3516, 1e-24
        %v3575 = vmax.f32 %v3519, 1e-24
        %v3576 = vmax.f32 %v3522, 1e-24
        %v3577 = vmax.f32 %v3525, 1e-24
        %v3578 = vmax.f32 %v3528, 1e-24
        %v3579 = vmax.f32 %v3531, 1e-24
        %v3580 = vmax.f32 %v3534, 1e-24
        %v3581 = vmax.f32 %v3537, 1e-24
        %v3582 = vmax.f32 %v3540, 1e-24
        %v3583 = vmax.f32 %v3543, 1e-24
        %v3584 = vmax.f32 %v3546, 1e-24
        %v3585 = vmax.f32 %v3549, 1e-24
        %v3586 = vmax.f32 %v3552, 1e-24
        %v3587 = vmax.f32 %v3555, 1e-24
        %v3588 = vrsqrt.pop %v3556
        %v3589 = vrsqrt.pop %v3557
        %v3590 = vrsqrt.pop %v3558
        %v3591 = vrsqrt.pop %v3559
        %v3592 = vrsqrt.pop %v3560
        %v3593 = vrsqrt.pop %v3561
        %v3594 = vrsqrt.pop %v3562
        %v3595 = vrsqrt.pop %v3563
        %v3596 = vrsqrt.pop %v3564
        %v3597 = vrsqrt.pop %v3565
        %v3598 = vrsqrt.pop %v3566
        %v3599 = vrsqrt.pop %v3567
        %v3600 = vrsqrt.pop %v3568
        %v3601 = vrsqrt.pop %v3569
        %v3602 = vrsqrt.pop %v3570
        %v3603 = vrsqrt.pop %v3571
        %v3604 = vrsqrt.pop %v3572
        %v3605 = vrsqrt.pop %v3573
        %v3606 = vrsqrt.pop %v3574
        %v3607 = vrsqrt.pop %v3575
        %v3608 = vrsqrt.pop %v3576
        %v3609 = vrsqrt.pop %v3577
        %v3610 = vrsqrt.pop %v3578
        %v3611 = vrsqrt.pop %v3579
        %v3612 = vrsqrt.pop %v3580
        %v3613 = vrsqrt.pop %v3581
        %v3614 = vrsqrt.pop %v3582
        %v3615 = vrsqrt.pop %v3583
        %v3616 = vrsqrt.pop %v3584
        %v3617 = vrsqrt.pop %v3585
        %v3618 = vrsqrt.pop %v3586
        %v3619 = vrsqrt.pop %v3587
        %v3620 = vmul.f32 %v3236, %v3588
        %v3621 = vmul.f32 %v3237, %v3588
        %v3622 = vmul.f32 %v3238, %v3589
        %v3623 = vmul.f32 %v3239, %v3589
        %v3624 = vmul.f32 %v3240, %v3590
        %v3625 = vmul.f32 %v3241, %v3590
        %v3626 = vmul.f32 %v3242, %v3591
        %v3627 = vmul.f32 %v3243, %v3591
        %v3628 = vmul.f32 %v3244, %v3592
        %v3629 = vmul.f32 %v3245, %v3592
        %v3630 = vmul.f32 %v3246, %v3593
        %v3631 = vmul.f32 %v3247, %v3593
        %v3632 = vmul.f32 %v3248, %v3594
        %v3633 = vmul.f32 %v3249, %v3594
        %v3634 = vmul.f32 %v3250, %v3595
        %v3635 = vmul.f32 %v3251, %v3595
        %v3636 = vmul.f32 %v3284, %v3596
        %v3637 = vmul.f32 %v3285, %v3596
        %v3638 = vmul.f32 %v3286, %v3597
        %v3639 = vmul.f32 %v3287, %v3597
        %v3640 = vmul.f32 %v3288, %v3598
        %v3641 = vmul.f32 %v3289, %v3598
        %v3642 = vmul.f32 %v3290, %v3599
        %v3643 = vmul.f32 %v3291, %v3599
        %v3644 = vmul.f32 %v3292, %v3600
        %v3645 = vmul.f32 %v3293, %v3600
        %v3646 = vmul.f32 %v3294, %v3601
        %v3647 = vmul.f32 %v3295, %v3601
        %v3648 = vmul.f32 %v3296, %v3602
        %v3649 = vmul.f32 %v3297, %v3602
        %v3650 = vmul.f32 %v3298, %v3603
        %v3651 = vmul.f32 %v3299, %v3603
        %v3652 = vmul.f32 %v3332, %v3604
        %v3653 = vmul.f32 %v3333, %v3604
        %v3654 = vmul.f32 %v3334, %v3605
        %v3655 = vmul.f32 %v3335, %v3605
        %v3656 = vmul.f32 %v3336, %v3606
        %v3657 = vmul.f32 %v3337, %v3606
        %v3658 = vmul.f32 %v3338, %v3607
        %v3659 = vmul.f32 %v3339, %v3607
        %v3660 = vmul.f32 %v3340, %v3608
        %v3661 = vmul.f32 %v3341, %v3608
        %v3662 = vmul.f32 %v3342, %v3609
        %v3663 = vmul.f32 %v3343, %v3609
        %v3664 = vmul.f32 %v3344, %v3610
        %v3665 = vmul.f32 %v3345, %v3610
        %v3666 = vmul.f32 %v3346, %v3611
        %v3667 = vmul.f32 %v3347, %v3611
        %v3668 = vmul.f32 %v3380, %v3612
        %v3669 = vmul.f32 %v3381, %v3612
        %v3670 = vmul.f32 %v3382, %v3613
        %v3671 = vmul.f32 %v3383, %v3613
        %v3672 = vmul.f32 %v3384, %v3614
        %v3673 = vmul.f32 %v3385, %v3614
        %v3674 = vmul.f32 %v3386, %v3615
        %v3675 = vmul.f32 %v3387, %v3615
        %v3676 = vmul.f32 %v3388, %v3616
        %v3677 = vmul.f32 %v3389, %v3616
        %v3678 = vmul.f32 %v3390, %v3617
        %v3679 = vmul.f32 %v3391, %v3617
        %v3680 = vmul.f32 %v3392, %v3618
        %v3681 = vmul.f32 %v3393, %v3618
        %v3682 = vmul.f32 %v3394, %v3619
        %v3683 = vmul.f32 %v3395, %v3619
        %v3684 = vld [vmem:[%s12] sm:$0xff]
        %v3685 = vld [vmem:[%s12 + $0x8] sm:$0xff]
        %v3686 = vld [vmem:[%s12 + $0x10] sm:$0xff]
        %v3687 = vld [vmem:[%s12 + $0x18] sm:$0xff]
        %v3688 = vld [vmem:[%s12 + $0x20] sm:$0xff]
        %v3689 = vld [vmem:[%s12 + $0x28] sm:$0xff]
        %v3690 = vld [vmem:[%s12 + $0x30] sm:$0xff]
        %v3691 = vld [vmem:[%s12 + $0x38] sm:$0xff]
        %v3692 = vld [vmem:[%s12 + $0x40] sm:$0xff]
        %v3693 = vld [vmem:[%s12 + $0x48] sm:$0xff]
        %v3694 = vld [vmem:[%s12 + $0x50] sm:$0xff]
        %v3695 = vld [vmem:[%s12 + $0x58] sm:$0xff]
        %v3696 = vld [vmem:[%s12 + $0x60] sm:$0xff]
        %v3697 = vld [vmem:[%s12 + $0x68] sm:$0xff]
        %v3698 = vld [vmem:[%s12 + $0x70] sm:$0xff]
        %v3699 = vld [vmem:[%s12 + $0x78] sm:$0xff]
        %v3700 = vld [vmem:[%s12 + $0x80] sm:$0xff]
        %v3701 = vld [vmem:[%s12 + $0x88] sm:$0xff]
        %v3702 = vld [vmem:[%s12 + $0x90] sm:$0xff]
        %v3703 = vld [vmem:[%s12 + $0x98] sm:$0xff]
        %v3704 = vld [vmem:[%s12 + $0xa0] sm:$0xff]
        %v3705 = vld [vmem:[%s12 + $0xa8] sm:$0xff]
        %v3706 = vld [vmem:[%s12 + $0xb0] sm:$0xff]
        %v3707 = vld [vmem:[%s12 + $0xb8] sm:$0xff]
        %v3708 = vld [vmem:[%s12 + $0xc0] sm:$0xff]
        %v3709 = vld [vmem:[%s12 + $0xc8] sm:$0xff]
        %v3710 = vld [vmem:[%s12 + $0xd0] sm:$0xff]
        %v3711 = vld [vmem:[%s12 + $0xd8] sm:$0xff]
        %v3712 = vld [vmem:[%s12 + $0xe0] sm:$0xff]
        %v3713 = vld [vmem:[%s12 + $0xe8] sm:$0xff]
        %v3714 = vld [vmem:[%s12 + $0xf0] sm:$0xff]
        %v3715 = vld [vmem:[%s12 + $0xf8] sm:$0xff]
        %v3716 = vlaneseq
        %v3717 = vshrl.u32 %v3716, 7
        %v3718 = vsub.s32 0, %v3717
        %v3719 = vrot.slane %v573, %v3718
        %3720 = vmatprep.subr.mxu0 0.0
        %3721 = vmatpush1.msra.mxu0 %v3684
        %3722 = vmatprep.subr.mxu0 0.0
        %3723 = vmatpush1.msra.mxu0 %v3685
        %3724 = vmatprep.subr.mxu0 0.0
        %3725 = vmatpush1.msra.mxu0 %v3686
        %3726 = vmatprep.subr.mxu0 0.0
        %3727 = vmatpush1.msra.mxu0 %v3687
        %3728 = vmatprep.subr.mxu0 0.0
        %3729 = vmatpush1.msra.mxu0 %v3688
        %3730 = vmatprep.subr.mxu0 0.0
        %3731 = vmatpush1.msra.mxu0 %v3689
        %3732 = vmatprep.subr.mxu0 0.0
        %3733 = vmatpush1.msra.mxu0 %v3690
        %3734 = vmatprep.subr.mxu0 0.0
        %3735 = vmatpush1.msra.mxu0 %v3691
        %3736 = vmatprep.subr.mxu0 0.0
        %3737 = vmatpush1.msra.mxu0 %v3692
        %3738 = vmatprep.subr.mxu0 0.0
        %3739 = vmatpush1.msra.mxu0 %v3693
        %3740 = vmatprep.subr.mxu0 0.0
        %3741 = vmatpush1.msra.mxu0 %v3694
        %3742 = vmatprep.subr.mxu0 0.0
        %3743 = vmatpush1.msra.mxu0 %v3695
        %3744 = vmatprep.subr.mxu0 0.0
        %3745 = vmatpush1.msra.mxu0 %v3696
        %3746 = vmatprep.subr.mxu0 0.0
        %3747 = vmatpush1.msra.mxu0 %v3697
        %3748 = vmatprep.subr.mxu0 0.0
        %3749 = vmatpush1.msra.mxu0 %v3698
        %3750 = vmatprep.subr.mxu0 0.0
        %3751 = vmatpush1.msra.mxu0 %v3699
        %3752 = vmatprep.subr.mxu0 0.0
        %3753 = vmatpush1.msra.mxu0 %v3700
        %3754 = vmatprep.subr.mxu0 0.0
        %3755 = vmatpush1.msra.mxu0 %v3701
        %3756 = vmatprep.subr.mxu0 0.0
        %3757 = vmatpush1.msra.mxu0 %v3702
        %3758 = vmatprep.subr.mxu0 0.0
        %3759 = vmatpush1.msra.mxu0 %v3703
        %3760 = vmatprep.subr.mxu0 0.0
        %3761 = vmatpush1.msra.mxu0 %v3704
        %3762 = vmatprep.subr.mxu0 0.0
        %3763 = vmatpush1.msra.mxu0 %v3705
        %3764 = vmatprep.subr.mxu0 0.0
        %3765 = vmatpush1.msra.mxu0 %v3706
        %3766 = vmatprep.subr.mxu0 0.0
        %3767 = vmatpush1.msra.mxu0 %v3707
        %3768 = vmatprep.subr.mxu0 0.0
        %3769 = vmatpush1.msra.mxu0 %v3708
        %3770 = vmatprep.subr.mxu0 0.0
        %3771 = vmatpush1.msra.mxu0 %v3709
        %3772 = vmatprep.subr.mxu0 0.0
        %3773 = vmatpush1.msra.mxu0 %v3710
        %3774 = vmatprep.subr.mxu0 0.0
        %3775 = vmatpush1.msra.mxu0 %v3711
        %3776 = vmatprep.subr.mxu0 0.0
        %3777 = vmatpush1.msra.mxu0 %v3712
        %3778 = vmatprep.subr.mxu0 0.0
        %3779 = vmatpush1.msra.mxu0 %v3713
        %3780 = vmatprep.subr.mxu0 0.0
        %3781 = vmatpush1.msra.mxu0 %v3714
        %3782 = vmatprep.subr.mxu0 0.0
        %3783 = vmatpush1.msra.mxu0 %v3715
        %3784 = vmatprep.mubr.f32.mxu0 %v3621
        %3785 = vmatmul.mubr.f32.gmra.mrb[0].mxu0 %v3620
        %v3786 = vpop.f32.mrb[0].mxu0
        %v3787 = vadd.f32 %v3719, %v3786
        %v3788 = vpop.f32.mrb[0].mxu0
        %3789 = vmatprep.mubr.f32.mxu0 %v3623
        %3790 = vmatmul.mubr.f32.gmra.mrb[0].mxu0 %v3622
        %v3791 = vpop.f32.mrb[0].mxu0
        %v3792 = vadd.f32 %v3719, %v3791
        %v3793 = vpop.f32.mrb[0].mxu0
        %3794 = vmatprep.mubr.f32.mxu0 %v3625
        %3795 = vmatmul.mubr.f32.gmra.mrb[0].mxu0 %v3624
        %v3796 = vpop.f32.mrb[0].mxu0
        %v3797 = vadd.f32 %v3719, %v3796
        %v3798 = vpop.f32.mrb[0].mxu0
        %3799 = vmatprep.mubr.f32.mxu0 %v3627
        %3800 = vmatmul.mubr.f32.gmra.mrb[0].mxu0 %v3626
        %v3801 = vpop.f32.mrb[0].mxu0
        %v3802 = vadd.f32 %v3719, %v3801
        %v3803 = vpop.f32.mrb[0].mxu0
        %3804 = vmatprep.mubr.f32.mxu0 %v3629
        %3805 = vmatmul.mubr.f32.gmra.mrb[0].mxu0 %v3628
        %v3806 = vpop.f32.mrb[0].mxu0
        %v3807 = vadd.f32 %v3719, %v3806
        %v3808 = vpop.f32.mrb[0].mxu0
        %3809 = vmatprep.mubr.f32.mxu0 %v3631
        %3810 = vmatmul.mubr.f32.gmra.mrb[0].mxu0 %v3630
        %v3811 = vpop.f32.mrb[0].mxu0
        %v3812 = vadd.f32 %v3719, %v3811
        %v3813 = vpop.f32.mrb[0].mxu0
        %3814 = vmatprep.mubr.f32.mxu0 %v3633
        %3815 = vmatmul.mubr.f32.gmra.mrb[0].mxu0 %v3632
        %v3816 = vpop.f32.mrb[0].mxu0
        %v3817 = vadd.f32 %v3719, %v3816
        %v3818 = vpop.f32.mrb[0].mxu0
        %3819 = vmatprep.mubr.f32.mxu0 %v3635
        %3820 = vmatmul.mubr.f32.gmra.mrb[0].mxu0 %v3634
        %v3821 = vpop.f32.mrb[0].mxu0
        %v3822 = vadd.f32 %v3719, %v3821
        %v3823 = vpop.f32.mrb[0].mxu0
        %3824 = vmatprep.mubr.f32.mxu0 %v3637
        %3825 = vmatmul.mubr.f32.gmra.mrb[0].mxu0 %v3636
        %v3826 = vpop.f32.mrb[0].mxu0
        %v3827 = vadd.f32 %v3719, %v3826
        %v3828 = vpop.f32.mrb[0].mxu0
        %3829 = vmatprep.mubr.f32.mxu0 %v3639
        %3830 = vmatmul.mubr.f32.gmra.mrb[0].mxu0 %v3638
        %v3831 = vpop.f32.mrb[0].mxu0
        %v3832 = vadd.f32 %v3719, %v3831
        %v3833 = vpop.f32.mrb[0].mxu0
        %3834 = vmatprep.mubr.f32.mxu0 %v3641
        %3835 = vmatmul.mubr.f32.gmra.mrb[0].mxu0 %v3640
        %v3836 = vpop.f32.mrb[0].mxu0
        %v3837 = vadd.f32 %v3719, %v3836
        %v3838 = vpop.f32.mrb[0].mxu0
        %3839 = vmatprep.mubr.f32.mxu0 %v3643
        %3840 = vmatmul.mubr.f32.gmra.mrb[0].mxu0 %v3642
        %v3841 = vpop.f32.mrb[0].mxu0
        %v3842 = vadd.f32 %v3719, %v3841
        %v3843 = vpop.f32.mrb[0].mxu0
        %3844 = vmatprep.mubr.f32.mxu0 %v3645
        %3845 = vmatmul.mubr.f32.gmra.mrb[0].mxu0 %v3644
        %v3846 = vpop.f32.mrb[0].mxu0
        %v3847 = vadd.f32 %v3719, %v3846
        %v3848 = vpop.f32.mrb[0].mxu0
        %3849 = vmatprep.mubr.f32.mxu0 %v3647
        %3850 = vmatmul.mubr.f32.gmra.mrb[0].mxu0 %v3646
        %v3851 = vpop.f32.mrb[0].mxu0
        %v3852 = vadd.f32 %v3719, %v3851
        %v3853 = vpop.f32.mrb[0].mxu0
        %3854 = vmatprep.mubr.f32.mxu0 %v3649
        %3855 = vmatmul.mubr.f32.gmra.mrb[0].mxu0 %v3648
        %v3856 = vpop.f32.mrb[0].mxu0
        %v3857 = vadd.f32 %v3719, %v3856
        %v3858 = vpop.f32.mrb[0].mxu0
        %3859 = vmatprep.mubr.f32.mxu0 %v3651
        %3860 = vmatmul.mubr.f32.gmra.mrb[0].mxu0 %v3650
        %v3861 = vpop.f32.mrb[0].mxu0
        %v3862 = vadd.f32 %v3719, %v3861
        %v3863 = vpop.f32.mrb[0].mxu0
        %3864 = vmatprep.mubr.f32.mxu0 %v3653
        %3865 = vmatmul.mubr.f32.gmra.mrb[0].mxu0 %v3652
        %v3866 = vpop.f32.mrb[0].mxu0
        %v3867 = vadd.f32 %v3719, %v3866
        %v3868 = vpop.f32.mrb[0].mxu0
        %3869 = vmatprep.mubr.f32.mxu0 %v3655
        %3870 = vmatmul.mubr.f32.gmra.mrb[0].mxu0 %v3654
        %v3871 = vpop.f32.mrb[0].mxu0
        %v3872 = vadd.f32 %v3719, %v3871
        %v3873 = vpop.f32.mrb[0].mxu0
        %3874 = vmatprep.mubr.f32.mxu0 %v3657
        %3875 = vmatmul.mubr.f32.gmra.mrb[0].mxu0 %v3656
        %v3876 = vpop.f32.mrb[0].mxu0
        %v3877 = vadd.f32 %v3719, %v3876
        %v3878 = vpop.f32.mrb[0].mxu0
        %3879 = vmatprep.mubr.f32.mxu0 %v3659
        %3880 = vmatmul.mubr.f32.gmra.mrb[0].mxu0 %v3658
        %v3881 = vpop.f32.mrb[0].mxu0
        %v3882 = vadd.f32 %v3719, %v3881
        %v3883 = vpop.f32.mrb[0].mxu0
        %3884 = vmatprep.mubr.f32.mxu0 %v3661
        %3885 = vmatmul.mubr.f32.gmra.mrb[0].mxu0 %v3660
        %v3886 = vpop.f32.mrb[0].mxu0
        %v3887 = vadd.f32 %v3719, %v3886
        %v3888 = vpop.f32.mrb[0].mxu0
        %3889 = vmatprep.mubr.f32.mxu0 %v3663
        %3890 = vmatmul.mubr.f32.gmra.mrb[0].mxu0 %v3662
        %v3891 = vpop.f32.mrb[0].mxu0
        %v3892 = vadd.f32 %v3719, %v3891
        %v3893 = vpop.f32.mrb[0].mxu0
        %3894 = vmatprep.mubr.f32.mxu0 %v3665
        %3895 = vmatmul.mubr.f32.gmra.mrb[0].mxu0 %v3664
        %v3896 = vpop.f32.mrb[0].mxu0
        %v3897 = vadd.f32 %v3719, %v3896
        %v3898 = vpop.f32.mrb[0].mxu0
        %3899 = vmatprep.mubr.f32.mxu0 %v3667
        %3900 = vmatmul.mubr.f32.gmra.mrb[0].mxu0 %v3666
        %v3901 = vpop.f32.mrb[0].mxu0
        %v3902 = vadd.f32 %v3719, %v3901
        %v3903 = vpop.f32.mrb[0].mxu0
        %3904 = vmatprep.mubr.f32.mxu0 %v3669
        %3905 = vmatmul.mubr.f32.gmra.mrb[0].mxu0 %v3668
        %v3906 = vpop.f32.mrb[0].mxu0
        %v3907 = vadd.f32 %v3719, %v3906
        %v3908 = vpop.f32.mrb[0].mxu0
        %3909 = vmatprep.mubr.f32.mxu0 %v3671
        %3910 = vmatmul.mubr.f32.gmra.mrb[0].mxu0 %v3670
        %v3911 = vpop.f32.mrb[0].mxu0
        %v3912 = vadd.f32 %v3719, %v3911
        %v3913 = vpop.f32.mrb[0].mxu0
        %3914 = vmatprep.mubr.f32.mxu0 %v3673
        %3915 = vmatmul.mubr.f32.gmra.mrb[0].mxu0 %v3672
        %v3916 = vpop.f32.mrb[0].mxu0
        %v3917 = vadd.f32 %v3719, %v3916
        %v3918 = vpop.f32.mrb[0].mxu0
        %3919 = vmatprep.mubr.f32.mxu0 %v3675
        %3920 = vmatmul.mubr.f32.gmra.mrb[0].mxu0 %v3674
        %v3921 = vpop.f32.mrb[0].mxu0
        %v3922 = vadd.f32 %v3719, %v3921
        %v3923 = vpop.f32.mrb[0].mxu0
        %3924 = vmatprep.mubr.f32.mxu0 %v3677
        %3925 = vmatmul.mubr.f32.gmra.mrb[0].mxu0 %v3676
        %v3926 = vpop.f32.mrb[0].mxu0
        %v3927 = vadd.f32 %v3719, %v3926
        %v3928 = vpop.f32.mrb[0].mxu0
        %3929 = vmatprep.mubr.f32.mxu0 %v3679
        %3930 = vmatmul.mubr.f32.gmra.mrb[0].mxu0 %v3678
        %v3931 = vpop.f32.mrb[0].mxu0
        %v3932 = vadd.f32 %v3719, %v3931
        %v3933 = vpop.f32.mrb[0].mxu0
        %3934 = vmatprep.mubr.f32.mxu0 %v3681
        %3935 = vmatmul.mubr.f32.gmra.mrb[0].mxu0 %v3680
        %v3936 = vpop.f32.mrb[0].mxu0
        %v3937 = vadd.f32 %v3719, %v3936
        %v3938 = vpop.f32.mrb[0].mxu0
        %3939 = vmatprep.mubr.f32.mxu0 %v3683
        %3940 = vmatmul.mubr.f32.gmra.mrb[0].mxu0 %v3682
        %v3941 = vpop.f32.mrb[0].mxu0
        %v3942 = vadd.f32 %v3719, %v3941
        %v3943 = vpop.f32.mrb[0].mxu0
        %3944 = vdwg.mxu0
        %vm3945 = vcmask 523264
        %v3946 = vsel %vm3945, %v3787, -inf
        %3947 = vmax.xlane.f32.xlu0 %v3946
        %v3948 = vpop.xlane.xlu0 %3947
        %v3949 = vsel %vm3945, %v3792, -inf
        %3950 = vmax.xlane.f32.xlu0 %v3949
        %v3951 = vpop.xlane.xlu0 %3950
        %v3952 = vsel %vm3945, %v3797, -inf
        %3953 = vmax.xlane.f32.xlu0 %v3952
        %v3954 = vpop.xlane.xlu0 %3953
        %v3955 = vsel %vm3945, %v3802, -inf
        %3956 = vmax.xlane.f32.xlu0 %v3955
        %v3957 = vpop.xlane.xlu0 %3956
        %v3958 = vsel %vm3945, %v3807, -inf
        %3959 = vmax.xlane.f32.xlu0 %v3958
        %v3960 = vpop.xlane.xlu0 %3959
        %v3961 = vsel %vm3945, %v3812, -inf
        %3962 = vmax.xlane.f32.xlu0 %v3961
        %v3963 = vpop.xlane.xlu0 %3962
        %v3964 = vsel %vm3945, %v3817, -inf
        %3965 = vmax.xlane.f32.xlu0 %v3964
        %v3966 = vpop.xlane.xlu0 %3965
        %v3967 = vsel %vm3945, %v3822, -inf
        %3968 = vmax.xlane.f32.xlu0 %v3967
        %v3969 = vpop.xlane.xlu0 %3968
        %v3970 = vsel %vm3945, %v3827, -inf
        %3971 = vmax.xlane.f32.xlu0 %v3970
        %v3972 = vpop.xlane.xlu0 %3971
        %v3973 = vsel %vm3945, %v3832, -inf
        %3974 = vmax.xlane.f32.xlu0 %v3973
        %v3975 = vpop.xlane.xlu0 %3974
        %v3976 = vsel %vm3945, %v3837, -inf
        %3977 = vmax.xlane.f32.xlu0 %v3976
        %v3978 = vpop.xlane.xlu0 %3977
        %v3979 = vsel %vm3945, %v3842, -inf
        %3980 = vmax.xlane.f32.xlu0 %v3979
        %v3981 = vpop.xlane.xlu0 %3980
        %v3982 = vsel %vm3945, %v3847, -inf
        %3983 = vmax.xlane.f32.xlu0 %v3982
        %v3984 = vpop.xlane.xlu0 %3983
        %v3985 = vsel %vm3945, %v3852, -inf
        %3986 = vmax.xlane.f32.xlu0 %v3985
        %v3987 = vpop.xlane.xlu0 %3986
        %v3988 = vsel %vm3945, %v3857, -inf
        %3989 = vmax.xlane.f32.xlu0 %v3988
        %v3990 = vpop.xlane.xlu0 %3989
        %v3991 = vsel %vm3945, %v3862, -inf
        %3992 = vmax.xlane.f32.xlu0 %v3991
        %v3993 = vpop.xlane.xlu0 %3992
        %v3994 = vsel %vm3945, %v3867, -inf
        %3995 = vmax.xlane.f32.xlu0 %v3994
        %v3996 = vpop.xlane.xlu0 %3995
        %v3997 = vsel %vm3945, %v3872, -inf
        %3998 = vmax.xlane.f32.xlu0 %v3997
        %v3999 = vpop.xlane.xlu0 %3998
        %v4000 = vsel %vm3945, %v3877, -inf
        %4001 = vmax.xlane.f32.xlu0 %v4000
        %v4002 = vpop.xlane.xlu0 %4001
        %v4003 = vsel %vm3945, %v3882, -inf
        %4004 = vmax.xlane.f32.xlu0 %v4003
        %v4005 = vpop.xlane.xlu0 %4004
        %v4006 = vsel %vm3945, %v3887, -inf
        %4007 = vmax.xlane.f32.xlu0 %v4006
        %v4008 = vpop.xlane.xlu0 %4007
        %v4009 = vsel %vm3945, %v3892, -inf
        %4010 = vmax.xlane.f32.xlu0 %v4009
        %v4011 = vpop.xlane.xlu0 %4010
        %v4012 = vsel %vm3945, %v3897, -inf
        %4013 = vmax.xlane.f32.xlu0 %v4012
        %v4014 = vpop.xlane.xlu0 %4013
        %v4015 = vsel %vm3945, %v3902, -inf
        %4016 = vmax.xlane.f32.xlu0 %v4015
        %v4017 = vpop.xlane.xlu0 %4016
        %v4018 = vsel %vm3945, %v3907, -inf
        %4019 = vmax.xlane.f32.xlu0 %v4018
        %v4020 = vpop.xlane.xlu0 %4019
        %v4021 = vsel %vm3945, %v3912, -inf
        %4022 = vmax.xlane.f32.xlu0 %v4021
        %v4023 = vpop.xlane.xlu0 %4022
        %v4024 = vsel %vm3945, %v3917, -inf
        %4025 = vmax.xlane.f32.xlu0 %v4024
        %v4026 = vpop.xlane.xlu0 %4025
        %v4027 = vsel %vm3945, %v3922, -inf
        %4028 = vmax.xlane.f32.xlu0 %v4027
        %v4029 = vpop.xlane.xlu0 %4028
        %v4030 = vsel %vm3945, %v3927, -inf
        %4031 = vmax.xlane.f32.xlu0 %v4030
        %v4032 = vpop.xlane.xlu0 %4031
        %v4033 = vsel %vm3945, %v3932, -inf
        %4034 = vmax.xlane.f32.xlu0 %v4033
        %v4035 = vpop.xlane.xlu0 %4034
        %v4036 = vsel %vm3945, %v3937, -inf
        %4037 = vmax.xlane.f32.xlu0 %v4036
        %v4038 = vpop.xlane.xlu0 %4037
        %v4039 = vsel %vm3945, %v3942, -inf
        %4040 = vmax.xlane.f32.xlu0 %v4039
        %v4041 = vpop.xlane.xlu0 %4040
        %v4042 = vsub.f32 %v3787, %v3948
        %v4043 = vsub.f32 %v3792, %v3951
        %v4044 = vsub.f32 %v3797, %v3954
        %v4045 = vsub.f32 %v3802, %v3957
        %v4046 = vsub.f32 %v3807, %v3960
        %v4047 = vsub.f32 %v3812, %v3963
        %v4048 = vsub.f32 %v3817, %v3966
        %v4049 = vsub.f32 %v3822, %v3969
        %v4050 = vsub.f32 %v3827, %v3972
        %v4051 = vsub.f32 %v3832, %v3975
        %v4052 = vsub.f32 %v3837, %v3978
        %v4053 = vsub.f32 %v3842, %v3981
        %v4054 = vsub.f32 %v3847, %v3984
        %v4055 = vsub.f32 %v3852, %v3987
        %v4056 = vsub.f32 %v3857, %v3990
        %v4057 = vsub.f32 %v3862, %v3993
        %v4058 = vsub.f32 %v3867, %v3996
        %v4059 = vsub.f32 %v3872, %v3999
        %v4060 = vsub.f32 %v3877, %v4002
        %v4061 = vsub.f32 %v3882, %v4005
        %v4062 = vsub.f32 %v3887, %v4008
        %v4063 = vsub.f32 %v3892, %v4011
        %v4064 = vsub.f32 %v3897, %v4014
        %v4065 = vsub.f32 %v3902, %v4017
        %v4066 = vsub.f32 %v3907, %v4020
        %v4067 = vsub.f32 %v3912, %v4023
        %v4068 = vsub.f32 %v3917, %v4026
        %v4069 = vsub.f32 %v3922, %v4029
        %v4070 = vsub.f32 %v3927, %v4032
        %v4071 = vsub.f32 %v3932, %v4035
        %v4072 = vsub.f32 %v3937, %v4038
        %v4073 = vsub.f32 %v3942, %v4041
        %v4074 = vmul.f32 %v4042, 1.442695
        %v4075 = vpow.pop %v4074
        %v4076 = vmul.f32 %v4043, 1.442695
        %v4077 = vpow.pop %v4076
        %v4078 = vmul.f32 %v4044, 1.442695
        %v4079 = vpow.pop %v4078
        %v4080 = vmul.f32 %v4045, 1.442695
        %v4081 = vpow.pop %v4080
        %v4082 = vmul.f32 %v4046, 1.442695
        %v4083 = vpow.pop %v4082
        %v4084 = vmul.f32 %v4047, 1.442695
        %v4085 = vpow.pop %v4084
        %v4086 = vmul.f32 %v4048, 1.442695
        %v4087 = vpow.pop %v4086
        %v4088 = vmul.f32 %v4049, 1.442695
        %v4089 = vpow.pop %v4088
        %v4090 = vmul.f32 %v4050, 1.442695
        %v4091 = vpow.pop %v4090
        %v4092 = vmul.f32 %v4051, 1.442695
        %v4093 = vpow.pop %v4092
        %v4094 = vmul.f32 %v4052, 1.442695
        %v4095 = vpow.pop %v4094
        %v4096 = vmul.f32 %v4053, 1.442695
        %v4097 = vpow.pop %v4096
        %v4098 = vmul.f32 %v4054, 1.442695
        %v4099 = vpow.pop %v4098
        %v4100 = vmul.f32 %v4055, 1.442695
        %v4101 = vpow.pop %v4100
        %v4102 = vmul.f32 %v4056, 1.442695
        %v4103 = vpow.pop %v4102
        %v4104 = vmul.f32 %v4057, 1.442695
        %v4105 = vpow.pop %v4104
        %v4106 = vmul.f32 %v4058, 1.442695
        %v4107 = vpow.pop %v4106
        %v4108 = vmul.f32 %v4059, 1.442695
        %v4109 = vpow.pop %v4108
        %v4110 = vmul.f32 %v4060, 1.442695
        %v4111 = vpow.pop %v4110
        %v4112 = vmul.f32 %v4061, 1.442695
        %v4113 = vpow.pop %v4112
        %v4114 = vmul.f32 %v4062, 1.442695
        %v4115 = vpow.pop %v4114
        %v4116 = vmul.f32 %v4063, 1.442695
        %v4117 = vpow.pop %v4116
        %v4118 = vmul.f32 %v4064, 1.442695
        %v4119 = vpow.pop %v4118
        %v4120 = vmul.f32 %v4065, 1.442695
        %v4121 = vpow.pop %v4120
        %v4122 = vmul.f32 %v4066, 1.442695
        %v4123 = vpow.pop %v4122
        %v4124 = vmul.f32 %v4067, 1.442695
        %v4125 = vpow.pop %v4124
        %v4126 = vmul.f32 %v4068, 1.442695
        %v4127 = vpow.pop %v4126
        %v4128 = vmul.f32 %v4069, 1.442695
        %v4129 = vpow.pop %v4128
        %v4130 = vmul.f32 %v4070, 1.442695
        %v4131 = vpow.pop %v4130
        %v4132 = vmul.f32 %v4071, 1.442695
        %v4133 = vpow.pop %v4132
        %v4134 = vmul.f32 %v4072, 1.442695
        %v4135 = vpow.pop %v4134
        %v4136 = vmul.f32 %v4073, 1.442695
        %v4137 = vpow.pop %v4136
        %v4138 = vsel %vm3945, %v4075, 0.0
        %4139 = vadd.xlane.f32.xlu0 %v4138
        %v4140 = vpop.xlane.xlu0 %4139
        %v4141 = vsel %vm3945, %v4077, 0.0
        %4142 = vadd.xlane.f32.xlu0 %v4141
        %v4143 = vpop.xlane.xlu0 %4142
        %v4144 = vsel %vm3945, %v4079, 0.0
        %4145 = vadd.xlane.f32.xlu0 %v4144
        %v4146 = vpop.xlane.xlu0 %4145
        %v4147 = vsel %vm3945, %v4081, 0.0
        %4148 = vadd.xlane.f32.xlu0 %v4147
        %v4149 = vpop.xlane.xlu0 %4148
        %v4150 = vsel %vm3945, %v4083, 0.0
        %4151 = vadd.xlane.f32.xlu0 %v4150
        %v4152 = vpop.xlane.xlu0 %4151
        %v4153 = vsel %vm3945, %v4085, 0.0
        %4154 = vadd.xlane.f32.xlu0 %v4153
        %v4155 = vpop.xlane.xlu0 %4154
        %v4156 = vsel %vm3945, %v4087, 0.0
        %4157 = vadd.xlane.f32.xlu0 %v4156
        %v4158 = vpop.xlane.xlu0 %4157
        %v4159 = vsel %vm3945, %v4089, 0.0
        %4160 = vadd.xlane.f32.xlu0 %v4159
        %v4161 = vpop.xlane.xlu0 %4160
        %v4162 = vsel %vm3945, %v4091, 0.0
        %4163 = vadd.xlane.f32.xlu0 %v4162
        %v4164 = vpop.xlane.xlu0 %4163
        %v4165 = vsel %vm3945, %v4093, 0.0
        %4166 = vadd.xlane.f32.xlu0 %v4165
        %v4167 = vpop.xlane.xlu0 %4166
        %v4168 = vsel %vm3945, %v4095, 0.0
        %4169 = vadd.xlane.f32.xlu0 %v4168
        %v4170 = vpop.xlane.xlu0 %4169
        %v4171 = vsel %vm3945, %v4097, 0.0
        %4172 = vadd.xlane.f32.xlu0 %v4171
        %v4173 = vpop.xlane.xlu0 %4172
        %v4174 = vsel %vm3945, %v4099, 0.0
        %4175 = vadd.xlane.f32.xlu0 %v4174
        %v4176 = vpop.xlane.xlu0 %4175
        %v4177 = vsel %vm3945, %v4101, 0.0
        %4178 = vadd.xlane.f32.xlu0 %v4177
        %v4179 = vpop.xlane.xlu0 %4178
        %v4180 = vsel %vm3945, %v4103, 0.0
        %4181 = vadd.xlane.f32.xlu0 %v4180
        %v4182 = vpop.xlane.xlu0 %4181
        %v4183 = vsel %vm3945, %v4105, 0.0
        %4184 = vadd.xlane.f32.xlu0 %v4183
        %v4185 = vpop.xlane.xlu0 %4184
        %v4186 = vsel %vm3945, %v4107, 0.0
        %4187 = vadd.xlane.f32.xlu0 %v4186
        %v4188 = vpop.xlane.xlu0 %4187
        %v4189 = vsel %vm3945, %v4109, 0.0
        %4190 = vadd.xlane.f32.xlu0 %v4189
        %v4191 = vpop.xlane.xlu0 %4190
        %v4192 = vsel %vm3945, %v4111, 0.0
        %4193 = vadd.xlane.f32.xlu0 %v4192
        %v4194 = vpop.xlane.xlu0 %4193
        %v4195 = vsel %vm3945, %v4113, 0.0
        %4196 = vadd.xlane.f32.xlu0 %v4195
        %v4197 = vpop.xlane.xlu0 %4196
        %v4198 = vsel %vm3945, %v4115, 0.0
        %4199 = vadd.xlane.f32.xlu0 %v4198
        %v4200 = vpop.xlane.xlu0 %4199
        %v4201 = vsel %vm3945, %v4117, 0.0
        %4202 = vadd.xlane.f32.xlu0 %v4201
        %v4203 = vpop.xlane.xlu0 %4202
        %v4204 = vsel %vm3945, %v4119, 0.0
        %4205 = vadd.xlane.f32.xlu0 %v4204
        %v4206 = vpop.xlane.xlu0 %4205
        %v4207 = vsel %vm3945, %v4121, 0.0
        %4208 = vadd.xlane.f32.xlu0 %v4207
        %v4209 = vpop.xlane.xlu0 %4208
        %v4210 = vsel %vm3945, %v4123, 0.0
        %4211 = vadd.xlane.f32.xlu0 %v4210
        %v4212 = vpop.xlane.xlu0 %4211
        %v4213 = vsel %vm3945, %v4125, 0.0
        %4214 = vadd.xlane.f32.xlu0 %v4213
        %v4215 = vpop.xlane.xlu0 %4214
        %v4216 = vsel %vm3945, %v4127, 0.0
        %4217 = vadd.xlane.f32.xlu0 %v4216
        %v4218 = vpop.xlane.xlu0 %4217
        %v4219 = vsel %vm3945, %v4129, 0.0
        %4220 = vadd.xlane.f32.xlu0 %v4219
        %v4221 = vpop.xlane.xlu0 %4220
        %v4222 = vsel %vm3945, %v4131, 0.0
        %4223 = vadd.xlane.f32.xlu0 %v4222
        %v4224 = vpop.xlane.xlu0 %4223
        %v4225 = vsel %vm3945, %v4133, 0.0
        %4226 = vadd.xlane.f32.xlu0 %v4225
        %v4227 = vpop.xlane.xlu0 %4226
        %v4228 = vsel %vm3945, %v4135, 0.0
        %4229 = vadd.xlane.f32.xlu0 %v4228
        %v4230 = vpop.xlane.xlu0 %4229
        %v4231 = vsel %vm3945, %v4137, 0.0
        %4232 = vadd.xlane.f32.xlu0 %v4231
        %v4233 = vpop.xlane.xlu0 %4232
        %v4234 = vrcp.pop %v4140
        %v4235 = vrcp.pop %v4143
        %v4236 = vrcp.pop %v4146
        %v4237 = vrcp.pop %v4149
        %v4238 = vrcp.pop %v4152
        %v4239 = vrcp.pop %v4155
        %v4240 = vrcp.pop %v4158
        %v4241 = vrcp.pop %v4161
        %v4242 = vrcp.pop %v4164
        %v4243 = vrcp.pop %v4167
        %v4244 = vrcp.pop %v4170
        %v4245 = vrcp.pop %v4173
        %v4246 = vrcp.pop %v4176
        %v4247 = vrcp.pop %v4179
        %v4248 = vrcp.pop %v4182
        %v4249 = vrcp.pop %v4185
        %v4250 = vrcp.pop %v4188
        %v4251 = vrcp.pop %v4191
        %v4252 = vrcp.pop %v4194
        %v4253 = vrcp.pop %v4197
        %v4254 = vrcp.pop %v4200
        %v4255 = vrcp.pop %v4203
        %v4256 = vrcp.pop %v4206
        %v4257 = vrcp.pop %v4209
        %v4258 = vrcp.pop %v4212
        %v4259 = vrcp.pop %v4215
        %v4260 = vrcp.pop %v4218
        %v4261 = vrcp.pop %v4221
        %v4262 = vrcp.pop %v4224
        %v4263 = vrcp.pop %v4227
        %v4264 = vrcp.pop %v4230
        %v4265 = vrcp.pop %v4233
        %v4266 = vmul.f32 %v4075, %v4234
        %v4267 = vmul.f32 %v4077, %v4235
        %v4268 = vmul.f32 %v4079, %v4236
        %v4269 = vmul.f32 %v4081, %v4237
        %v4270 = vmul.f32 %v4083, %v4238
        %v4271 = vmul.f32 %v4085, %v4239
        %v4272 = vmul.f32 %v4087, %v4240
        %v4273 = vmul.f32 %v4089, %v4241
        %v4274 = vmul.f32 %v4091, %v4242
        %v4275 = vmul.f32 %v4093, %v4243
        %v4276 = vmul.f32 %v4095, %v4244
        %v4277 = vmul.f32 %v4097, %v4245
        %v4278 = vmul.f32 %v4099, %v4246
        %v4279 = vmul.f32 %v4101, %v4247
        %v4280 = vmul.f32 %v4103, %v4248
        %v4281 = vmul.f32 %v4105, %v4249
        %v4282 = vmul.f32 %v4107, %v4250
        %v4283 = vmul.f32 %v4109, %v4251
        %v4284 = vmul.f32 %v4111, %v4252
        %v4285 = vmul.f32 %v4113, %v4253
        %v4286 = vmul.f32 %v4115, %v4254
        %v4287 = vmul.f32 %v4117, %v4255
        %v4288 = vmul.f32 %v4119, %v4256
        %v4289 = vmul.f32 %v4121, %v4257
        %v4290 = vmul.f32 %v4123, %v4258
        %v4291 = vmul.f32 %v4125, %v4259
        %v4292 = vmul.f32 %v4127, %v4260
        %v4293 = vmul.f32 %v4129, %v4261
        %v4294 = vmul.f32 %v4131, %v4262
        %v4295 = vmul.f32 %v4133, %v4263
        %v4296 = vmul.f32 %v4135, %v4264
        %v4297 = vmul.f32 %v4137, %v4265
        %v4298 = vsel %vm3945, %v4266, 0.0
        %v4299 = vsel %vm3945, %v4267, 0.0
        %v4300 = vadd.f32 %v4298, %v4299
        %v4301 = vsel %vm3945, %v4268, 0.0
        %v4302 = vadd.f32 %v4300, %v4301
        %v4303 = vsel %vm3945, %v4269, 0.0
        %v4304 = vadd.f32 %v4302, %v4303
        %v4305 = vsel %vm3945, %v4270, 0.0
        %v4306 = vadd.f32 %v4304, %v4305
        %v4307 = vsel %vm3945, %v4271, 0.0
        %v4308 = vadd.f32 %v4306, %v4307
        %v4309 = vsel %vm3945, %v4272, 0.0
        %v4310 = vadd.f32 %v4308, %v4309
        %v4311 = vsel %vm3945, %v4273, 0.0
        %v4312 = vadd.f32 %v4310, %v4311
        %v4313 = vrot.slane %v4312, 4
        %v4314 = vadd.f32 %v4312, %v4313
        %v4315 = vrot.slane %v4314, 2
        %v4316 = vadd.f32 %v4314, %v4315
        %v4317 = vrot.slane %v4316, 1
        %v4318 = vadd.f32 %v4316, %v4317
        %v4319 = vsel %vm3945, %v4274, 0.0
        %v4320 = vsel %vm3945, %v4275, 0.0
        %v4321 = vadd.f32 %v4319, %v4320
        %v4322 = vsel %vm3945, %v4276, 0.0
        %v4323 = vadd.f32 %v4321, %v4322
        %v4324 = vsel %vm3945, %v4277, 0.0
        %v4325 = vadd.f32 %v4323, %v4324
        %v4326 = vsel %vm3945, %v4278, 0.0
        %v4327 = vadd.f32 %v4325, %v4326
        %v4328 = vsel %vm3945, %v4279, 0.0
        %v4329 = vadd.f32 %v4327, %v4328
        %v4330 = vsel %vm3945, %v4280, 0.0
        %v4331 = vadd.f32 %v4329, %v4330
        %v4332 = vsel %vm3945, %v4281, 0.0
        %v4333 = vadd.f32 %v4331, %v4332
        %v4334 = vrot.slane %v4333, 4
        %v4335 = vadd.f32 %v4333, %v4334
        %v4336 = vrot.slane %v4335, 2
        %v4337 = vadd.f32 %v4335, %v4336
        %v4338 = vrot.slane %v4337, 1
        %v4339 = vadd.f32 %v4337, %v4338
        %v4340 = vsel %vm3945, %v4282, 0.0
        %v4341 = vsel %vm3945, %v4283, 0.0
        %v4342 = vadd.f32 %v4340, %v4341
        %v4343 = vsel %vm3945, %v4284, 0.0
        %v4344 = vadd.f32 %v4342, %v4343
        %v4345 = vsel %vm3945, %v4285, 0.0
        %v4346 = vadd.f32 %v4344, %v4345
        %v4347 = vsel %vm3945, %v4286, 0.0
        %v4348 = vadd.f32 %v4346, %v4347
        %v4349 = vsel %vm3945, %v4287, 0.0
        %v4350 = vadd.f32 %v4348, %v4349
        %v4351 = vsel %vm3945, %v4288, 0.0
        %v4352 = vadd.f32 %v4350, %v4351
        %v4353 = vsel %vm3945, %v4289, 0.0
        %v4354 = vadd.f32 %v4352, %v4353
        %v4355 = vrot.slane %v4354, 4
        %v4356 = vadd.f32 %v4354, %v4355
        %v4357 = vrot.slane %v4356, 2
        %v4358 = vadd.f32 %v4356, %v4357
        %v4359 = vrot.slane %v4358, 1
        %v4360 = vadd.f32 %v4358, %v4359
        %v4361 = vsel %vm3945, %v4290, 0.0
        %v4362 = vsel %vm3945, %v4291, 0.0
        %v4363 = vadd.f32 %v4361, %v4362
        %v4364 = vsel %vm3945, %v4292, 0.0
        %v4365 = vadd.f32 %v4363, %v4364
        %v4366 = vsel %vm3945, %v4293, 0.0
        %v4367 = vadd.f32 %v4365, %v4366
        %v4368 = vsel %vm3945, %v4294, 0.0
        %v4369 = vadd.f32 %v4367, %v4368
        %v4370 = vsel %vm3945, %v4295, 0.0
        %v4371 = vadd.f32 %v4369, %v4370
        %v4372 = vsel %vm3945, %v4296, 0.0
        %v4373 = vadd.f32 %v4371, %v4372
        %v4374 = vsel %vm3945, %v4297, 0.0
        %v4375 = vadd.f32 %v4373, %v4374
        %v4376 = vrot.slane %v4375, 4
        %v4377 = vadd.f32 %v4375, %v4376
        %v4378 = vrot.slane %v4377, 2
        %v4379 = vadd.f32 %v4377, %v4378
        %v4380 = vrot.slane %v4379, 1
        %v4381 = vadd.f32 %v4379, %v4380
        %v4382 = vsel %vm1300, %v4318, %v4339
        %v4383 = vsel %vm1302, %v4382, %v4360
        %v4384 = vsel %vm1304, %v4383, %v4381
        %4385 = vxpose.xlu0.b32.start [1/16] %v4384, 128
        %4386 = vxpose.xlu0.b32.cont [2/16] 0.0, 128
        %4387 = vxpose.xlu0.b32.cont [3/16] 0.0, 128
        %4388 = vxpose.xlu0.b32.cont [4/16] 0.0, 128
        %4389 = vxpose.xlu0.b32.cont [5/16] 0.0, 128
        %4390 = vxpose.xlu0.b32.cont [6/16] 0.0, 128
        %4391 = vxpose.xlu0.b32.cont [7/16] 0.0, 128
        %4392 = vxpose.xlu0.b32.cont [8/16] 0.0, 128
        %4393 = vxpose.xlu0.b32.cont [9/16] 0.0, 128
        %4394 = vxpose.xlu0.b32.cont [10/16] 0.0, 128
        %4395 = vxpose.xlu0.b32.cont [11/16] 0.0, 128
        %4396 = vxpose.xlu0.b32.cont [12/16] 0.0, 128
        %4397 = vxpose.xlu0.b32.cont [13/16] 0.0, 128
        %4398 = vxpose.xlu0.b32.cont [14/16] 0.0, 128
        %4399 = vxpose.xlu0.b32.cont [15/16] 0.0, 128
        %4400 = vxpose.xlu0.b32.end [16/16] 0.0, 128
        %v4401 = vpop.trf.xlu0
        %v4402 = vpop.trf.xlu0
        %v4403 = vpop.trf.xlu0
        %v4404 = vpop.trf.xlu0
        %v4405 = vpop.trf.xlu0
        %v4406 = vpop.trf.xlu0
        %v4407 = vpop.trf.xlu0
        %v4408 = vpop.trf.xlu0
        %v4409 = vpop.trf.xlu0
        %v4410 = vpop.trf.xlu0
        %v4411 = vpop.trf.xlu0
        %v4412 = vpop.trf.xlu0
        %v4413 = vpop.trf.xlu0
        %v4414 = vpop.trf.xlu0
        %v4415 = vpop.trf.xlu0
        %v4416 = vpop.trf.xlu0
        %v4417 = vld [vmem:[#allocation13] sm:$0xff]
        %v4418 = vld [vmem:[#allocation13 + $0x8] sm:$0xff]
        %v4419 = vld [vmem:[#allocation13 + $0x10] sm:$0xff]
        %v4420 = vld [vmem:[#allocation13 + $0x18] sm:$0xff]
        %v4421 = vld [vmem:[#allocation13 + $0x20] sm:$0xff]
        %v4422 = vld [vmem:[#allocation13 + $0x28] sm:$0xff]
        %v4423 = vld [vmem:[#allocation13 + $0x30] sm:$0xff]
        %v4424 = vld [vmem:[#allocation13 + $0x38] sm:$0xff]
        %v4425 = vld [vmem:[#allocation13 + $0x40] sm:$0xff]
        %v4426 = vld [vmem:[#allocation13 + $0x48] sm:$0xff]
        %v4427 = vld [vmem:[#allocation13 + $0x50] sm:$0xff]
        %v4428 = vld [vmem:[#allocation13 + $0x58] sm:$0xff]
        %v4429 = vld [vmem:[#allocation13 + $0x60] sm:$0xff]
        %v4430 = vld [vmem:[#allocation13 + $0x68] sm:$0xff]
        %v4431 = vld [vmem:[#allocation13 + $0x70] sm:$0xff]
        %v4432 = vld [vmem:[#allocation13 + $0x78] sm:$0xff]
        %4433 = vxpose.xlu0.b32.start [1/16] %v4266, 128
        %4434 = vxpose.xlu0.b32.cont [2/16] %v4267, 128
        %4435 = vxpose.xlu0.b32.cont [3/16] %v4268, 128
        %4436 = vxpose.xlu0.b32.cont [4/16] %v4269, 128
        %4437 = vxpose.xlu0.b32.cont [5/16] %v4270, 128
        %4438 = vxpose.xlu0.b32.cont [6/16] %v4271, 128
        %4439 = vxpose.xlu0.b32.cont [7/16] %v4272, 128
        %4440 = vxpose.xlu0.b32.cont [8/16] %v4273, 128
        %4441 = vxpose.xlu0.b32.cont [9/16] 0.0, 128
        %4442 = vxpose.xlu0.b32.cont [10/16] 0.0, 128
        %4443 = vxpose.xlu0.b32.cont [11/16] 0.0, 128
        %4444 = vxpose.xlu0.b32.cont [12/16] 0.0, 128
        %4445 = vxpose.xlu0.b32.cont [13/16] 0.0, 128
        %4446 = vxpose.xlu0.b32.cont [14/16] 0.0, 128
        %4447 = vxpose.xlu0.b32.cont [15/16] 0.0, 128
        %4448 = vxpose.xlu0.b32.end [16/16] 0.0, 128
        %v4449 = vpop.trf.xlu0
        %v4450 = vpop.trf.xlu0
        %v4451 = vpop.trf.xlu0
        %v4452 = vpop.trf.xlu0
        %v4453 = vpop.trf.xlu0
        %v4454 = vpop.trf.xlu0
        %v4455 = vpop.trf.xlu0
        %v4456 = vpop.trf.xlu0
        %v4457 = vpop.trf.xlu0
        %v4458 = vpop.trf.xlu0
        %v4459 = vpop.trf.xlu0
        %v4460 = vpop.trf.xlu0
        %v4461 = vpop.trf.xlu0
        %v4462 = vpop.trf.xlu0
        %v4463 = vpop.trf.xlu0
        %v4464 = vpop.trf.xlu0
        %v4466 = vsel %vm3945, %v4449, 0
        %v4469 = vsel %vm3945, %v4450, 0
        %v4472 = vsel %vm3945, %v4451, 0
        %v4475 = vsel %vm3945, %v4452, 0
        %v4478 = vsel %vm3945, %v4453, 0
        %v4481 = vsel %vm3945, %v4454, 0
        %v4484 = vsel %vm3945, %v4455, 0
        %v4487 = vsel %vm3945, %v4456, 0
        %4489 = vmatprep.subr.mxu0 %v3621
        %4490 = vmatpush1.msra.mxu0 %v3620
        %4491 = vmatprep.subr.mxu0 %v3623
        %4492 = vmatpush1.msra.mxu0 %v3622
        %4493 = vmatprep.subr.mxu0 %v3625
        %4494 = vmatpush1.msra.mxu0 %v3624
        %4495 = vmatprep.subr.mxu0 %v3627
        %4496 = vmatpush1.msra.mxu0 %v3626
        %4497 = vmatprep.subr.mxu0 %v3629
        %4498 = vmatpush1.msra.mxu0 %v3628
        %4499 = vmatprep.subr.mxu0 %v3631
        %4500 = vmatpush1.msra.mxu0 %v3630
        %4501 = vmatprep.subr.mxu0 %v3633
        %4502 = vmatpush1.msra.mxu0 %v3632
        %4503 = vmatprep.subr.mxu0 %v3635
        %4504 = vmatpush1.msra.mxu0 %v3634
        %4505 = vmatprep.subr.mxu0 0.0
        %4506 = vmatpush1.msra.mxu0 0.0
        %4507 = vmatprep.subr.mxu0 0.0
        %4508 = vmatpush1.msra.mxu0 0.0
        %4509 = vmatprep.subr.mxu0 0.0
        %4510 = vmatpush1.msra.mxu0 0.0
        %4511 = vmatprep.subr.mxu0 0.0
        %4512 = vmatpush1.msra.mxu0 0.0
        %4513 = vmatprep.subr.mxu0 0.0
        %4514 = vmatpush1.msra.mxu0 0.0
        %4515 = vmatprep.subr.mxu0 0.0
        %4516 = vmatpush1.msra.mxu0 0.0
        %4517 = vmatprep.subr.mxu0 0.0
        %4518 = vmatpush1.msra.mxu0 0.0
        %4519 = vmatprep.subr.mxu0 0.0
        %4520 = vmatpush1.msra.mxu0 0.0
        %4521 = vmatprep.subr.mxu0 0.0
        %4522 = vmatpush1.msra.mxu0 0.0
        %4523 = vmatprep.subr.mxu0 0.0
        %4524 = vmatpush1.msra.mxu0 0.0
        %4525 = vmatprep.subr.mxu0 0.0
        %4526 = vmatpush1.msra.mxu0 0.0
        %4527 = vmatprep.subr.mxu0 0.0
        %4528 = vmatpush1.msra.mxu0 0.0
        %4529 = vmatprep.subr.mxu0 0.0
        %4530 = vmatpush1.msra.mxu0 0.0
        %4531 = vmatprep.subr.mxu0 0.0
        %4532 = vmatpush1.msra.mxu0 0.0
        %4533 = vmatprep.subr.mxu0 0.0
        %4534 = vmatpush1.msra.mxu0 0.0
        %4535 = vmatprep.subr.mxu0 0.0
        %4536 = vmatpush1.msra.mxu0 0.0
        %4537 = vmatprep.subr.mxu0 0.0
        %4538 = vmatpush1.msra.mxu0 0.0
        %4539 = vmatprep.subr.mxu0 0.0
        %4540 = vmatpush1.msra.mxu0 0.0
        %4541 = vmatprep.subr.mxu0 0.0
        %4542 = vmatpush1.msra.mxu0 0.0
        %4543 = vmatprep.subr.mxu0 0.0
        %4544 = vmatpush1.msra.mxu0 0.0
        %4545 = vmatprep.subr.mxu0 0.0
        %4546 = vmatpush1.msra.mxu0 0.0
        %4547 = vmatprep.subr.mxu0 0.0
        %4548 = vmatpush1.msra.mxu0 0.0
        %4549 = vmatprep.subr.mxu0 0.0
        %4550 = vmatpush1.msra.mxu0 0.0
        %4551 = vmatprep.subr.mxu0 0.0
        %4552 = vmatpush1.msra.mxu0 0.0
        %4553 = vmatprep.mubr.f32.mxu0 0.0
        %4554 = vmatmul.mubr.f32.gmra.mrb[0].mxu0 %v4466
        %v4555 = vpop.f32.mrb[0].mxu0
        %v4556 = vadd.f32 0.0, %v4555
        %v4557 = vpop.f32.mrb[0].mxu0
        %v4558 = vadd.f32 0.0, %v4557
        %4559 = vmatprep.mubr.f32.mxu0 0.0
        %4560 = vmatmul.mubr.f32.gmra.mrb[0].mxu0 %v4469
        %v4561 = vpop.f32.mrb[0].mxu0
        %v4562 = vadd.f32 0.0, %v4561
        %v4563 = vpop.f32.mrb[0].mxu0
        %v4564 = vadd.f32 0.0, %v4563
        %4565 = vmatprep.mubr.f32.mxu0 0.0
        %4566 = vmatmul.mubr.f32.gmra.mrb[0].mxu0 %v4472
        %v4567 = vpop.f32.mrb[0].mxu0
        %v4568 = vadd.f32 0.0, %v4567
        %v4569 = vpop.f32.mrb[0].mxu0
        %v4570 = vadd.f32 0.0, %v4569
        %4571 = vmatprep.mubr.f32.mxu0 0.0
        %4572 = vmatmul.mubr.f32.gmra.mrb[0].mxu0 %v4475
        %v4573 = vpop.f32.mrb[0].mxu0
        %v4574 = vadd.f32 0.0, %v4573
        %v4575 = vpop.f32.mrb[0].mxu0
        %v4576 = vadd.f32 0.0, %v4575
        %4577 = vmatprep.mubr.f32.mxu0 0.0
        %4578 = vmatmul.mubr.f32.gmra.mrb[0].mxu0 %v4478
        %v4579 = vpop.f32.mrb[0].mxu0
        %v4580 = vadd.f32 0.0, %v4579
        %v4581 = vpop.f32.mrb[0].mxu0
        %v4582 = vadd.f32 0.0, %v4581
        %4583 = vmatprep.mubr.f32.mxu0 0.0
        %4584 = vmatmul.mubr.f32.gmra.mrb[0].mxu0 %v4481
        %v4585 = vpop.f32.mrb[0].mxu0
        %v4586 = vadd.f32 0.0, %v4585
        %v4587 = vpop.f32.mrb[0].mxu0
        %v4588 = vadd.f32 0.0, %v4587
        %4589 = vmatprep.mubr.f32.mxu0 0.0
        %4590 = vmatmul.mubr.f32.gmra.mrb[0].mxu0 %v4484
        %v4591 = vpop.f32.mrb[0].mxu0
        %v4592 = vadd.f32 0.0, %v4591
        %v4593 = vpop.f32.mrb[0].mxu0
        %v4594 = vadd.f32 0.0, %v4593
        %4595 = vmatprep.mubr.f32.mxu0 0.0
        %4596 = vmatmul.mubr.f32.gmra.mrb[0].mxu0 %v4487
        %v4597 = vpop.f32.mrb[0].mxu0
        %v4598 = vadd.f32 0.0, %v4597
        %v4599 = vpop.f32.mrb[0].mxu0
        %v4600 = vadd.f32 0.0, %v4599
        %4601 = vdwg.mxu0
        %4603 = vset.pattern.permute.xlu0 0
        %4604 = vperm.xlu0 %4603, %v4401
        %v4605 = vpop.permute.xlu0 %4604
        %4608 = vset.pattern.permute.xlu0 0
        %4609 = vperm.xlu0 %4608, %v4402
        %v4610 = vpop.permute.xlu0 %4609
        %4613 = vset.pattern.permute.xlu0 0
        %4614 = vperm.xlu0 %4613, %v4403
        %v4615 = vpop.permute.xlu0 %4614
        %4618 = vset.pattern.permute.xlu0 0
        %4619 = vperm.xlu0 %4618, %v4404
        %v4620 = vpop.permute.xlu0 %4619
        %4623 = vset.pattern.permute.xlu0 0
        %4624 = vperm.xlu0 %4623, %v4405
        %v4625 = vpop.permute.xlu0 %4624
        %4628 = vset.pattern.permute.xlu0 0
        %4629 = vperm.xlu0 %4628, %v4406
        %v4630 = vpop.permute.xlu0 %4629
        %4633 = vset.pattern.permute.xlu0 0
        %4634 = vperm.xlu0 %4633, %v4407
        %v4635 = vpop.permute.xlu0 %4634
        %4638 = vset.pattern.permute.xlu0 0
        %4639 = vperm.xlu0 %4638, %v4408
        %v4640 = vpop.permute.xlu0 %4639
        %v4642 = vmul.f32 %v4417, %v4605
        %v4643 = vmul.f32 %v4418, %v4605
        %v4644 = vmul.f32 %v4419, %v4610
        %v4645 = vmul.f32 %v4420, %v4610
        %v4646 = vmul.f32 %v4421, %v4615
        %v4647 = vmul.f32 %v4422, %v4615
        %v4648 = vmul.f32 %v4423, %v4620
        %v4649 = vmul.f32 %v4424, %v4620
        %v4650 = vmul.f32 %v4425, %v4625
        %v4651 = vmul.f32 %v4426, %v4625
        %v4652 = vmul.f32 %v4427, %v4630
        %v4653 = vmul.f32 %v4428, %v4630
        %v4654 = vmul.f32 %v4429, %v4635
        %v4655 = vmul.f32 %v4430, %v4635
        %v4656 = vmul.f32 %v4431, %v4640
        %v4657 = vmul.f32 %v4432, %v4640
        %v4658 = vsub.f32 %v4556, %v4642
        %v4659 = vsub.f32 %v4558, %v4643
        %v4660 = vsub.f32 %v4562, %v4644
        %v4661 = vsub.f32 %v4564, %v4645
        %v4662 = vsub.f32 %v4568, %v4646
        %v4663 = vsub.f32 %v4570, %v4647
        %v4664 = vsub.f32 %v4574, %v4648
        %v4665 = vsub.f32 %v4576, %v4649
        %v4666 = vsub.f32 %v4580, %v4650
        %v4667 = vsub.f32 %v4582, %v4651
        %v4668 = vsub.f32 %v4586, %v4652
        %v4669 = vsub.f32 %v4588, %v4653
        %v4670 = vsub.f32 %v4592, %v4654
        %v4671 = vsub.f32 %v4594, %v4655
        %v4672 = vsub.f32 %v4598, %v4656
        %v4673 = vsub.f32 %v4600, %v4657
        %v4674 = vmul.f32 %v4658, %v4658
        %v4675 = vmul.f32 %v4659, %v4659
        %v4676 = vmul.f32 %v4660, %v4660
        %v4677 = vmul.f32 %v4661, %v4661
        %v4678 = vmul.f32 %v4662, %v4662
        %v4679 = vmul.f32 %v4663, %v4663
        %v4680 = vmul.f32 %v4664, %v4664
        %v4681 = vmul.f32 %v4665, %v4665
        %v4682 = vmul.f32 %v4666, %v4666
        %v4683 = vmul.f32 %v4667, %v4667
        %v4684 = vmul.f32 %v4668, %v4668
        %v4685 = vmul.f32 %v4669, %v4669
        %v4686 = vmul.f32 %v4670, %v4670
        %v4687 = vmul.f32 %v4671, %v4671
        %v4688 = vmul.f32 %v4672, %v4672
        %v4689 = vmul.f32 %v4673, %v4673
        %v4690 = vadd.f32 %v4674, %v4675
        %4691 = vadd.xlane.f32.xlu0 %v4690
        %v4692 = vpop.xlane.xlu0 %4691
        %v4693 = vadd.f32 %v4676, %v4677
        %4694 = vadd.xlane.f32.xlu0 %v4693
        %v4695 = vpop.xlane.xlu0 %4694
        %v4696 = vadd.f32 %v4678, %v4679
        %4697 = vadd.xlane.f32.xlu0 %v4696
        %v4698 = vpop.xlane.xlu0 %4697
        %v4699 = vadd.f32 %v4680, %v4681
        %4700 = vadd.xlane.f32.xlu0 %v4699
        %v4701 = vpop.xlane.xlu0 %4700
        %v4702 = vadd.f32 %v4682, %v4683
        %4703 = vadd.xlane.f32.xlu0 %v4702
        %v4704 = vpop.xlane.xlu0 %4703
        %v4705 = vadd.f32 %v4684, %v4685
        %4706 = vadd.xlane.f32.xlu0 %v4705
        %v4707 = vpop.xlane.xlu0 %4706
        %v4708 = vadd.f32 %v4686, %v4687
        %4709 = vadd.xlane.f32.xlu0 %v4708
        %v4710 = vpop.xlane.xlu0 %4709
        %v4711 = vadd.f32 %v4688, %v4689
        %4712 = vadd.xlane.f32.xlu0 %v4711
        %v4713 = vpop.xlane.xlu0 %4712
        %v4714 = vmax.f32 %v4692, 1e-24
        %v4715 = vmax.f32 %v4695, 1e-24
        %v4716 = vmax.f32 %v4698, 1e-24
        %v4717 = vmax.f32 %v4701, 1e-24
        %v4718 = vmax.f32 %v4704, 1e-24
        %v4719 = vmax.f32 %v4707, 1e-24
        %v4720 = vmax.f32 %v4710, 1e-24
        %v4721 = vmax.f32 %v4713, 1e-24
        %v4722 = vrsqrt.pop %v4714
        %v4723 = vrsqrt.pop %v4715
        %v4724 = vrsqrt.pop %v4716
        %v4725 = vrsqrt.pop %v4717
        %v4726 = vrsqrt.pop %v4718
        %v4727 = vrsqrt.pop %v4719
        %v4728 = vrsqrt.pop %v4720
        %v4729 = vrsqrt.pop %v4721
        %v4730 = vmul.f32 %v4658, %v4722
        %v4731 = vmul.f32 %v4659, %v4722
        %v4732 = vmul.f32 %v4660, %v4723
        %v4733 = vmul.f32 %v4661, %v4723
        %v4734 = vmul.f32 %v4662, %v4724
        %v4735 = vmul.f32 %v4663, %v4724
        %v4736 = vmul.f32 %v4664, %v4725
        %v4737 = vmul.f32 %v4665, %v4725
        %v4738 = vmul.f32 %v4666, %v4726
        %v4739 = vmul.f32 %v4667, %v4726
        %v4740 = vmul.f32 %v4668, %v4727
        %v4741 = vmul.f32 %v4669, %v4727
        %v4742 = vmul.f32 %v4670, %v4728
        %v4743 = vmul.f32 %v4671, %v4728
        %v4744 = vmul.f32 %v4672, %v4729
        %v4745 = vmul.f32 %v4673, %v4729
        %v4746 = vmul.f32 %v4730, %v4730
        %v4747 = vmul.f32 %v4731, %v4731
        %v4748 = vmul.f32 %v4732, %v4732
        %v4749 = vmul.f32 %v4733, %v4733
        %v4750 = vmul.f32 %v4734, %v4734
        %v4751 = vmul.f32 %v4735, %v4735
        %v4752 = vmul.f32 %v4736, %v4736
        %v4753 = vmul.f32 %v4737, %v4737
        %v4754 = vmul.f32 %v4738, %v4738
        %v4755 = vmul.f32 %v4739, %v4739
        %v4756 = vmul.f32 %v4740, %v4740
        %v4757 = vmul.f32 %v4741, %v4741
        %v4758 = vmul.f32 %v4742, %v4742
        %v4759 = vmul.f32 %v4743, %v4743
        %v4760 = vmul.f32 %v4744, %v4744
        %v4761 = vmul.f32 %v4745, %v4745
        %v4762 = vadd.f32 %v4746, %v4747
        %v4763 = vadd.f32 %v4762, %v4748
        %v4764 = vadd.f32 %v4763, %v4749
        %v4765 = vadd.f32 %v4764, %v4750
        %v4766 = vadd.f32 %v4765, %v4751
        %v4767 = vadd.f32 %v4766, %v4752
        %v4768 = vadd.f32 %v4767, %v4753
        %v4769 = vadd.f32 %v4768, %v4754
        %v4770 = vadd.f32 %v4769, %v4755
        %v4771 = vadd.f32 %v4770, %v4756
        %v4772 = vadd.f32 %v4771, %v4757
        %v4773 = vadd.f32 %v4772, %v4758
        %v4774 = vadd.f32 %v4773, %v4759
        %v4775 = vadd.f32 %v4774, %v4760
        %v4776 = vadd.f32 %v4775, %v4761
        %4777 = vadd.xlane.f32.xlu0 %v4776
        %v4778 = vpop.xlane.xlu0 %4777
        %v4779 = vrot.slane %v4778, 4
        %v4780 = vadd.f32 %v4778, %v4779
        %v4781 = vrot.slane %v4780, 2
        %v4782 = vadd.f32 %v4780, %v4781
        %v4783 = vrot.slane %v4782, 1
        %v4784 = vadd.f32 %v4782, %v4783
        %s4785 = vtos %v4784
        %v4786 = vstv %s4785
        %v4787 = vmax.f32 %v4786, 1e-24
        %v4788 = vrsqrt.pop %v4787
        %v4789 = vmul.f32 %v4730, %v4788
        %v4790 = vmul.f32 %v4731, %v4788
        %v4791 = vmul.f32 %v4732, %v4788
        %v4792 = vmul.f32 %v4733, %v4788
        %v4793 = vmul.f32 %v4734, %v4788
        %v4794 = vmul.f32 %v4735, %v4788
        %v4795 = vmul.f32 %v4736, %v4788
        %v4796 = vmul.f32 %v4737, %v4788
        %v4797 = vmul.f32 %v4738, %v4788
        %v4798 = vmul.f32 %v4739, %v4788
        %v4799 = vmul.f32 %v4740, %v4788
        %v4800 = vmul.f32 %v4741, %v4788
        %v4801 = vmul.f32 %v4742, %v4788
        %v4802 = vmul.f32 %v4743, %v4788
        %v4803 = vmul.f32 %v4744, %v4788
        %v4804 = vmul.f32 %v4745, %v4788
        %4805 = vst [vmem:[%s559] sm:$0xff] %v4789
        %4806 = vst [vmem:[%s559 + $0x8] sm:$0xff] %v4790
        %4807 = vst [vmem:[%s559 + $0x10] sm:$0xff] %v4791
        %4808 = vst [vmem:[%s559 + $0x18] sm:$0xff] %v4792
        %4809 = vst [vmem:[%s559 + $0x20] sm:$0xff] %v4793
        %4810 = vst [vmem:[%s559 + $0x28] sm:$0xff] %v4794
        %4811 = vst [vmem:[%s559 + $0x30] sm:$0xff] %v4795
        %4812 = vst [vmem:[%s559 + $0x38] sm:$0xff] %v4796
        %4813 = vst [vmem:[%s559 + $0x40] sm:$0xff] %v4797
        %4814 = vst [vmem:[%s559 + $0x48] sm:$0xff] %v4798
        %4815 = vst [vmem:[%s559 + $0x50] sm:$0xff] %v4799
        %4816 = vst [vmem:[%s559 + $0x58] sm:$0xff] %v4800
        %4817 = vst [vmem:[%s559 + $0x60] sm:$0xff] %v4801
        %4818 = vst [vmem:[%s559 + $0x68] sm:$0xff] %v4802
        %4819 = vst [vmem:[%s559 + $0x70] sm:$0xff] %v4803
        %4820 = vst [vmem:[%s559 + $0x78] sm:$0xff] %v4804
        %4821 = vxpose.xlu0.b32.start [1/16] %v4274, 128
        %4822 = vxpose.xlu0.b32.cont [2/16] %v4275, 128
        %4823 = vxpose.xlu0.b32.cont [3/16] %v4276, 128
        %4824 = vxpose.xlu0.b32.cont [4/16] %v4277, 128
        %4825 = vxpose.xlu0.b32.cont [5/16] %v4278, 128
        %4826 = vxpose.xlu0.b32.cont [6/16] %v4279, 128
        %4827 = vxpose.xlu0.b32.cont [7/16] %v4280, 128
        %4828 = vxpose.xlu0.b32.cont [8/16] %v4281, 128
        %4829 = vxpose.xlu0.b32.cont [9/16] 0.0, 128
        %4830 = vxpose.xlu0.b32.cont [10/16] 0.0, 128
        %4831 = vxpose.xlu0.b32.cont [11/16] 0.0, 128
        %4832 = vxpose.xlu0.b32.cont [12/16] 0.0, 128
        %4833 = vxpose.xlu0.b32.cont [13/16] 0.0, 128
        %4834 = vxpose.xlu0.b32.cont [14/16] 0.0, 128
        %4835 = vxpose.xlu0.b32.cont [15/16] 0.0, 128
        %4836 = vxpose.xlu0.b32.end [16/16] 0.0, 128
        %v4837 = vpop.trf.xlu0
        %v4838 = vpop.trf.xlu0
        %v4839 = vpop.trf.xlu0
        %v4840 = vpop.trf.xlu0
        %v4841 = vpop.trf.xlu0
        %v4842 = vpop.trf.xlu0
        %v4843 = vpop.trf.xlu0
        %v4844 = vpop.trf.xlu0
        %v4845 = vpop.trf.xlu0
        %v4846 = vpop.trf.xlu0
        %v4847 = vpop.trf.xlu0
        %v4848 = vpop.trf.xlu0
        %v4849 = vpop.trf.xlu0
        %v4850 = vpop.trf.xlu0
        %v4851 = vpop.trf.xlu0
        %v4852 = vpop.trf.xlu0
        %v4854 = vsel %vm3945, %v4837, 0
        %v4857 = vsel %vm3945, %v4838, 0
        %v4860 = vsel %vm3945, %v4839, 0
        %v4863 = vsel %vm3945, %v4840, 0
        %v4866 = vsel %vm3945, %v4841, 0
        %v4869 = vsel %vm3945, %v4842, 0
        %v4872 = vsel %vm3945, %v4843, 0
        %v4875 = vsel %vm3945, %v4844, 0
        %4877 = vmatprep.subr.mxu0 %v3637
        %4878 = vmatpush1.msra.mxu0 %v3636
        %4879 = vmatprep.subr.mxu0 %v3639
        %4880 = vmatpush1.msra.mxu0 %v3638
        %4881 = vmatprep.subr.mxu0 %v3641
        %4882 = vmatpush1.msra.mxu0 %v3640
        %4883 = vmatprep.subr.mxu0 %v3643
        %4884 = vmatpush1.msra.mxu0 %v3642
        %4885 = vmatprep.subr.mxu0 %v3645
        %4886 = vmatpush1.msra.mxu0 %v3644
        %4887 = vmatprep.subr.mxu0 %v3647
        %4888 = vmatpush1.msra.mxu0 %v3646
        %4889 = vmatprep.subr.mxu0 %v3649
        %4890 = vmatpush1.msra.mxu0 %v3648
        %4891 = vmatprep.subr.mxu0 %v3651
        %4892 = vmatpush1.msra.mxu0 %v3650
        %4893 = vmatprep.subr.mxu0 0.0
        %4894 = vmatpush1.msra.mxu0 0.0
        %4895 = vmatprep.subr.mxu0 0.0
        %4896 = vmatpush1.msra.mxu0 0.0
        %4897 = vmatprep.subr.mxu0 0.0
        %4898 = vmatpush1.msra.mxu0 0.0
        %4899 = vmatprep.subr.mxu0 0.0
        %4900 = vmatpush1.msra.mxu0 0.0
        %4901 = vmatprep.subr.mxu0 0.0
        %4902 = vmatpush1.msra.mxu0 0.0
        %4903 = vmatprep.subr.mxu0 0.0
        %4904 = vmatpush1.msra.mxu0 0.0
        %4905 = vmatprep.subr.mxu0 0.0
        %4906 = vmatpush1.msra.mxu0 0.0
        %4907 = vmatprep.subr.mxu0 0.0
        %4908 = vmatpush1.msra.mxu0 0.0
        %4909 = vmatprep.subr.mxu0 0.0
        %4910 = vmatpush1.msra.mxu0 0.0
        %4911 = vmatprep.subr.mxu0 0.0
        %4912 = vmatpush1.msra.mxu0 0.0
        %4913 = vmatprep.subr.mxu0 0.0
        %4914 = vmatpush1.msra.mxu0 0.0
        %4915 = vmatprep.subr.mxu0 0.0
        %4916 = vmatpush1.msra.mxu0 0.0
        %4917 = vmatprep.subr.mxu0 0.0
        %4918 = vmatpush1.msra.mxu0 0.0
        %4919 = vmatprep.subr.mxu0 0.0
        %4920 = vmatpush1.msra.mxu0 0.0
        %4921 = vmatprep.subr.mxu0 0.0
        %4922 = vmatpush1.msra.mxu0 0.0
        %4923 = vmatprep.subr.mxu0 0.0
        %4924 = vmatpush1.msra.mxu0 0.0
        %4925 = vmatprep.subr.mxu0 0.0
        %4926 = vmatpush1.msra.mxu0 0.0
        %4927 = vmatprep.subr.mxu0 0.0
        %4928 = vmatpush1.msra.mxu0 0.0
        %4929 = vmatprep.subr.mxu0 0.0
        %4930 = vmatpush1.msra.mxu0 0.0
        %4931 = vmatprep.subr.mxu0 0.0
        %4932 = vmatpush1.msra.mxu0 0.0
        %4933 = vmatprep.subr.mxu0 0.0
        %4934 = vmatpush1.msra.mxu0 0.0
        %4935 = vmatprep.subr.mxu0 0.0
        %4936 = vmatpush1.msra.mxu0 0.0
        %4937 = vmatprep.subr.mxu0 0.0
        %4938 = vmatpush1.msra.mxu0 0.0
        %4939 = vmatprep.subr.mxu0 0.0
        %4940 = vmatpush1.msra.mxu0 0.0
        %4941 = vmatprep.mubr.f32.mxu0 0.0
        %4942 = vmatmul.mubr.f32.gmra.mrb[0].mxu0 %v4854
        %v4943 = vpop.f32.mrb[0].mxu0
        %v4944 = vadd.f32 0.0, %v4943
        %v4945 = vpop.f32.mrb[0].mxu0
        %v4946 = vadd.f32 0.0, %v4945
        %4947 = vmatprep.mubr.f32.mxu0 0.0
        %4948 = vmatmul.mubr.f32.gmra.mrb[0].mxu0 %v4857
        %v4949 = vpop.f32.mrb[0].mxu0
        %v4950 = vadd.f32 0.0, %v4949
        %v4951 = vpop.f32.mrb[0].mxu0
        %v4952 = vadd.f32 0.0, %v4951
        %4953 = vmatprep.mubr.f32.mxu0 0.0
        %4954 = vmatmul.mubr.f32.gmra.mrb[0].mxu0 %v4860
        %v4955 = vpop.f32.mrb[0].mxu0
        %v4956 = vadd.f32 0.0, %v4955
        %v4957 = vpop.f32.mrb[0].mxu0
        %v4958 = vadd.f32 0.0, %v4957
        %4959 = vmatprep.mubr.f32.mxu0 0.0
        %4960 = vmatmul.mubr.f32.gmra.mrb[0].mxu0 %v4863
        %v4961 = vpop.f32.mrb[0].mxu0
        %v4962 = vadd.f32 0.0, %v4961
        %v4963 = vpop.f32.mrb[0].mxu0
        %v4964 = vadd.f32 0.0, %v4963
        %4965 = vmatprep.mubr.f32.mxu0 0.0
        %4966 = vmatmul.mubr.f32.gmra.mrb[0].mxu0 %v4866
        %v4967 = vpop.f32.mrb[0].mxu0
        %v4968 = vadd.f32 0.0, %v4967
        %v4969 = vpop.f32.mrb[0].mxu0
        %v4970 = vadd.f32 0.0, %v4969
        %4971 = vmatprep.mubr.f32.mxu0 0.0
        %4972 = vmatmul.mubr.f32.gmra.mrb[0].mxu0 %v4869
        %v4973 = vpop.f32.mrb[0].mxu0
        %v4974 = vadd.f32 0.0, %v4973
        %v4975 = vpop.f32.mrb[0].mxu0
        %v4976 = vadd.f32 0.0, %v4975
        %4977 = vmatprep.mubr.f32.mxu0 0.0
        %4978 = vmatmul.mubr.f32.gmra.mrb[0].mxu0 %v4872
        %v4979 = vpop.f32.mrb[0].mxu0
        %v4980 = vadd.f32 0.0, %v4979
        %v4981 = vpop.f32.mrb[0].mxu0
        %v4982 = vadd.f32 0.0, %v4981
        %4983 = vmatprep.mubr.f32.mxu0 0.0
        %4984 = vmatmul.mubr.f32.gmra.mrb[0].mxu0 %v4875
        %v4985 = vpop.f32.mrb[0].mxu0
        %v4986 = vadd.f32 0.0, %v4985
        %v4987 = vpop.f32.mrb[0].mxu0
        %v4988 = vadd.f32 0.0, %v4987
        %4989 = vdwg.mxu0
        %4990 = vset.pattern.permute.xlu0 1
        %4991 = vperm.xlu0 %4990, %v4401
        %v4992 = vpop.permute.xlu0 %4991
        %4994 = vset.pattern.permute.xlu0 1
        %4995 = vperm.xlu0 %4994, %v4402
        %v4996 = vpop.permute.xlu0 %4995
        %4998 = vset.pattern.permute.xlu0 1
        %4999 = vperm.xlu0 %4998, %v4403
        %v5000 = vpop.permute.xlu0 %4999
        %5002 = vset.pattern.permute.xlu0 1
        %5003 = vperm.xlu0 %5002, %v4404
        %v5004 = vpop.permute.xlu0 %5003
        %5006 = vset.pattern.permute.xlu0 1
        %5007 = vperm.xlu0 %5006, %v4405
        %v5008 = vpop.permute.xlu0 %5007
        %5010 = vset.pattern.permute.xlu0 1
        %5011 = vperm.xlu0 %5010, %v4406
        %v5012 = vpop.permute.xlu0 %5011
        %5014 = vset.pattern.permute.xlu0 1
        %5015 = vperm.xlu0 %5014, %v4407
        %v5016 = vpop.permute.xlu0 %5015
        %5018 = vset.pattern.permute.xlu0 1
        %5019 = vperm.xlu0 %5018, %v4408
        %v5020 = vpop.permute.xlu0 %5019
        %v5022 = vmul.f32 %v4417, %v4992
        %v5023 = vmul.f32 %v4418, %v4992
        %v5024 = vmul.f32 %v4419, %v4996
        %v5025 = vmul.f32 %v4420, %v4996
        %v5026 = vmul.f32 %v4421, %v5000
        %v5027 = vmul.f32 %v4422, %v5000
        %v5028 = vmul.f32 %v4423, %v5004
        %v5029 = vmul.f32 %v4424, %v5004
        %v5030 = vmul.f32 %v4425, %v5008
        %v5031 = vmul.f32 %v4426, %v5008
        %v5032 = vmul.f32 %v4427, %v5012
        %v5033 = vmul.f32 %v4428, %v5012
        %v5034 = vmul.f32 %v4429, %v5016
        %v5035 = vmul.f32 %v4430, %v5016
        %v5036 = vmul.f32 %v4431, %v5020
        %v5037 = vmul.f32 %v4432, %v5020
        %v5038 = vsub.f32 %v4944, %v5022
        %v5039 = vsub.f32 %v4946, %v5023
        %v5040 = vsub.f32 %v4950, %v5024
        %v5041 = vsub.f32 %v4952, %v5025
        %v5042 = vsub.f32 %v4956, %v5026
        %v5043 = vsub.f32 %v4958, %v5027
        %v5044 = vsub.f32 %v4962, %v5028
        %v5045 = vsub.f32 %v4964, %v5029
        %v5046 = vsub.f32 %v4968, %v5030
        %v5047 = vsub.f32 %v4970, %v5031
        %v5048 = vsub.f32 %v4974, %v5032
        %v5049 = vsub.f32 %v4976, %v5033
        %v5050 = vsub.f32 %v4980, %v5034
        %v5051 = vsub.f32 %v4982, %v5035
        %v5052 = vsub.f32 %v4986, %v5036
        %v5053 = vsub.f32 %v4988, %v5037
        %v5054 = vmul.f32 %v5038, %v5038
        %v5055 = vmul.f32 %v5039, %v5039
        %v5056 = vmul.f32 %v5040, %v5040
        %v5057 = vmul.f32 %v5041, %v5041
        %v5058 = vmul.f32 %v5042, %v5042
        %v5059 = vmul.f32 %v5043, %v5043
        %v5060 = vmul.f32 %v5044, %v5044
        %v5061 = vmul.f32 %v5045, %v5045
        %v5062 = vmul.f32 %v5046, %v5046
        %v5063 = vmul.f32 %v5047, %v5047
        %v5064 = vmul.f32 %v5048, %v5048
        %v5065 = vmul.f32 %v5049, %v5049
        %v5066 = vmul.f32 %v5050, %v5050
        %v5067 = vmul.f32 %v5051, %v5051
        %v5068 = vmul.f32 %v5052, %v5052
        %v5069 = vmul.f32 %v5053, %v5053
        %v5070 = vadd.f32 %v5054, %v5055
        %5071 = vadd.xlane.f32.xlu0 %v5070
        %v5072 = vpop.xlane.xlu0 %5071
        %v5073 = vadd.f32 %v5056, %v5057
        %5074 = vadd.xlane.f32.xlu0 %v5073
        %v5075 = vpop.xlane.xlu0 %5074
        %v5076 = vadd.f32 %v5058, %v5059
        %5077 = vadd.xlane.f32.xlu0 %v5076
        %v5078 = vpop.xlane.xlu0 %5077
        %v5079 = vadd.f32 %v5060, %v5061
        %5080 = vadd.xlane.f32.xlu0 %v5079
        %v5081 = vpop.xlane.xlu0 %5080
        %v5082 = vadd.f32 %v5062, %v5063
        %5083 = vadd.xlane.f32.xlu0 %v5082
        %v5084 = vpop.xlane.xlu0 %5083
        %v5085 = vadd.f32 %v5064, %v5065
        %5086 = vadd.xlane.f32.xlu0 %v5085
        %v5087 = vpop.xlane.xlu0 %5086
        %v5088 = vadd.f32 %v5066, %v5067
        %5089 = vadd.xlane.f32.xlu0 %v5088
        %v5090 = vpop.xlane.xlu0 %5089
        %v5091 = vadd.f32 %v5068, %v5069
        %5092 = vadd.xlane.f32.xlu0 %v5091
        %v5093 = vpop.xlane.xlu0 %5092
        %v5094 = vmax.f32 %v5072, 1e-24
        %v5095 = vmax.f32 %v5075, 1e-24
        %v5096 = vmax.f32 %v5078, 1e-24
        %v5097 = vmax.f32 %v5081, 1e-24
        %v5098 = vmax.f32 %v5084, 1e-24
        %v5099 = vmax.f32 %v5087, 1e-24
        %v5100 = vmax.f32 %v5090, 1e-24
        %v5101 = vmax.f32 %v5093, 1e-24
        %v5102 = vrsqrt.pop %v5094
        %v5103 = vrsqrt.pop %v5095
        %v5104 = vrsqrt.pop %v5096
        %v5105 = vrsqrt.pop %v5097
        %v5106 = vrsqrt.pop %v5098
        %v5107 = vrsqrt.pop %v5099
        %v5108 = vrsqrt.pop %v5100
        %v5109 = vrsqrt.pop %v5101
        %v5110 = vmul.f32 %v5038, %v5102
        %v5111 = vmul.f32 %v5039, %v5102
        %v5112 = vmul.f32 %v5040, %v5103
        %v5113 = vmul.f32 %v5041, %v5103
        %v5114 = vmul.f32 %v5042, %v5104
        %v5115 = vmul.f32 %v5043, %v5104
        %v5116 = vmul.f32 %v5044, %v5105
        %v5117 = vmul.f32 %v5045, %v5105
        %v5118 = vmul.f32 %v5046, %v5106
        %v5119 = vmul.f32 %v5047, %v5106
        %v5120 = vmul.f32 %v5048, %v5107
        %v5121 = vmul.f32 %v5049, %v5107
        %v5122 = vmul.f32 %v5050, %v5108
        %v5123 = vmul.f32 %v5051, %v5108
        %v5124 = vmul.f32 %v5052, %v5109
        %v5125 = vmul.f32 %v5053, %v5109
        %v5126 = vmul.f32 %v5110, %v5110
        %v5127 = vmul.f32 %v5111, %v5111
        %v5128 = vmul.f32 %v5112, %v5112
        %v5129 = vmul.f32 %v5113, %v5113
        %v5130 = vmul.f32 %v5114, %v5114
        %v5131 = vmul.f32 %v5115, %v5115
        %v5132 = vmul.f32 %v5116, %v5116
        %v5133 = vmul.f32 %v5117, %v5117
        %v5134 = vmul.f32 %v5118, %v5118
        %v5135 = vmul.f32 %v5119, %v5119
        %v5136 = vmul.f32 %v5120, %v5120
        %v5137 = vmul.f32 %v5121, %v5121
        %v5138 = vmul.f32 %v5122, %v5122
        %v5139 = vmul.f32 %v5123, %v5123
        %v5140 = vmul.f32 %v5124, %v5124
        %v5141 = vmul.f32 %v5125, %v5125
        %v5142 = vadd.f32 %v5126, %v5127
        %v5143 = vadd.f32 %v5142, %v5128
        %v5144 = vadd.f32 %v5143, %v5129
        %v5145 = vadd.f32 %v5144, %v5130
        %v5146 = vadd.f32 %v5145, %v5131
        %v5147 = vadd.f32 %v5146, %v5132
        %v5148 = vadd.f32 %v5147, %v5133
        %v5149 = vadd.f32 %v5148, %v5134
        %v5150 = vadd.f32 %v5149, %v5135
        %v5151 = vadd.f32 %v5150, %v5136
        %v5152 = vadd.f32 %v5151, %v5137
        %v5153 = vadd.f32 %v5152, %v5138
        %v5154 = vadd.f32 %v5153, %v5139
        %v5155 = vadd.f32 %v5154, %v5140
        %v5156 = vadd.f32 %v5155, %v5141
        %5157 = vadd.xlane.f32.xlu0 %v5156
        %v5158 = vpop.xlane.xlu0 %5157
        %v5159 = vrot.slane %v5158, 4
        %v5160 = vadd.f32 %v5158, %v5159
        %v5161 = vrot.slane %v5160, 2
        %v5162 = vadd.f32 %v5160, %v5161
        %v5163 = vrot.slane %v5162, 1
        %v5164 = vadd.f32 %v5162, %v5163
        %s5165 = vtos %v5164
        %v5166 = vstv %s5165
        %v5167 = vmax.f32 %v5166, 1e-24
        %v5168 = vrsqrt.pop %v5167
        %v5169 = vmul.f32 %v5110, %v5168
        %v5170 = vmul.f32 %v5111, %v5168
        %v5171 = vmul.f32 %v5112, %v5168
        %v5172 = vmul.f32 %v5113, %v5168
        %v5173 = vmul.f32 %v5114, %v5168
        %v5174 = vmul.f32 %v5115, %v5168
        %v5175 = vmul.f32 %v5116, %v5168
        %v5176 = vmul.f32 %v5117, %v5168
        %v5177 = vmul.f32 %v5118, %v5168
        %v5178 = vmul.f32 %v5119, %v5168
        %v5179 = vmul.f32 %v5120, %v5168
        %v5180 = vmul.f32 %v5121, %v5168
        %v5181 = vmul.f32 %v5122, %v5168
        %v5182 = vmul.f32 %v5123, %v5168
        %v5183 = vmul.f32 %v5124, %v5168
        %v5184 = vmul.f32 %v5125, %v5168
        %s5185 = scalar_lea.vmem %s559, 128 [#allocation14]
        %5186 = vst [vmem:[%s5185] sm:$0xff] %v5169
        %5187 = vst [vmem:[%s5185 + $0x8] sm:$0xff] %v5170
        %5188 = vst [vmem:[%s5185 + $0x10] sm:$0xff] %v5171
        %5189 = vst [vmem:[%s5185 + $0x18] sm:$0xff] %v5172
        %5190 = vst [vmem:[%s5185 + $0x20] sm:$0xff] %v5173
        %5191 = vst [vmem:[%s5185 + $0x28] sm:$0xff] %v5174
        %5192 = vst [vmem:[%s5185 + $0x30] sm:$0xff] %v5175
        %5193 = vst [vmem:[%s5185 + $0x38] sm:$0xff] %v5176
        %5194 = vst [vmem:[%s5185 + $0x40] sm:$0xff] %v5177
        %5195 = vst [vmem:[%s5185 + $0x48] sm:$0xff] %v5178
        %5196 = vst [vmem:[%s5185 + $0x50] sm:$0xff] %v5179
        %5197 = vst [vmem:[%s5185 + $0x58] sm:$0xff] %v5180
        %5198 = vst [vmem:[%s5185 + $0x60] sm:$0xff] %v5181
        %5199 = vst [vmem:[%s5185 + $0x68] sm:$0xff] %v5182
        %5200 = vst [vmem:[%s5185 + $0x70] sm:$0xff] %v5183
        %5201 = vst [vmem:[%s5185 + $0x78] sm:$0xff] %v5184
        %5202 = vxpose.xlu0.b32.start [1/16] %v4282, 128
        %5203 = vxpose.xlu0.b32.cont [2/16] %v4283, 128
        %5204 = vxpose.xlu0.b32.cont [3/16] %v4284, 128
        %5205 = vxpose.xlu0.b32.cont [4/16] %v4285, 128
        %5206 = vxpose.xlu0.b32.cont [5/16] %v4286, 128
        %5207 = vxpose.xlu0.b32.cont [6/16] %v4287, 128
        %5208 = vxpose.xlu0.b32.cont [7/16] %v4288, 128
        %5209 = vxpose.xlu0.b32.cont [8/16] %v4289, 128
        %5210 = vxpose.xlu0.b32.cont [9/16] 0.0, 128
        %5211 = vxpose.xlu0.b32.cont [10/16] 0.0, 128
        %5212 = vxpose.xlu0.b32.cont [11/16] 0.0, 128
        %5213 = vxpose.xlu0.b32.cont [12/16] 0.0, 128
        %5214 = vxpose.xlu0.b32.cont [13/16] 0.0, 128
        %5215 = vxpose.xlu0.b32.cont [14/16] 0.0, 128
        %5216 = vxpose.xlu0.b32.cont [15/16] 0.0, 128
        %5217 = vxpose.xlu0.b32.end [16/16] 0.0, 128
        %v5218 = vpop.trf.xlu0
        %v5219 = vpop.trf.xlu0
        %v5220 = vpop.trf.xlu0
        %v5221 = vpop.trf.xlu0
        %v5222 = vpop.trf.xlu0
        %v5223 = vpop.trf.xlu0
        %v5224 = vpop.trf.xlu0
        %v5225 = vpop.trf.xlu0
        %v5226 = vpop.trf.xlu0
        %v5227 = vpop.trf.xlu0
        %v5228 = vpop.trf.xlu0
        %v5229 = vpop.trf.xlu0
        %v5230 = vpop.trf.xlu0
        %v5231 = vpop.trf.xlu0
        %v5232 = vpop.trf.xlu0
        %v5233 = vpop.trf.xlu0
        %v5235 = vsel %vm3945, %v5218, 0
        %v5238 = vsel %vm3945, %v5219, 0
        %v5241 = vsel %vm3945, %v5220, 0
        %v5244 = vsel %vm3945, %v5221, 0
        %v5247 = vsel %vm3945, %v5222, 0
        %v5250 = vsel %vm3945, %v5223, 0
        %v5253 = vsel %vm3945, %v5224, 0
        %v5256 = vsel %vm3945, %v5225, 0
        %5258 = vmatprep.subr.mxu0 %v3653
        %5259 = vmatpush1.msra.mxu0 %v3652
        %5260 = vmatprep.subr.mxu0 %v3655
        %5261 = vmatpush1.msra.mxu0 %v3654
        %5262 = vmatprep.subr.mxu0 %v3657
        %5263 = vmatpush1.msra.mxu0 %v3656
        %5264 = vmatprep.subr.mxu0 %v3659
        %5265 = vmatpush1.msra.mxu0 %v3658
        %5266 = vmatprep.subr.mxu0 %v3661
        %5267 = vmatpush1.msra.mxu0 %v3660
        %5268 = vmatprep.subr.mxu0 %v3663
        %5269 = vmatpush1.msra.mxu0 %v3662
        %5270 = vmatprep.subr.mxu0 %v3665
        %5271 = vmatpush1.msra.mxu0 %v3664
        %5272 = vmatprep.subr.mxu0 %v3667
        %5273 = vmatpush1.msra.mxu0 %v3666
        %5274 = vmatprep.subr.mxu0 0.0
        %5275 = vmatpush1.msra.mxu0 0.0
        %5276 = vmatprep.subr.mxu0 0.0
        %5277 = vmatpush1.msra.mxu0 0.0
        %5278 = vmatprep.subr.mxu0 0.0
        %5279 = vmatpush1.msra.mxu0 0.0
        %5280 = vmatprep.subr.mxu0 0.0
        %5281 = vmatpush1.msra.mxu0 0.0
        %5282 = vmatprep.subr.mxu0 0.0
        %5283 = vmatpush1.msra.mxu0 0.0
        %5284 = vmatprep.subr.mxu0 0.0
        %5285 = vmatpush1.msra.mxu0 0.0
        %5286 = vmatprep.subr.mxu0 0.0
        %5287 = vmatpush1.msra.mxu0 0.0
        %5288 = vmatprep.subr.mxu0 0.0
        %5289 = vmatpush1.msra.mxu0 0.0
        %5290 = vmatprep.subr.mxu0 0.0
        %5291 = vmatpush1.msra.mxu0 0.0
        %5292 = vmatprep.subr.mxu0 0.0
        %5293 = vmatpush1.msra.mxu0 0.0
        %5294 = vmatprep.subr.mxu0 0.0
        %5295 = vmatpush1.msra.mxu0 0.0
        %5296 = vmatprep.subr.mxu0 0.0
        %5297 = vmatpush1.msra.mxu0 0.0
        %5298 = vmatprep.subr.mxu0 0.0
        %5299 = vmatpush1.msra.mxu0 0.0
        %5300 = vmatprep.subr.mxu0 0.0
        %5301 = vmatpush1.msra.mxu0 0.0
        %5302 = vmatprep.subr.mxu0 0.0
        %5303 = vmatpush1.msra.mxu0 0.0
        %5304 = vmatprep.subr.mxu0 0.0
        %5305 = vmatpush1.msra.mxu0 0.0
        %5306 = vmatprep.subr.mxu0 0.0
        %5307 = vmatpush1.msra.mxu0 0.0
        %5308 = vmatprep.subr.mxu0 0.0
        %5309 = vmatpush1.msra.mxu0 0.0
        %5310 = vmatprep.subr.mxu0 0.0
        %5311 = vmatpush1.msra.mxu0 0.0
        %5312 = vmatprep.subr.mxu0 0.0
        %5313 = vmatpush1.msra.mxu0 0.0
        %5314 = vmatprep.subr.mxu0 0.0
        %5315 = vmatpush1.msra.mxu0 0.0
        %5316 = vmatprep.subr.mxu0 0.0
        %5317 = vmatpush1.msra.mxu0 0.0
        %5318 = vmatprep.subr.mxu0 0.0
        %5319 = vmatpush1.msra.mxu0 0.0
        %5320 = vmatprep.subr.mxu0 0.0
        %5321 = vmatpush1.msra.mxu0 0.0
        %5322 = vmatprep.mubr.f32.mxu0 0.0
        %5323 = vmatmul.mubr.f32.gmra.mrb[0].mxu0 %v5235
        %v5324 = vpop.f32.mrb[0].mxu0
        %v5325 = vadd.f32 0.0, %v5324
        %v5326 = vpop.f32.mrb[0].mxu0
        %v5327 = vadd.f32 0.0, %v5326
        %5328 = vmatprep.mubr.f32.mxu0 0.0
        %5329 = vmatmul.mubr.f32.gmra.mrb[0].mxu0 %v5238
        %v5330 = vpop.f32.mrb[0].mxu0
        %v5331 = vadd.f32 0.0, %v5330
        %v5332 = vpop.f32.mrb[0].mxu0
        %v5333 = vadd.f32 0.0, %v5332
        %5334 = vmatprep.mubr.f32.mxu0 0.0
        %5335 = vmatmul.mubr.f32.gmra.mrb[0].mxu0 %v5241
        %v5336 = vpop.f32.mrb[0].mxu0
        %v5337 = vadd.f32 0.0, %v5336
        %v5338 = vpop.f32.mrb[0].mxu0
        %v5339 = vadd.f32 0.0, %v5338
        %5340 = vmatprep.mubr.f32.mxu0 0.0
        %5341 = vmatmul.mubr.f32.gmra.mrb[0].mxu0 %v5244
        %v5342 = vpop.f32.mrb[0].mxu0
        %v5343 = vadd.f32 0.0, %v5342
        %v5344 = vpop.f32.mrb[0].mxu0
        %v5345 = vadd.f32 0.0, %v5344
        %5346 = vmatprep.mubr.f32.mxu0 0.0
        %5347 = vmatmul.mubr.f32.gmra.mrb[0].mxu0 %v5247
        %v5348 = vpop.f32.mrb[0].mxu0
        %v5349 = vadd.f32 0.0, %v5348
        %v5350 = vpop.f32.mrb[0].mxu0
        %v5351 = vadd.f32 0.0, %v5350
        %5352 = vmatprep.mubr.f32.mxu0 0.0
        %5353 = vmatmul.mubr.f32.gmra.mrb[0].mxu0 %v5250
        %v5354 = vpop.f32.mrb[0].mxu0
        %v5355 = vadd.f32 0.0, %v5354
        %v5356 = vpop.f32.mrb[0].mxu0
        %v5357 = vadd.f32 0.0, %v5356
        %5358 = vmatprep.mubr.f32.mxu0 0.0
        %5359 = vmatmul.mubr.f32.gmra.mrb[0].mxu0 %v5253
        %v5360 = vpop.f32.mrb[0].mxu0
        %v5361 = vadd.f32 0.0, %v5360
        %v5362 = vpop.f32.mrb[0].mxu0
        %v5363 = vadd.f32 0.0, %v5362
        %5364 = vmatprep.mubr.f32.mxu0 0.0
        %5365 = vmatmul.mubr.f32.gmra.mrb[0].mxu0 %v5256
        %v5366 = vpop.f32.mrb[0].mxu0
        %v5367 = vadd.f32 0.0, %v5366
        %v5368 = vpop.f32.mrb[0].mxu0
        %v5369 = vadd.f32 0.0, %v5368
        %5370 = vdwg.mxu0
        %5371 = vset.pattern.permute.xlu0 2
        %5372 = vperm.xlu0 %5371, %v4401
        %v5373 = vpop.permute.xlu0 %5372
        %5375 = vset.pattern.permute.xlu0 2
        %5376 = vperm.xlu0 %5375, %v4402
        %v5377 = vpop.permute.xlu0 %5376
        %5379 = vset.pattern.permute.xlu0 2
        %5380 = vperm.xlu0 %5379, %v4403
        %v5381 = vpop.permute.xlu0 %5380
        %5383 = vset.pattern.permute.xlu0 2
        %5384 = vperm.xlu0 %5383, %v4404
        %v5385 = vpop.permute.xlu0 %5384
        %5387 = vset.pattern.permute.xlu0 2
        %5388 = vperm.xlu0 %5387, %v4405
        %v5389 = vpop.permute.xlu0 %5388
        %5391 = vset.pattern.permute.xlu0 2
        %5392 = vperm.xlu0 %5391, %v4406
        %v5393 = vpop.permute.xlu0 %5392
        %5395 = vset.pattern.permute.xlu0 2
        %5396 = vperm.xlu0 %5395, %v4407
        %v5397 = vpop.permute.xlu0 %5396
        %5399 = vset.pattern.permute.xlu0 2
        %5400 = vperm.xlu0 %5399, %v4408
        %v5401 = vpop.permute.xlu0 %5400
        %v5403 = vmul.f32 %v4417, %v5373
        %v5404 = vmul.f32 %v4418, %v5373
        %v5405 = vmul.f32 %v4419, %v5377
        %v5406 = vmul.f32 %v4420, %v5377
        %v5407 = vmul.f32 %v4421, %v5381
        %v5408 = vmul.f32 %v4422, %v5381
        %v5409 = vmul.f32 %v4423, %v5385
        %v5410 = vmul.f32 %v4424, %v5385
        %v5411 = vmul.f32 %v4425, %v5389
        %v5412 = vmul.f32 %v4426, %v5389
        %v5413 = vmul.f32 %v4427, %v5393
        %v5414 = vmul.f32 %v4428, %v5393
        %v5415 = vmul.f32 %v4429, %v5397
        %v5416 = vmul.f32 %v4430, %v5397
        %v5417 = vmul.f32 %v4431, %v5401
        %v5418 = vmul.f32 %v4432, %v5401
        %v5419 = vsub.f32 %v5325, %v5403
        %v5420 = vsub.f32 %v5327, %v5404
        %v5421 = vsub.f32 %v5331, %v5405
        %v5422 = vsub.f32 %v5333, %v5406
        %v5423 = vsub.f32 %v5337, %v5407
        %v5424 = vsub.f32 %v5339, %v5408
        %v5425 = vsub.f32 %v5343, %v5409
        %v5426 = vsub.f32 %v5345, %v5410
        %v5427 = vsub.f32 %v5349, %v5411
        %v5428 = vsub.f32 %v5351, %v5412
        %v5429 = vsub.f32 %v5355, %v5413
        %v5430 = vsub.f32 %v5357, %v5414
        %v5431 = vsub.f32 %v5361, %v5415
        %v5432 = vsub.f32 %v5363, %v5416
        %v5433 = vsub.f32 %v5367, %v5417
        %v5434 = vsub.f32 %v5369, %v5418
        %v5435 = vmul.f32 %v5419, %v5419
        %v5436 = vmul.f32 %v5420, %v5420
        %v5437 = vmul.f32 %v5421, %v5421
        %v5438 = vmul.f32 %v5422, %v5422
        %v5439 = vmul.f32 %v5423, %v5423
        %v5440 = vmul.f32 %v5424, %v5424
        %v5441 = vmul.f32 %v5425, %v5425
        %v5442 = vmul.f32 %v5426, %v5426
        %v5443 = vmul.f32 %v5427, %v5427
        %v5444 = vmul.f32 %v5428, %v5428
        %v5445 = vmul.f32 %v5429, %v5429
        %v5446 = vmul.f32 %v5430, %v5430
        %v5447 = vmul.f32 %v5431, %v5431
        %v5448 = vmul.f32 %v5432, %v5432
        %v5449 = vmul.f32 %v5433, %v5433
        %v5450 = vmul.f32 %v5434, %v5434
        %v5451 = vadd.f32 %v5435, %v5436
        %5452 = vadd.xlane.f32.xlu0 %v5451
        %v5453 = vpop.xlane.xlu0 %5452
        %v5454 = vadd.f32 %v5437, %v5438
        %5455 = vadd.xlane.f32.xlu0 %v5454
        %v5456 = vpop.xlane.xlu0 %5455
        %v5457 = vadd.f32 %v5439, %v5440
        %5458 = vadd.xlane.f32.xlu0 %v5457
        %v5459 = vpop.xlane.xlu0 %5458
        %v5460 = vadd.f32 %v5441, %v5442
        %5461 = vadd.xlane.f32.xlu0 %v5460
        %v5462 = vpop.xlane.xlu0 %5461
        %v5463 = vadd.f32 %v5443, %v5444
        %5464 = vadd.xlane.f32.xlu0 %v5463
        %v5465 = vpop.xlane.xlu0 %5464
        %v5466 = vadd.f32 %v5445, %v5446
        %5467 = vadd.xlane.f32.xlu0 %v5466
        %v5468 = vpop.xlane.xlu0 %5467
        %v5469 = vadd.f32 %v5447, %v5448
        %5470 = vadd.xlane.f32.xlu0 %v5469
        %v5471 = vpop.xlane.xlu0 %5470
        %v5472 = vadd.f32 %v5449, %v5450
        %5473 = vadd.xlane.f32.xlu0 %v5472
        %v5474 = vpop.xlane.xlu0 %5473
        %v5475 = vmax.f32 %v5453, 1e-24
        %v5476 = vmax.f32 %v5456, 1e-24
        %v5477 = vmax.f32 %v5459, 1e-24
        %v5478 = vmax.f32 %v5462, 1e-24
        %v5479 = vmax.f32 %v5465, 1e-24
        %v5480 = vmax.f32 %v5468, 1e-24
        %v5481 = vmax.f32 %v5471, 1e-24
        %v5482 = vmax.f32 %v5474, 1e-24
        %v5483 = vrsqrt.pop %v5475
        %v5484 = vrsqrt.pop %v5476
        %v5485 = vrsqrt.pop %v5477
        %v5486 = vrsqrt.pop %v5478
        %v5487 = vrsqrt.pop %v5479
        %v5488 = vrsqrt.pop %v5480
        %v5489 = vrsqrt.pop %v5481
        %v5490 = vrsqrt.pop %v5482
        %v5491 = vmul.f32 %v5419, %v5483
        %v5492 = vmul.f32 %v5420, %v5483
        %v5493 = vmul.f32 %v5421, %v5484
        %v5494 = vmul.f32 %v5422, %v5484
        %v5495 = vmul.f32 %v5423, %v5485
        %v5496 = vmul.f32 %v5424, %v5485
        %v5497 = vmul.f32 %v5425, %v5486
        %v5498 = vmul.f32 %v5426, %v5486
        %v5499 = vmul.f32 %v5427, %v5487
        %v5500 = vmul.f32 %v5428, %v5487
        %v5501 = vmul.f32 %v5429, %v5488
        %v5502 = vmul.f32 %v5430, %v5488
        %v5503 = vmul.f32 %v5431, %v5489
        %v5504 = vmul.f32 %v5432, %v5489
        %v5505 = vmul.f32 %v5433, %v5490
        %v5506 = vmul.f32 %v5434, %v5490
        %v5507 = vmul.f32 %v5491, %v5491
        %v5508 = vmul.f32 %v5492, %v5492
        %v5509 = vmul.f32 %v5493, %v5493
        %v5510 = vmul.f32 %v5494, %v5494
        %v5511 = vmul.f32 %v5495, %v5495
        %v5512 = vmul.f32 %v5496, %v5496
        %v5513 = vmul.f32 %v5497, %v5497
        %v5514 = vmul.f32 %v5498, %v5498
        %v5515 = vmul.f32 %v5499, %v5499
        %v5516 = vmul.f32 %v5500, %v5500
        %v5517 = vmul.f32 %v5501, %v5501
        %v5518 = vmul.f32 %v5502, %v5502
        %v5519 = vmul.f32 %v5503, %v5503
        %v5520 = vmul.f32 %v5504, %v5504
        %v5521 = vmul.f32 %v5505, %v5505
        %v5522 = vmul.f32 %v5506, %v5506
        %v5523 = vadd.f32 %v5507, %v5508
        %v5524 = vadd.f32 %v5523, %v5509
        %v5525 = vadd.f32 %v5524, %v5510
        %v5526 = vadd.f32 %v5525, %v5511
        %v5527 = vadd.f32 %v5526, %v5512
        %v5528 = vadd.f32 %v5527, %v5513
        %v5529 = vadd.f32 %v5528, %v5514
        %v5530 = vadd.f32 %v5529, %v5515
        %v5531 = vadd.f32 %v5530, %v5516
        %v5532 = vadd.f32 %v5531, %v5517
        %v5533 = vadd.f32 %v5532, %v5518
        %v5534 = vadd.f32 %v5533, %v5519
        %v5535 = vadd.f32 %v5534, %v5520
        %v5536 = vadd.f32 %v5535, %v5521
        %v5537 = vadd.f32 %v5536, %v5522
        %5538 = vadd.xlane.f32.xlu0 %v5537
        %v5539 = vpop.xlane.xlu0 %5538
        %v5540 = vrot.slane %v5539, 4
        %v5541 = vadd.f32 %v5539, %v5540
        %v5542 = vrot.slane %v5541, 2
        %v5543 = vadd.f32 %v5541, %v5542
        %v5544 = vrot.slane %v5543, 1
        %v5545 = vadd.f32 %v5543, %v5544
        %s5546 = vtos %v5545
        %v5547 = vstv %s5546
        %v5548 = vmax.f32 %v5547, 1e-24
        %v5549 = vrsqrt.pop %v5548
        %v5550 = vmul.f32 %v5491, %v5549
        %v5551 = vmul.f32 %v5492, %v5549
        %v5552 = vmul.f32 %v5493, %v5549
        %v5553 = vmul.f32 %v5494, %v5549
        %v5554 = vmul.f32 %v5495, %v5549
        %v5555 = vmul.f32 %v5496, %v5549
        %v5556 = vmul.f32 %v5497, %v5549
        %v5557 = vmul.f32 %v5498, %v5549
        %v5558 = vmul.f32 %v5499, %v5549
        %v5559 = vmul.f32 %v5500, %v5549
        %v5560 = vmul.f32 %v5501, %v5549
        %v5561 = vmul.f32 %v5502, %v5549
        %v5562 = vmul.f32 %v5503, %v5549
        %v5563 = vmul.f32 %v5504, %v5549
        %v5564 = vmul.f32 %v5505, %v5549
        %v5565 = vmul.f32 %v5506, %v5549
        %s5566 = scalar_lea.vmem %s559, 256 [#allocation14]
        %5567 = vst [vmem:[%s5566] sm:$0xff] %v5550
        %5568 = vst [vmem:[%s5566 + $0x8] sm:$0xff] %v5551
        %5569 = vst [vmem:[%s5566 + $0x10] sm:$0xff] %v5552
        %5570 = vst [vmem:[%s5566 + $0x18] sm:$0xff] %v5553
        %5571 = vst [vmem:[%s5566 + $0x20] sm:$0xff] %v5554
        %5572 = vst [vmem:[%s5566 + $0x28] sm:$0xff] %v5555
        %5573 = vst [vmem:[%s5566 + $0x30] sm:$0xff] %v5556
        %5574 = vst [vmem:[%s5566 + $0x38] sm:$0xff] %v5557
        %5575 = vst [vmem:[%s5566 + $0x40] sm:$0xff] %v5558
        %5576 = vst [vmem:[%s5566 + $0x48] sm:$0xff] %v5559
        %5577 = vst [vmem:[%s5566 + $0x50] sm:$0xff] %v5560
        %5578 = vst [vmem:[%s5566 + $0x58] sm:$0xff] %v5561
        %5579 = vst [vmem:[%s5566 + $0x60] sm:$0xff] %v5562
        %5580 = vst [vmem:[%s5566 + $0x68] sm:$0xff] %v5563
        %5581 = vst [vmem:[%s5566 + $0x70] sm:$0xff] %v5564
        %5582 = vst [vmem:[%s5566 + $0x78] sm:$0xff] %v5565
        %5583 = vxpose.xlu0.b32.start [1/16] %v4290, 128
        %5584 = vxpose.xlu0.b32.cont [2/16] %v4291, 128
        %5585 = vxpose.xlu0.b32.cont [3/16] %v4292, 128
        %5586 = vxpose.xlu0.b32.cont [4/16] %v4293, 128
        %5587 = vxpose.xlu0.b32.cont [5/16] %v4294, 128
        %5588 = vxpose.xlu0.b32.cont [6/16] %v4295, 128
        %5589 = vxpose.xlu0.b32.cont [7/16] %v4296, 128
        %5590 = vxpose.xlu0.b32.cont [8/16] %v4297, 128
        %5591 = vxpose.xlu0.b32.cont [9/16] 0.0, 128
        %5592 = vxpose.xlu0.b32.cont [10/16] 0.0, 128
        %5593 = vxpose.xlu0.b32.cont [11/16] 0.0, 128
        %5594 = vxpose.xlu0.b32.cont [12/16] 0.0, 128
        %5595 = vxpose.xlu0.b32.cont [13/16] 0.0, 128
        %5596 = vxpose.xlu0.b32.cont [14/16] 0.0, 128
        %5597 = vxpose.xlu0.b32.cont [15/16] 0.0, 128
        %5598 = vxpose.xlu0.b32.end [16/16] 0.0, 128
        %v5599 = vpop.trf.xlu0
        %v5600 = vpop.trf.xlu0
        %v5601 = vpop.trf.xlu0
        %v5602 = vpop.trf.xlu0
        %v5603 = vpop.trf.xlu0
        %v5604 = vpop.trf.xlu0
        %v5605 = vpop.trf.xlu0
        %v5606 = vpop.trf.xlu0
        %v5607 = vpop.trf.xlu0
        %v5608 = vpop.trf.xlu0
        %v5609 = vpop.trf.xlu0
        %v5610 = vpop.trf.xlu0
        %v5611 = vpop.trf.xlu0
        %v5612 = vpop.trf.xlu0
        %v5613 = vpop.trf.xlu0
        %v5614 = vpop.trf.xlu0
        %v5616 = vsel %vm3945, %v5599, 0
        %v5619 = vsel %vm3945, %v5600, 0
        %v5622 = vsel %vm3945, %v5601, 0
        %v5625 = vsel %vm3945, %v5602, 0
        %v5628 = vsel %vm3945, %v5603, 0
        %v5631 = vsel %vm3945, %v5604, 0
        %v5634 = vsel %vm3945, %v5605, 0
        %v5637 = vsel %vm3945, %v5606, 0
        %5639 = vmatprep.subr.mxu0 %v3669
        %5640 = vmatpush1.msra.mxu0 %v3668
        %5641 = vmatprep.subr.mxu0 %v3671
        %5642 = vmatpush1.msra.mxu0 %v3670
        %5643 = vmatprep.subr.mxu0 %v3673
        %5644 = vmatpush1.msra.mxu0 %v3672
        %5645 = vmatprep.subr.mxu0 %v3675
        %5646 = vmatpush1.msra.mxu0 %v3674
        %5647 = vmatprep.subr.mxu0 %v3677
        %5648 = vmatpush1.msra.mxu0 %v3676
        %5649 = vmatprep.subr.mxu0 %v3679
        %5650 = vmatpush1.msra.mxu0 %v3678
        %5651 = vmatprep.subr.mxu0 %v3681
        %5652 = vmatpush1.msra.mxu0 %v3680
        %5653 = vmatprep.subr.mxu0 %v3683
        %5654 = vmatpush1.msra.mxu0 %v3682
        %5655 = vmatprep.subr.mxu0 0.0
        %5656 = vmatpush1.msra.mxu0 0.0
        %5657 = vmatprep.subr.mxu0 0.0
        %5658 = vmatpush1.msra.mxu0 0.0
        %5659 = vmatprep.subr.mxu0 0.0
        %5660 = vmatpush1.msra.mxu0 0.0
        %5661 = vmatprep.subr.mxu0 0.0
        %5662 = vmatpush1.msra.mxu0 0.0
        %5663 = vmatprep.subr.mxu0 0.0
        %5664 = vmatpush1.msra.mxu0 0.0
        %5665 = vmatprep.subr.mxu0 0.0
        %5666 = vmatpush1.msra.mxu0 0.0
        %5667 = vmatprep.subr.mxu0 0.0
        %5668 = vmatpush1.msra.mxu0 0.0
        %5669 = vmatprep.subr.mxu0 0.0
        %5670 = vmatpush1.msra.mxu0 0.0
        %5671 = vmatprep.subr.mxu0 0.0
        %5672 = vmatpush1.msra.mxu0 0.0
        %5673 = vmatprep.subr.mxu0 0.0
        %5674 = vmatpush1.msra.mxu0 0.0
        %5675 = vmatprep.subr.mxu0 0.0
        %5676 = vmatpush1.msra.mxu0 0.0
        %5677 = vmatprep.subr.mxu0 0.0
        %5678 = vmatpush1.msra.mxu0 0.0
        %5679 = vmatprep.subr.mxu0 0.0
        %5680 = vmatpush1.msra.mxu0 0.0
        %5681 = vmatprep.subr.mxu0 0.0
        %5682 = vmatpush1.msra.mxu0 0.0
        %5683 = vmatprep.subr.mxu0 0.0
        %5684 = vmatpush1.msra.mxu0 0.0
        %5685 = vmatprep.subr.mxu0 0.0
        %5686 = vmatpush1.msra.mxu0 0.0
        %5687 = vmatprep.subr.mxu0 0.0
        %5688 = vmatpush1.msra.mxu0 0.0
        %5689 = vmatprep.subr.mxu0 0.0
        %5690 = vmatpush1.msra.mxu0 0.0
        %5691 = vmatprep.subr.mxu0 0.0
        %5692 = vmatpush1.msra.mxu0 0.0
        %5693 = vmatprep.subr.mxu0 0.0
        %5694 = vmatpush1.msra.mxu0 0.0
        %5695 = vmatprep.subr.mxu0 0.0
        %5696 = vmatpush1.msra.mxu0 0.0
        %5697 = vmatprep.subr.mxu0 0.0
        %5698 = vmatpush1.msra.mxu0 0.0
        %5699 = vmatprep.subr.mxu0 0.0
        %5700 = vmatpush1.msra.mxu0 0.0
        %5701 = vmatprep.subr.mxu0 0.0
        %5702 = vmatpush1.msra.mxu0 0.0
        %5703 = vmatprep.mubr.f32.mxu0 0.0
        %5704 = vmatmul.mubr.f32.gmra.mrb[0].mxu0 %v5616
        %v5705 = vpop.f32.mrb[0].mxu0
        %v5706 = vadd.f32 0.0, %v5705
        %v5707 = vpop.f32.mrb[0].mxu0
        %v5708 = vadd.f32 0.0, %v5707
        %5709 = vmatprep.mubr.f32.mxu0 0.0
        %5710 = vmatmul.mubr.f32.gmra.mrb[0].mxu0 %v5619
        %v5711 = vpop.f32.mrb[0].mxu0
        %v5712 = vadd.f32 0.0, %v5711
        %v5713 = vpop.f32.mrb[0].mxu0
        %v5714 = vadd.f32 0.0, %v5713
        %5715 = vmatprep.mubr.f32.mxu0 0.0
        %5716 = vmatmul.mubr.f32.gmra.mrb[0].mxu0 %v5622
        %v5717 = vpop.f32.mrb[0].mxu0
        %v5718 = vadd.f32 0.0, %v5717
        %v5719 = vpop.f32.mrb[0].mxu0
        %v5720 = vadd.f32 0.0, %v5719
        %5721 = vmatprep.mubr.f32.mxu0 0.0
        %5722 = vmatmul.mubr.f32.gmra.mrb[0].mxu0 %v5625
        %v5723 = vpop.f32.mrb[0].mxu0
        %v5724 = vadd.f32 0.0, %v5723
        %v5725 = vpop.f32.mrb[0].mxu0
        %v5726 = vadd.f32 0.0, %v5725
        %5727 = vmatprep.mubr.f32.mxu0 0.0
        %5728 = vmatmul.mubr.f32.gmra.mrb[0].mxu0 %v5628
        %v5729 = vpop.f32.mrb[0].mxu0
        %v5730 = vadd.f32 0.0, %v5729
        %v5731 = vpop.f32.mrb[0].mxu0
        %v5732 = vadd.f32 0.0, %v5731
        %5733 = vmatprep.mubr.f32.mxu0 0.0
        %5734 = vmatmul.mubr.f32.gmra.mrb[0].mxu0 %v5631
        %v5735 = vpop.f32.mrb[0].mxu0
        %v5736 = vadd.f32 0.0, %v5735
        %v5737 = vpop.f32.mrb[0].mxu0
        %v5738 = vadd.f32 0.0, %v5737
        %5739 = vmatprep.mubr.f32.mxu0 0.0
        %5740 = vmatmul.mubr.f32.gmra.mrb[0].mxu0 %v5634
        %v5741 = vpop.f32.mrb[0].mxu0
        %v5742 = vadd.f32 0.0, %v5741
        %v5743 = vpop.f32.mrb[0].mxu0
        %v5744 = vadd.f32 0.0, %v5743
        %5745 = vmatprep.mubr.f32.mxu0 0.0
        %5746 = vmatmul.mubr.f32.gmra.mrb[0].mxu0 %v5637
        %v5747 = vpop.f32.mrb[0].mxu0
        %v5748 = vadd.f32 0.0, %v5747
        %v5749 = vpop.f32.mrb[0].mxu0
        %v5750 = vadd.f32 0.0, %v5749
        %5751 = vdwg.mxu0
        %5752 = vset.pattern.permute.xlu0 3
        %5753 = vperm.xlu0 %5752, %v4401
        %v5754 = vpop.permute.xlu0 %5753
        %5756 = vset.pattern.permute.xlu0 3
        %5757 = vperm.xlu0 %5756, %v4402
        %v5758 = vpop.permute.xlu0 %5757
        %5760 = vset.pattern.permute.xlu0 3
        %5761 = vperm.xlu0 %5760, %v4403
        %v5762 = vpop.permute.xlu0 %5761
        %5764 = vset.pattern.permute.xlu0 3
        %5765 = vperm.xlu0 %5764, %v4404
        %v5766 = vpop.permute.xlu0 %5765
        %5768 = vset.pattern.permute.xlu0 3
        %5769 = vperm.xlu0 %5768, %v4405
        %v5770 = vpop.permute.xlu0 %5769
        %5772 = vset.pattern.permute.xlu0 3
        %5773 = vperm.xlu0 %5772, %v4406
        %v5774 = vpop.permute.xlu0 %5773
        %5776 = vset.pattern.permute.xlu0 3
        %5777 = vperm.xlu0 %5776, %v4407
        %v5778 = vpop.permute.xlu0 %5777
        %5780 = vset.pattern.permute.xlu0 3
        %5781 = vperm.xlu0 %5780, %v4408
        %v5782 = vpop.permute.xlu0 %5781
        %v5784 = vmul.f32 %v4417, %v5754
        %v5785 = vmul.f32 %v4418, %v5754
        %v5786 = vmul.f32 %v4419, %v5758
        %v5787 = vmul.f32 %v4420, %v5758
        %v5788 = vmul.f32 %v4421, %v5762
        %v5789 = vmul.f32 %v4422, %v5762
        %v5790 = vmul.f32 %v4423, %v5766
        %v5791 = vmul.f32 %v4424, %v5766
        %v5792 = vmul.f32 %v4425, %v5770
        %v5793 = vmul.f32 %v4426, %v5770
        %v5794 = vmul.f32 %v4427, %v5774
        %v5795 = vmul.f32 %v4428, %v5774
        %v5796 = vmul.f32 %v4429, %v5778
        %v5797 = vmul.f32 %v4430, %v5778
        %v5798 = vmul.f32 %v4431, %v5782
        %v5799 = vmul.f32 %v4432, %v5782
        %v5800 = vsub.f32 %v5706, %v5784
        %v5801 = vsub.f32 %v5708, %v5785
        %v5802 = vsub.f32 %v5712, %v5786
        %v5803 = vsub.f32 %v5714, %v5787
        %v5804 = vsub.f32 %v5718, %v5788
        %v5805 = vsub.f32 %v5720, %v5789
        %v5806 = vsub.f32 %v5724, %v5790
        %v5807 = vsub.f32 %v5726, %v5791
        %v5808 = vsub.f32 %v5730, %v5792
        %v5809 = vsub.f32 %v5732, %v5793
        %v5810 = vsub.f32 %v5736, %v5794
        %v5811 = vsub.f32 %v5738, %v5795
        %v5812 = vsub.f32 %v5742, %v5796
        %v5813 = vsub.f32 %v5744, %v5797
        %v5814 = vsub.f32 %v5748, %v5798
        %v5815 = vsub.f32 %v5750, %v5799
        %v5816 = vmul.f32 %v5800, %v5800
        %v5817 = vmul.f32 %v5801, %v5801
        %v5818 = vmul.f32 %v5802, %v5802
        %v5819 = vmul.f32 %v5803, %v5803
        %v5820 = vmul.f32 %v5804, %v5804
        %v5821 = vmul.f32 %v5805, %v5805
        %v5822 = vmul.f32 %v5806, %v5806
        %v5823 = vmul.f32 %v5807, %v5807
        %v5824 = vmul.f32 %v5808, %v5808
        %v5825 = vmul.f32 %v5809, %v5809
        %v5826 = vmul.f32 %v5810, %v5810
        %v5827 = vmul.f32 %v5811, %v5811
        %v5828 = vmul.f32 %v5812, %v5812
        %v5829 = vmul.f32 %v5813, %v5813
        %v5830 = vmul.f32 %v5814, %v5814
        %v5831 = vmul.f32 %v5815, %v5815
        %v5832 = vadd.f32 %v5816, %v5817
        %5833 = vadd.xlane.f32.xlu0 %v5832
        %v5834 = vpop.xlane.xlu0 %5833
        %v5835 = vadd.f32 %v5818, %v5819
        %5836 = vadd.xlane.f32.xlu0 %v5835
        %v5837 = vpop.xlane.xlu0 %5836
        %v5838 = vadd.f32 %v5820, %v5821
        %5839 = vadd.xlane.f32.xlu0 %v5838
        %v5840 = vpop.xlane.xlu0 %5839
        %v5841 = vadd.f32 %v5822, %v5823
        %5842 = vadd.xlane.f32.xlu0 %v5841
        %v5843 = vpop.xlane.xlu0 %5842
        %v5844 = vadd.f32 %v5824, %v5825
        %5845 = vadd.xlane.f32.xlu0 %v5844
        %v5846 = vpop.xlane.xlu0 %5845
        %v5847 = vadd.f32 %v5826, %v5827
        %5848 = vadd.xlane.f32.xlu0 %v5847
        %v5849 = vpop.xlane.xlu0 %5848
        %v5850 = vadd.f32 %v5828, %v5829
        %5851 = vadd.xlane.f32.xlu0 %v5850
        %v5852 = vpop.xlane.xlu0 %5851
        %v5853 = vadd.f32 %v5830, %v5831
        %5854 = vadd.xlane.f32.xlu0 %v5853
        %v5855 = vpop.xlane.xlu0 %5854
        %v5856 = vmax.f32 %v5834, 1e-24
        %v5857 = vmax.f32 %v5837, 1e-24
        %v5858 = vmax.f32 %v5840, 1e-24
        %v5859 = vmax.f32 %v5843, 1e-24
        %v5860 = vmax.f32 %v5846, 1e-24
        %v5861 = vmax.f32 %v5849, 1e-24
        %v5862 = vmax.f32 %v5852, 1e-24
        %v5863 = vmax.f32 %v5855, 1e-24
        %v5864 = vrsqrt.pop %v5856
        %v5865 = vrsqrt.pop %v5857
        %v5866 = vrsqrt.pop %v5858
        %v5867 = vrsqrt.pop %v5859
        %v5868 = vrsqrt.pop %v5860
        %v5869 = vrsqrt.pop %v5861
        %v5870 = vrsqrt.pop %v5862
        %v5871 = vrsqrt.pop %v5863
        %v5872 = vmul.f32 %v5800, %v5864
        %v5873 = vmul.f32 %v5801, %v5864
        %v5874 = vmul.f32 %v5802, %v5865
        %v5875 = vmul.f32 %v5803, %v5865
        %v5876 = vmul.f32 %v5804, %v5866
        %v5877 = vmul.f32 %v5805, %v5866
        %v5878 = vmul.f32 %v5806, %v5867
        %v5879 = vmul.f32 %v5807, %v5867
        %v5880 = vmul.f32 %v5808, %v5868
        %v5881 = vmul.f32 %v5809, %v5868
        %v5882 = vmul.f32 %v5810, %v5869
        %v5883 = vmul.f32 %v5811, %v5869
        %v5884 = vmul.f32 %v5812, %v5870
        %v5885 = vmul.f32 %v5813, %v5870
        %v5886 = vmul.f32 %v5814, %v5871
        %v5887 = vmul.f32 %v5815, %v5871
        %v5888 = vmul.f32 %v5872, %v5872
        %v5889 = vmul.f32 %v5873, %v5873
        %v5890 = vmul.f32 %v5874, %v5874
        %v5891 = vmul.f32 %v5875, %v5875
        %v5892 = vmul.f32 %v5876, %v5876
        %v5893 = vmul.f32 %v5877, %v5877
        %v5894 = vmul.f32 %v5878, %v5878
        %v5895 = vmul.f32 %v5879, %v5879
        %v5896 = vmul.f32 %v5880, %v5880
        %v5897 = vmul.f32 %v5881, %v5881
        %v5898 = vmul.f32 %v5882, %v5882
        %v5899 = vmul.f32 %v5883, %v5883
        %v5900 = vmul.f32 %v5884, %v5884
        %v5901 = vmul.f32 %v5885, %v5885
        %v5902 = vmul.f32 %v5886, %v5886
        %v5903 = vmul.f32 %v5887, %v5887
        %v5904 = vadd.f32 %v5888, %v5889
        %v5905 = vadd.f32 %v5904, %v5890
        %v5906 = vadd.f32 %v5905, %v5891
        %v5907 = vadd.f32 %v5906, %v5892
        %v5908 = vadd.f32 %v5907, %v5893
        %v5909 = vadd.f32 %v5908, %v5894
        %v5910 = vadd.f32 %v5909, %v5895
        %v5911 = vadd.f32 %v5910, %v5896
        %v5912 = vadd.f32 %v5911, %v5897
        %v5913 = vadd.f32 %v5912, %v5898
        %v5914 = vadd.f32 %v5913, %v5899
        %v5915 = vadd.f32 %v5914, %v5900
        %v5916 = vadd.f32 %v5915, %v5901
        %v5917 = vadd.f32 %v5916, %v5902
        %v5918 = vadd.f32 %v5917, %v5903
        %5919 = vadd.xlane.f32.xlu0 %v5918
        %v5920 = vpop.xlane.xlu0 %5919
        %v5921 = vrot.slane %v5920, 4
        %v5922 = vadd.f32 %v5920, %v5921
        %v5923 = vrot.slane %v5922, 2
        %v5924 = vadd.f32 %v5922, %v5923
        %v5925 = vrot.slane %v5924, 1
        %v5926 = vadd.f32 %v5924, %v5925
        %s5927 = vtos %v5926
        %v5928 = vstv %s5927
        %v5929 = vmax.f32 %v5928, 1e-24
        %v5930 = vrsqrt.pop %v5929
        %v5931 = vmul.f32 %v5872, %v5930
        %v5932 = vmul.f32 %v5873, %v5930
        %v5933 = vmul.f32 %v5874, %v5930
        %v5934 = vmul.f32 %v5875, %v5930
        %v5935 = vmul.f32 %v5876, %v5930
        %v5936 = vmul.f32 %v5877, %v5930
        %v5937 = vmul.f32 %v5878, %v5930
        %v5938 = vmul.f32 %v5879, %v5930
        %v5939 = vmul.f32 %v5880, %v5930
        %v5940 = vmul.f32 %v5881, %v5930
        %v5941 = vmul.f32 %v5882, %v5930
        %v5942 = vmul.f32 %v5883, %v5930
        %v5943 = vmul.f32 %v5884, %v5930
        %v5944 = vmul.f32 %v5885, %v5930
        %v5945 = vmul.f32 %v5886, %v5930
        %v5946 = vmul.f32 %v5887, %v5930
        %s5947 = scalar_lea.vmem %s559, 384 [#allocation14]
        %5948 = vst [vmem:[%s5947] sm:$0xff] %v5931
        %5949 = vst [vmem:[%s5947 + $0x8] sm:$0xff] %v5932
        %5950 = vst [vmem:[%s5947 + $0x10] sm:$0xff] %v5933
        %5951 = vst [vmem:[%s5947 + $0x18] sm:$0xff] %v5934
        %5952 = vst [vmem:[%s5947 + $0x20] sm:$0xff] %v5935
        %5953 = vst [vmem:[%s5947 + $0x28] sm:$0xff] %v5936
        %5954 = vst [vmem:[%s5947 + $0x30] sm:$0xff] %v5937
        %5955 = vst [vmem:[%s5947 + $0x38] sm:$0xff] %v5938
        %5956 = vst [vmem:[%s5947 + $0x40] sm:$0xff] %v5939
        %5957 = vst [vmem:[%s5947 + $0x48] sm:$0xff] %v5940
        %5958 = vst [vmem:[%s5947 + $0x50] sm:$0xff] %v5941
        %5959 = vst [vmem:[%s5947 + $0x58] sm:$0xff] %v5942
        %5960 = vst [vmem:[%s5947 + $0x60] sm:$0xff] %v5943
        %5961 = vst [vmem:[%s5947 + $0x68] sm:$0xff] %v5944
        %5962 = vst [vmem:[%s5947 + $0x70] sm:$0xff] %v5945
        %5963 = vst [vmem:[%s5947 + $0x78] sm:$0xff] %v5946
        %s5964 = sand.u32 %s324, 1
        %s5965 = scalar_lea.sflag [#allocation4], %s5964
        %s5966 = sand.u32 %s324, 1
        %s5967 = smul.addr %s5966, 512
        %s5968 = scalar_lea.vmem [#allocation14], %s5967
        // Predicated region
        $region101: #{tpu_custom_call.1} parent=71 // pred_check
          %p5969 = pneg %p334
        $region102: #{tpu_custom_call.1} parent=71 // pred_check_branch
          %5971 = sbr.rel (%p5969) target = $region104
        $region103: #{tpu_custom_call.1} parent=71 // pred_region
          %s5972 = smul.u32 4, %s33
          %s5974 = ssub.s32 8192, 8192
          %5975 = vsyncadd %s5965, %s5974
          %s5976 = smul.addr %s5972, 16
          %s5977 = smul.addr %s5976, 128
          %s5978 = scalar_lea.hbm %s13, %s5977
          %s5979 = sshll.u32 %s5968, 4
          %s5980 = int_to_ptr.vmem [resolvable:$true] %s5979
          %5985 = dma.vmem_to_hbm [thread:$0]  %s5980, 8192, %s5978, %s5965, 256, 256, 16
        $region104: #{tpu_custom_call.1} parent=71 // pred_fallthru
          _
      $region72: #{tpu_custom_call.1} parent=5 // pred_fallthru
        _
      %p5986 = scmp.le.s32.totalorder 2, %s28
      // Predicated region
      $region105: #{tpu_custom_call.1} parent=5 // pred_check
        %p5987 = pneg %p5986
      $region106: #{tpu_custom_call.1} parent=5 // pred_check_branch
        %5989 = sbr.rel (%p5987) target = $region108
      $region107: #{tpu_custom_call.1} parent=5 // pred_region
        %s5990 = ssub.s32 %s28, 2
        // Predicated region
        $region109: #{tpu_custom_call.1} parent=107 // pred_check
          %p5991 = pneg %p340
        $region110: #{tpu_custom_call.1} parent=107 // pred_check_branch
          %5993 = sbr.rel (%p5991) target = $region112
        $region111: #{tpu_custom_call.1} parent=107 // pred_region
          %s5994 = sand.u32 %s325, 1
          %s5995 = scalar_lea.sflag [#allocation4], %s5994
          %s5996 = sand.u32 %s325, 1
          %s5997 = smul.addr %s5996, 512
          %s5998 = scalar_lea.vmem [#allocation14], %s5997
          %5999 = dma.done %s5995, 8192
        $region112: #{tpu_custom_call.1} parent=107 // pred_fallthru
          _
      $region108: #{tpu_custom_call.1} parent=5 // pred_fallthru
        _
    $region6: #{tpu_custom_call.1} parent=1 // loop_footer
      %s32 = sadd.s32 1, %s28
    $region7: #{tpu_custom_call.1} parent=1 // loop_footer_branch
      %27 = sbr.rel target = $region3
    $region8: #{tpu_custom_call.1} parent=1 // loop_exit
      _
    %6000 = vsyncpa [#allocation3], 1
    %s6001 = scalar_lea.sflag [#allocation3], 1
    %6002 = vsyncpa %s6001, 1
    %6003 = vsyncpa [#allocation6], 1
    %6004 = vsyncpa [#allocation9], 1
    %6005 = vsyncpa [#allocation12], 1
    %6006 = vsyncpa [#allocation4], 1
    %s6007 = scalar_lea.sflag [#allocation4], 1
    %6008 = vsyncpa %s6007, 1

</llo_original>
